<compile_context>
chip_gen: v7x
topology: tpu7x:2x2x1
jax: 0.10.0
libtpu: 0.0.40
codegen_flags: <defaults>
</compile_context>

<pallas_src>
import jax
import jax.numpy as jnp
from jax import lax
from jax.experimental import pallas as pl
from jax.experimental.pallas import tpu as pltpu


# ----------------------------------------------------------------------------
# Pallas tiled matmul + fused bias (conv hot path, after im2col)
# ----------------------------------------------------------------------------
def _round_up(x, m):
    return (x + m - 1) // m * m


def _pick_k_tiling(K):
    """Return (Kp, tk): padded reduction length and K-tile size.

    K is only padded to a multiple of 128 (lane/sublane requirement); for deep
    reductions we may pad slightly more so that a 512-deep tile divides Kp and
    the grid stays short."""
    Kp = _round_up(K, 128)
    if Kp <= 1024:
        return Kp, Kp
    for tk in (512, 384, 256):
        if Kp % tk == 0:
            return Kp, tk
    return _round_up(Kp, 512), 512


def _matmul_bias_kernel(a_ref, b_ref, bias_ref, o_ref, acc_ref):
    # Grid = (M tiles, N tiles, K tiles); K is innermost -> accumulate in VMEM.
    @pl.when(pl.program_id(2) == 0)
    def _():
        acc_ref[...] = jnp.zeros_like(acc_ref)

    acc_ref[...] += jnp.dot(a_ref[...], b_ref[...],
                            preferred_element_type=jnp.float32)

    @pl.when(pl.program_id(2) == pl.num_programs(2) - 1)
    def _():
        o_ref[...] = acc_ref[...] + bias_ref[...]


def pallas_matmul_bias(a, b, bias=None, tm_target=256, tn_target=256):
    """a: (M, Ka), b: (K, N) with Ka >= K (a may be pre-padded on K).

    Computes a[:, :K] @ b + bias in bf16 on the MXU with f32 accumulation.
    Returns (M, N) f32."""
    M, Ka = a.shape
    K, N = b.shape
    assert Ka >= K

    Kp, tk = _pick_k_tiling(Ka)
    tm = min(tm_target, _round_up(max(M, 8), 8))
    Mp = _round_up(M, tm)
    tn = min(tn_target, _round_up(max(N, 128), 128))
    Np = _round_up(N, tn)

    a_bf = a.astype(jnp.bfloat16)
    if (Mp, Kp) != (M, Ka):
        a_bf = jnp.pad(a_bf, ((0, Mp - M), (0, Kp - Ka)))
    b_bf = b.astype(jnp.bfloat16)
    if (Kp, Np) != (K, N):
        b_bf = jnp.pad(b_bf, ((0, Kp - K), (0, Np - N)))
    if bias is None:
        bias_p = jnp.zeros((1, Np), jnp.float32)
    else:
        bias_p = jnp.pad(bias.astype(jnp.float32), (0, Np - N)).reshape(1, Np)

    grid = (Mp // tm, Np // tn, Kp // tk)

    out = pl.pallas_call(
        _matmul_bias_kernel,
        out_shape=jax.ShapeDtypeStruct((Mp, Np), jnp.float32),
        grid_spec=pltpu.PrefetchScalarGridSpec(
            num_scalar_prefetch=0,
            grid=grid,
            in_specs=[
                pl.BlockSpec((tm, tk), lambda i, j, k: (i, k)),
                pl.BlockSpec((tk, tn), lambda i, j, k: (k, j)),
                pl.BlockSpec((1, tn), lambda i, j, k: (0, j)),
            ],
            out_specs=pl.BlockSpec((tm, tn), lambda i, j, k: (i, j)),
            scratch_shapes=[pltpu.VMEM((tm, tn), jnp.float32)],
        ),
        compiler_params=pltpu.CompilerParams(
            dimension_semantics=("parallel", "parallel", "arbitrary")),
    )(a_bf, b_bf, bias_p)
    return out[:M, :N]


# ----------------------------------------------------------------------------
# Conv / BN / pooling built on top of the Pallas matmul
# ----------------------------------------------------------------------------
def conv2d(x, w, b=None, stride=1, padding=0):
    """x: (N, H, W, Cin), w: (KH, KW, Cin, Cout). Same semantics as nn.Conv2d.

    stride / padding MUST be static Python ints/tuples (not pytree leaves)."""
    if isinstance(padding, int):
        padding = (padding, padding)
    if isinstance(stride, int):
        stride = (stride, stride)
    KH, KW, Cin, Cout = w.shape
    ph, pw = padding
    sh, sw = stride
    xp = jnp.pad(x, ((0, 0), (ph, ph), (pw, pw), (0, 0)))
    N, Hp, Wp, _ = xp.shape
    OH = (Hp - KH) // sh + 1
    OW = (Wp - KW) // sw + 1

    K = KH * KW * Cin
    Kp, _ = _pick_k_tiling(K)

    # im2col (glue): gather the KH*KW shifted views, channel-last per tap.
    # The K padding is folded into the concatenate so no second pad copy of
    # the (potentially 9x expanded) patch matrix is materialized.
    cols = []
    for i in range(KH):
        for j in range(KW):
            cols.append(xp[:, i:i + (OH - 1) * sh + 1:sh,
                           j:j + (OW - 1) * sw + 1:sw, :])
    if Kp > K:
        cols.append(jnp.zeros((N, OH, OW, Kp - K), x.dtype))
    patches = cols[0] if len(cols) == 1 else jnp.concatenate(cols, axis=-1)
    patches = patches.reshape(N * OH * OW, Kp)

    wmat = w.reshape(K, Cout)
    y = pallas_matmul_bias(patches, wmat, bias=b)   # bias fused in epilogue
    return y.reshape(N, OH, OW, Cout)


def batchnorm(x, gamma, beta, eps=1e-3):
    # PyTorch BatchNorm2d in training mode: per-channel batch stats, biased var.
    mean = jnp.mean(x, axis=(0, 1, 2), keepdims=True)
    var = jnp.var(x, axis=(0, 1, 2), keepdims=True)
    return gamma * (x - mean) * lax.rsqrt(var + eps) + beta


def max_pool_3x3_s2_p1(x):
    # F.max_pool2d(kernel_size=3, stride=2, padding=1) — pads with -inf.
    return lax.reduce_window(
        x, jnp.array(-jnp.inf, x.dtype), lax.max,
        window_dimensions=(1, 3, 3, 1),
        window_strides=(1, 2, 2, 1),
        padding=((0, 0), (1, 1), (1, 1), (0, 0)))


# ----------------------------------------------------------------------------
# Deterministic parameter construction (arrays only — no static config leaves)
# ----------------------------------------------------------------------------
class KeyGen:
    def __init__(self, key):
        self.key = key

    def next(self):
        self.key, sub = jax.random.split(self.key)
        return sub


def init_conv(kg, cin, cout, ksize, bias):
    kh, kw = ksize if isinstance(ksize, tuple) else (ksize, ksize)
    fan_in = cin * kh * kw
    w = jax.random.normal(kg.next(), (kh, kw, cin, cout),
                          jnp.float32) / jnp.sqrt(float(fan_in))
    b = (jax.random.normal(kg.next(), (cout,), jnp.float32) * 0.01
         if bias else None)
    return {"w": w, "b": b}


def init_basic_conv(kg, cin, cout, ksize):
    return {"conv": init_conv(kg, cin, cout, ksize, bias=False),
            "gamma": jnp.ones((cout,), jnp.float32),
            "beta": jnp.zeros((cout,), jnp.float32)}


def basic_conv_fwd(p, x, stride=1, padding=0):
    x = conv2d(x, p["conv"]["w"], p["conv"]["b"], stride, padding)
    x = batchnorm(x, p["gamma"], p["beta"])
    return jax.nn.relu(x)


def init_sep_conv(kg, cin, cout):
    return {"conv_1x1": init_conv(kg, cin, cout, 1, True),
            "conv_d": init_conv(kg, cout, cout, (1, 3), False),
            "conv_w": init_conv(kg, cout, cout, (3, 1), False),
            "conv_3x3": init_conv(kg, cout, cout, 3, True),
            "gamma": jnp.ones((cout,), jnp.float32),
            "beta": jnp.zeros((cout,), jnp.float32)}


def sep_conv_fwd(p, x):
    # Reference sets self.activation = True unconditionally -> ReLU always runs.
    x = jax.nn.relu(x)
    x = conv2d(x, p["conv_1x1"]["w"], p["conv_1x1"]["b"], 1, 0)
    x = conv2d(x, p["conv_d"]["w"], None, 1, (0, 1))
    x = conv2d(x, p["conv_w"]["w"], None, 1, (1, 0))
    x = conv2d(x, p["conv_3x3"]["w"], p["conv_3x3"]["b"], 1, 1)
    return batchnorm(x, p["gamma"], p["beta"])


def init_residual(kg, cin, cout):
    return {"conv_a": init_conv(kg, cin, cout, 1, True),
            "b1": init_sep_conv(kg, cin, cout),
            "b2": init_sep_conv(kg, cout, cout),
            "res_gamma": jnp.ones((cout,), jnp.float32),
            "res_beta": jnp.zeros((cout,), jnp.float32)}


def residual_fwd(p, x):
    residual = conv2d(x, p["conv_a"]["w"], p["conv_a"]["b"], 2, 0)
    # Reference builds a *fresh* nn.BatchNorm2d in forward (training mode):
    # batch statistics, gamma=1, beta=0.
    residual = batchnorm(residual, p["res_gamma"], p["res_beta"])
    y = sep_conv_fwd(p["b1"], x)
    y = sep_conv_fwd(p["b2"], y)
    y = max_pool_3x3_s2_p1(y)
    return jnp.concatenate([y, residual], axis=-1)


def init_entry_stem(key, in_channels):
    kg = KeyGen(key)
    return {"c5": init_basic_conv(kg, in_channels, 32, 3),
            "c6": init_basic_conv(kg, 32, 64, 3),
            "r7": init_residual(kg, 64, 128),
            "r8": init_residual(kg, 256, 256),
            "r9": init_residual(kg, 512, 728),
            "c10": init_basic_conv(kg, 1456, 728, 3)}


def entry_stem_fwd(params, x_nchw):
    x = jnp.transpose(x_nchw, (0, 2, 3, 1))  # NCHW -> NHWC
    x = basic_conv_fwd(params["c5"], x, stride=2, padding=0)
    x = basic_conv_fwd(params["c6"], x, stride=1, padding=1)
    x = residual_fwd(params["r7"], x)
    x = residual_fwd(params["r8"], x)
    x = residual_fwd(params["r9"], x)
    x = basic_conv_fwd(params["c10"], x, stride=1, padding=1)
    return jnp.transpose(x, (0, 3, 1, 2))  # NHWC -> NCHW


# TODO(synk): BatchNorm batch-statistics, ReLU and the 3x3 max-pool are left to
# XLA (memory-bound glue); only the conv matmuls run as Pallas MXU kernels.

# ----------------------------------------------------------------------------
if __name__ == "__main__":
    key = jax.random.PRNGKey(0)
    pkey, xkey = jax.random.split(key)

    in_channels = 4
    x = jax.random.normal(xkey, (2, in_channels, 16, 16), jnp.float32)
    params = init_entry_stem(pkey, in_channels)

    fwd = jax.jit(entry_stem_fwd)
    out = fwd(params, x)
    jax.block_until_ready(out)

    assert out.shape == (2, 728, 1, 1), out.shape
    assert out.dtype == jnp.float32
    assert bool(jnp.all(jnp.isfinite(out)))
    print("KERNEL_OK")
</pallas_src>

<mosaic_0001>
module attributes {stable_mosaic.version = 11 : i64} {
  func.func @_matmul_bias_kernel(%arg0: i32, %arg1: i32, %arg2: i32, %arg3: memref<104x128xbf16, #tpu.memory_space<vmem>>, %arg4: memref<128x128xbf16, #tpu.memory_space<vmem>>, %arg5: memref<1x128xf32, #tpu.memory_space<vmem>>, %arg6: memref<104x128xf32, #tpu.memory_space<vmem>>, %arg7: memref<104x128xf32, #tpu.memory_space<vmem>>) attributes {dimension_semantics = [#tpu.dimension_semantics<parallel>, #tpu.dimension_semantics<parallel>, #tpu.dimension_semantics<arbitrary>], iteration_bounds = array<i64: 1, 1, 1>, scalar_prefetch = 0 : i64, scratch_operands = 1 : i64, tpu.core_type = #tpu.core_type<tc>, window_params = [{transform_indices = @transform_0, window_bounds = array<i64: 104, 128>}, {transform_indices = @transform_1, window_bounds = array<i64: 128, 128>}, {transform_indices = @transform_2, window_bounds = array<i64: 1, 128>}, {transform_indices = @transform_3, window_bounds = array<i64: 104, 128>}]} {
    %c0_i32 = arith.constant 0 : i32
    %0 = arith.cmpi eq, %arg2, %c0_i32 : i32
    %1 = arith.extui %0 : i1 to i32
    %c0_i32_0 = arith.constant 0 : i32
    %2 = arith.cmpi ne, %1, %c0_i32_0 : i32
    scf.if %2 {
      %cst_10 = arith.constant 0.000000e+00 : f32
      %12 = vector.broadcast %cst_10 : f32 to vector<104x128xf32>
      %c0_11 = arith.constant 0 : index
      %c0_12 = arith.constant 0 : index
      %13 = vector.load %arg7[%c0_11, %c0_12] : memref<104x128xf32, #tpu.memory_space<vmem>>, vector<104x128xf32>
      tpu.vector_store %arg7[%c0_11, %c0_12], %12 {strides = array<i32>} : memref<104x128xf32, #tpu.memory_space<vmem>>, vector<104x128xf32>,
    } else {
    }
    %c0 = arith.constant 0 : index
    %c0_1 = arith.constant 0 : index
    %3 = vector.load %arg7[%c0, %c0_1] : memref<104x128xf32, #tpu.memory_space<vmem>>, vector<104x128xf32>
    %c0_2 = arith.constant 0 : index
    %c0_3 = arith.constant 0 : index
    %4 = vector.load %arg3[%c0_2, %c0_3] : memref<104x128xbf16, #tpu.memory_space<vmem>>, vector<104x128xbf16>
    %c0_4 = arith.constant 0 : index
    %c0_5 = arith.constant 0 : index
    %5 = vector.load %arg4[%c0_4, %c0_5] : memref<128x128xbf16, #tpu.memory_space<vmem>>, vector<128x128xbf16>
    %cst = arith.constant dense<0.000000e+00> : vector<104x128xf32>
    %6 = tpu.matmul %4, %5, %cst {dimension_numbers = #tpu.dot_dimension_numbers<[1], [0], [0], [1], [0, 0, 1, 1], [], []>} : vector<104x128xbf16>, vector<128x128xbf16>, vector<104x128xf32> -> vector<104x128xf32>
    %7 = arith.addf %3, %6 : vector<104x128xf32>
    %c0_6 = arith.constant 0 : index
    %c0_7 = arith.constant 0 : index
    %8 = vector.load %arg7[%c0_6, %c0_7] : memref<104x128xf32, #tpu.memory_space<vmem>>, vector<104x128xf32>
    tpu.vector_store %arg7[%c0_6, %c0_7], %7 {strides = array<i32>} : memref<104x128xf32, #tpu.memory_space<vmem>>, vector<104x128xf32>,
    %c0_i32_8 = arith.constant 0 : i32
    %9 = arith.cmpi eq, %arg2, %c0_i32_8 : i32
    %10 = arith.extui %9 : i1 to i32
    %c0_i32_9 = arith.constant 0 : i32
    %11 = arith.cmpi ne, %10, %c0_i32_9 : i32
    scf.if %11 {
      %c0_10 = arith.constant 0 : index
      %c0_11 = arith.constant 0 : index
      %12 = vector.load %arg7[%c0_10, %c0_11] : memref<104x128xf32, #tpu.memory_space<vmem>>, vector<104x128xf32>
      %c0_12 = arith.constant 0 : index
      %c0_13 = arith.constant 0 : index
      %13 = vector.load %arg5[%c0_12, %c0_13] : memref<1x128xf32, #tpu.memory_space<vmem>>, vector<1x128xf32>
      %14 = vector.broadcast %13 : vector<1x128xf32> to vector<104x128xf32>
      %15 = arith.addf %12, %14 : vector<104x128xf32>
      %c0_14 = arith.constant 0 : index
      %c0_15 = arith.constant 0 : index
      %16 = vector.load %arg6[%c0_14, %c0_15] : memref<104x128xf32, #tpu.memory_space<vmem>>, vector<104x128xf32>
      tpu.vector_store %arg6[%c0_14, %c0_15], %15 {strides = array<i32>} : memref<104x128xf32, #tpu.memory_space<vmem>>, vector<104x128xf32>,
    } else {
    }
    return
  }
  func.func @transform_0(%arg0: i32, %arg1: i32, %arg2: i32) -> (i32, i32) {
    %c0_i32 = arith.constant 0 : i32
    return %arg0, %arg2 : i32, i32
  }
  func.func @transform_1(%arg0: i32, %arg1: i32, %arg2: i32) -> (i32, i32) {
    %c0_i32 = arith.constant 0 : i32
    return %arg2, %arg1 : i32, i32
  }
  func.func @transform_2(%arg0: i32, %arg1: i32, %arg2: i32) -> (i32, i32) {
    %c0_i32 = arith.constant 0 : i32
    %c0_i32_0 = arith.constant 0 : i32
    return %c0_i32, %arg1 : i32, i32
  }
  func.func @transform_3(%arg0: i32, %arg1: i32, %arg2: i32) -> (i32, i32) {
    %c0_i32 = arith.constant 0 : i32
    return %arg0, %arg1 : i32, i32
  }
}

module attributes {stable_mosaic.version = 11 : i64} {
  func.func @_matmul_bias_kernel(%arg0: i32, %arg1: i32, %arg2: i32, %arg3: memref<104x384xbf16, #tpu.memory_space<vmem>>, %arg4: memref<384x128xbf16, #tpu.memory_space<vmem>>, %arg5: memref<1x128xf32, #tpu.memory_space<vmem>>, %arg6: memref<104x128xf32, #tpu.memory_space<vmem>>, %arg7: memref<104x128xf32, #tpu.memory_space<vmem>>) attributes {dimension_semantics = [#tpu.dimension_semantics<parallel>, #tpu.dimension_semantics<parallel>, #tpu.dimension_semantics<arbitrary>], iteration_bounds = array<i64: 1, 1, 1>, scalar_prefetch = 0 : i64, scratch_operands = 1 : i64, tpu.core_type = #tpu.core_type<tc>, window_params = [{transform_indices = @transform_0, window_bounds = array<i64: 104, 384>}, {transform_indices = @transform_1, window_bounds = array<i64: 384, 128>}, {transform_indices = @transform_2, window_bounds = array<i64: 1, 128>}, {transform_indices = @transform_3, window_bounds = array<i64: 104, 128>}]} {
    %c0_i32 = arith.constant 0 : i32
    %0 = arith.cmpi eq, %arg2, %c0_i32 : i32
    %1 = arith.extui %0 : i1 to i32
    %c0_i32_0 = arith.constant 0 : i32
    %2 = arith.cmpi ne, %1, %c0_i32_0 : i32
    scf.if %2 {
      %cst_10 = arith.constant 0.000000e+00 : f32
      %12 = vector.broadcast %cst_10 : f32 to vector<104x128xf32>
      %c0_11 = arith.constant 0 : index
      %c0_12 = arith.constant 0 : index
      %13 = vector.load %arg7[%c0_11, %c0_12] : memref<104x128xf32, #tpu.memory_space<vmem>>, vector<104x128xf32>
      tpu.vector_store %arg7[%c0_11, %c0_12], %12 {strides = array<i32>} : memref<104x128xf32, #tpu.memory_space<vmem>>, vector<104x128xf32>,
    } else {
    }
    %c0 = arith.constant 0 : index
    %c0_1 = arith.constant 0 : index
    %3 = vector.load %arg7[%c0, %c0_1] : memref<104x128xf32, #tpu.memory_space<vmem>>, vector<104x128xf32>
    %c0_2 = arith.constant 0 : index
    %c0_3 = arith.constant 0 : index
    %4 = vector.load %arg3[%c0_2, %c0_3] : memref<104x384xbf16, #tpu.memory_space<vmem>>, vector<104x384xbf16>
    %c0_4 = arith.constant 0 : index
    %c0_5 = arith.constant 0 : index
    %5 = vector.load %arg4[%c0_4, %c0_5] : memref<384x128xbf16, #tpu.memory_space<vmem>>, vector<384x128xbf16>
    %cst = arith.constant dense<0.000000e+00> : vector<104x128xf32>
    %6 = tpu.matmul %4, %5, %cst {dimension_numbers = #tpu.dot_dimension_numbers<[1], [0], [0], [1], [0, 0, 1, 1], [], []>} : vector<104x384xbf16>, vector<384x128xbf16>, vector<104x128xf32> -> vector<104x128xf32>
    %7 = arith.addf %3, %6 : vector<104x128xf32>
    %c0_6 = arith.constant 0 : index
    %c0_7 = arith.constant 0 : index
    %8 = vector.load %arg7[%c0_6, %c0_7] : memref<104x128xf32, #tpu.memory_space<vmem>>, vector<104x128xf32>
    tpu.vector_store %arg7[%c0_6, %c0_7], %7 {strides = array<i32>} : memref<104x128xf32, #tpu.memory_space<vmem>>, vector<104x128xf32>,
    %c0_i32_8 = arith.constant 0 : i32
    %9 = arith.cmpi eq, %arg2, %c0_i32_8 : i32
    %10 = arith.extui %9 : i1 to i32
    %c0_i32_9 = arith.constant 0 : i32
    %11 = arith.cmpi ne, %10, %c0_i32_9 : i32
    scf.if %11 {
      %c0_10 = arith.constant 0 : index
      %c0_11 = arith.constant 0 : index
      %12 = vector.load %arg7[%c0_10, %c0_11] : memref<104x128xf32, #tpu.memory_space<vmem>>, vector<104x128xf32>
      %c0_12 = arith.constant 0 : index
      %c0_13 = arith.constant 0 : index
      %13 = vector.load %arg5[%c0_12, %c0_13] : memref<1x128xf32, #tpu.memory_space<vmem>>, vector<1x128xf32>
      %14 = vector.broadcast %13 : vector<1x128xf32> to vector<104x128xf32>
      %15 = arith.addf %12, %14 : vector<104x128xf32>
      %c0_14 = arith.constant 0 : index
      %c0_15 = arith.constant 0 : index
      %16 = vector.load %arg6[%c0_14, %c0_15] : memref<104x128xf32, #tpu.memory_space<vmem>>, vector<104x128xf32>
      tpu.vector_store %arg6[%c0_14, %c0_15], %15 {strides = array<i32>} : memref<104x128xf32, #tpu.memory_space<vmem>>, vector<104x128xf32>,
    } else {
    }
    return
  }
  func.func @transform_0(%arg0: i32, %arg1: i32, %arg2: i32) -> (i32, i32) {
    %c0_i32 = arith.constant 0 : i32
    return %arg0, %arg2 : i32, i32
  }
  func.func @transform_1(%arg0: i32, %arg1: i32, %arg2: i32) -> (i32, i32) {
    %c0_i32 = arith.constant 0 : i32
    return %arg2, %arg1 : i32, i32
  }
  func.func @transform_2(%arg0: i32, %arg1: i32, %arg2: i32) -> (i32, i32) {
    %c0_i32 = arith.constant 0 : i32
    %c0_i32_0 = arith.constant 0 : i32
    return %c0_i32, %arg1 : i32, i32
  }
  func.func @transform_3(%arg0: i32, %arg1: i32, %arg2: i32) -> (i32, i32) {
    %c0_i32 = arith.constant 0 : i32
    return %arg0, %arg1 : i32, i32
  }
}

module attributes {stable_mosaic.version = 11 : i64} {
  func.func @_matmul_bias_kernel(%arg0: i32, %arg1: i32, %arg2: i32, %arg3: memref<32x128xbf16, #tpu.memory_space<vmem>>, %arg4: memref<128x128xbf16, #tpu.memory_space<vmem>>, %arg5: memref<1x128xf32, #tpu.memory_space<vmem>>, %arg6: memref<32x128xf32, #tpu.memory_space<vmem>>, %arg7: memref<32x128xf32, #tpu.memory_space<vmem>>) attributes {dimension_semantics = [#tpu.dimension_semantics<parallel>, #tpu.dimension_semantics<parallel>, #tpu.dimension_semantics<arbitrary>], iteration_bounds = array<i64: 1, 1, 1>, scalar_prefetch = 0 : i64, scratch_operands = 1 : i64, tpu.core_type = #tpu.core_type<tc>, window_params = [{transform_indices = @transform_0, window_bounds = array<i64: 32, 128>}, {transform_indices = @transform_1, window_bounds = array<i64: 128, 128>}, {transform_indices = @transform_2, window_bounds = array<i64: 1, 128>}, {transform_indices = @transform_3, window_bounds = array<i64: 32, 128>}]} {
    %c0_i32 = arith.constant 0 : i32
    %0 = arith.cmpi eq, %arg2, %c0_i32 : i32
    %1 = arith.extui %0 : i1 to i32
    %c0_i32_0 = arith.constant 0 : i32
    %2 = arith.cmpi ne, %1, %c0_i32_0 : i32
    scf.if %2 {
      %cst_10 = arith.constant 0.000000e+00 : f32
      %12 = vector.broadcast %cst_10 : f32 to vector<32x128xf32>
      %c0_11 = arith.constant 0 : index
      %c0_12 = arith.constant 0 : index
      %13 = vector.load %arg7[%c0_11, %c0_12] : memref<32x128xf32, #tpu.memory_space<vmem>>, vector<32x128xf32>
      tpu.vector_store %arg7[%c0_11, %c0_12], %12 {strides = array<i32>} : memref<32x128xf32, #tpu.memory_space<vmem>>, vector<32x128xf32>,
    } else {
    }
    %c0 = arith.constant 0 : index
    %c0_1 = arith.constant 0 : index
    %3 = vector.load %arg7[%c0, %c0_1] : memref<32x128xf32, #tpu.memory_space<vmem>>, vector<32x128xf32>
    %c0_2 = arith.constant 0 : index
    %c0_3 = arith.constant 0 : index
    %4 = vector.load %arg3[%c0_2, %c0_3] : memref<32x128xbf16, #tpu.memory_space<vmem>>, vector<32x128xbf16>
    %c0_4 = arith.constant 0 : index
    %c0_5 = arith.constant 0 : index
    %5 = vector.load %arg4[%c0_4, %c0_5] : memref<128x128xbf16, #tpu.memory_space<vmem>>, vector<128x128xbf16>
    %cst = arith.constant dense<0.000000e+00> : vector<32x128xf32>
    %6 = tpu.matmul %4, %5, %cst {dimension_numbers = #tpu.dot_dimension_numbers<[1], [0], [0], [1], [0, 0, 1, 1], [], []>} : vector<32x128xbf16>, vector<128x128xbf16>, vector<32x128xf32> -> vector<32x128xf32>
    %7 = arith.addf %3, %6 : vector<32x128xf32>
    %c0_6 = arith.constant 0 : index
    %c0_7 = arith.constant 0 : index
    %8 = vector.load %arg7[%c0_6, %c0_7] : memref<32x128xf32, #tpu.memory_space<vmem>>, vector<32x128xf32>
    tpu.vector_store %arg7[%c0_6, %c0_7], %7 {strides = array<i32>} : memref<32x128xf32, #tpu.memory_space<vmem>>, vector<32x128xf32>,
    %c0_i32_8 = arith.constant 0 : i32
    %9 = arith.cmpi eq, %arg2, %c0_i32_8 : i32
    %10 = arith.extui %9 : i1 to i32
    %c0_i32_9 = arith.constant 0 : i32
    %11 = arith.cmpi ne, %10, %c0_i32_9 : i32
    scf.if %11 {
      %c0_10 = arith.constant 0 : index
      %c0_11 = arith.constant 0 : index
      %12 = vector.load %arg7[%c0_10, %c0_11] : memref<32x128xf32, #tpu.memory_space<vmem>>, vector<32x128xf32>
      %c0_12 = arith.constant 0 : index
      %c0_13 = arith.constant 0 : index
      %13 = vector.load %arg5[%c0_12, %c0_13] : memref<1x128xf32, #tpu.memory_space<vmem>>, vector<1x128xf32>
      %14 = vector.broadcast %13 : vector<1x128xf32> to vector<32x128xf32>
      %15 = arith.addf %12, %14 : vector<32x128xf32>
      %c0_14 = arith.constant 0 : index
      %c0_15 = arith.constant 0 : index
      %16 = vector.load %arg6[%c0_14, %c0_15] : memref<32x128xf32, #tpu.memory_space<vmem>>, vector<32x128xf32>
      tpu.vector_store %arg6[%c0_14, %c0_15], %15 {strides = array<i32>} : memref<32x128xf32, #tpu.memory_space<vmem>>, vector<32x128xf32>,
    } else {
    }
    return
  }
  func.func @transform_0(%arg0: i32, %arg1: i32, %arg2: i32) -> (i32, i32) {
    %c0_i32 = arith.constant 0 : i32
    return %arg0, %arg2 : i32, i32
  }
  func.func @transform_1(%arg0: i32, %arg1: i32, %arg2: i32) -> (i32, i32) {
    %c0_i32 = arith.constant 0 : i32
    return %arg2, %arg1 : i32, i32
  }
  func.func @transform_2(%arg0: i32, %arg1: i32, %arg2: i32) -> (i32, i32) {
    %c0_i32 = arith.constant 0 : i32
    %c0_i32_0 = arith.constant 0 : i32
    return %c0_i32, %arg1 : i32, i32
  }
  func.func @transform_3(%arg0: i32, %arg1: i32, %arg2: i32) -> (i32, i32) {
    %c0_i32 = arith.constant 0 : i32
    return %arg0, %arg1 : i32, i32
  }
}

module attributes {stable_mosaic.version = 11 : i64} {
  func.func @_matmul_bias_kernel(%arg0: i32, %arg1: i32, %arg2: i32, %arg3: memref<104x384xbf16, #tpu.memory_space<vmem>>, %arg4: memref<384x128xbf16, #tpu.memory_space<vmem>>, %arg5: memref<1x128xf32, #tpu.memory_space<vmem>>, %arg6: memref<104x128xf32, #tpu.memory_space<vmem>>, %arg7: memref<104x128xf32, #tpu.memory_space<vmem>>) attributes {dimension_semantics = [#tpu.dimension_semantics<parallel>, #tpu.dimension_semantics<parallel>, #tpu.dimension_semantics<arbitrary>], iteration_bounds = array<i64: 1, 1, 3>, scalar_prefetch = 0 : i64, scratch_operands = 1 : i64, tpu.core_type = #tpu.core_type<tc>, window_params = [{transform_indices = @transform_0, window_bounds = array<i64: 104, 384>}, {transform_indices = @transform_1, window_bounds = array<i64: 384, 128>}, {transform_indices = @transform_2, window_bounds = array<i64: 1, 128>}, {transform_indices = @transform_3, window_bounds = array<i64: 104, 128>}]} {
    %c0_i32 = arith.constant 0 : i32
    %0 = arith.cmpi eq, %arg2, %c0_i32 : i32
    %1 = arith.extui %0 : i1 to i32
    %c0_i32_0 = arith.constant 0 : i32
    %2 = arith.cmpi ne, %1, %c0_i32_0 : i32
    scf.if %2 {
      %cst_9 = arith.constant 0.000000e+00 : f32
      %12 = vector.broadcast %cst_9 : f32 to vector<104x128xf32>
      %c0_10 = arith.constant 0 : index
      %c0_11 = arith.constant 0 : index
      %13 = vector.load %arg7[%c0_10, %c0_11] : memref<104x128xf32, #tpu.memory_space<vmem>>, vector<104x128xf32>
      tpu.vector_store %arg7[%c0_10, %c0_11], %12 {strides = array<i32>} : memref<104x128xf32, #tpu.memory_space<vmem>>, vector<104x128xf32>,
    } else {
    }
    %c0 = arith.constant 0 : index
    %c0_1 = arith.constant 0 : index
    %3 = vector.load %arg7[%c0, %c0_1] : memref<104x128xf32, #tpu.memory_space<vmem>>, vector<104x128xf32>
    %c0_2 = arith.constant 0 : index
    %c0_3 = arith.constant 0 : index
    %4 = vector.load %arg3[%c0_2, %c0_3] : memref<104x384xbf16, #tpu.memory_space<vmem>>, vector<104x384xbf16>
    %c0_4 = arith.constant 0 : index
    %c0_5 = arith.constant 0 : index
    %5 = vector.load %arg4[%c0_4, %c0_5] : memref<384x128xbf16, #tpu.memory_space<vmem>>, vector<384x128xbf16>
    %cst = arith.constant dense<0.000000e+00> : vector<104x128xf32>
    %6 = tpu.matmul %4, %5, %cst {dimension_numbers = #tpu.dot_dimension_numbers<[1], [0], [0], [1], [0, 0, 1, 1], [], []>} : vector<104x384xbf16>, vector<384x128xbf16>, vector<104x128xf32> -> vector<104x128xf32>
    %7 = arith.addf %3, %6 : vector<104x128xf32>
    %c0_6 = arith.constant 0 : index
    %c0_7 = arith.constant 0 : index
    %8 = vector.load %arg7[%c0_6, %c0_7] : memref<104x128xf32, #tpu.memory_space<vmem>>, vector<104x128xf32>
    tpu.vector_store %arg7[%c0_6, %c0_7], %7 {strides = array<i32>} : memref<104x128xf32, #tpu.memory_space<vmem>>, vector<104x128xf32>,
    %c2_i32 = arith.constant 2 : i32
    %9 = arith.cmpi eq, %arg2, %c2_i32 : i32
    %10 = arith.extui %9 : i1 to i32
    %c0_i32_8 = arith.constant 0 : i32
    %11 = arith.cmpi ne, %10, %c0_i32_8 : i32
    scf.if %11 {
      %c0_9 = arith.constant 0 : index
      %c0_10 = arith.constant 0 : index
      %12 = vector.load %arg7[%c0_9, %c0_10] : memref<104x128xf32, #tpu.memory_space<vmem>>, vector<104x128xf32>
      %c0_11 = arith.constant 0 : index
      %c0_12 = arith.constant 0 : index
      %13 = vector.load %arg5[%c0_11, %c0_12] : memref<1x128xf32, #tpu.memory_space<vmem>>, vector<1x128xf32>
      %14 = vector.broadcast %13 : vector<1x128xf32> to vector<104x128xf32>
      %15 = arith.addf %12, %14 : vector<104x128xf32>
      %c0_13 = arith.constant 0 : index
      %c0_14 = arith.constant 0 : index
      %16 = vector.load %arg6[%c0_13, %c0_14] : memref<104x128xf32, #tpu.memory_space<vmem>>, vector<104x128xf32>
      tpu.vector_store %arg6[%c0_13, %c0_14], %15 {strides = array<i32>} : memref<104x128xf32, #tpu.memory_space<vmem>>, vector<104x128xf32>,
    } else {
    }
    return
  }
  func.func @transform_0(%arg0: i32, %arg1: i32, %arg2: i32) -> (i32, i32) {
    %c0_i32 = arith.constant 0 : i32
    return %arg0, %arg2 : i32, i32
  }
  func.func @transform_1(%arg0: i32, %arg1: i32, %arg2: i32) -> (i32, i32) {
    %c0_i32 = arith.constant 0 : i32
    return %arg2, %arg1 : i32, i32
  }
  func.func @transform_2(%arg0: i32, %arg1: i32, %arg2: i32) -> (i32, i32) {
    %c0_i32 = arith.constant 0 : i32
    %c0_i32_0 = arith.constant 0 : i32
    return %c0_i32, %arg1 : i32, i32
  }
  func.func @transform_3(%arg0: i32, %arg1: i32, %arg2: i32) -> (i32, i32) {
    %c0_i32 = arith.constant 0 : i32
    return %arg0, %arg1 : i32, i32
  }
}

module attributes {stable_mosaic.version = 11 : i64} {
  func.func @_matmul_bias_kernel(%arg0: i32, %arg1: i32, %arg2: i32, %arg3: memref<32x256xbf16, #tpu.memory_space<vmem>>, %arg4: memref<256x256xbf16, #tpu.memory_space<vmem>>, %arg5: memref<1x256xf32, #tpu.memory_space<vmem>>, %arg6: memref<32x256xf32, #tpu.memory_space<vmem>>, %arg7: memref<32x256xf32, #tpu.memory_space<vmem>>) attributes {dimension_semantics = [#tpu.dimension_semantics<parallel>, #tpu.dimension_semantics<parallel>, #tpu.dimension_semantics<arbitrary>], iteration_bounds = array<i64: 1, 1, 1>, scalar_prefetch = 0 : i64, scratch_operands = 1 : i64, tpu.core_type = #tpu.core_type<tc>, window_params = [{transform_indices = @transform_0, window_bounds = array<i64: 32, 256>}, {transform_indices = @transform_1, window_bounds = array<i64: 256, 256>}, {transform_indices = @transform_2, window_bounds = array<i64: 1, 256>}, {transform_indices = @transform_3, window_bounds = array<i64: 32, 256>}]} {
    %c0_i32 = arith.constant 0 : i32
    %0 = arith.cmpi eq, %arg2, %c0_i32 : i32
    %1 = arith.extui %0 : i1 to i32
    %c0_i32_0 = arith.constant 0 : i32
    %2 = arith.cmpi ne, %1, %c0_i32_0 : i32
    scf.if %2 {
      %cst_10 = arith.constant 0.000000e+00 : f32
      %12 = vector.broadcast %cst_10 : f32 to vector<32x256xf32>
      %c0_11 = arith.constant 0 : index
      %c0_12 = arith.constant 0 : index
      %13 = vector.load %arg7[%c0_11, %c0_12] : memref<32x256xf32, #tpu.memory_space<vmem>>, vector<32x256xf32>
      tpu.vector_store %arg7[%c0_11, %c0_12], %12 {strides = array<i32>} : memref<32x256xf32, #tpu.memory_space<vmem>>, vector<32x256xf32>,
    } else {
    }
    %c0 = arith.constant 0 : index
    %c0_1 = arith.constant 0 : index
    %3 = vector.load %arg7[%c0, %c0_1] : memref<32x256xf32, #tpu.memory_space<vmem>>, vector<32x256xf32>
    %c0_2 = arith.constant 0 : index
    %c0_3 = arith.constant 0 : index
    %4 = vector.load %arg3[%c0_2, %c0_3] : memref<32x256xbf16, #tpu.memory_space<vmem>>, vector<32x256xbf16>
    %c0_4 = arith.constant 0 : index
    %c0_5 = arith.constant 0 : index
    %5 = vector.load %arg4[%c0_4, %c0_5] : memref<256x256xbf16, #tpu.memory_space<vmem>>, vector<256x256xbf16>
    %cst = arith.constant dense<0.000000e+00> : vector<32x256xf32>
    %6 = tpu.matmul %4, %5, %cst {dimension_numbers = #tpu.dot_dimension_numbers<[1], [0], [0], [1], [0, 0, 1, 1], [], []>} : vector<32x256xbf16>, vector<256x256xbf16>, vector<32x256xf32> -> vector<32x256xf32>
    %7 = arith.addf %3, %6 : vector<32x256xf32>
    %c0_6 = arith.constant 0 : index
    %c0_7 = arith.constant 0 : index
    %8 = vector.load %arg7[%c0_6, %c0_7] : memref<32x256xf32, #tpu.memory_space<vmem>>, vector<32x256xf32>
    tpu.vector_store %arg7[%c0_6, %c0_7], %7 {strides = array<i32>} : memref<32x256xf32, #tpu.memory_space<vmem>>, vector<32x256xf32>,
    %c0_i32_8 = arith.constant 0 : i32
    %9 = arith.cmpi eq, %arg2, %c0_i32_8 : i32
    %10 = arith.extui %9 : i1 to i32
    %c0_i32_9 = arith.constant 0 : i32
    %11 = arith.cmpi ne, %10, %c0_i32_9 : i32
    scf.if %11 {
      %c0_10 = arith.constant 0 : index
      %c0_11 = arith.constant 0 : index
      %12 = vector.load %arg7[%c0_10, %c0_11] : memref<32x256xf32, #tpu.memory_space<vmem>>, vector<32x256xf32>
      %c0_12 = arith.constant 0 : index
      %c0_13 = arith.constant 0 : index
      %13 = vector.load %arg5[%c0_12, %c0_13] : memref<1x256xf32, #tpu.memory_space<vmem>>, vector<1x256xf32>
      %14 = vector.broadcast %13 : vector<1x256xf32> to vector<32x256xf32>
      %15 = arith.addf %12, %14 : vector<32x256xf32>
      %c0_14 = arith.constant 0 : index
      %c0_15 = arith.constant 0 : index
      %16 = vector.load %arg6[%c0_14, %c0_15] : memref<32x256xf32, #tpu.memory_space<vmem>>, vector<32x256xf32>
      tpu.vector_store %arg6[%c0_14, %c0_15], %15 {strides = array<i32>} : memref<32x256xf32, #tpu.memory_space<vmem>>, vector<32x256xf32>,
    } else {
    }
    return
  }
  func.func @transform_0(%arg0: i32, %arg1: i32, %arg2: i32) -> (i32, i32) {
    %c0_i32 = arith.constant 0 : i32
    return %arg0, %arg2 : i32, i32
  }
  func.func @transform_1(%arg0: i32, %arg1: i32, %arg2: i32) -> (i32, i32) {
    %c0_i32 = arith.constant 0 : i32
    return %arg2, %arg1 : i32, i32
  }
  func.func @transform_2(%arg0: i32, %arg1: i32, %arg2: i32) -> (i32, i32) {
    %c0_i32 = arith.constant 0 : i32
    %c0_i32_0 = arith.constant 0 : i32
    return %c0_i32, %arg1 : i32, i32
  }
  func.func @transform_3(%arg0: i32, %arg1: i32, %arg2: i32) -> (i32, i32) {
    %c0_i32 = arith.constant 0 : i32
    return %arg0, %arg1 : i32, i32
  }
}

module attributes {stable_mosaic.version = 11 : i64} {
  func.func @_matmul_bias_kernel(%arg0: i32, %arg1: i32, %arg2: i32, %arg3: memref<8x256xbf16, #tpu.memory_space<vmem>>, %arg4: memref<256x256xbf16, #tpu.memory_space<vmem>>, %arg5: memref<1x256xf32, #tpu.memory_space<vmem>>, %arg6: memref<8x256xf32, #tpu.memory_space<vmem>>, %arg7: memref<8x256xf32, #tpu.memory_space<vmem>>) attributes {dimension_semantics = [#tpu.dimension_semantics<parallel>, #tpu.dimension_semantics<parallel>, #tpu.dimension_semantics<arbitrary>], iteration_bounds = array<i64: 1, 1, 1>, scalar_prefetch = 0 : i64, scratch_operands = 1 : i64, tpu.core_type = #tpu.core_type<tc>, window_params = [{transform_indices = @transform_0, window_bounds = array<i64: 8, 256>}, {transform_indices = @transform_1, window_bounds = array<i64: 256, 256>}, {transform_indices = @transform_2, window_bounds = array<i64: 1, 256>}, {transform_indices = @transform_3, window_bounds = array<i64: 8, 256>}]} {
    %c0_i32 = arith.constant 0 : i32
    %0 = arith.cmpi eq, %arg2, %c0_i32 : i32
    %1 = arith.extui %0 : i1 to i32
    %c0_i32_0 = arith.constant 0 : i32
    %2 = arith.cmpi ne, %1, %c0_i32_0 : i32
    scf.if %2 {
      %cst_10 = arith.constant 0.000000e+00 : f32
      %12 = vector.broadcast %cst_10 : f32 to vector<8x256xf32>
      %c0_11 = arith.constant 0 : index
      %c0_12 = arith.constant 0 : index
      %13 = vector.load %arg7[%c0_11, %c0_12] : memref<8x256xf32, #tpu.memory_space<vmem>>, vector<8x256xf32>
      tpu.vector_store %arg7[%c0_11, %c0_12], %12 {strides = array<i32>} : memref<8x256xf32, #tpu.memory_space<vmem>>, vector<8x256xf32>,
    } else {
    }
    %c0 = arith.constant 0 : index
    %c0_1 = arith.constant 0 : index
    %3 = vector.load %arg7[%c0, %c0_1] : memref<8x256xf32, #tpu.memory_space<vmem>>, vector<8x256xf32>
    %c0_2 = arith.constant 0 : index
    %c0_3 = arith.constant 0 : index
    %4 = vector.load %arg3[%c0_2, %c0_3] : memref<8x256xbf16, #tpu.memory_space<vmem>>, vector<8x256xbf16>
    %c0_4 = arith.constant 0 : index
    %c0_5 = arith.constant 0 : index
    %5 = vector.load %arg4[%c0_4, %c0_5] : memref<256x256xbf16, #tpu.memory_space<vmem>>, vector<256x256xbf16>
    %cst = arith.constant dense<0.000000e+00> : vector<8x256xf32>
    %6 = tpu.matmul %4, %5, %cst {dimension_numbers = #tpu.dot_dimension_numbers<[1], [0], [0], [1], [0, 0, 1, 1], [], []>} : vector<8x256xbf16>, vector<256x256xbf16>, vector<8x256xf32> -> vector<8x256xf32>
    %7 = arith.addf %3, %6 : vector<8x256xf32>
    %c0_6 = arith.constant 0 : index
    %c0_7 = arith.constant 0 : index
    %8 = vector.load %arg7[%c0_6, %c0_7] : memref<8x256xf32, #tpu.memory_space<vmem>>, vector<8x256xf32>
    tpu.vector_store %arg7[%c0_6, %c0_7], %7 {strides = array<i32>} : memref<8x256xf32, #tpu.memory_space<vmem>>, vector<8x256xf32>,
    %c0_i32_8 = arith.constant 0 : i32
    %9 = arith.cmpi eq, %arg2, %c0_i32_8 : i32
    %10 = arith.extui %9 : i1 to i32
    %c0_i32_9 = arith.constant 0 : i32
    %11 = arith.cmpi ne, %10, %c0_i32_9 : i32
    scf.if %11 {
      %c0_10 = arith.constant 0 : index
      %c0_11 = arith.constant 0 : index
      %12 = vector.load %arg7[%c0_10, %c0_11] : memref<8x256xf32, #tpu.memory_space<vmem>>, vector<8x256xf32>
      %c0_12 = arith.constant 0 : index
      %c0_13 = arith.constant 0 : index
      %13 = vector.load %arg5[%c0_12, %c0_13] : memref<1x256xf32, #tpu.memory_space<vmem>>, vector<1x256xf32>
      %14 = vector.broadcast %13 : vector<1x256xf32> to vector<8x256xf32>
      %15 = arith.addf %12, %14 : vector<8x256xf32>
      %c0_14 = arith.constant 0 : index
      %c0_15 = arith.constant 0 : index
      %16 = vector.load %arg6[%c0_14, %c0_15] : memref<8x256xf32, #tpu.memory_space<vmem>>, vector<8x256xf32>
      tpu.vector_store %arg6[%c0_14, %c0_15], %15 {strides = array<i32>} : memref<8x256xf32, #tpu.memory_space<vmem>>, vector<8x256xf32>,
    } else {
    }
    return
  }
  func.func @transform_0(%arg0: i32, %arg1: i32, %arg2: i32) -> (i32, i32) {
    %c0_i32 = arith.constant 0 : i32
    return %arg0, %arg2 : i32, i32
  }
  func.func @transform_1(%arg0: i32, %arg1: i32, %arg2: i32) -> (i32, i32) {
    %c0_i32 = arith.constant 0 : i32
    return %arg2, %arg1 : i32, i32
  }
  func.func @transform_2(%arg0: i32, %arg1: i32, %arg2: i32) -> (i32, i32) {
    %c0_i32 = arith.constant 0 : i32
    %c0_i32_0 = arith.constant 0 : i32
    return %c0_i32, %arg1 : i32, i32
  }
  func.func @transform_3(%arg0: i32, %arg1: i32, %arg2: i32) -> (i32, i32) {
    %c0_i32 = arith.constant 0 : i32
    return %arg0, %arg1 : i32, i32
  }
}

module attributes {stable_mosaic.version = 11 : i64} {
  func.func @_matmul_bias_kernel(%arg0: i32, %arg1: i32, %arg2: i32, %arg3: memref<32x768xbf16, #tpu.memory_space<vmem>>, %arg4: memref<768x256xbf16, #tpu.memory_space<vmem>>, %arg5: memref<1x256xf32, #tpu.memory_space<vmem>>, %arg6: memref<32x256xf32, #tpu.memory_space<vmem>>, %arg7: memref<32x256xf32, #tpu.memory_space<vmem>>) attributes {dimension_semantics = [#tpu.dimension_semantics<parallel>, #tpu.dimension_semantics<parallel>, #tpu.dimension_semantics<arbitrary>], iteration_bounds = array<i64: 1, 1, 1>, scalar_prefetch = 0 : i64, scratch_operands = 1 : i64, tpu.core_type = #tpu.core_type<tc>, window_params = [{transform_indices = @transform_0, window_bounds = array<i64: 32, 768>}, {transform_indices = @transform_1, window_bounds = array<i64: 768, 256>}, {transform_indices = @transform_2, window_bounds = array<i64: 1, 256>}, {transform_indices = @transform_3, window_bounds = array<i64: 32, 256>}]} {
    %c0_i32 = arith.constant 0 : i32
    %0 = arith.cmpi eq, %arg2, %c0_i32 : i32
    %1 = arith.extui %0 : i1 to i32
    %c0_i32_0 = arith.constant 0 : i32
    %2 = arith.cmpi ne, %1, %c0_i32_0 : i32
    scf.if %2 {
      %cst_10 = arith.constant 0.000000e+00 : f32
      %12 = vector.broadcast %cst_10 : f32 to vector<32x256xf32>
      %c0_11 = arith.constant 0 : index
      %c0_12 = arith.constant 0 : index
      %13 = vector.load %arg7[%c0_11, %c0_12] : memref<32x256xf32, #tpu.memory_space<vmem>>, vector<32x256xf32>
      tpu.vector_store %arg7[%c0_11, %c0_12], %12 {strides = array<i32>} : memref<32x256xf32, #tpu.memory_space<vmem>>, vector<32x256xf32>,
    } else {
    }
    %c0 = arith.constant 0 : index
    %c0_1 = arith.constant 0 : index
    %3 = vector.load %arg7[%c0, %c0_1] : memref<32x256xf32, #tpu.memory_space<vmem>>, vector<32x256xf32>
    %c0_2 = arith.constant 0 : index
    %c0_3 = arith.constant 0 : index
    %4 = vector.load %arg3[%c0_2, %c0_3] : memref<32x768xbf16, #tpu.memory_space<vmem>>, vector<32x768xbf16>
    %c0_4 = arith.constant 0 : index
    %c0_5 = arith.constant 0 : index
    %5 = vector.load %arg4[%c0_4, %c0_5] : memref<768x256xbf16, #tpu.memory_space<vmem>>, vector<768x256xbf16>
    %cst = arith.constant dense<0.000000e+00> : vector<32x256xf32>
    %6 = tpu.matmul %4, %5, %cst {dimension_numbers = #tpu.dot_dimension_numbers<[1], [0], [0], [1], [0, 0, 1, 1], [], []>} : vector<32x768xbf16>, vector<768x256xbf16>, vector<32x256xf32> -> vector<32x256xf32>
    %7 = arith.addf %3, %6 : vector<32x256xf32>
    %c0_6 = arith.constant 0 : index
    %c0_7 = arith.constant 0 : index
    %8 = vector.load %arg7[%c0_6, %c0_7] : memref<32x256xf32, #tpu.memory_space<vmem>>, vector<32x256xf32>
    tpu.vector_store %arg7[%c0_6, %c0_7], %7 {strides = array<i32>} : memref<32x256xf32, #tpu.memory_space<vmem>>, vector<32x256xf32>,
    %c0_i32_8 = arith.constant 0 : i32
    %9 = arith.cmpi eq, %arg2, %c0_i32_8 : i32
    %10 = arith.extui %9 : i1 to i32
    %c0_i32_9 = arith.constant 0 : i32
    %11 = arith.cmpi ne, %10, %c0_i32_9 : i32
    scf.if %11 {
      %c0_10 = arith.constant 0 : index
      %c0_11 = arith.constant 0 : index
      %12 = vector.load %arg7[%c0_10, %c0_11] : memref<32x256xf32, #tpu.memory_space<vmem>>, vector<32x256xf32>
      %c0_12 = arith.constant 0 : index
      %c0_13 = arith.constant 0 : index
      %13 = vector.load %arg5[%c0_12, %c0_13] : memref<1x256xf32, #tpu.memory_space<vmem>>, vector<1x256xf32>
      %14 = vector.broadcast %13 : vector<1x256xf32> to vector<32x256xf32>
      %15 = arith.addf %12, %14 : vector<32x256xf32>
      %c0_14 = arith.constant 0 : index
      %c0_15 = arith.constant 0 : index
      %16 = vector.load %arg6[%c0_14, %c0_15] : memref<32x256xf32, #tpu.memory_space<vmem>>, vector<32x256xf32>
      tpu.vector_store %arg6[%c0_14, %c0_15], %15 {strides = array<i32>} : memref<32x256xf32, #tpu.memory_space<vmem>>, vector<32x256xf32>,
    } else {
    }
    return
  }
  func.func @transform_0(%arg0: i32, %arg1: i32, %arg2: i32) -> (i32, i32) {
    %c0_i32 = arith.constant 0 : i32
    return %arg0, %arg2 : i32, i32
  }
  func.func @transform_1(%arg0: i32, %arg1: i32, %arg2: i32) -> (i32, i32) {
    %c0_i32 = arith.constant 0 : i32
    return %arg2, %arg1 : i32, i32
  }
  func.func @transform_2(%arg0: i32, %arg1: i32, %arg2: i32) -> (i32, i32) {
    %c0_i32 = arith.constant 0 : i32
    %c0_i32_0 = arith.constant 0 : i32
    return %c0_i32, %arg1 : i32, i32
  }
  func.func @transform_3(%arg0: i32, %arg1: i32, %arg2: i32) -> (i32, i32) {
    %c0_i32 = arith.constant 0 : i32
    return %arg0, %arg1 : i32, i32
  }
}

module attributes {stable_mosaic.version = 11 : i64} {
  func.func @_matmul_bias_kernel(%arg0: i32, %arg1: i32, %arg2: i32, %arg3: memref<32x384xbf16, #tpu.memory_space<vmem>>, %arg4: memref<384x256xbf16, #tpu.memory_space<vmem>>, %arg5: memref<1x256xf32, #tpu.memory_space<vmem>>, %arg6: memref<32x256xf32, #tpu.memory_space<vmem>>, %arg7: memref<32x256xf32, #tpu.memory_space<vmem>>) attributes {dimension_semantics = [#tpu.dimension_semantics<parallel>, #tpu.dimension_semantics<parallel>, #tpu.dimension_semantics<arbitrary>], iteration_bounds = array<i64: 1, 1, 6>, scalar_prefetch = 0 : i64, scratch_operands = 1 : i64, tpu.core_type = #tpu.core_type<tc>, window_params = [{transform_indices = @transform_0, window_bounds = array<i64: 32, 384>}, {transform_indices = @transform_1, window_bounds = array<i64: 384, 256>}, {transform_indices = @transform_2, window_bounds = array<i64: 1, 256>}, {transform_indices = @transform_3, window_bounds = array<i64: 32, 256>}]} {
    %c0_i32 = arith.constant 0 : i32
    %0 = arith.cmpi eq, %arg2, %c0_i32 : i32
    %1 = arith.extui %0 : i1 to i32
    %c0_i32_0 = arith.constant 0 : i32
    %2 = arith.cmpi ne, %1, %c0_i32_0 : i32
    scf.if %2 {
      %cst_9 = arith.constant 0.000000e+00 : f32
      %12 = vector.broadcast %cst_9 : f32 to vector<32x256xf32>
      %c0_10 = arith.constant 0 : index
      %c0_11 = arith.constant 0 : index
      %13 = vector.load %arg7[%c0_10, %c0_11] : memref<32x256xf32, #tpu.memory_space<vmem>>, vector<32x256xf32>
      tpu.vector_store %arg7[%c0_10, %c0_11], %12 {strides = array<i32>} : memref<32x256xf32, #tpu.memory_space<vmem>>, vector<32x256xf32>,
    } else {
    }
    %c0 = arith.constant 0 : index
    %c0_1 = arith.constant 0 : index
    %3 = vector.load %arg7[%c0, %c0_1] : memref<32x256xf32, #tpu.memory_space<vmem>>, vector<32x256xf32>
    %c0_2 = arith.constant 0 : index
    %c0_3 = arith.constant 0 : index
    %4 = vector.load %arg3[%c0_2, %c0_3] : memref<32x384xbf16, #tpu.memory_space<vmem>>, vector<32x384xbf16>
    %c0_4 = arith.constant 0 : index
    %c0_5 = arith.constant 0 : index
    %5 = vector.load %arg4[%c0_4, %c0_5] : memref<384x256xbf16, #tpu.memory_space<vmem>>, vector<384x256xbf16>
    %cst = arith.constant dense<0.000000e+00> : vector<32x256xf32>
    %6 = tpu.matmul %4, %5, %cst {dimension_numbers = #tpu.dot_dimension_numbers<[1], [0], [0], [1], [0, 0, 1, 1], [], []>} : vector<32x384xbf16>, vector<384x256xbf16>, vector<32x256xf32> -> vector<32x256xf32>
    %7 = arith.addf %3, %6 : vector<32x256xf32>
    %c0_6 = arith.constant 0 : index
    %c0_7 = arith.constant 0 : index
    %8 = vector.load %arg7[%c0_6, %c0_7] : memref<32x256xf32, #tpu.memory_space<vmem>>, vector<32x256xf32>
    tpu.vector_store %arg7[%c0_6, %c0_7], %7 {strides = array<i32>} : memref<32x256xf32, #tpu.memory_space<vmem>>, vector<32x256xf32>,
    %c5_i32 = arith.constant 5 : i32
    %9 = arith.cmpi eq, %arg2, %c5_i32 : i32
    %10 = arith.extui %9 : i1 to i32
    %c0_i32_8 = arith.constant 0 : i32
    %11 = arith.cmpi ne, %10, %c0_i32_8 : i32
    scf.if %11 {
      %c0_9 = arith.constant 0 : index
      %c0_10 = arith.constant 0 : index
      %12 = vector.load %arg7[%c0_9, %c0_10] : memref<32x256xf32, #tpu.memory_space<vmem>>, vector<32x256xf32>
      %c0_11 = arith.constant 0 : index
      %c0_12 = arith.constant 0 : index
      %13 = vector.load %arg5[%c0_11, %c0_12] : memref<1x256xf32, #tpu.memory_space<vmem>>, vector<1x256xf32>
      %14 = vector.broadcast %13 : vector<1x256xf32> to vector<32x256xf32>
      %15 = arith.addf %12, %14 : vector<32x256xf32>
      %c0_13 = arith.constant 0 : index
      %c0_14 = arith.constant 0 : index
      %16 = vector.load %arg6[%c0_13, %c0_14] : memref<32x256xf32, #tpu.memory_space<vmem>>, vector<32x256xf32>
      tpu.vector_store %arg6[%c0_13, %c0_14], %15 {strides = array<i32>} : memref<32x256xf32, #tpu.memory_space<vmem>>, vector<32x256xf32>,
    } else {
    }
    return
  }
  func.func @transform_0(%arg0: i32, %arg1: i32, %arg2: i32) -> (i32, i32) {
    %c0_i32 = arith.constant 0 : i32
    return %arg0, %arg2 : i32, i32
  }
  func.func @transform_1(%arg0: i32, %arg1: i32, %arg2: i32) -> (i32, i32) {
    %c0_i32 = arith.constant 0 : i32
    return %arg2, %arg1 : i32, i32
  }
  func.func @transform_2(%arg0: i32, %arg1: i32, %arg2: i32) -> (i32, i32) {
    %c0_i32 = arith.constant 0 : i32
    %c0_i32_0 = arith.constant 0 : i32
    return %c0_i32, %arg1 : i32, i32
  }
  func.func @transform_3(%arg0: i32, %arg1: i32, %arg2: i32) -> (i32, i32) {
    %c0_i32 = arith.constant 0 : i32
    return %arg0, %arg1 : i32, i32
  }
}

module attributes {stable_mosaic.version = 11 : i64} {
  func.func @_matmul_bias_kernel(%arg0: i32, %arg1: i32, %arg2: i32, %arg3: memref<8x512xbf16, #tpu.memory_space<vmem>>, %arg4: memref<512x256xbf16, #tpu.memory_space<vmem>>, %arg5: memref<1x256xf32, #tpu.memory_space<vmem>>, %arg6: memref<8x256xf32, #tpu.memory_space<vmem>>, %arg7: memref<8x256xf32, #tpu.memory_space<vmem>>) attributes {dimension_semantics = [#tpu.dimension_semantics<parallel>, #tpu.dimension_semantics<parallel>, #tpu.dimension_semantics<arbitrary>], iteration_bounds = array<i64: 1, 3, 1>, scalar_prefetch = 0 : i64, scratch_operands = 1 : i64, tpu.core_type = #tpu.core_type<tc>, window_params = [{transform_indices = @transform_0, window_bounds = array<i64: 8, 512>}, {transform_indices = @transform_1, window_bounds = array<i64: 512, 256>}, {transform_indices = @transform_2, window_bounds = array<i64: 1, 256>}, {transform_indices = @transform_3, window_bounds = array<i64: 8, 256>}]} {
    %c0_i32 = arith.constant 0 : i32
    %0 = arith.cmpi eq, %arg2, %c0_i32 : i32
    %1 = arith.extui %0 : i1 to i32
    %c0_i32_0 = arith.constant 0 : i32
    %2 = arith.cmpi ne, %1, %c0_i32_0 : i32
    scf.if %2 {
      %cst_10 = arith.constant 0.000000e+00 : f32
      %12 = vector.broadcast %cst_10 : f32 to vector<8x256xf32>
      %c0_11 = arith.constant 0 : index
      %c0_12 = arith.constant 0 : index
      %13 = vector.load %arg7[%c0_11, %c0_12] : memref<8x256xf32, #tpu.memory_space<vmem>>, vector<8x256xf32>
      tpu.vector_store %arg7[%c0_11, %c0_12], %12 {strides = array<i32>} : memref<8x256xf32, #tpu.memory_space<vmem>>, vector<8x256xf32>,
    } else {
    }
    %c0 = arith.constant 0 : index
    %c0_1 = arith.constant 0 : index
    %3 = vector.load %arg7[%c0, %c0_1] : memref<8x256xf32, #tpu.memory_space<vmem>>, vector<8x256xf32>
    %c0_2 = arith.constant 0 : index
    %c0_3 = arith.constant 0 : index
    %4 = vector.load %arg3[%c0_2, %c0_3] : memref<8x512xbf16, #tpu.memory_space<vmem>>, vector<8x512xbf16>
    %c0_4 = arith.constant 0 : index
    %c0_5 = arith.constant 0 : index
    %5 = vector.load %arg4[%c0_4, %c0_5] : memref<512x256xbf16, #tpu.memory_space<vmem>>, vector<512x256xbf16>
    %cst = arith.constant dense<0.000000e+00> : vector<8x256xf32>
    %6 = tpu.matmul %4, %5, %cst {dimension_numbers = #tpu.dot_dimension_numbers<[1], [0], [0], [1], [0, 0, 1, 1], [], []>} : vector<8x512xbf16>, vector<512x256xbf16>, vector<8x256xf32> -> vector<8x256xf32>
    %7 = arith.addf %3, %6 : vector<8x256xf32>
    %c0_6 = arith.constant 0 : index
    %c0_7 = arith.constant 0 : index
    %8 = vector.load %arg7[%c0_6, %c0_7] : memref<8x256xf32, #tpu.memory_space<vmem>>, vector<8x256xf32>
    tpu.vector_store %arg7[%c0_6, %c0_7], %7 {strides = array<i32>} : memref<8x256xf32, #tpu.memory_space<vmem>>, vector<8x256xf32>,
    %c0_i32_8 = arith.constant 0 : i32
    %9 = arith.cmpi eq, %arg2, %c0_i32_8 : i32
    %10 = arith.extui %9 : i1 to i32
    %c0_i32_9 = arith.constant 0 : i32
    %11 = arith.cmpi ne, %10, %c0_i32_9 : i32
    scf.if %11 {
      %c0_10 = arith.constant 0 : index
      %c0_11 = arith.constant 0 : index
      %12 = vector.load %arg7[%c0_10, %c0_11] : memref<8x256xf32, #tpu.memory_space<vmem>>, vector<8x256xf32>
      %c0_12 = arith.constant 0 : index
      %c0_13 = arith.constant 0 : index
      %13 = vector.load %arg5[%c0_12, %c0_13] : memref<1x256xf32, #tpu.memory_space<vmem>>, vector<1x256xf32>
      %14 = vector.broadcast %13 : vector<1x256xf32> to vector<8x256xf32>
      %15 = arith.addf %12, %14 : vector<8x256xf32>
      %c0_14 = arith.constant 0 : index
      %c0_15 = arith.constant 0 : index
      %16 = vector.load %arg6[%c0_14, %c0_15] : memref<8x256xf32, #tpu.memory_space<vmem>>, vector<8x256xf32>
      tpu.vector_store %arg6[%c0_14, %c0_15], %15 {strides = array<i32>} : memref<8x256xf32, #tpu.memory_space<vmem>>, vector<8x256xf32>,
    } else {
    }
    return
  }
  func.func @transform_0(%arg0: i32, %arg1: i32, %arg2: i32) -> (i32, i32) {
    %c0_i32 = arith.constant 0 : i32
    return %arg0, %arg2 : i32, i32
  }
  func.func @transform_1(%arg0: i32, %arg1: i32, %arg2: i32) -> (i32, i32) {
    %c0_i32 = arith.constant 0 : i32
    return %arg2, %arg1 : i32, i32
  }
  func.func @transform_2(%arg0: i32, %arg1: i32, %arg2: i32) -> (i32, i32) {
    %c0_i32 = arith.constant 0 : i32
    %c0_i32_0 = arith.constant 0 : i32
    return %c0_i32, %arg1 : i32, i32
  }
  func.func @transform_3(%arg0: i32, %arg1: i32, %arg2: i32) -> (i32, i32) {
    %c0_i32 = arith.constant 0 : i32
    return %arg0, %arg1 : i32, i32
  }
}

module attributes {stable_mosaic.version = 11 : i64} {
  func.func @_matmul_bias_kernel(%arg0: i32, %arg1: i32, %arg2: i32, %arg3: memref<8x384xbf16, #tpu.memory_space<vmem>>, %arg4: memref<384x256xbf16, #tpu.memory_space<vmem>>, %arg5: memref<1x256xf32, #tpu.memory_space<vmem>>, %arg6: memref<8x256xf32, #tpu.memory_space<vmem>>, %arg7: memref<8x256xf32, #tpu.memory_space<vmem>>) attributes {dimension_semantics = [#tpu.dimension_semantics<parallel>, #tpu.dimension_semantics<parallel>, #tpu.dimension_semantics<arbitrary>], iteration_bounds = array<i64: 1, 3, 6>, scalar_prefetch = 0 : i64, scratch_operands = 1 : i64, tpu.core_type = #tpu.core_type<tc>, window_params = [{transform_indices = @transform_0, window_bounds = array<i64: 8, 384>}, {transform_indices = @transform_1, window_bounds = array<i64: 384, 256>}, {transform_indices = @transform_2, window_bounds = array<i64: 1, 256>}, {transform_indices = @transform_3, window_bounds = array<i64: 8, 256>}]} {
    %c0_i32 = arith.constant 0 : i32
    %0 = arith.cmpi eq, %arg2, %c0_i32 : i32
    %1 = arith.extui %0 : i1 to i32
    %c0_i32_0 = arith.constant 0 : i32
    %2 = arith.cmpi ne, %1, %c0_i32_0 : i32
    scf.if %2 {
      %cst_9 = arith.constant 0.000000e+00 : f32
      %12 = vector.broadcast %cst_9 : f32 to vector<8x256xf32>
      %c0_10 = arith.constant 0 : index
      %c0_11 = arith.constant 0 : index
      %13 = vector.load %arg7[%c0_10, %c0_11] : memref<8x256xf32, #tpu.memory_space<vmem>>, vector<8x256xf32>
      tpu.vector_store %arg7[%c0_10, %c0_11], %12 {strides = array<i32>} : memref<8x256xf32, #tpu.memory_space<vmem>>, vector<8x256xf32>,
    } else {
    }
    %c0 = arith.constant 0 : index
    %c0_1 = arith.constant 0 : index
    %3 = vector.load %arg7[%c0, %c0_1] : memref<8x256xf32, #tpu.memory_space<vmem>>, vector<8x256xf32>
    %c0_2 = arith.constant 0 : index
    %c0_3 = arith.constant 0 : index
    %4 = vector.load %arg3[%c0_2, %c0_3] : memref<8x384xbf16, #tpu.memory_space<vmem>>, vector<8x384xbf16>
    %c0_4 = arith.constant 0 : index
    %c0_5 = arith.constant 0 : index
    %5 = vector.load %arg4[%c0_4, %c0_5] : memref<384x256xbf16, #tpu.memory_space<vmem>>, vector<384x256xbf16>
    %cst = arith.constant dense<0.000000e+00> : vector<8x256xf32>
    %6 = tpu.matmul %4, %5, %cst {dimension_numbers = #tpu.dot_dimension_numbers<[1], [0], [0], [1], [0, 0, 1, 1], [], []>} : vector<8x384xbf16>, vector<384x256xbf16>, vector<8x256xf32> -> vector<8x256xf32>
    %7 = arith.addf %3, %6 : vector<8x256xf32>
    %c0_6 = arith.constant 0 : index
    %c0_7 = arith.constant 0 : index
    %8 = vector.load %arg7[%c0_6, %c0_7] : memref<8x256xf32, #tpu.memory_space<vmem>>, vector<8x256xf32>
    tpu.vector_store %arg7[%c0_6, %c0_7], %7 {strides = array<i32>} : memref<8x256xf32, #tpu.memory_space<vmem>>, vector<8x256xf32>,
    %c5_i32 = arith.constant 5 : i32
    %9 = arith.cmpi eq, %arg2, %c5_i32 : i32
    %10 = arith.extui %9 : i1 to i32
    %c0_i32_8 = arith.constant 0 : i32
    %11 = arith.cmpi ne, %10, %c0_i32_8 : i32
    scf.if %11 {
      %c0_9 = arith.constant 0 : index
      %c0_10 = arith.constant 0 : index
      %12 = vector.load %arg7[%c0_9, %c0_10] : memref<8x256xf32, #tpu.memory_space<vmem>>, vector<8x256xf32>
      %c0_11 = arith.constant 0 : index
      %c0_12 = arith.constant 0 : index
      %13 = vector.load %arg5[%c0_11, %c0_12] : memref<1x256xf32, #tpu.memory_space<vmem>>, vector<1x256xf32>
      %14 = vector.broadcast %13 : vector<1x256xf32> to vector<8x256xf32>
      %15 = arith.addf %12, %14 : vector<8x256xf32>
      %c0_13 = arith.constant 0 : index
      %c0_14 = arith.constant 0 : index
      %16 = vector.load %arg6[%c0_13, %c0_14] : memref<8x256xf32, #tpu.memory_space<vmem>>, vector<8x256xf32>
      tpu.vector_store %arg6[%c0_13, %c0_14], %15 {strides = array<i32>} : memref<8x256xf32, #tpu.memory_space<vmem>>, vector<8x256xf32>,
    } else {
    }
    return
  }
  func.func @transform_0(%arg0: i32, %arg1: i32, %arg2: i32) -> (i32, i32) {
    %c0_i32 = arith.constant 0 : i32
    return %arg0, %arg2 : i32, i32
  }
  func.func @transform_1(%arg0: i32, %arg1: i32, %arg2: i32) -> (i32, i32) {
    %c0_i32 = arith.constant 0 : i32
    return %arg2, %arg1 : i32, i32
  }
  func.func @transform_2(%arg0: i32, %arg1: i32, %arg2: i32) -> (i32, i32) {
    %c0_i32 = arith.constant 0 : i32
    %c0_i32_0 = arith.constant 0 : i32
    return %c0_i32, %arg1 : i32, i32
  }
  func.func @transform_3(%arg0: i32, %arg1: i32, %arg2: i32) -> (i32, i32) {
    %c0_i32 = arith.constant 0 : i32
    return %arg0, %arg1 : i32, i32
  }
}

module attributes {stable_mosaic.version = 11 : i64} {
  func.func @_matmul_bias_kernel(%arg0: i32, %arg1: i32, %arg2: i32, %arg3: memref<8x512xbf16, #tpu.memory_space<vmem>>, %arg4: memref<512x256xbf16, #tpu.memory_space<vmem>>, %arg5: memref<1x256xf32, #tpu.memory_space<vmem>>, %arg6: memref<8x256xf32, #tpu.memory_space<vmem>>, %arg7: memref<8x256xf32, #tpu.memory_space<vmem>>) attributes {dimension_semantics = [#tpu.dimension_semantics<parallel>, #tpu.dimension_semantics<parallel>, #tpu.dimension_semantics<arbitrary>], iteration_bounds = array<i64: 1, 3, 13>, scalar_prefetch = 0 : i64, scratch_operands = 1 : i64, tpu.core_type = #tpu.core_type<tc>, window_params = [{transform_indices = @transform_0, window_bounds = array<i64: 8, 512>}, {transform_indices = @transform_1, window_bounds = array<i64: 512, 256>}, {transform_indices = @transform_2, window_bounds = array<i64: 1, 256>}, {transform_indices = @transform_3, window_bounds = array<i64: 8, 256>}]} {
    %c0_i32 = arith.constant 0 : i32
    %0 = arith.cmpi eq, %arg2, %c0_i32 : i32
    %1 = arith.extui %0 : i1 to i32
    %c0_i32_0 = arith.constant 0 : i32
    %2 = arith.cmpi ne, %1, %c0_i32_0 : i32
    scf.if %2 {
      %cst_9 = arith.constant 0.000000e+00 : f32
      %12 = vector.broadcast %cst_9 : f32 to vector<8x256xf32>
      %c0_10 = arith.constant 0 : index
      %c0_11 = arith.constant 0 : index
      %13 = vector.load %arg7[%c0_10, %c0_11] : memref<8x256xf32, #tpu.memory_space<vmem>>, vector<8x256xf32>
      tpu.vector_store %arg7[%c0_10, %c0_11], %12 {strides = array<i32>} : memref<8x256xf32, #tpu.memory_space<vmem>>, vector<8x256xf32>,
    } else {
    }
    %c0 = arith.constant 0 : index
    %c0_1 = arith.constant 0 : index
    %3 = vector.load %arg7[%c0, %c0_1] : memref<8x256xf32, #tpu.memory_space<vmem>>, vector<8x256xf32>
    %c0_2 = arith.constant 0 : index
    %c0_3 = arith.constant 0 : index
    %4 = vector.load %arg3[%c0_2, %c0_3] : memref<8x512xbf16, #tpu.memory_space<vmem>>, vector<8x512xbf16>
    %c0_4 = arith.constant 0 : index
    %c0_5 = arith.constant 0 : index
    %5 = vector.load %arg4[%c0_4, %c0_5] : memref<512x256xbf16, #tpu.memory_space<vmem>>, vector<512x256xbf16>
    %cst = arith.constant dense<0.000000e+00> : vector<8x256xf32>
    %6 = tpu.matmul %4, %5, %cst {dimension_numbers = #tpu.dot_dimension_numbers<[1], [0], [0], [1], [0, 0, 1, 1], [], []>} : vector<8x512xbf16>, vector<512x256xbf16>, vector<8x256xf32> -> vector<8x256xf32>
    %7 = arith.addf %3, %6 : vector<8x256xf32>
    %c0_6 = arith.constant 0 : index
    %c0_7 = arith.constant 0 : index
    %8 = vector.load %arg7[%c0_6, %c0_7] : memref<8x256xf32, #tpu.memory_space<vmem>>, vector<8x256xf32>
    tpu.vector_store %arg7[%c0_6, %c0_7], %7 {strides = array<i32>} : memref<8x256xf32, #tpu.memory_space<vmem>>, vector<8x256xf32>,
    %c12_i32 = arith.constant 12 : i32
    %9 = arith.cmpi eq, %arg2, %c12_i32 : i32
    %10 = arith.extui %9 : i1 to i32
    %c0_i32_8 = arith.constant 0 : i32
    %11 = arith.cmpi ne, %10, %c0_i32_8 : i32
    scf.if %11 {
      %c0_9 = arith.constant 0 : index
      %c0_10 = arith.constant 0 : index
      %12 = vector.load %arg7[%c0_9, %c0_10] : memref<8x256xf32, #tpu.memory_space<vmem>>, vector<8x256xf32>
      %c0_11 = arith.constant 0 : index
      %c0_12 = arith.constant 0 : index
      %13 = vector.load %arg5[%c0_11, %c0_12] : memref<1x256xf32, #tpu.memory_space<vmem>>, vector<1x256xf32>
      %14 = vector.broadcast %13 : vector<1x256xf32> to vector<8x256xf32>
      %15 = arith.addf %12, %14 : vector<8x256xf32>
      %c0_13 = arith.constant 0 : index
      %c0_14 = arith.constant 0 : index
      %16 = vector.load %arg6[%c0_13, %c0_14] : memref<8x256xf32, #tpu.memory_space<vmem>>, vector<8x256xf32>
      tpu.vector_store %arg6[%c0_13, %c0_14], %15 {strides = array<i32>} : memref<8x256xf32, #tpu.memory_space<vmem>>, vector<8x256xf32>,
    } else {
    }
    return
  }
  func.func @transform_0(%arg0: i32, %arg1: i32, %arg2: i32) -> (i32, i32) {
    %c0_i32 = arith.constant 0 : i32
    return %arg0, %arg2 : i32, i32
  }
  func.func @transform_1(%arg0: i32, %arg1: i32, %arg2: i32) -> (i32, i32) {
    %c0_i32 = arith.constant 0 : i32
    return %arg2, %arg1 : i32, i32
  }
  func.func @transform_2(%arg0: i32, %arg1: i32, %arg2: i32) -> (i32, i32) {
    %c0_i32 = arith.constant 0 : i32
    %c0_i32_0 = arith.constant 0 : i32
    return %c0_i32, %arg1 : i32, i32
  }
  func.func @transform_3(%arg0: i32, %arg1: i32, %arg2: i32) -> (i32, i32) {
    %c0_i32 = arith.constant 0 : i32
    return %arg0, %arg1 : i32, i32
  }
}

module attributes {stable_mosaic.version = 11 : i64} {
  func.func @_matmul_bias_kernel(%arg0: i32, %arg1: i32, %arg2: i32, %arg3: memref<8x768xbf16, #tpu.memory_space<vmem>>, %arg4: memref<768x256xbf16, #tpu.memory_space<vmem>>, %arg5: memref<1x256xf32, #tpu.memory_space<vmem>>, %arg6: memref<8x256xf32, #tpu.memory_space<vmem>>, %arg7: memref<8x256xf32, #tpu.memory_space<vmem>>) attributes {dimension_semantics = [#tpu.dimension_semantics<parallel>, #tpu.dimension_semantics<parallel>, #tpu.dimension_semantics<arbitrary>], iteration_bounds = array<i64: 1, 3, 1>, scalar_prefetch = 0 : i64, scratch_operands = 1 : i64, tpu.core_type = #tpu.core_type<tc>, window_params = [{transform_indices = @transform_0, window_bounds = array<i64: 8, 768>}, {transform_indices = @transform_1, window_bounds = array<i64: 768, 256>}, {transform_indices = @transform_2, window_bounds = array<i64: 1, 256>}, {transform_indices = @transform_3, window_bounds = array<i64: 8, 256>}]} {
    %c0_i32 = arith.constant 0 : i32
    %0 = arith.cmpi eq, %arg2, %c0_i32 : i32
    %1 = arith.extui %0 : i1 to i32
    %c0_i32_0 = arith.constant 0 : i32
    %2 = arith.cmpi ne, %1, %c0_i32_0 : i32
    scf.if %2 {
      %cst_10 = arith.constant 0.000000e+00 : f32
      %12 = vector.broadcast %cst_10 : f32 to vector<8x256xf32>
      %c0_11 = arith.constant 0 : index
      %c0_12 = arith.constant 0 : index
      %13 = vector.load %arg7[%c0_11, %c0_12] : memref<8x256xf32, #tpu.memory_space<vmem>>, vector<8x256xf32>
      tpu.vector_store %arg7[%c0_11, %c0_12], %12 {strides = array<i32>} : memref<8x256xf32, #tpu.memory_space<vmem>>, vector<8x256xf32>,
    } else {
    }
    %c0 = arith.constant 0 : index
    %c0_1 = arith.constant 0 : index
    %3 = vector.load %arg7[%c0, %c0_1] : memref<8x256xf32, #tpu.memory_space<vmem>>, vector<8x256xf32>
    %c0_2 = arith.constant 0 : index
    %c0_3 = arith.constant 0 : index
    %4 = vector.load %arg3[%c0_2, %c0_3] : memref<8x768xbf16, #tpu.memory_space<vmem>>, vector<8x768xbf16>
    %c0_4 = arith.constant 0 : index
    %c0_5 = arith.constant 0 : index
    %5 = vector.load %arg4[%c0_4, %c0_5] : memref<768x256xbf16, #tpu.memory_space<vmem>>, vector<768x256xbf16>
    %cst = arith.constant dense<0.000000e+00> : vector<8x256xf32>
    %6 = tpu.matmul %4, %5, %cst {dimension_numbers = #tpu.dot_dimension_numbers<[1], [0], [0], [1], [0, 0, 1, 1], [], []>} : vector<8x768xbf16>, vector<768x256xbf16>, vector<8x256xf32> -> vector<8x256xf32>
    %7 = arith.addf %3, %6 : vector<8x256xf32>
    %c0_6 = arith.constant 0 : index
    %c0_7 = arith.constant 0 : index
    %8 = vector.load %arg7[%c0_6, %c0_7] : memref<8x256xf32, #tpu.memory_space<vmem>>, vector<8x256xf32>
    tpu.vector_store %arg7[%c0_6, %c0_7], %7 {strides = array<i32>} : memref<8x256xf32, #tpu.memory_space<vmem>>, vector<8x256xf32>,
    %c0_i32_8 = arith.constant 0 : i32
    %9 = arith.cmpi eq, %arg2, %c0_i32_8 : i32
    %10 = arith.extui %9 : i1 to i32
    %c0_i32_9 = arith.constant 0 : i32
    %11 = arith.cmpi ne, %10, %c0_i32_9 : i32
    scf.if %11 {
      %c0_10 = arith.constant 0 : index
      %c0_11 = arith.constant 0 : index
      %12 = vector.load %arg7[%c0_10, %c0_11] : memref<8x256xf32, #tpu.memory_space<vmem>>, vector<8x256xf32>
      %c0_12 = arith.constant 0 : index
      %c0_13 = arith.constant 0 : index
      %13 = vector.load %arg5[%c0_12, %c0_13] : memref<1x256xf32, #tpu.memory_space<vmem>>, vector<1x256xf32>
      %14 = vector.broadcast %13 : vector<1x256xf32> to vector<8x256xf32>
      %15 = arith.addf %12, %14 : vector<8x256xf32>
      %c0_14 = arith.constant 0 : index
      %c0_15 = arith.constant 0 : index
      %16 = vector.load %arg6[%c0_14, %c0_15] : memref<8x256xf32, #tpu.memory_space<vmem>>, vector<8x256xf32>
      tpu.vector_store %arg6[%c0_14, %c0_15], %15 {strides = array<i32>} : memref<8x256xf32, #tpu.memory_space<vmem>>, vector<8x256xf32>,
    } else {
    }
    return
  }
  func.func @transform_0(%arg0: i32, %arg1: i32, %arg2: i32) -> (i32, i32) {
    %c0_i32 = arith.constant 0 : i32
    return %arg0, %arg2 : i32, i32
  }
  func.func @transform_1(%arg0: i32, %arg1: i32, %arg2: i32) -> (i32, i32) {
    %c0_i32 = arith.constant 0 : i32
    return %arg2, %arg1 : i32, i32
  }
  func.func @transform_2(%arg0: i32, %arg1: i32, %arg2: i32) -> (i32, i32) {
    %c0_i32 = arith.constant 0 : i32
    %c0_i32_0 = arith.constant 0 : i32
    return %c0_i32, %arg1 : i32, i32
  }
  func.func @transform_3(%arg0: i32, %arg1: i32, %arg2: i32) -> (i32, i32) {
    %c0_i32 = arith.constant 0 : i32
    return %arg0, %arg1 : i32, i32
  }
}

module attributes {stable_mosaic.version = 11 : i64} {
  func.func @_matmul_bias_kernel(%arg0: i32, %arg1: i32, %arg2: i32, %arg3: memref<8x512xbf16, #tpu.memory_space<vmem>>, %arg4: memref<512x256xbf16, #tpu.memory_space<vmem>>, %arg5: memref<1x256xf32, #tpu.memory_space<vmem>>, %arg6: memref<8x256xf32, #tpu.memory_space<vmem>>, %arg7: memref<8x256xf32, #tpu.memory_space<vmem>>) attributes {dimension_semantics = [#tpu.dimension_semantics<parallel>, #tpu.dimension_semantics<parallel>, #tpu.dimension_semantics<arbitrary>], iteration_bounds = array<i64: 1, 3, 26>, scalar_prefetch = 0 : i64, scratch_operands = 1 : i64, tpu.core_type = #tpu.core_type<tc>, window_params = [{transform_indices = @transform_0, window_bounds = array<i64: 8, 512>}, {transform_indices = @transform_1, window_bounds = array<i64: 512, 256>}, {transform_indices = @transform_2, window_bounds = array<i64: 1, 256>}, {transform_indices = @transform_3, window_bounds = array<i64: 8, 256>}]} {
    %c0_i32 = arith.constant 0 : i32
    %0 = arith.cmpi eq, %arg2, %c0_i32 : i32
    %1 = arith.extui %0 : i1 to i32
    %c0_i32_0 = arith.constant 0 : i32
    %2 = arith.cmpi ne, %1, %c0_i32_0 : i32
    scf.if %2 {
      %cst_9 = arith.constant 0.000000e+00 : f32
      %12 = vector.broadcast %cst_9 : f32 to vector<8x256xf32>
      %c0_10 = arith.constant 0 : index
      %c0_11 = arith.constant 0 : index
      %13 = vector.load %arg7[%c0_10, %c0_11] : memref<8x256xf32, #tpu.memory_space<vmem>>, vector<8x256xf32>
      tpu.vector_store %arg7[%c0_10, %c0_11], %12 {strides = array<i32>} : memref<8x256xf32, #tpu.memory_space<vmem>>, vector<8x256xf32>,
    } else {
    }
    %c0 = arith.constant 0 : index
    %c0_1 = arith.constant 0 : index
    %3 = vector.load %arg7[%c0, %c0_1] : memref<8x256xf32, #tpu.memory_space<vmem>>, vector<8x256xf32>
    %c0_2 = arith.constant 0 : index
    %c0_3 = arith.constant 0 : index
    %4 = vector.load %arg3[%c0_2, %c0_3] : memref<8x512xbf16, #tpu.memory_space<vmem>>, vector<8x512xbf16>
    %c0_4 = arith.constant 0 : index
    %c0_5 = arith.constant 0 : index
    %5 = vector.load %arg4[%c0_4, %c0_5] : memref<512x256xbf16, #tpu.memory_space<vmem>>, vector<512x256xbf16>
    %cst = arith.constant dense<0.000000e+00> : vector<8x256xf32>
    %6 = tpu.matmul %4, %5, %cst {dimension_numbers = #tpu.dot_dimension_numbers<[1], [0], [0], [1], [0, 0, 1, 1], [], []>} : vector<8x512xbf16>, vector<512x256xbf16>, vector<8x256xf32> -> vector<8x256xf32>
    %7 = arith.addf %3, %6 : vector<8x256xf32>
    %c0_6 = arith.constant 0 : index
    %c0_7 = arith.constant 0 : index
    %8 = vector.load %arg7[%c0_6, %c0_7] : memref<8x256xf32, #tpu.memory_space<vmem>>, vector<8x256xf32>
    tpu.vector_store %arg7[%c0_6, %c0_7], %7 {strides = array<i32>} : memref<8x256xf32, #tpu.memory_space<vmem>>, vector<8x256xf32>,
    %c25_i32 = arith.constant 25 : i32
    %9 = arith.cmpi eq, %arg2, %c25_i32 : i32
    %10 = arith.extui %9 : i1 to i32
    %c0_i32_8 = arith.constant 0 : i32
    %11 = arith.cmpi ne, %10, %c0_i32_8 : i32
    scf.if %11 {
      %c0_9 = arith.constant 0 : index
      %c0_10 = arith.constant 0 : index
      %12 = vector.load %arg7[%c0_9, %c0_10] : memref<8x256xf32, #tpu.memory_space<vmem>>, vector<8x256xf32>
      %c0_11 = arith.constant 0 : index
      %c0_12 = arith.constant 0 : index
      %13 = vector.load %arg5[%c0_11, %c0_12] : memref<1x256xf32, #tpu.memory_space<vmem>>, vector<1x256xf32>
      %14 = vector.broadcast %13 : vector<1x256xf32> to vector<8x256xf32>
      %15 = arith.addf %12, %14 : vector<8x256xf32>
      %c0_13 = arith.constant 0 : index
      %c0_14 = arith.constant 0 : index
      %16 = vector.load %arg6[%c0_13, %c0_14] : memref<8x256xf32, #tpu.memory_space<vmem>>, vector<8x256xf32>
      tpu.vector_store %arg6[%c0_13, %c0_14], %15 {strides = array<i32>} : memref<8x256xf32, #tpu.memory_space<vmem>>, vector<8x256xf32>,
    } else {
    }
    return
  }
  func.func @transform_0(%arg0: i32, %arg1: i32, %arg2: i32) -> (i32, i32) {
    %c0_i32 = arith.constant 0 : i32
    return %arg0, %arg2 : i32, i32
  }
  func.func @transform_1(%arg0: i32, %arg1: i32, %arg2: i32) -> (i32, i32) {
    %c0_i32 = arith.constant 0 : i32
    return %arg2, %arg1 : i32, i32
  }
  func.func @transform_2(%arg0: i32, %arg1: i32, %arg2: i32) -> (i32, i32) {
    %c0_i32 = arith.constant 0 : i32
    %c0_i32_0 = arith.constant 0 : i32
    return %c0_i32, %arg1 : i32, i32
  }
  func.func @transform_3(%arg0: i32, %arg1: i32, %arg2: i32) -> (i32, i32) {
    %c0_i32 = arith.constant 0 : i32
    return %arg0, %arg1 : i32, i32
  }
}

</mosaic_0001>

<llo_original>
// kernel: entry_stem_fwd.30
$region0: #{entry_stem_fwd.30}
  #allocation0 [shape = 'u32[]', space=smem, size = 0x4, offset = 0x4, fixed_abs, tag = 'smem constant byte address 0x4 - core index']
  #allocation1 [shape = 'u32[144,128]{1,0:T(1,128)}', space=vmem, size = 0x12000, scoped, tag = 'internal scratch']
  #allocation2 [shape = 'f32[104,128]{1,0:T(8,128)}', space=vmem, size = 0xd000, scoped, tag = 'scratch operand']
  %s0 = inlined_call_operand.vmem [shape: bf16[104,128], index: 0, kind: input, shape index: {}]
  %s1 = inlined_call_operand.vmem [shape: bf16[128,128], index: 1, kind: input, shape index: {}]
  %s2 = inlined_call_operand.vmem [shape: f32[1,128], index: 2, kind: input, shape index: {}]
  %s3 = inlined_call_operand.vmem [shape: f32[104,128], index: 3, kind: output, shape index: {}]
  %s4 = sld [smem:[#allocation0]]
  $region30: #{entry_stem_fwd.30} parent=0
    _
  %s6 = ssub.s32 1, %s4
  %s7 = scalar_select 0, %s6, %s4
  // Predicated region
  $region2: #{entry_stem_fwd.30} parent=0 // pred_check
    _
  $region3: #{entry_stem_fwd.30} parent=0 // pred_check_branch
    %9 = sbr.rel (0) target = $region5
  $region4: #{entry_stem_fwd.30} parent=0 // pred_region
    _
  $region5: #{entry_stem_fwd.30} parent=0 // pred_fallthru
    _
  // Predicated region
  $region6: #{entry_stem_fwd.30} parent=0 // pred_check
    _
  $region7: #{entry_stem_fwd.30} parent=0 // pred_check_branch
    %11 = sbr.rel (0) target = $region9
  $region8: #{entry_stem_fwd.30} parent=0 // pred_region
    _
  $region9: #{entry_stem_fwd.30} parent=0 // pred_fallthru
    _
  // Predicated region
  $region10: #{entry_stem_fwd.30} parent=0 // pred_check
    _
  $region11: #{entry_stem_fwd.30} parent=0 // pred_check_branch
    %13 = sbr.rel (0) target = $region13
  $region12: #{entry_stem_fwd.30} parent=0 // pred_region
    _
  $region13: #{entry_stem_fwd.30} parent=0 // pred_fallthru
    _
  %p15 = scmp.eq.s32.totalorder 0, 0
  // Predicated region
  $region14: #{entry_stem_fwd.30} parent=0 // pred_check
    %p16 = pneg %p15
  $region15: #{entry_stem_fwd.30} parent=0 // pred_check_branch
    %18 = sbr.rel (%p16) target = $region17
  $region16: #{entry_stem_fwd.30} parent=0 // pred_region
    %19 = vst [vmem:[#allocation2] sm:$0xff] 0.0
    %20 = vst [vmem:[#allocation2 + $0x8] sm:$0xff] 0.0
    %21 = vst [vmem:[#allocation2 + $0x10] sm:$0xff] 0.0
    %22 = vst [vmem:[#allocation2 + $0x18] sm:$0xff] 0.0
    %23 = vst [vmem:[#allocation2 + $0x20] sm:$0xff] 0.0
    %24 = vst [vmem:[#allocation2 + $0x28] sm:$0xff] 0.0
    %25 = vst [vmem:[#allocation2 + $0x30] sm:$0xff] 0.0
    %26 = vst [vmem:[#allocation2 + $0x38] sm:$0xff] 0.0
    %27 = vst [vmem:[#allocation2 + $0x40] sm:$0xff] 0.0
    %28 = vst [vmem:[#allocation2 + $0x48] sm:$0xff] 0.0
    %29 = vst [vmem:[#allocation2 + $0x50] sm:$0xff] 0.0
    %30 = vst [vmem:[#allocation2 + $0x58] sm:$0xff] 0.0
    %31 = vst [vmem:[#allocation2 + $0x60] sm:$0xff] 0.0
  $region17: #{entry_stem_fwd.30} parent=0 // pred_fallthru
    _
  %v32 = vld [vmem:[#allocation2] sm:$0xff]
  %v33 = vld [vmem:[#allocation2 + $0x8] sm:$0xff]
  %v34 = vld [vmem:[#allocation2 + $0x10] sm:$0xff]
  %v35 = vld [vmem:[#allocation2 + $0x18] sm:$0xff]
  %v36 = vld [vmem:[#allocation2 + $0x20] sm:$0xff]
  %v37 = vld [vmem:[#allocation2 + $0x28] sm:$0xff]
  %v38 = vld [vmem:[#allocation2 + $0x30] sm:$0xff]
  %v39 = vld [vmem:[#allocation2 + $0x38] sm:$0xff]
  %v40 = vld [vmem:[#allocation2 + $0x40] sm:$0xff]
  %v41 = vld [vmem:[#allocation2 + $0x48] sm:$0xff]
  %v42 = vld [vmem:[#allocation2 + $0x50] sm:$0xff]
  %v43 = vld [vmem:[#allocation2 + $0x58] sm:$0xff]
  %v44 = vld [vmem:[#allocation2 + $0x60] sm:$0xff]
  %v45 = vld [vmem:[%s0] sm:$0xf]
  %v46 = vld [vmem:[%s0 + $0x4] sm:$0xf]
  %v47 = vld [vmem:[%s0 + $0x8] sm:$0xf]
  %v48 = vld [vmem:[%s0 + $0xc] sm:$0xf]
  %v49 = vld [vmem:[%s0 + $0x10] sm:$0xf]
  %v50 = vld [vmem:[%s0 + $0x14] sm:$0xf]
  %v51 = vld [vmem:[%s0 + $0x18] sm:$0xf]
  %v52 = vld [vmem:[%s0 + $0x1c] sm:$0xf]
  %v53 = vld [vmem:[%s0 + $0x20] sm:$0xf]
  %v54 = vld [vmem:[%s0 + $0x24] sm:$0xf]
  %v55 = vld [vmem:[%s0 + $0x28] sm:$0xf]
  %v56 = vld [vmem:[%s0 + $0x2c] sm:$0xf]
  %v57 = vld [vmem:[%s0 + $0x30] sm:$0xf]
  %v58 = vld [vmem:[%s1] sm:$0xf]
  %v59 = vld [vmem:[%s1 + $0x4] sm:$0xf]
  %v60 = vld [vmem:[%s1 + $0x8] sm:$0xf]
  %v61 = vld [vmem:[%s1 + $0xc] sm:$0xf]
  %v62 = vld [vmem:[%s1 + $0x10] sm:$0xf]
  %v63 = vld [vmem:[%s1 + $0x14] sm:$0xf]
  %v64 = vld [vmem:[%s1 + $0x18] sm:$0xf]
  %v65 = vld [vmem:[%s1 + $0x1c] sm:$0xf]
  %v66 = vld [vmem:[%s1 + $0x20] sm:$0xf]
  %v67 = vld [vmem:[%s1 + $0x24] sm:$0xf]
  %v68 = vld [vmem:[%s1 + $0x28] sm:$0xf]
  %v69 = vld [vmem:[%s1 + $0x2c] sm:$0xf]
  %v70 = vld [vmem:[%s1 + $0x30] sm:$0xf]
  %v71 = vld [vmem:[%s1 + $0x34] sm:$0xf]
  %v72 = vld [vmem:[%s1 + $0x38] sm:$0xf]
  %v73 = vld [vmem:[%s1 + $0x3c] sm:$0xf]
  %v87 = vunpack.c.l.b16 %v45
  %v88 = vunpack.c.l.b16 %v46
  %v89 = vunpack.c.l.b16 %v47
  %v90 = vunpack.c.l.b16 %v48
  %v91 = vunpack.c.l.b16 %v49
  %v92 = vunpack.c.l.b16 %v50
  %v93 = vunpack.c.l.b16 %v51
  %v94 = vunpack.c.l.b16 %v52
  %v95 = vunpack.c.l.b16 %v53
  %v96 = vunpack.c.l.b16 %v54
  %v97 = vunpack.c.l.b16 %v55
  %v98 = vunpack.c.l.b16 %v56
  %v99 = vunpack.c.l.b16 %v57
  %v100 = vpack.c.b16 %v88, %v87
  %v101 = vpack.c.b16 %v90, %v89
  %v102 = vpack.c.b16 %v92, %v91
  %v103 = vpack.c.b16 %v94, %v93
  %v104 = vpack.c.b16 %v96, %v95
  %v105 = vpack.c.b16 %v98, %v97
  %v106 = vpack.c.b16 %v99, %v99
  %v130 = vunpack.c.l.b16 %v58
  %v131 = vunpack.c.l.b16 %v59
  %v132 = vunpack.c.l.b16 %v60
  %v133 = vunpack.c.l.b16 %v61
  %v134 = vunpack.c.l.b16 %v62
  %v135 = vunpack.c.l.b16 %v63
  %v136 = vunpack.c.l.b16 %v64
  %v137 = vunpack.c.l.b16 %v65
  %v138 = vunpack.c.l.b16 %v66
  %v139 = vunpack.c.l.b16 %v67
  %v140 = vunpack.c.l.b16 %v68
  %v141 = vunpack.c.l.b16 %v69
  %v142 = vunpack.c.l.b16 %v70
  %v143 = vunpack.c.l.b16 %v71
  %v144 = vunpack.c.l.b16 %v72
  %v145 = vunpack.c.l.b16 %v73
  %v146 = vpack.c.b16 %v131, %v130
  %v147 = vpack.c.b16 %v133, %v132
  %v148 = vpack.c.b16 %v135, %v134
  %v149 = vpack.c.b16 %v137, %v136
  %v150 = vpack.c.b16 %v139, %v138
  %v151 = vpack.c.b16 %v141, %v140
  %v152 = vpack.c.b16 %v143, %v142
  %v153 = vpack.c.b16 %v145, %v144
  %162 = vmatprep.subr.bf16.mxu0 0
  %163 = vmatpush1.bf16.msra.mxu0 %v146
  %164 = vmatprep.subr.bf16.mxu0 0
  %165 = vmatpush1.bf16.msra.mxu0 %v147
  %166 = vmatprep.subr.bf16.mxu0 0
  %167 = vmatpush1.bf16.msra.mxu0 %v148
  %168 = vmatprep.subr.bf16.mxu0 0
  %169 = vmatpush1.bf16.msra.mxu0 %v149
  %170 = vmatprep.subr.bf16.mxu0 0
  %171 = vmatpush1.bf16.msra.mxu0 %v150
  %172 = vmatprep.subr.bf16.mxu0 0
  %173 = vmatpush1.bf16.msra.mxu0 %v151
  %174 = vmatprep.subr.bf16.mxu0 0
  %175 = vmatpush1.bf16.msra.mxu0 %v152
  %176 = vmatprep.subr.bf16.mxu0 0
  %177 = vmatpush1.bf16.msra.mxu0 %v153
  %178 = vmatprep.subr.bf16.mxu0 0
  %179 = vmatpush1.bf16.msra.mxu0 0
  %180 = vmatprep.subr.bf16.mxu0 0
  %181 = vmatpush1.bf16.msra.mxu0 0
  %182 = vmatprep.subr.bf16.mxu0 0
  %183 = vmatpush1.bf16.msra.mxu0 0
  %184 = vmatprep.subr.bf16.mxu0 0
  %185 = vmatpush1.bf16.msra.mxu0 0
  %186 = vmatprep.subr.bf16.mxu0 0
  %187 = vmatpush1.bf16.msra.mxu0 0
  %188 = vmatprep.subr.bf16.mxu0 0
  %189 = vmatpush1.bf16.msra.mxu0 0
  %190 = vmatprep.subr.bf16.mxu0 0
  %191 = vmatpush1.bf16.msra.mxu0 0
  %192 = vmatprep.subr.bf16.mxu0 0
  %193 = vmatpush1.bf16.msra.mxu0 0
  %194 = vmatprep.mubr.bf16.mxu0 0
  %195 = vmatmul.mubr.bf16.gmra.mrb[0].mxu0 %v100
  %v196 = vpop.f32.mrb[0].mxu0
  %v197 = vadd.f32 0.0, %v196
  %v198 = vpop.f32.mrb[0].mxu0
  %v199 = vpop.f32.mrb[0].mxu0
  %v200 = vadd.f32 0.0, %v199
  %v201 = vpop.f32.mrb[0].mxu0
  %202 = vmatprep.mubr.bf16.mxu0 0
  %203 = vmatmul.mubr.bf16.gmra.mrb[0].mxu0 %v101
  %v204 = vpop.f32.mrb[0].mxu0
  %v205 = vadd.f32 0.0, %v204
  %v206 = vpop.f32.mrb[0].mxu0
  %v207 = vpop.f32.mrb[0].mxu0
  %v208 = vadd.f32 0.0, %v207
  %v209 = vpop.f32.mrb[0].mxu0
  %210 = vmatprep.mubr.bf16.mxu0 0
  %211 = vmatmul.mubr.bf16.gmra.mrb[0].mxu0 %v102
  %v212 = vpop.f32.mrb[0].mxu0
  %v213 = vadd.f32 0.0, %v212
  %v214 = vpop.f32.mrb[0].mxu0
  %v215 = vpop.f32.mrb[0].mxu0
  %v216 = vadd.f32 0.0, %v215
  %v217 = vpop.f32.mrb[0].mxu0
  %218 = vmatprep.mubr.bf16.mxu0 0
  %219 = vmatmul.mubr.bf16.gmra.mrb[0].mxu0 %v103
  %v220 = vpop.f32.mrb[0].mxu0
  %v221 = vadd.f32 0.0, %v220
  %v222 = vpop.f32.mrb[0].mxu0
  %v223 = vpop.f32.mrb[0].mxu0
  %v224 = vadd.f32 0.0, %v223
  %v225 = vpop.f32.mrb[0].mxu0
  %226 = vmatprep.mubr.bf16.mxu0 0
  %227 = vmatmul.mubr.bf16.gmra.mrb[0].mxu0 %v104
  %v228 = vpop.f32.mrb[0].mxu0
  %v229 = vadd.f32 0.0, %v228
  %v230 = vpop.f32.mrb[0].mxu0
  %v231 = vpop.f32.mrb[0].mxu0
  %v232 = vadd.f32 0.0, %v231
  %v233 = vpop.f32.mrb[0].mxu0
  %234 = vmatprep.mubr.bf16.mxu0 0
  %235 = vmatmul.mubr.bf16.gmra.mrb[0].mxu0 %v105
  %v236 = vpop.f32.mrb[0].mxu0
  %v237 = vadd.f32 0.0, %v236
  %v238 = vpop.f32.mrb[0].mxu0
  %v239 = vpop.f32.mrb[0].mxu0
  %v240 = vadd.f32 0.0, %v239
  %v241 = vpop.f32.mrb[0].mxu0
  %242 = vmatprep.mubr.bf16.mxu0 0
  %243 = vmatmul.mubr.bf16.gmra.mrb[0].mxu0 %v106
  %v244 = vpop.f32.mrb[0].mxu0
  %v245 = vadd.f32 0.0, %v244
  %v246 = vpop.f32.mrb[0].mxu0
  %v247 = vpop.f32.mrb[0].mxu0
  %v248 = vpop.f32.mrb[0].mxu0
  %249 = vdwg.mxu0
  %v250 = vadd.f32 %v32, %v197
  %v251 = vadd.f32 %v33, %v200
  %v252 = vadd.f32 %v34, %v205
  %v253 = vadd.f32 %v35, %v208
  %v254 = vadd.f32 %v36, %v213
  %v255 = vadd.f32 %v37, %v216
  %v256 = vadd.f32 %v38, %v221
  %v257 = vadd.f32 %v39, %v224
  %v258 = vadd.f32 %v40, %v229
  %v259 = vadd.f32 %v41, %v232
  %v260 = vadd.f32 %v42, %v237
  %v261 = vadd.f32 %v43, %v240
  %v262 = vadd.f32 %v44, %v245
  %263 = vst [vmem:[#allocation2] sm:$0xff] %v250
  %264 = vst [vmem:[#allocation2 + $0x8] sm:$0xff] %v251
  %265 = vst [vmem:[#allocation2 + $0x10] sm:$0xff] %v252
  %266 = vst [vmem:[#allocation2 + $0x18] sm:$0xff] %v253
  %267 = vst [vmem:[#allocation2 + $0x20] sm:$0xff] %v254
  %268 = vst [vmem:[#allocation2 + $0x28] sm:$0xff] %v255
  %269 = vst [vmem:[#allocation2 + $0x30] sm:$0xff] %v256
  %270 = vst [vmem:[#allocation2 + $0x38] sm:$0xff] %v257
  %271 = vst [vmem:[#allocation2 + $0x40] sm:$0xff] %v258
  %272 = vst [vmem:[#allocation2 + $0x48] sm:$0xff] %v259
  %273 = vst [vmem:[#allocation2 + $0x50] sm:$0xff] %v260
  %274 = vst [vmem:[#allocation2 + $0x58] sm:$0xff] %v261
  %275 = vst [vmem:[#allocation2 + $0x60] sm:$0xff] %v262
  // Predicated region
  $region18: #{entry_stem_fwd.30} parent=0 // pred_check
    %p276 = pneg %p15
  $region19: #{entry_stem_fwd.30} parent=0 // pred_check_branch
    %278 = sbr.rel (%p276) target = $region21
  $region20: #{entry_stem_fwd.30} parent=0 // pred_region
    %v279 = vld [vmem:[#allocation2] sm:$0xff]
    %v280 = vld [vmem:[#allocation2 + $0x8] sm:$0xff]
    %v281 = vld [vmem:[#allocation2 + $0x10] sm:$0xff]
    %v282 = vld [vmem:[#allocation2 + $0x18] sm:$0xff]
    %v283 = vld [vmem:[#allocation2 + $0x20] sm:$0xff]
    %v284 = vld [vmem:[#allocation2 + $0x28] sm:$0xff]
    %v285 = vld [vmem:[#allocation2 + $0x30] sm:$0xff]
    %v286 = vld [vmem:[#allocation2 + $0x38] sm:$0xff]
    %v287 = vld [vmem:[#allocation2 + $0x40] sm:$0xff]
    %v288 = vld [vmem:[#allocation2 + $0x48] sm:$0xff]
    %v289 = vld [vmem:[#allocation2 + $0x50] sm:$0xff]
    %v290 = vld [vmem:[#allocation2 + $0x58] sm:$0xff]
    %v291 = vld [vmem:[#allocation2 + $0x60] sm:$0xff]
    %v292 = vld [vmem:[%s2] sm:$0x1]
    %v294 = vlaneseq
    %v295 = vshrl.u32 %v294, 7
    %v296 = vsub.s32 0, %v295
    %v297 = vrot.slane %v292, %v296
    %v299 = vadd.f32 %v279, %v297
    %v300 = vadd.f32 %v280, %v297
    %v301 = vadd.f32 %v281, %v297
    %v302 = vadd.f32 %v282, %v297
    %v303 = vadd.f32 %v283, %v297
    %v304 = vadd.f32 %v284, %v297
    %v305 = vadd.f32 %v285, %v297
    %v306 = vadd.f32 %v286, %v297
    %v307 = vadd.f32 %v287, %v297
    %v308 = vadd.f32 %v288, %v297
    %v309 = vadd.f32 %v289, %v297
    %v310 = vadd.f32 %v290, %v297
    %v311 = vadd.f32 %v291, %v297
    %312 = vst [vmem:[%s3] sm:$0xff] %v299
    %313 = vst [vmem:[%s3 + $0x8] sm:$0xff] %v300
    %314 = vst [vmem:[%s3 + $0x10] sm:$0xff] %v301
    %315 = vst [vmem:[%s3 + $0x18] sm:$0xff] %v302
    %316 = vst [vmem:[%s3 + $0x20] sm:$0xff] %v303
    %317 = vst [vmem:[%s3 + $0x28] sm:$0xff] %v304
    %318 = vst [vmem:[%s3 + $0x30] sm:$0xff] %v305
    %319 = vst [vmem:[%s3 + $0x38] sm:$0xff] %v306
    %320 = vst [vmem:[%s3 + $0x40] sm:$0xff] %v307
    %321 = vst [vmem:[%s3 + $0x48] sm:$0xff] %v308
    %322 = vst [vmem:[%s3 + $0x50] sm:$0xff] %v309
    %323 = vst [vmem:[%s3 + $0x58] sm:$0xff] %v310
    %324 = vst [vmem:[%s3 + $0x60] sm:$0xff] %v311
  $region21: #{entry_stem_fwd.30} parent=0 // pred_fallthru
    _
  // Predicated region
  $region22: #{entry_stem_fwd.30} parent=0 // pred_check
    _
  $region23: #{entry_stem_fwd.30} parent=0 // pred_check_branch
    %326 = sbr.rel (0) target = $region25
  $region24: #{entry_stem_fwd.30} parent=0 // pred_region
    _
  $region25: #{entry_stem_fwd.30} parent=0 // pred_fallthru
    _
  // Predicated region
  $region26: #{entry_stem_fwd.30} parent=0 // pred_check
    _
  $region27: #{entry_stem_fwd.30} parent=0 // pred_check_branch
    %328 = sbr.rel (0) target = $region29
  $region28: #{entry_stem_fwd.30} parent=0 // pred_region
    _
  $region29: #{entry_stem_fwd.30} parent=0 // pred_fallthru
    _

// kernel: entry_stem_fwd.31
$region0: #{entry_stem_fwd.31}
  #allocation0 [shape = 'u32[]', space=smem, size = 0x4, offset = 0x4, fixed_abs, tag = 'smem constant byte address 0x4 - core index']
  #allocation1 [shape = 'u32[144,128]{1,0:T(1,128)}', space=vmem, size = 0x12000, scoped, tag = 'internal scratch']
  #allocation2 [shape = 'f32[104,128]{1,0:T(8,128)}', space=vmem, size = 0xd000, scoped, tag = 'scratch operand']
  %s0 = inlined_call_operand.vmem [shape: bf16[104,384], index: 0, kind: input, shape index: {}]
  %s1 = inlined_call_operand.vmem [shape: bf16[384,128], index: 1, kind: input, shape index: {}]
  %s2 = inlined_call_operand.vmem [shape: f32[1,128], index: 2, kind: input, shape index: {}]
  %s3 = inlined_call_operand.vmem [shape: f32[104,128], index: 3, kind: output, shape index: {}]
  %s4 = sld [smem:[#allocation0]]
  $region30: #{entry_stem_fwd.31} parent=0
    _
  %s6 = ssub.s32 1, %s4
  %s7 = scalar_select 0, %s6, %s4
  // Predicated region
  $region2: #{entry_stem_fwd.31} parent=0 // pred_check
    _
  $region3: #{entry_stem_fwd.31} parent=0 // pred_check_branch
    %9 = sbr.rel (0) target = $region5
  $region4: #{entry_stem_fwd.31} parent=0 // pred_region
    _
  $region5: #{entry_stem_fwd.31} parent=0 // pred_fallthru
    _
  // Predicated region
  $region6: #{entry_stem_fwd.31} parent=0 // pred_check
    _
  $region7: #{entry_stem_fwd.31} parent=0 // pred_check_branch
    %11 = sbr.rel (0) target = $region9
  $region8: #{entry_stem_fwd.31} parent=0 // pred_region
    _
  $region9: #{entry_stem_fwd.31} parent=0 // pred_fallthru
    _
  // Predicated region
  $region10: #{entry_stem_fwd.31} parent=0 // pred_check
    _
  $region11: #{entry_stem_fwd.31} parent=0 // pred_check_branch
    %13 = sbr.rel (0) target = $region13
  $region12: #{entry_stem_fwd.31} parent=0 // pred_region
    _
  $region13: #{entry_stem_fwd.31} parent=0 // pred_fallthru
    _
  %p15 = scmp.eq.s32.totalorder 0, 0
  // Predicated region
  $region14: #{entry_stem_fwd.31} parent=0 // pred_check
    %p16 = pneg %p15
  $region15: #{entry_stem_fwd.31} parent=0 // pred_check_branch
    %18 = sbr.rel (%p16) target = $region17
  $region16: #{entry_stem_fwd.31} parent=0 // pred_region
    %19 = vst [vmem:[#allocation2] sm:$0xff] 0.0
    %20 = vst [vmem:[#allocation2 + $0x8] sm:$0xff] 0.0
    %21 = vst [vmem:[#allocation2 + $0x10] sm:$0xff] 0.0
    %22 = vst [vmem:[#allocation2 + $0x18] sm:$0xff] 0.0
    %23 = vst [vmem:[#allocation2 + $0x20] sm:$0xff] 0.0
    %24 = vst [vmem:[#allocation2 + $0x28] sm:$0xff] 0.0
    %25 = vst [vmem:[#allocation2 + $0x30] sm:$0xff] 0.0
    %26 = vst [vmem:[#allocation2 + $0x38] sm:$0xff] 0.0
    %27 = vst [vmem:[#allocation2 + $0x40] sm:$0xff] 0.0
    %28 = vst [vmem:[#allocation2 + $0x48] sm:$0xff] 0.0
    %29 = vst [vmem:[#allocation2 + $0x50] sm:$0xff] 0.0
    %30 = vst [vmem:[#allocation2 + $0x58] sm:$0xff] 0.0
    %31 = vst [vmem:[#allocation2 + $0x60] sm:$0xff] 0.0
  $region17: #{entry_stem_fwd.31} parent=0 // pred_fallthru
    _
  %v32 = vld [vmem:[#allocation2] sm:$0xff]
  %v33 = vld [vmem:[#allocation2 + $0x8] sm:$0xff]
  %v34 = vld [vmem:[#allocation2 + $0x10] sm:$0xff]
  %v35 = vld [vmem:[#allocation2 + $0x18] sm:$0xff]
  %v36 = vld [vmem:[#allocation2 + $0x20] sm:$0xff]
  %v37 = vld [vmem:[#allocation2 + $0x28] sm:$0xff]
  %v38 = vld [vmem:[#allocation2 + $0x30] sm:$0xff]
  %v39 = vld [vmem:[#allocation2 + $0x38] sm:$0xff]
  %v40 = vld [vmem:[#allocation2 + $0x40] sm:$0xff]
  %v41 = vld [vmem:[#allocation2 + $0x48] sm:$0xff]
  %v42 = vld [vmem:[#allocation2 + $0x50] sm:$0xff]
  %v43 = vld [vmem:[#allocation2 + $0x58] sm:$0xff]
  %v44 = vld [vmem:[#allocation2 + $0x60] sm:$0xff]
  %v45 = vld [vmem:[%s0] sm:$0xff]
  %v46 = vld [vmem:[%s0 + $0x8] sm:$0xf]
  %v47 = vld [vmem:[%s0 + $0xc] sm:$0xff]
  %v48 = vld [vmem:[%s0 + $0x14] sm:$0xf]
  %v49 = vld [vmem:[%s0 + $0x18] sm:$0xff]
  %v50 = vld [vmem:[%s0 + $0x20] sm:$0xf]
  %v51 = vld [vmem:[%s0 + $0x24] sm:$0xff]
  %v52 = vld [vmem:[%s0 + $0x2c] sm:$0xf]
  %v53 = vld [vmem:[%s0 + $0x30] sm:$0xff]
  %v54 = vld [vmem:[%s0 + $0x38] sm:$0xf]
  %v55 = vld [vmem:[%s0 + $0x3c] sm:$0xff]
  %v56 = vld [vmem:[%s0 + $0x44] sm:$0xf]
  %v57 = vld [vmem:[%s0 + $0x48] sm:$0xff]
  %v58 = vld [vmem:[%s0 + $0x50] sm:$0xf]
  %v59 = vld [vmem:[%s0 + $0x54] sm:$0xff]
  %v60 = vld [vmem:[%s0 + $0x5c] sm:$0xf]
  %v61 = vld [vmem:[%s0 + $0x60] sm:$0xff]
  %v62 = vld [vmem:[%s0 + $0x68] sm:$0xf]
  %v63 = vld [vmem:[%s0 + $0x6c] sm:$0xff]
  %v64 = vld [vmem:[%s0 + $0x74] sm:$0xf]
  %v65 = vld [vmem:[%s0 + $0x78] sm:$0xff]
  %v66 = vld [vmem:[%s0 + $0x80] sm:$0xf]
  %v67 = vld [vmem:[%s0 + $0x84] sm:$0xff]
  %v68 = vld [vmem:[%s0 + $0x8c] sm:$0xf]
  %v69 = vld [vmem:[%s0 + $0x90] sm:$0xff]
  %v70 = vld [vmem:[%s0 + $0x98] sm:$0xf]
  %v71 = vld [vmem:[%s1] sm:$0xf]
  %v72 = vld [vmem:[%s1 + $0x4] sm:$0xf]
  %v73 = vld [vmem:[%s1 + $0x8] sm:$0xf]
  %v74 = vld [vmem:[%s1 + $0xc] sm:$0xf]
  %v75 = vld [vmem:[%s1 + $0x10] sm:$0xf]
  %v76 = vld [vmem:[%s1 + $0x14] sm:$0xf]
  %v77 = vld [vmem:[%s1 + $0x18] sm:$0xf]
  %v78 = vld [vmem:[%s1 + $0x1c] sm:$0xf]
  %v79 = vld [vmem:[%s1 + $0x20] sm:$0xf]
  %v80 = vld [vmem:[%s1 + $0x24] sm:$0xf]
  %v81 = vld [vmem:[%s1 + $0x28] sm:$0xf]
  %v82 = vld [vmem:[%s1 + $0x2c] sm:$0xf]
  %v83 = vld [vmem:[%s1 + $0x30] sm:$0xf]
  %v84 = vld [vmem:[%s1 + $0x34] sm:$0xf]
  %v85 = vld [vmem:[%s1 + $0x38] sm:$0xf]
  %v86 = vld [vmem:[%s1 + $0x3c] sm:$0xf]
  %v87 = vld [vmem:[%s1 + $0x40] sm:$0xf]
  %v88 = vld [vmem:[%s1 + $0x44] sm:$0xf]
  %v89 = vld [vmem:[%s1 + $0x48] sm:$0xf]
  %v90 = vld [vmem:[%s1 + $0x4c] sm:$0xf]
  %v91 = vld [vmem:[%s1 + $0x50] sm:$0xf]
  %v92 = vld [vmem:[%s1 + $0x54] sm:$0xf]
  %v93 = vld [vmem:[%s1 + $0x58] sm:$0xf]
  %v94 = vld [vmem:[%s1 + $0x5c] sm:$0xf]
  %v95 = vld [vmem:[%s1 + $0x60] sm:$0xf]
  %v96 = vld [vmem:[%s1 + $0x64] sm:$0xf]
  %v97 = vld [vmem:[%s1 + $0x68] sm:$0xf]
  %v98 = vld [vmem:[%s1 + $0x6c] sm:$0xf]
  %v99 = vld [vmem:[%s1 + $0x70] sm:$0xf]
  %v100 = vld [vmem:[%s1 + $0x74] sm:$0xf]
  %v101 = vld [vmem:[%s1 + $0x78] sm:$0xf]
  %v102 = vld [vmem:[%s1 + $0x7c] sm:$0xf]
  %v103 = vld [vmem:[%s1 + $0x80] sm:$0xf]
  %v104 = vld [vmem:[%s1 + $0x84] sm:$0xf]
  %v105 = vld [vmem:[%s1 + $0x88] sm:$0xf]
  %v106 = vld [vmem:[%s1 + $0x8c] sm:$0xf]
  %v107 = vld [vmem:[%s1 + $0x90] sm:$0xf]
  %v108 = vld [vmem:[%s1 + $0x94] sm:$0xf]
  %v109 = vld [vmem:[%s1 + $0x98] sm:$0xf]
  %v110 = vld [vmem:[%s1 + $0x9c] sm:$0xf]
  %v111 = vld [vmem:[%s1 + $0xa0] sm:$0xf]
  %v112 = vld [vmem:[%s1 + $0xa4] sm:$0xf]
  %v113 = vld [vmem:[%s1 + $0xa8] sm:$0xf]
  %v114 = vld [vmem:[%s1 + $0xac] sm:$0xf]
  %v115 = vld [vmem:[%s1 + $0xb0] sm:$0xf]
  %v116 = vld [vmem:[%s1 + $0xb4] sm:$0xf]
  %v117 = vld [vmem:[%s1 + $0xb8] sm:$0xf]
  %v118 = vld [vmem:[%s1 + $0xbc] sm:$0xf]
  %v145 = vunpack.c.l.b16 %v45
  %v146 = vunpack.c.h.b16 %v45
  %v147 = vunpack.c.l.b16 %v46
  %v148 = vunpack.c.l.b16 %v47
  %v149 = vunpack.c.h.b16 %v47
  %v150 = vunpack.c.l.b16 %v48
  %v151 = vunpack.c.l.b16 %v49
  %v152 = vunpack.c.h.b16 %v49
  %v153 = vunpack.c.l.b16 %v50
  %v154 = vunpack.c.l.b16 %v51
  %v155 = vunpack.c.h.b16 %v51
  %v156 = vunpack.c.l.b16 %v52
  %v157 = vunpack.c.l.b16 %v53
  %v158 = vunpack.c.h.b16 %v53
  %v159 = vunpack.c.l.b16 %v54
  %v160 = vunpack.c.l.b16 %v55
  %v161 = vunpack.c.h.b16 %v55
  %v162 = vunpack.c.l.b16 %v56
  %v163 = vunpack.c.l.b16 %v57
  %v164 = vunpack.c.h.b16 %v57
  %v165 = vunpack.c.l.b16 %v58
  %v166 = vunpack.c.l.b16 %v59
  %v167 = vunpack.c.h.b16 %v59
  %v168 = vunpack.c.l.b16 %v60
  %v169 = vunpack.c.l.b16 %v61
  %v170 = vunpack.c.h.b16 %v61
  %v171 = vunpack.c.l.b16 %v62
  %v172 = vunpack.c.l.b16 %v63
  %v173 = vunpack.c.h.b16 %v63
  %v174 = vunpack.c.l.b16 %v64
  %v175 = vunpack.c.l.b16 %v65
  %v176 = vunpack.c.h.b16 %v65
  %v177 = vunpack.c.l.b16 %v66
  %v178 = vunpack.c.l.b16 %v67
  %v179 = vunpack.c.h.b16 %v67
  %v180 = vunpack.c.l.b16 %v68
  %v181 = vunpack.c.l.b16 %v69
  %v182 = vunpack.c.h.b16 %v69
  %v183 = vunpack.c.l.b16 %v70
  %v184 = vpack.c.b16 %v148, %v145
  %v185 = vpack.c.b16 %v149, %v146
  %v186 = vpack.c.b16 %v150, %v147
  %v187 = vpack.c.b16 %v154, %v151
  %v188 = vpack.c.b16 %v155, %v152
  %v189 = vpack.c.b16 %v156, %v153
  %v190 = vpack.c.b16 %v160, %v157
  %v191 = vpack.c.b16 %v161, %v158
  %v192 = vpack.c.b16 %v162, %v159
  %v193 = vpack.c.b16 %v166, %v163
  %v194 = vpack.c.b16 %v167, %v164
  %v195 = vpack.c.b16 %v168, %v165
  %v196 = vpack.c.b16 %v172, %v169
  %v197 = vpack.c.b16 %v173, %v170
  %v198 = vpack.c.b16 %v174, %v171
  %v199 = vpack.c.b16 %v178, %v175
  %v200 = vpack.c.b16 %v179, %v176
  %v201 = vpack.c.b16 %v180, %v177
  %v202 = vpack.c.b16 %v181, %v181
  %v203 = vpack.c.b16 %v182, %v182
  %v204 = vpack.c.b16 %v183, %v183
  %v274 = vunpack.c.l.b16 %v71
  %v275 = vunpack.c.l.b16 %v72
  %v276 = vunpack.c.l.b16 %v73
  %v277 = vunpack.c.l.b16 %v74
  %v278 = vunpack.c.l.b16 %v75
  %v279 = vunpack.c.l.b16 %v76
  %v280 = vunpack.c.l.b16 %v77
  %v281 = vunpack.c.l.b16 %v78
  %v282 = vunpack.c.l.b16 %v79
  %v283 = vunpack.c.l.b16 %v80
  %v284 = vunpack.c.l.b16 %v81
  %v285 = vunpack.c.l.b16 %v82
  %v286 = vunpack.c.l.b16 %v83
  %v287 = vunpack.c.l.b16 %v84
  %v288 = vunpack.c.l.b16 %v85
  %v289 = vunpack.c.l.b16 %v86
  %v290 = vunpack.c.l.b16 %v87
  %v291 = vunpack.c.l.b16 %v88
  %v292 = vunpack.c.l.b16 %v89
  %v293 = vunpack.c.l.b16 %v90
  %v294 = vunpack.c.l.b16 %v91
  %v295 = vunpack.c.l.b16 %v92
  %v296 = vunpack.c.l.b16 %v93
  %v297 = vunpack.c.l.b16 %v94
  %v298 = vunpack.c.l.b16 %v95
  %v299 = vunpack.c.l.b16 %v96
  %v300 = vunpack.c.l.b16 %v97
  %v301 = vunpack.c.l.b16 %v98
  %v302 = vunpack.c.l.b16 %v99
  %v303 = vunpack.c.l.b16 %v100
  %v304 = vunpack.c.l.b16 %v101
  %v305 = vunpack.c.l.b16 %v102
  %v306 = vunpack.c.l.b16 %v103
  %v307 = vunpack.c.l.b16 %v104
  %v308 = vunpack.c.l.b16 %v105
  %v309 = vunpack.c.l.b16 %v106
  %v310 = vunpack.c.l.b16 %v107
  %v311 = vunpack.c.l.b16 %v108
  %v312 = vunpack.c.l.b16 %v109
  %v313 = vunpack.c.l.b16 %v110
  %v314 = vunpack.c.l.b16 %v111
  %v315 = vunpack.c.l.b16 %v112
  %v316 = vunpack.c.l.b16 %v113
  %v317 = vunpack.c.l.b16 %v114
  %v318 = vunpack.c.l.b16 %v115
  %v319 = vunpack.c.l.b16 %v116
  %v320 = vunpack.c.l.b16 %v117
  %v321 = vunpack.c.l.b16 %v118
  %v322 = vpack.c.b16 %v275, %v274
  %v323 = vpack.c.b16 %v277, %v276
  %v324 = vpack.c.b16 %v279, %v278
  %v325 = vpack.c.b16 %v281, %v280
  %v326 = vpack.c.b16 %v283, %v282
  %v327 = vpack.c.b16 %v285, %v284
  %v328 = vpack.c.b16 %v287, %v286
  %v329 = vpack.c.b16 %v289, %v288
  %v330 = vpack.c.b16 %v291, %v290
  %v331 = vpack.c.b16 %v293, %v292
  %v332 = vpack.c.b16 %v295, %v294
  %v333 = vpack.c.b16 %v297, %v296
  %v334 = vpack.c.b16 %v299, %v298
  %v335 = vpack.c.b16 %v301, %v300
  %v336 = vpack.c.b16 %v303, %v302
  %v337 = vpack.c.b16 %v305, %v304
  %v338 = vpack.c.b16 %v307, %v306
  %v339 = vpack.c.b16 %v309, %v308
  %v340 = vpack.c.b16 %v311, %v310
  %v341 = vpack.c.b16 %v313, %v312
  %v342 = vpack.c.b16 %v315, %v314
  %v343 = vpack.c.b16 %v317, %v316
  %v344 = vpack.c.b16 %v319, %v318
  %v345 = vpack.c.b16 %v321, %v320
  %370 = vmatprep.subr.bf16.mxu0 0
  %371 = vmatpush1.bf16.msra.mxu0 %v322
  %372 = vmatprep.subr.bf16.mxu0 0
  %373 = vmatpush1.bf16.msra.mxu0 %v323
  %374 = vmatprep.subr.bf16.mxu0 0
  %375 = vmatpush1.bf16.msra.mxu0 %v324
  %376 = vmatprep.subr.bf16.mxu0 0
  %377 = vmatpush1.bf16.msra.mxu0 %v325
  %378 = vmatprep.subr.bf16.mxu0 0
  %379 = vmatpush1.bf16.msra.mxu0 %v326
  %380 = vmatprep.subr.bf16.mxu0 0
  %381 = vmatpush1.bf16.msra.mxu0 %v327
  %382 = vmatprep.subr.bf16.mxu0 0
  %383 = vmatpush1.bf16.msra.mxu0 %v328
  %384 = vmatprep.subr.bf16.mxu0 0
  %385 = vmatpush1.bf16.msra.mxu0 %v329
  %386 = vmatprep.subr.bf16.mxu0 0
  %387 = vmatpush1.bf16.msra.mxu0 %v330
  %388 = vmatprep.subr.bf16.mxu0 0
  %389 = vmatpush1.bf16.msra.mxu0 %v331
  %390 = vmatprep.subr.bf16.mxu0 0
  %391 = vmatpush1.bf16.msra.mxu0 %v332
  %392 = vmatprep.subr.bf16.mxu0 0
  %393 = vmatpush1.bf16.msra.mxu0 %v333
  %394 = vmatprep.subr.bf16.mxu0 0
  %395 = vmatpush1.bf16.msra.mxu0 %v334
  %396 = vmatprep.subr.bf16.mxu0 0
  %397 = vmatpush1.bf16.msra.mxu0 %v335
  %398 = vmatprep.subr.bf16.mxu0 0
  %399 = vmatpush1.bf16.msra.mxu0 %v336
  %400 = vmatprep.subr.bf16.mxu0 0
  %401 = vmatpush1.bf16.msra.mxu0 %v337
  %402 = vmatprep.mubr.bf16.mxu0 %v185
  %403 = vmatmul.mubr.bf16.gmra.mrb[0].mxu0 %v184
  %v404 = vpop.f32.mrb[0].mxu0
  %v405 = vadd.f32 0.0, %v404
  %v406 = vpop.f32.mrb[0].mxu0
  %v407 = vpop.f32.mrb[0].mxu0
  %v408 = vadd.f32 0.0, %v407
  %v409 = vpop.f32.mrb[0].mxu0
  %410 = vmatprep.mubr.bf16.mxu0 %v188
  %411 = vmatmul.mubr.bf16.gmra.mrb[0].mxu0 %v187
  %v412 = vpop.f32.mrb[0].mxu0
  %v413 = vadd.f32 0.0, %v412
  %v414 = vpop.f32.mrb[0].mxu0
  %v415 = vpop.f32.mrb[0].mxu0
  %v416 = vadd.f32 0.0, %v415
  %v417 = vpop.f32.mrb[0].mxu0
  %418 = vmatprep.mubr.bf16.mxu0 %v191
  %419 = vmatmul.mubr.bf16.gmra.mrb[0].mxu0 %v190
  %v420 = vpop.f32.mrb[0].mxu0
  %v421 = vadd.f32 0.0, %v420
  %v422 = vpop.f32.mrb[0].mxu0
  %v423 = vpop.f32.mrb[0].mxu0
  %v424 = vadd.f32 0.0, %v423
  %v425 = vpop.f32.mrb[0].mxu0
  %426 = vmatprep.mubr.bf16.mxu0 %v194
  %427 = vmatmul.mubr.bf16.gmra.mrb[0].mxu0 %v193
  %v428 = vpop.f32.mrb[0].mxu0
  %v429 = vadd.f32 0.0, %v428
  %v430 = vpop.f32.mrb[0].mxu0
  %v431 = vpop.f32.mrb[0].mxu0
  %v432 = vadd.f32 0.0, %v431
  %v433 = vpop.f32.mrb[0].mxu0
  %434 = vmatprep.mubr.bf16.mxu0 %v197
  %435 = vmatmul.mubr.bf16.gmra.mrb[0].mxu0 %v196
  %v436 = vpop.f32.mrb[0].mxu0
  %v437 = vadd.f32 0.0, %v436
  %v438 = vpop.f32.mrb[0].mxu0
  %v439 = vpop.f32.mrb[0].mxu0
  %v440 = vadd.f32 0.0, %v439
  %v441 = vpop.f32.mrb[0].mxu0
  %442 = vmatprep.mubr.bf16.mxu0 %v200
  %443 = vmatmul.mubr.bf16.gmra.mrb[0].mxu0 %v199
  %v444 = vpop.f32.mrb[0].mxu0
  %v445 = vadd.f32 0.0, %v444
  %v446 = vpop.f32.mrb[0].mxu0
  %v447 = vpop.f32.mrb[0].mxu0
  %v448 = vadd.f32 0.0, %v447
  %v449 = vpop.f32.mrb[0].mxu0
  %450 = vmatprep.mubr.bf16.mxu0 %v203
  %451 = vmatmul.mubr.bf16.gmra.mrb[0].mxu0 %v202
  %v452 = vpop.f32.mrb[0].mxu0
  %v453 = vadd.f32 0.0, %v452
  %v454 = vpop.f32.mrb[0].mxu0
  %v455 = vpop.f32.mrb[0].mxu0
  %v456 = vpop.f32.mrb[0].mxu0
  %457 = vdwg.mxu0
  %458 = vmatprep.subr.bf16.mxu0 0
  %459 = vmatpush1.bf16.msra.mxu0 %v338
  %460 = vmatprep.subr.bf16.mxu0 0
  %461 = vmatpush1.bf16.msra.mxu0 %v339
  %462 = vmatprep.subr.bf16.mxu0 0
  %463 = vmatpush1.bf16.msra.mxu0 %v340
  %464 = vmatprep.subr.bf16.mxu0 0
  %465 = vmatpush1.bf16.msra.mxu0 %v341
  %466 = vmatprep.subr.bf16.mxu0 0
  %467 = vmatpush1.bf16.msra.mxu0 %v342
  %468 = vmatprep.subr.bf16.mxu0 0
  %469 = vmatpush1.bf16.msra.mxu0 %v343
  %470 = vmatprep.subr.bf16.mxu0 0
  %471 = vmatpush1.bf16.msra.mxu0 %v344
  %472 = vmatprep.subr.bf16.mxu0 0
  %473 = vmatpush1.bf16.msra.mxu0 %v345
  %474 = vmatprep.subr.bf16.mxu0 0
  %475 = vmatpush1.bf16.msra.mxu0 0
  %476 = vmatprep.subr.bf16.mxu0 0
  %477 = vmatpush1.bf16.msra.mxu0 0
  %478 = vmatprep.subr.bf16.mxu0 0
  %479 = vmatpush1.bf16.msra.mxu0 0
  %480 = vmatprep.subr.bf16.mxu0 0
  %481 = vmatpush1.bf16.msra.mxu0 0
  %482 = vmatprep.subr.bf16.mxu0 0
  %483 = vmatpush1.bf16.msra.mxu0 0
  %484 = vmatprep.subr.bf16.mxu0 0
  %485 = vmatpush1.bf16.msra.mxu0 0
  %486 = vmatprep.subr.bf16.mxu0 0
  %487 = vmatpush1.bf16.msra.mxu0 0
  %488 = vmatprep.subr.bf16.mxu0 0
  %489 = vmatpush1.bf16.msra.mxu0 0
  %490 = vmatprep.mubr.bf16.mxu0 0
  %491 = vmatmul.mubr.bf16.gmra.mrb[0].mxu0 %v186
  %v492 = vpop.f32.mrb[0].mxu0
  %v493 = vadd.f32 %v405, %v492
  %v494 = vpop.f32.mrb[0].mxu0
  %v495 = vpop.f32.mrb[0].mxu0
  %v496 = vadd.f32 %v408, %v495
  %v497 = vpop.f32.mrb[0].mxu0
  %498 = vmatprep.mubr.bf16.mxu0 0
  %499 = vmatmul.mubr.bf16.gmra.mrb[0].mxu0 %v189
  %v500 = vpop.f32.mrb[0].mxu0
  %v501 = vadd.f32 %v413, %v500
  %v502 = vpop.f32.mrb[0].mxu0
  %v503 = vpop.f32.mrb[0].mxu0
  %v504 = vadd.f32 %v416, %v503
  %v505 = vpop.f32.mrb[0].mxu0
  %506 = vmatprep.mubr.bf16.mxu0 0
  %507 = vmatmul.mubr.bf16.gmra.mrb[0].mxu0 %v192
  %v508 = vpop.f32.mrb[0].mxu0
  %v509 = vadd.f32 %v421, %v508
  %v510 = vpop.f32.mrb[0].mxu0
  %v511 = vpop.f32.mrb[0].mxu0
  %v512 = vadd.f32 %v424, %v511
  %v513 = vpop.f32.mrb[0].mxu0
  %514 = vmatprep.mubr.bf16.mxu0 0
  %515 = vmatmul.mubr.bf16.gmra.mrb[0].mxu0 %v195
  %v516 = vpop.f32.mrb[0].mxu0
  %v517 = vadd.f32 %v429, %v516
  %v518 = vpop.f32.mrb[0].mxu0
  %v519 = vpop.f32.mrb[0].mxu0
  %v520 = vadd.f32 %v432, %v519
  %v521 = vpop.f32.mrb[0].mxu0
  %522 = vmatprep.mubr.bf16.mxu0 0
  %523 = vmatmul.mubr.bf16.gmra.mrb[0].mxu0 %v198
  %v524 = vpop.f32.mrb[0].mxu0
  %v525 = vadd.f32 %v437, %v524
  %v526 = vpop.f32.mrb[0].mxu0
  %v527 = vpop.f32.mrb[0].mxu0
  %v528 = vadd.f32 %v440, %v527
  %v529 = vpop.f32.mrb[0].mxu0
  %530 = vmatprep.mubr.bf16.mxu0 0
  %531 = vmatmul.mubr.bf16.gmra.mrb[0].mxu0 %v201
  %v532 = vpop.f32.mrb[0].mxu0
  %v533 = vadd.f32 %v445, %v532
  %v534 = vpop.f32.mrb[0].mxu0
  %v535 = vpop.f32.mrb[0].mxu0
  %v536 = vadd.f32 %v448, %v535
  %v537 = vpop.f32.mrb[0].mxu0
  %538 = vmatprep.mubr.bf16.mxu0 0
  %539 = vmatmul.mubr.bf16.gmra.mrb[0].mxu0 %v204
  %v540 = vpop.f32.mrb[0].mxu0
  %v541 = vadd.f32 %v453, %v540
  %v542 = vpop.f32.mrb[0].mxu0
  %v543 = vpop.f32.mrb[0].mxu0
  %v544 = vpop.f32.mrb[0].mxu0
  %545 = vdwg.mxu0
  %v546 = vadd.f32 %v32, %v493
  %v547 = vadd.f32 %v33, %v496
  %v548 = vadd.f32 %v34, %v501
  %v549 = vadd.f32 %v35, %v504
  %v550 = vadd.f32 %v36, %v509
  %v551 = vadd.f32 %v37, %v512
  %v552 = vadd.f32 %v38, %v517
  %v553 = vadd.f32 %v39, %v520
  %v554 = vadd.f32 %v40, %v525
  %v555 = vadd.f32 %v41, %v528
  %v556 = vadd.f32 %v42, %v533
  %v557 = vadd.f32 %v43, %v536
  %v558 = vadd.f32 %v44, %v541
  %559 = vst [vmem:[#allocation2] sm:$0xff] %v546
  %560 = vst [vmem:[#allocation2 + $0x8] sm:$0xff] %v547
  %561 = vst [vmem:[#allocation2 + $0x10] sm:$0xff] %v548
  %562 = vst [vmem:[#allocation2 + $0x18] sm:$0xff] %v549
  %563 = vst [vmem:[#allocation2 + $0x20] sm:$0xff] %v550
  %564 = vst [vmem:[#allocation2 + $0x28] sm:$0xff] %v551
  %565 = vst [vmem:[#allocation2 + $0x30] sm:$0xff] %v552
  %566 = vst [vmem:[#allocation2 + $0x38] sm:$0xff] %v553
  %567 = vst [vmem:[#allocation2 + $0x40] sm:$0xff] %v554
  %568 = vst [vmem:[#allocation2 + $0x48] sm:$0xff] %v555
  %569 = vst [vmem:[#allocation2 + $0x50] sm:$0xff] %v556
  %570 = vst [vmem:[#allocation2 + $0x58] sm:$0xff] %v557
  %571 = vst [vmem:[#allocation2 + $0x60] sm:$0xff] %v558
  // Predicated region
  $region18: #{entry_stem_fwd.31} parent=0 // pred_check
    %p572 = pneg %p15
  $region19: #{entry_stem_fwd.31} parent=0 // pred_check_branch
    %574 = sbr.rel (%p572) target = $region21
  $region20: #{entry_stem_fwd.31} parent=0 // pred_region
    %v575 = vld [vmem:[#allocation2] sm:$0xff]
    %v576 = vld [vmem:[#allocation2 + $0x8] sm:$0xff]
    %v577 = vld [vmem:[#allocation2 + $0x10] sm:$0xff]
    %v578 = vld [vmem:[#allocation2 + $0x18] sm:$0xff]
    %v579 = vld [vmem:[#allocation2 + $0x20] sm:$0xff]
    %v580 = vld [vmem:[#allocation2 + $0x28] sm:$0xff]
    %v581 = vld [vmem:[#allocation2 + $0x30] sm:$0xff]
    %v582 = vld [vmem:[#allocation2 + $0x38] sm:$0xff]
    %v583 = vld [vmem:[#allocation2 + $0x40] sm:$0xff]
    %v584 = vld [vmem:[#allocation2 + $0x48] sm:$0xff]
    %v585 = vld [vmem:[#allocation2 + $0x50] sm:$0xff]
    %v586 = vld [vmem:[#allocation2 + $0x58] sm:$0xff]
    %v587 = vld [vmem:[#allocation2 + $0x60] sm:$0xff]
    %v588 = vld [vmem:[%s2] sm:$0x1]
    %v590 = vlaneseq
    %v591 = vshrl.u32 %v590, 7
    %v592 = vsub.s32 0, %v591
    %v593 = vrot.slane %v588, %v592
    %v595 = vadd.f32 %v575, %v593
    %v596 = vadd.f32 %v576, %v593
    %v597 = vadd.f32 %v577, %v593
    %v598 = vadd.f32 %v578, %v593
    %v599 = vadd.f32 %v579, %v593
    %v600 = vadd.f32 %v580, %v593
    %v601 = vadd.f32 %v581, %v593
    %v602 = vadd.f32 %v582, %v593
    %v603 = vadd.f32 %v583, %v593
    %v604 = vadd.f32 %v584, %v593
    %v605 = vadd.f32 %v585, %v593
    %v606 = vadd.f32 %v586, %v593
    %v607 = vadd.f32 %v587, %v593
    %608 = vst [vmem:[%s3] sm:$0xff] %v595
    %609 = vst [vmem:[%s3 + $0x8] sm:$0xff] %v596
    %610 = vst [vmem:[%s3 + $0x10] sm:$0xff] %v597
    %611 = vst [vmem:[%s3 + $0x18] sm:$0xff] %v598
    %612 = vst [vmem:[%s3 + $0x20] sm:$0xff] %v599
    %613 = vst [vmem:[%s3 + $0x28] sm:$0xff] %v600
    %614 = vst [vmem:[%s3 + $0x30] sm:$0xff] %v601
    %615 = vst [vmem:[%s3 + $0x38] sm:$0xff] %v602
    %616 = vst [vmem:[%s3 + $0x40] sm:$0xff] %v603
    %617 = vst [vmem:[%s3 + $0x48] sm:$0xff] %v604
    %618 = vst [vmem:[%s3 + $0x50] sm:$0xff] %v605
    %619 = vst [vmem:[%s3 + $0x58] sm:$0xff] %v606
    %620 = vst [vmem:[%s3 + $0x60] sm:$0xff] %v607
  $region21: #{entry_stem_fwd.31} parent=0 // pred_fallthru
    _
  // Predicated region
  $region22: #{entry_stem_fwd.31} parent=0 // pred_check
    _
  $region23: #{entry_stem_fwd.31} parent=0 // pred_check_branch
    %622 = sbr.rel (0) target = $region25
  $region24: #{entry_stem_fwd.31} parent=0 // pred_region
    _
  $region25: #{entry_stem_fwd.31} parent=0 // pred_fallthru
    _
  // Predicated region
  $region26: #{entry_stem_fwd.31} parent=0 // pred_check
    _
  $region27: #{entry_stem_fwd.31} parent=0 // pred_check_branch
    %624 = sbr.rel (0) target = $region29
  $region28: #{entry_stem_fwd.31} parent=0 // pred_region
    _
  $region29: #{entry_stem_fwd.31} parent=0 // pred_fallthru
    _

// kernel: entry_stem_fwd.32
$region0: #{entry_stem_fwd.32}
  #allocation0 [shape = 'u32[]', space=smem, size = 0x4, offset = 0x4, fixed_abs, tag = 'smem constant byte address 0x4 - core index']
  #allocation1 [shape = 'u32[144,128]{1,0:T(1,128)}', space=vmem, size = 0x12000, scoped, tag = 'internal scratch']
  #allocation2 [shape = 'f32[32,128]{1,0:T(8,128)}', space=vmem, size = 0x4000, scoped, tag = 'scratch operand']
  %s0 = inlined_call_operand.vmem [shape: bf16[32,128], index: 0, kind: input, shape index: {}]
  %s1 = inlined_call_operand.vmem [shape: bf16[128,128], index: 1, kind: input, shape index: {}]
  %s2 = inlined_call_operand.vmem [shape: f32[1,128], index: 2, kind: input, shape index: {}]
  %s3 = inlined_call_operand.vmem [shape: f32[32,128], index: 3, kind: output, shape index: {}]
  %s4 = sld [smem:[#allocation0]]
  $region30: #{entry_stem_fwd.32} parent=0
    _
  %s6 = ssub.s32 1, %s4
  %s7 = scalar_select 0, %s6, %s4
  // Predicated region
  $region2: #{entry_stem_fwd.32} parent=0 // pred_check
    _
  $region3: #{entry_stem_fwd.32} parent=0 // pred_check_branch
    %9 = sbr.rel (0) target = $region5
  $region4: #{entry_stem_fwd.32} parent=0 // pred_region
    _
  $region5: #{entry_stem_fwd.32} parent=0 // pred_fallthru
    _
  // Predicated region
  $region6: #{entry_stem_fwd.32} parent=0 // pred_check
    _
  $region7: #{entry_stem_fwd.32} parent=0 // pred_check_branch
    %11 = sbr.rel (0) target = $region9
  $region8: #{entry_stem_fwd.32} parent=0 // pred_region
    _
  $region9: #{entry_stem_fwd.32} parent=0 // pred_fallthru
    _
  // Predicated region
  $region10: #{entry_stem_fwd.32} parent=0 // pred_check
    _
  $region11: #{entry_stem_fwd.32} parent=0 // pred_check_branch
    %13 = sbr.rel (0) target = $region13
  $region12: #{entry_stem_fwd.32} parent=0 // pred_region
    _
  $region13: #{entry_stem_fwd.32} parent=0 // pred_fallthru
    _
  %p15 = scmp.eq.s32.totalorder 0, 0
  // Predicated region
  $region14: #{entry_stem_fwd.32} parent=0 // pred_check
    %p16 = pneg %p15
  $region15: #{entry_stem_fwd.32} parent=0 // pred_check_branch
    %18 = sbr.rel (%p16) target = $region17
  $region16: #{entry_stem_fwd.32} parent=0 // pred_region
    %19 = vst [vmem:[#allocation2] sm:$0xff] 0.0
    %20 = vst [vmem:[#allocation2 + $0x8] sm:$0xff] 0.0
    %21 = vst [vmem:[#allocation2 + $0x10] sm:$0xff] 0.0
    %22 = vst [vmem:[#allocation2 + $0x18] sm:$0xff] 0.0
  $region17: #{entry_stem_fwd.32} parent=0 // pred_fallthru
    _
  %v23 = vld [vmem:[#allocation2] sm:$0xff]
  %v24 = vld [vmem:[#allocation2 + $0x8] sm:$0xff]
  %v25 = vld [vmem:[#allocation2 + $0x10] sm:$0xff]
  %v26 = vld [vmem:[#allocation2 + $0x18] sm:$0xff]
  %v27 = vld [vmem:[%s0] sm:$0xf]
  %v28 = vld [vmem:[%s0 + $0x4] sm:$0xf]
  %v29 = vld [vmem:[%s0 + $0x8] sm:$0xf]
  %v30 = vld [vmem:[%s0 + $0xc] sm:$0xf]
  %v31 = vld [vmem:[%s1] sm:$0xf]
  %v32 = vld [vmem:[%s1 + $0x4] sm:$0xf]
  %v33 = vld [vmem:[%s1 + $0x8] sm:$0xf]
  %v34 = vld [vmem:[%s1 + $0xc] sm:$0xf]
  %v35 = vld [vmem:[%s1 + $0x10] sm:$0xf]
  %v36 = vld [vmem:[%s1 + $0x14] sm:$0xf]
  %v37 = vld [vmem:[%s1 + $0x18] sm:$0xf]
  %v38 = vld [vmem:[%s1 + $0x1c] sm:$0xf]
  %v39 = vld [vmem:[%s1 + $0x20] sm:$0xf]
  %v40 = vld [vmem:[%s1 + $0x24] sm:$0xf]
  %v41 = vld [vmem:[%s1 + $0x28] sm:$0xf]
  %v42 = vld [vmem:[%s1 + $0x2c] sm:$0xf]
  %v43 = vld [vmem:[%s1 + $0x30] sm:$0xf]
  %v44 = vld [vmem:[%s1 + $0x34] sm:$0xf]
  %v45 = vld [vmem:[%s1 + $0x38] sm:$0xf]
  %v46 = vld [vmem:[%s1 + $0x3c] sm:$0xf]
  %v51 = vunpack.c.l.b16 %v27
  %v52 = vunpack.c.l.b16 %v28
  %v53 = vunpack.c.l.b16 %v29
  %v54 = vunpack.c.l.b16 %v30
  %v55 = vpack.c.b16 %v52, %v51
  %v56 = vpack.c.b16 %v54, %v53
  %v75 = vunpack.c.l.b16 %v31
  %v76 = vunpack.c.l.b16 %v32
  %v77 = vunpack.c.l.b16 %v33
  %v78 = vunpack.c.l.b16 %v34
  %v79 = vunpack.c.l.b16 %v35
  %v80 = vunpack.c.l.b16 %v36
  %v81 = vunpack.c.l.b16 %v37
  %v82 = vunpack.c.l.b16 %v38
  %v83 = vunpack.c.l.b16 %v39
  %v84 = vunpack.c.l.b16 %v40
  %v85 = vunpack.c.l.b16 %v41
  %v86 = vunpack.c.l.b16 %v42
  %v87 = vunpack.c.l.b16 %v43
  %v88 = vunpack.c.l.b16 %v44
  %v89 = vunpack.c.l.b16 %v45
  %v90 = vunpack.c.l.b16 %v46
  %v91 = vpack.c.b16 %v76, %v75
  %v92 = vpack.c.b16 %v78, %v77
  %v93 = vpack.c.b16 %v80, %v79
  %v94 = vpack.c.b16 %v82, %v81
  %v95 = vpack.c.b16 %v84, %v83
  %v96 = vpack.c.b16 %v86, %v85
  %v97 = vpack.c.b16 %v88, %v87
  %v98 = vpack.c.b16 %v90, %v89
  %107 = vmatprep.subr.bf16.mxu0 0
  %108 = vmatpush1.bf16.msra.mxu0 %v91
  %109 = vmatprep.subr.bf16.mxu0 0
  %110 = vmatpush1.bf16.msra.mxu0 %v92
  %111 = vmatprep.subr.bf16.mxu0 0
  %112 = vmatpush1.bf16.msra.mxu0 %v93
  %113 = vmatprep.subr.bf16.mxu0 0
  %114 = vmatpush1.bf16.msra.mxu0 %v94
  %115 = vmatprep.subr.bf16.mxu0 0
  %116 = vmatpush1.bf16.msra.mxu0 %v95
  %117 = vmatprep.subr.bf16.mxu0 0
  %118 = vmatpush1.bf16.msra.mxu0 %v96
  %119 = vmatprep.subr.bf16.mxu0 0
  %120 = vmatpush1.bf16.msra.mxu0 %v97
  %121 = vmatprep.subr.bf16.mxu0 0
  %122 = vmatpush1.bf16.msra.mxu0 %v98
  %123 = vmatprep.subr.bf16.mxu0 0
  %124 = vmatpush1.bf16.msra.mxu0 0
  %125 = vmatprep.subr.bf16.mxu0 0
  %126 = vmatpush1.bf16.msra.mxu0 0
  %127 = vmatprep.subr.bf16.mxu0 0
  %128 = vmatpush1.bf16.msra.mxu0 0
  %129 = vmatprep.subr.bf16.mxu0 0
  %130 = vmatpush1.bf16.msra.mxu0 0
  %131 = vmatprep.subr.bf16.mxu0 0
  %132 = vmatpush1.bf16.msra.mxu0 0
  %133 = vmatprep.subr.bf16.mxu0 0
  %134 = vmatpush1.bf16.msra.mxu0 0
  %135 = vmatprep.subr.bf16.mxu0 0
  %136 = vmatpush1.bf16.msra.mxu0 0
  %137 = vmatprep.subr.bf16.mxu0 0
  %138 = vmatpush1.bf16.msra.mxu0 0
  %139 = vmatprep.mubr.bf16.mxu0 0
  %140 = vmatmul.mubr.bf16.gmra.mrb[0].mxu0 %v55
  %v141 = vpop.f32.mrb[0].mxu0
  %v142 = vadd.f32 0.0, %v141
  %v143 = vpop.f32.mrb[0].mxu0
  %v144 = vpop.f32.mrb[0].mxu0
  %v145 = vadd.f32 0.0, %v144
  %v146 = vpop.f32.mrb[0].mxu0
  %147 = vmatprep.mubr.bf16.mxu0 0
  %148 = vmatmul.mubr.bf16.gmra.mrb[0].mxu0 %v56
  %v149 = vpop.f32.mrb[0].mxu0
  %v150 = vadd.f32 0.0, %v149
  %v151 = vpop.f32.mrb[0].mxu0
  %v152 = vpop.f32.mrb[0].mxu0
  %v153 = vadd.f32 0.0, %v152
  %v154 = vpop.f32.mrb[0].mxu0
  %155 = vdwg.mxu0
  %v156 = vadd.f32 %v23, %v142
  %v157 = vadd.f32 %v24, %v145
  %v158 = vadd.f32 %v25, %v150
  %v159 = vadd.f32 %v26, %v153
  %160 = vst [vmem:[#allocation2] sm:$0xff] %v156
  %161 = vst [vmem:[#allocation2 + $0x8] sm:$0xff] %v157
  %162 = vst [vmem:[#allocation2 + $0x10] sm:$0xff] %v158
  %163 = vst [vmem:[#allocation2 + $0x18] sm:$0xff] %v159
  // Predicated region
  $region18: #{entry_stem_fwd.32} parent=0 // pred_check
    %p164 = pneg %p15
  $region19: #{entry_stem_fwd.32} parent=0 // pred_check_branch
    %166 = sbr.rel (%p164) target = $region21
  $region20: #{entry_stem_fwd.32} parent=0 // pred_region
    %v167 = vld [vmem:[#allocation2] sm:$0xff]
    %v168 = vld [vmem:[#allocation2 + $0x8] sm:$0xff]
    %v169 = vld [vmem:[#allocation2 + $0x10] sm:$0xff]
    %v170 = vld [vmem:[#allocation2 + $0x18] sm:$0xff]
    %v171 = vld [vmem:[%s2] sm:$0x1]
    %v173 = vlaneseq
    %v174 = vshrl.u32 %v173, 7
    %v175 = vsub.s32 0, %v174
    %v176 = vrot.slane %v171, %v175
    %v178 = vadd.f32 %v167, %v176
    %v179 = vadd.f32 %v168, %v176
    %v180 = vadd.f32 %v169, %v176
    %v181 = vadd.f32 %v170, %v176
    %182 = vst [vmem:[%s3] sm:$0xff] %v178
    %183 = vst [vmem:[%s3 + $0x8] sm:$0xff] %v179
    %184 = vst [vmem:[%s3 + $0x10] sm:$0xff] %v180
    %185 = vst [vmem:[%s3 + $0x18] sm:$0xff] %v181
  $region21: #{entry_stem_fwd.32} parent=0 // pred_fallthru
    _
  // Predicated region
  $region22: #{entry_stem_fwd.32} parent=0 // pred_check
    _
  $region23: #{entry_stem_fwd.32} parent=0 // pred_check_branch
    %187 = sbr.rel (0) target = $region25
  $region24: #{entry_stem_fwd.32} parent=0 // pred_region
    _
  $region25: #{entry_stem_fwd.32} parent=0 // pred_fallthru
    _
  // Predicated region
  $region26: #{entry_stem_fwd.32} parent=0 // pred_check
    _
  $region27: #{entry_stem_fwd.32} parent=0 // pred_check_branch
    %189 = sbr.rel (0) target = $region29
  $region28: #{entry_stem_fwd.32} parent=0 // pred_region
    _
  $region29: #{entry_stem_fwd.32} parent=0 // pred_fallthru
    _

// kernel: entry_stem_fwd.36
$region0: #{entry_stem_fwd.36}
  #allocation0 [shape = 'u32[]', space=smem, size = 0x4, offset = 0x4, fixed_abs, tag = 'smem constant byte address 0x4 - core index']
  #allocation1 [shape = 'u32[144,128]{1,0:T(1,128)}', space=vmem, size = 0x12000, scoped, tag = 'internal scratch']
  #allocation2 [shape = 'f32[104,128]{1,0:T(8,128)}', space=vmem, size = 0xd000, scoped, tag = 'scratch operand']
  %s0 = inlined_call_operand.vmem [shape: bf16[104,1152], index: 0, kind: input, shape index: {}]
  %s1 = inlined_call_operand.vmem [shape: bf16[1152,128], index: 1, kind: input, shape index: {}]
  %s2 = inlined_call_operand.vmem [shape: f32[1,128], index: 2, kind: input, shape index: {}]
  %s3 = inlined_call_operand.vmem [shape: f32[104,128], index: 3, kind: output, shape index: {}]
  %s4 = sld [smem:[#allocation0]]
  $region79: #{entry_stem_fwd.36} parent=0
    _
  %s6 = ssub.s32 1, %s4
  %s7 = scalar_select 0, %s6, %s4
  $region1: #{entry_stem_fwd.36} parent=0
    #allocation3 [shape = 'u8[159744]{0}', space=vmem, size = 0x27000, scoped, tag = 'input window, operand 0']
    loop: start=0, step=1, limit=5
    $region2: #{entry_stem_fwd.36} parent=1 // loop_pre_header
      _
    $region3: #{entry_stem_fwd.36} parent=1 // loop_header
      %s9 = sphi 0, %s13
      %p10 = scmp.ge.s32.totalorder %s9, 5
      %s16 = sphi 0, %s35
      %s17 = sphi 0, %s31
      %s18 = sphi 0, %s27
      %s19 = sphi 0, %s16
      %s20 = sphi 0, %s17
      %s21 = sphi 0, %s18
      %s22 = sphi 0, %s19
      %s23 = sphi 0, %s20
      %s24 = sphi 0, %s21
      %s40 = sphi 0, %s42
      %s43 = sphi 0, %s40
      %s44 = sphi 0, %s43
      %s60 = sphi 0, %s44
      %s68 = sphi 0, %s70
      %s71 = sphi 0, %s68
      %s72 = sphi 0, %s71
      %s88 = sphi 0, %s72
      %s94 = sphi 0, %s96
      %s97 = sphi 0, %s94
      %s98 = sphi 0, %s97
      %s114 = sphi 0, %s98
      %s122 = sphi 0, %s124
      %s125 = sphi 0, %s122
      %s126 = sphi 0, %s125
      %s142 = sphi 0, %s126
    $region4: #{entry_stem_fwd.36} parent=1 // loop_header_branch
      %12 = sbr.rel (%p10) target = $region8
    $region5: #{entry_stem_fwd.36} parent=1 // loop_body
      %s14 = ssub.s32 %s9, 1
      %s15 = ssub.s32 %s9, 2
      %s25 = sadd.s32 1, %s18
      %p26 = scmp.ge.s32.totalorder %s25, 3
      %s27 = scalar_select %p26, 0, %s25
      %s28 = sadd.s32 1, %s17
      %s29 = scalar_select %p26, %s28, %s17
      %p30 = scmp.ge.s32.totalorder %s29, 1
      %s31 = scalar_select %p30, 0, %s29
      %s32 = sadd.s32 1, %s16
      %s33 = scalar_select %p30, %s32, %s16
      %p34 = scmp.ge.s32.totalorder %s33, 1
      %s35 = scalar_select %p34, 0, %s33
      %s36 = ssub.s32 %s16, %s35
      %s37 = ssub.s32 %s18, %s27
      %s38 = sor.u32 %s36, %s37
      %p39 = scmp.eq.s32.totalorder %s38, 0
      %s41 = sadd.s32 %s40, 1
      %s42 = scalar_select %p39, %s40, %s41
      %p45 = pneg %p39
      %p46 = scmp.eq.s32.totalorder %s9, 2
      %p47 = por %p45, %p46
      %p48 = scmp.ne.s32.totalorder %s40, %s43
      %p49 = scmp.eq.s32.totalorder %s9, 0
      %p50 = por %p48, %p49
      %p51 = scmp.ne.s32.totalorder %s40, %s43
      %p52 = scmp.eq.s32.totalorder %s14, 2
      %p53 = por %p51, %p52
      %p54 = scmp.ne.s32.totalorder %s43, %s44
      %p55 = scmp.eq.s32.totalorder %s14, 0
      %p56 = por %p54, %p55
      %p57 = scmp.ne.s32.totalorder %s43, %s44
      %p58 = scmp.eq.s32.totalorder %s15, 2
      %p59 = por %p57, %p58
      %p61 = scmp.ne.s32.totalorder %s44, %s60
      %p62 = scmp.eq.s32.totalorder %s15, 0
      %p63 = por %p61, %p62
      %s64 = ssub.s32 %s18, %s27
      %s65 = ssub.s32 %s17, %s31
      %s66 = sor.u32 %s64, %s65
      %p67 = scmp.eq.s32.totalorder %s66, 0
      %s69 = sadd.s32 %s68, 1
      %s70 = scalar_select %p67, %s68, %s69
      %p73 = pneg %p67
      %p74 = scmp.eq.s32.totalorder %s9, 2
      %p75 = por %p73, %p74
      %p76 = scmp.ne.s32.totalorder %s68, %s71
      %p77 = scmp.eq.s32.totalorder %s9, 0
      %p78 = por %p76, %p77
      %p79 = scmp.ne.s32.totalorder %s68, %s71
      %p80 = scmp.eq.s32.totalorder %s14, 2
      %p81 = por %p79, %p80
      %p82 = scmp.ne.s32.totalorder %s71, %s72
      %p83 = scmp.eq.s32.totalorder %s14, 0
      %p84 = por %p82, %p83
      %p85 = scmp.ne.s32.totalorder %s71, %s72
      %p86 = scmp.eq.s32.totalorder %s15, 2
      %p87 = por %p85, %p86
      %p89 = scmp.ne.s32.totalorder %s72, %s88
      %p90 = scmp.eq.s32.totalorder %s15, 0
      %p91 = por %p89, %p90
      %s92 = ssub.s32 %s17, %s31
      %p93 = scmp.eq.s32.totalorder %s92, 0
      %s95 = sadd.s32 %s94, 1
      %s96 = scalar_select %p93, %s94, %s95
      %p99 = pneg %p93
      %p100 = scmp.eq.s32.totalorder %s9, 2
      %p101 = por %p99, %p100
      %p102 = scmp.ne.s32.totalorder %s94, %s97
      %p103 = scmp.eq.s32.totalorder %s9, 0
      %p104 = por %p102, %p103
      %p105 = scmp.ne.s32.totalorder %s94, %s97
      %p106 = scmp.eq.s32.totalorder %s14, 2
      %p107 = por %p105, %p106
      %p108 = scmp.ne.s32.totalorder %s97, %s98
      %p109 = scmp.eq.s32.totalorder %s14, 0
      %p110 = por %p108, %p109
      %p111 = scmp.ne.s32.totalorder %s97, %s98
      %p112 = scmp.eq.s32.totalorder %s15, 2
      %p113 = por %p111, %p112
      %p115 = scmp.ne.s32.totalorder %s98, %s114
      %p116 = scmp.eq.s32.totalorder %s15, 0
      %p117 = por %p115, %p116
      %s118 = ssub.s32 %s16, %s35
      %s119 = ssub.s32 %s17, %s31
      %s120 = sor.u32 %s118, %s119
      %p121 = scmp.eq.s32.totalorder %s120, 0
      %s123 = sadd.s32 %s122, 1
      %s124 = scalar_select %p121, %s122, %s123
      %p127 = pneg %p121
      %p128 = scmp.eq.s32.totalorder %s9, 2
      %p129 = por %p127, %p128
      %p130 = scmp.ne.s32.totalorder %s122, %s125
      %p131 = scmp.eq.s32.totalorder %s9, 0
      %p132 = por %p130, %p131
      %p133 = scmp.ne.s32.totalorder %s122, %s125
      %p134 = scmp.eq.s32.totalorder %s14, 2
      %p135 = por %p133, %p134
      %p136 = scmp.ne.s32.totalorder %s125, %s126
      %p137 = scmp.eq.s32.totalorder %s14, 0
      %p138 = por %p136, %p137
      %p139 = scmp.ne.s32.totalorder %s125, %s126
      %p140 = scmp.eq.s32.totalorder %s15, 2
      %p141 = por %p139, %p140
      %p143 = scmp.ne.s32.totalorder %s126, %s142
      %p144 = scmp.eq.s32.totalorder %s15, 0
      %p145 = por %p143, %p144
      %p146 = scmp.le.s32.totalorder 1, %s9
      %p147 = scmp.lt.s32.totalorder %s9, 4
      %p148 = pnand %p146, %p147
      %p149 = pneg %p148
      // Predicated region
      $region9: #{entry_stem_fwd.36} parent=5 // pred_check
        _
      $region10: #{entry_stem_fwd.36} parent=5 // pred_check_branch
        %151 = sbr.rel (%p148) target = $region12
      $region11: #{entry_stem_fwd.36} parent=5 // pred_region
        %s152 = ssub.s32 %s9, 1
        // Predicated region
        $region13: #{entry_stem_fwd.36} parent=11 // pred_check
          %p153 = pneg %p110
        $region14: #{entry_stem_fwd.36} parent=11 // pred_check_branch
          %155 = sbr.rel (%p153) target = $region16
        $region15: #{entry_stem_fwd.36} parent=11 // pred_region
          %p156 = scmp.lt.s32.totalorder %s20, 0
          %s157 = scalar_select %p156, %s20, 0
          %s158 = scalar_lea.vmem %s2, %s157
        $region16: #{entry_stem_fwd.36} parent=11 // pred_fallthru
          _
      $region12: #{entry_stem_fwd.36} parent=5 // pred_fallthru
        _
      %p159 = scmp.lt.s32.totalorder %s9, 3
      // Predicated region
      $region17: #{entry_stem_fwd.36} parent=5 // pred_check
        %p160 = pneg %p159
      $region18: #{entry_stem_fwd.36} parent=5 // pred_check_branch
        %162 = sbr.rel (%p160) target = $region20
      $region19: #{entry_stem_fwd.36} parent=5 // pred_region
        // Predicated region
        $region21: #{entry_stem_fwd.36} parent=19 // pred_check
          %p163 = pneg %p50
        $region22: #{entry_stem_fwd.36} parent=19 // pred_check_branch
          %165 = sbr.rel (%p163) target = $region24
        $region23: #{entry_stem_fwd.36} parent=19 // pred_region
          %s166 = sand.u32 %s40, 1
          %s167 = sand.u32 %s40, 1
          %s168 = smul.addr %s167, 156
          %s169 = scalar_lea.vmem [#allocation3], %s168
          %s170 = smul.u32 13, %s16
          %s171 = smul.u32 3, %s18
          %s172 = smul.addr %s170, 9
          %s173 = sadd.s32 %s171, %s172
          %s174 = smul.addr %s173, 4
          %s175 = scalar_lea.vmem %s0, %s174
          // Predicated region
          $region25: #{entry_stem_fwd.36} parent=23 // pred_check
            _
          $region26: #{entry_stem_fwd.36} parent=23 // pred_check_branch
            %177 = sbr.rel (0) target = $region28
          $region27: #{entry_stem_fwd.36} parent=23 // pred_region
            // Predicated region
            $region29: #{entry_stem_fwd.36} parent=27 // pred_check
              _
            $region30: #{entry_stem_fwd.36} parent=27 // pred_check_branch
              %179 = sbr.rel (0) target = $region32
            $region31: #{entry_stem_fwd.36} parent=27 // pred_region
              %s180 = scalar_lea.vmem %s175, 8
              %s181 = scalar_lea.vmem %s169, 8 [#allocation3]
              loop: start=0, step=1, limit=1
              $region33: #{entry_stem_fwd.36} parent=31 // loop_pre_header
                _
              $region34: #{entry_stem_fwd.36} parent=31 // loop_header
                %s183 = sphi 0, %s187
                %p184 = scmp.ge.s32.totalorder %s183, 1
                %s188 = sphi %s175, %s175
                %s189 = sphi %s169, %s169
              $region35: #{entry_stem_fwd.36} parent=31 // loop_header_branch
                %186 = sbr.rel (%p184) target = $region39
              $region36: #{entry_stem_fwd.36} parent=31 // loop_body
                %v190 = vld [vmem:[%s188] sm:$0xff]
                %191 = vst [vmem:[%s189] sm:$0xff] %v190
                %v192 = vld [vmem:[%s188 + $0x24] sm:$0xff]
                %193 = vst [vmem:[%s189 + $0xc] sm:$0xff] %v192
                %v194 = vld [vmem:[%s188 + $0x48] sm:$0xff]
                %195 = vst [vmem:[%s189 + $0x18] sm:$0xff] %v194
                %v196 = vld [vmem:[%s188 + $0x6c] sm:$0xff]
                %197 = vst [vmem:[%s189 + $0x24] sm:$0xff] %v196
                %v198 = vld [vmem:[%s188 + $0x90] sm:$0xff]
                %199 = vst [vmem:[%s189 + $0x30] sm:$0xff] %v198
                %v200 = vld [vmem:[%s188 + $0xb4] sm:$0xff]
                %201 = vst [vmem:[%s189 + $0x3c] sm:$0xff] %v200
                %v202 = vld [vmem:[%s188 + $0xd8] sm:$0xff]
                %203 = vst [vmem:[%s189 + $0x48] sm:$0xff] %v202
                %v204 = vld [vmem:[%s188 + $0xfc] sm:$0xff]
                %205 = vst [vmem:[%s189 + $0x54] sm:$0xff] %v204
                %v206 = vld [vmem:[%s188 + $0x120] sm:$0xff]
                %207 = vst [vmem:[%s189 + $0x60] sm:$0xff] %v206
                %v208 = vld [vmem:[%s188 + $0x144] sm:$0xff]
                %209 = vst [vmem:[%s189 + $0x6c] sm:$0xff] %v208
                %v210 = vld [vmem:[%s188 + $0x168] sm:$0xff]
                %211 = vst [vmem:[%s189 + $0x78] sm:$0xff] %v210
                %v212 = vld [vmem:[%s188 + $0x18c] sm:$0xff]
                %213 = vst [vmem:[%s189 + $0x84] sm:$0xff] %v212
                %v214 = vld [vmem:[%s188 + $0x1b0] sm:$0xff]
                %215 = vst [vmem:[%s189 + $0x90] sm:$0xff] %v214
              $region37: #{entry_stem_fwd.36} parent=31 // loop_footer
                %s187 = sadd.s32 1, %s183
              $region38: #{entry_stem_fwd.36} parent=31 // loop_footer_branch
                %182 = sbr.rel target = $region34
              $region39: #{entry_stem_fwd.36} parent=31 // loop_exit
                _
              loop: start=0, step=1, limit=1
              $region40: #{entry_stem_fwd.36} parent=31 // loop_pre_header
                _
              $region41: #{entry_stem_fwd.36} parent=31 // loop_header
                %s218 = sphi 0, %s222
                %p219 = scmp.ge.s32.totalorder %s218, 1
                %s223 = sphi %s180, %s180
                %s224 = sphi %s181, %s181
              $region42: #{entry_stem_fwd.36} parent=31 // loop_header_branch
                %221 = sbr.rel (%p219) target = $region46
              $region43: #{entry_stem_fwd.36} parent=31 // loop_body
                %v225 = vld [vmem:[%s223] sm:$0xf]
                %226 = vst [vmem:[%s224] sm:$0xf] %v225
                %v227 = vld [vmem:[%s223 + $0x24] sm:$0xf]
                %228 = vst [vmem:[%s224 + $0xc] sm:$0xf] %v227
                %v229 = vld [vmem:[%s223 + $0x48] sm:$0xf]
                %230 = vst [vmem:[%s224 + $0x18] sm:$0xf] %v229
                %v231 = vld [vmem:[%s223 + $0x6c] sm:$0xf]
                %232 = vst [vmem:[%s224 + $0x24] sm:$0xf] %v231
                %v233 = vld [vmem:[%s223 + $0x90] sm:$0xf]
                %234 = vst [vmem:[%s224 + $0x30] sm:$0xf] %v233
                %v235 = vld [vmem:[%s223 + $0xb4] sm:$0xf]
                %236 = vst [vmem:[%s224 + $0x3c] sm:$0xf] %v235
                %v237 = vld [vmem:[%s223 + $0xd8] sm:$0xf]
                %238 = vst [vmem:[%s224 + $0x48] sm:$0xf] %v237
                %v239 = vld [vmem:[%s223 + $0xfc] sm:$0xf]
                %240 = vst [vmem:[%s224 + $0x54] sm:$0xf] %v239
                %v241 = vld [vmem:[%s223 + $0x120] sm:$0xf]
                %242 = vst [vmem:[%s224 + $0x60] sm:$0xf] %v241
                %v243 = vld [vmem:[%s223 + $0x144] sm:$0xf]
                %244 = vst [vmem:[%s224 + $0x6c] sm:$0xf] %v243
                %v245 = vld [vmem:[%s223 + $0x168] sm:$0xf]
                %246 = vst [vmem:[%s224 + $0x78] sm:$0xf] %v245
                %v247 = vld [vmem:[%s223 + $0x18c] sm:$0xf]
                %248 = vst [vmem:[%s224 + $0x84] sm:$0xf] %v247
                %v249 = vld [vmem:[%s223 + $0x1b0] sm:$0xf]
                %250 = vst [vmem:[%s224 + $0x90] sm:$0xf] %v249
              $region44: #{entry_stem_fwd.36} parent=31 // loop_footer
                %s222 = sadd.s32 1, %s218
              $region45: #{entry_stem_fwd.36} parent=31 // loop_footer_branch
                %217 = sbr.rel target = $region41
              $region46: #{entry_stem_fwd.36} parent=31 // loop_exit
                _
            $region32: #{entry_stem_fwd.36} parent=27 // pred_fallthru
              _
          $region28: #{entry_stem_fwd.36} parent=23 // pred_fallthru
            _
          %251 = vnop
        $region24: #{entry_stem_fwd.36} parent=19 // pred_fallthru
          _
        // Predicated region
        $region47: #{entry_stem_fwd.36} parent=19 // pred_check
          %p252 = pneg %p78
        $region48: #{entry_stem_fwd.36} parent=19 // pred_check_branch
          %254 = sbr.rel (%p252) target = $region50
        $region49: #{entry_stem_fwd.36} parent=19 // pred_region
          %s255 = smul.u32 48, %s18
          %p256 = scmp.lt.s32.totalorder %s255, 143
          %s257 = scalar_select %p256, %s255, 143
          %p258 = scmp.lt.s32.totalorder %s17, 0
          %s259 = scalar_select %p258, %s17, 0
          %s260 = sadd.s32 %s259, %s257
          %s261 = smul.addr %s260, 4
          %s262 = scalar_lea.vmem %s1, %s261
          %s263 = smul.u32 48, %s18
        $region50: #{entry_stem_fwd.36} parent=19 // pred_fallthru
          _
      $region20: #{entry_stem_fwd.36} parent=5 // pred_fallthru
        _
      %p264 = scmp.le.s32.totalorder 1, %s9
      %p265 = scmp.lt.s32.totalorder %s9, 4
      %p266 = pnand %p264, %p265
      %p267 = pneg %p266
      // Predicated region
      $region51: #{entry_stem_fwd.36} parent=5 // pred_check
        _
      $region52: #{entry_stem_fwd.36} parent=5 // pred_check_branch
        %269 = sbr.rel (%p266) target = $region54
      $region53: #{entry_stem_fwd.36} parent=5 // pred_region
        %s270 = ssub.s32 %s9, 1
        %s271 = sand.u32 %s43, 1
        %s272 = sand.u32 %s43, 1
        %s273 = smul.addr %s272, 156
        %s274 = scalar_lea.vmem [#allocation3], %s273
        // Predicated region
        $region55: #{entry_stem_fwd.36} parent=53 // pred_check
          %p275 = pneg %p56
        $region56: #{entry_stem_fwd.36} parent=53 // pred_check_branch
          %277 = sbr.rel (%p275) target = $region58
        $region57: #{entry_stem_fwd.36} parent=53 // pred_region
          _
        $region58: #{entry_stem_fwd.36} parent=53 // pred_fallthru
          _
        %s278 = sand.u32 %s43, 1
        %s279 = sand.u32 %s43, 1
        %s280 = smul.addr %s279, 156
        %s281 = scalar_lea.vmem [#allocation3], %s280
        %p282 = pneg %p56
        %p283 = pneg %p53
        %s284 = smul.u32 48, %s21
        %p285 = scmp.lt.s32.totalorder %s284, 143
        %s286 = scalar_select %p285, %s284, 143
        %p287 = scmp.lt.s32.totalorder %s20, 0
        %s288 = scalar_select %p287, %s20, 0
        %s289 = sadd.s32 %s288, %s286
        %s290 = smul.addr %s289, 4
        %s291 = scalar_lea.vmem %s1, %s290
        %p292 = pneg %p84
        %p293 = pneg %p81
        %p294 = scmp.lt.s32.totalorder %s20, 0
        %s295 = scalar_select %p294, %s20, 0
        %s296 = scalar_lea.vmem %s2, %s295
        %p297 = pneg %p110
        %p298 = pneg %p107
        %p299 = pneg %p138
        %p300 = pneg %p135
        %s301 = smul.u32 13, %s19
        %p302 = scmp.lt.s32.totalorder %s301, 12
        %s303 = scalar_select %p302, %s301, 12
        %p304 = scmp.lt.s32.totalorder %s20, 0
        %s305 = scalar_select %p304, %s20, 0
        %s306 = sadd.s32 %s305, %s303
        %s307 = smul.addr %s306, 8
        %s308 = scalar_lea.vmem %s3, %s307
        %s309 = smul.u32 13, %s19
        %s310 = smul.u32 3, %s21
        %s311 = smul.u32 48, %s21
        %p312 = scmp.lt.s32.totalorder %s311, 143
        %s313 = scalar_select %p312, %s311, 143
        %p314 = scmp.lt.s32.totalorder %s20, 0
        %s315 = scalar_select %p314, %s20, 0
        %s316 = sadd.s32 %s315, %s313
        %s317 = smul.addr %s316, 4
        %s318 = scalar_lea.vmem %s1, %s317
        %s319 = smul.u32 48, %s21
        %p320 = scmp.lt.s32.totalorder %s20, 0
        %s321 = scalar_select %p320, %s20, 0
        %s322 = scalar_lea.vmem %s2, %s321
        %s323 = smul.u32 13, %s19
        %p324 = scmp.lt.s32.totalorder %s323, 12
        %s325 = scalar_select %p324, %s323, 12
        %p326 = scmp.lt.s32.totalorder %s20, 0
        %s327 = scalar_select %p326, %s20, 0
        %s328 = sadd.s32 %s327, %s325
        %s329 = smul.addr %s328, 8
        %s330 = scalar_lea.vmem %s3, %s329
        %s331 = smul.u32 13, %s19
        %p333 = scmp.eq.s32.totalorder %s21, 0
        // Predicated region
        $region59: #{entry_stem_fwd.36} parent=53 // pred_check
          %p334 = pneg %p333
        $region60: #{entry_stem_fwd.36} parent=53 // pred_check_branch
          %336 = sbr.rel (%p334) target = $region62
        $region61: #{entry_stem_fwd.36} parent=53 // pred_region
          %337 = vst [vmem:[#allocation2] sm:$0xff] 0.0
          %338 = vst [vmem:[#allocation2 + $0x8] sm:$0xff] 0.0
          %339 = vst [vmem:[#allocation2 + $0x10] sm:$0xff] 0.0
          %340 = vst [vmem:[#allocation2 + $0x18] sm:$0xff] 0.0
          %341 = vst [vmem:[#allocation2 + $0x20] sm:$0xff] 0.0
          %342 = vst [vmem:[#allocation2 + $0x28] sm:$0xff] 0.0
          %343 = vst [vmem:[#allocation2 + $0x30] sm:$0xff] 0.0
          %344 = vst [vmem:[#allocation2 + $0x38] sm:$0xff] 0.0
          %345 = vst [vmem:[#allocation2 + $0x40] sm:$0xff] 0.0
          %346 = vst [vmem:[#allocation2 + $0x48] sm:$0xff] 0.0
          %347 = vst [vmem:[#allocation2 + $0x50] sm:$0xff] 0.0
          %348 = vst [vmem:[#allocation2 + $0x58] sm:$0xff] 0.0
          %349 = vst [vmem:[#allocation2 + $0x60] sm:$0xff] 0.0
        $region62: #{entry_stem_fwd.36} parent=53 // pred_fallthru
          _
        %v350 = vld [vmem:[#allocation2] sm:$0xff]
        %v351 = vld [vmem:[#allocation2 + $0x8] sm:$0xff]
        %v352 = vld [vmem:[#allocation2 + $0x10] sm:$0xff]
        %v353 = vld [vmem:[#allocation2 + $0x18] sm:$0xff]
        %v354 = vld [vmem:[#allocation2 + $0x20] sm:$0xff]
        %v355 = vld [vmem:[#allocation2 + $0x28] sm:$0xff]
        %v356 = vld [vmem:[#allocation2 + $0x30] sm:$0xff]
        %v357 = vld [vmem:[#allocation2 + $0x38] sm:$0xff]
        %v358 = vld [vmem:[#allocation2 + $0x40] sm:$0xff]
        %v359 = vld [vmem:[#allocation2 + $0x48] sm:$0xff]
        %v360 = vld [vmem:[#allocation2 + $0x50] sm:$0xff]
        %v361 = vld [vmem:[#allocation2 + $0x58] sm:$0xff]
        %v362 = vld [vmem:[#allocation2 + $0x60] sm:$0xff]
        %v363 = vld [vmem:[%s274] sm:$0xff]
        %v364 = vld [vmem:[%s274 + $0x8] sm:$0xf]
        %v365 = vld [vmem:[%s274 + $0xc] sm:$0xff]
        %v366 = vld [vmem:[%s274 + $0x14] sm:$0xf]
        %v367 = vld [vmem:[%s274 + $0x18] sm:$0xff]
        %v368 = vld [vmem:[%s274 + $0x20] sm:$0xf]
        %v369 = vld [vmem:[%s274 + $0x24] sm:$0xff]
        %v370 = vld [vmem:[%s274 + $0x2c] sm:$0xf]
        %v371 = vld [vmem:[%s274 + $0x30] sm:$0xff]
        %v372 = vld [vmem:[%s274 + $0x38] sm:$0xf]
        %v373 = vld [vmem:[%s274 + $0x3c] sm:$0xff]
        %v374 = vld [vmem:[%s274 + $0x44] sm:$0xf]
        %v375 = vld [vmem:[%s274 + $0x48] sm:$0xff]
        %v376 = vld [vmem:[%s274 + $0x50] sm:$0xf]
        %v377 = vld [vmem:[%s274 + $0x54] sm:$0xff]
        %v378 = vld [vmem:[%s274 + $0x5c] sm:$0xf]
        %v379 = vld [vmem:[%s274 + $0x60] sm:$0xff]
        %v380 = vld [vmem:[%s274 + $0x68] sm:$0xf]
        %v381 = vld [vmem:[%s274 + $0x6c] sm:$0xff]
        %v382 = vld [vmem:[%s274 + $0x74] sm:$0xf]
        %v383 = vld [vmem:[%s274 + $0x78] sm:$0xff]
        %v384 = vld [vmem:[%s274 + $0x80] sm:$0xf]
        %v385 = vld [vmem:[%s274 + $0x84] sm:$0xff]
        %v386 = vld [vmem:[%s274 + $0x8c] sm:$0xf]
        %v387 = vld [vmem:[%s274 + $0x90] sm:$0xff]
        %v388 = vld [vmem:[%s274 + $0x98] sm:$0xf]
        %v389 = vld [vmem:[%s318] sm:$0xf]
        %v390 = vld [vmem:[%s318 + $0x4] sm:$0xf]
        %v391 = vld [vmem:[%s318 + $0x8] sm:$0xf]
        %v392 = vld [vmem:[%s318 + $0xc] sm:$0xf]
        %v393 = vld [vmem:[%s318 + $0x10] sm:$0xf]
        %v394 = vld [vmem:[%s318 + $0x14] sm:$0xf]
        %v395 = vld [vmem:[%s318 + $0x18] sm:$0xf]
        %v396 = vld [vmem:[%s318 + $0x1c] sm:$0xf]
        %v397 = vld [vmem:[%s318 + $0x20] sm:$0xf]
        %v398 = vld [vmem:[%s318 + $0x24] sm:$0xf]
        %v399 = vld [vmem:[%s318 + $0x28] sm:$0xf]
        %v400 = vld [vmem:[%s318 + $0x2c] sm:$0xf]
        %v401 = vld [vmem:[%s318 + $0x30] sm:$0xf]
        %v402 = vld [vmem:[%s318 + $0x34] sm:$0xf]
        %v403 = vld [vmem:[%s318 + $0x38] sm:$0xf]
        %v404 = vld [vmem:[%s318 + $0x3c] sm:$0xf]
        %v405 = vld [vmem:[%s318 + $0x40] sm:$0xf]
        %v406 = vld [vmem:[%s318 + $0x44] sm:$0xf]
        %v407 = vld [vmem:[%s318 + $0x48] sm:$0xf]
        %v408 = vld [vmem:[%s318 + $0x4c] sm:$0xf]
        %v409 = vld [vmem:[%s318 + $0x50] sm:$0xf]
        %v410 = vld [vmem:[%s318 + $0x54] sm:$0xf]
        %v411 = vld [vmem:[%s318 + $0x58] sm:$0xf]
        %v412 = vld [vmem:[%s318 + $0x5c] sm:$0xf]
        %v413 = vld [vmem:[%s318 + $0x60] sm:$0xf]
        %v414 = vld [vmem:[%s318 + $0x64] sm:$0xf]
        %v415 = vld [vmem:[%s318 + $0x68] sm:$0xf]
        %v416 = vld [vmem:[%s318 + $0x6c] sm:$0xf]
        %v417 = vld [vmem:[%s318 + $0x70] sm:$0xf]
        %v418 = vld [vmem:[%s318 + $0x74] sm:$0xf]
        %v419 = vld [vmem:[%s318 + $0x78] sm:$0xf]
        %v420 = vld [vmem:[%s318 + $0x7c] sm:$0xf]
        %v421 = vld [vmem:[%s318 + $0x80] sm:$0xf]
        %v422 = vld [vmem:[%s318 + $0x84] sm:$0xf]
        %v423 = vld [vmem:[%s318 + $0x88] sm:$0xf]
        %v424 = vld [vmem:[%s318 + $0x8c] sm:$0xf]
        %v425 = vld [vmem:[%s318 + $0x90] sm:$0xf]
        %v426 = vld [vmem:[%s318 + $0x94] sm:$0xf]
        %v427 = vld [vmem:[%s318 + $0x98] sm:$0xf]
        %v428 = vld [vmem:[%s318 + $0x9c] sm:$0xf]
        %v429 = vld [vmem:[%s318 + $0xa0] sm:$0xf]
        %v430 = vld [vmem:[%s318 + $0xa4] sm:$0xf]
        %v431 = vld [vmem:[%s318 + $0xa8] sm:$0xf]
        %v432 = vld [vmem:[%s318 + $0xac] sm:$0xf]
        %v433 = vld [vmem:[%s318 + $0xb0] sm:$0xf]
        %v434 = vld [vmem:[%s318 + $0xb4] sm:$0xf]
        %v435 = vld [vmem:[%s318 + $0xb8] sm:$0xf]
        %v436 = vld [vmem:[%s318 + $0xbc] sm:$0xf]
        %v463 = vunpack.c.l.b16 %v363
        %v464 = vunpack.c.h.b16 %v363
        %v465 = vunpack.c.l.b16 %v364
        %v466 = vunpack.c.l.b16 %v365
        %v467 = vunpack.c.h.b16 %v365
        %v468 = vunpack.c.l.b16 %v366
        %v469 = vunpack.c.l.b16 %v367
        %v470 = vunpack.c.h.b16 %v367
        %v471 = vunpack.c.l.b16 %v368
        %v472 = vunpack.c.l.b16 %v369
        %v473 = vunpack.c.h.b16 %v369
        %v474 = vunpack.c.l.b16 %v370
        %v475 = vunpack.c.l.b16 %v371
        %v476 = vunpack.c.h.b16 %v371
        %v477 = vunpack.c.l.b16 %v372
        %v478 = vunpack.c.l.b16 %v373
        %v479 = vunpack.c.h.b16 %v373
        %v480 = vunpack.c.l.b16 %v374
        %v481 = vunpack.c.l.b16 %v375
        %v482 = vunpack.c.h.b16 %v375
        %v483 = vunpack.c.l.b16 %v376
        %v484 = vunpack.c.l.b16 %v377
        %v485 = vunpack.c.h.b16 %v377
        %v486 = vunpack.c.l.b16 %v378
        %v487 = vunpack.c.l.b16 %v379
        %v488 = vunpack.c.h.b16 %v379
        %v489 = vunpack.c.l.b16 %v380
        %v490 = vunpack.c.l.b16 %v381
        %v491 = vunpack.c.h.b16 %v381
        %v492 = vunpack.c.l.b16 %v382
        %v493 = vunpack.c.l.b16 %v383
        %v494 = vunpack.c.h.b16 %v383
        %v495 = vunpack.c.l.b16 %v384
        %v496 = vunpack.c.l.b16 %v385
        %v497 = vunpack.c.h.b16 %v385
        %v498 = vunpack.c.l.b16 %v386
        %v499 = vunpack.c.l.b16 %v387
        %v500 = vunpack.c.h.b16 %v387
        %v501 = vunpack.c.l.b16 %v388
        %v502 = vpack.c.b16 %v466, %v463
        %v503 = vpack.c.b16 %v467, %v464
        %v504 = vpack.c.b16 %v468, %v465
        %v505 = vpack.c.b16 %v472, %v469
        %v506 = vpack.c.b16 %v473, %v470
        %v507 = vpack.c.b16 %v474, %v471
        %v508 = vpack.c.b16 %v478, %v475
        %v509 = vpack.c.b16 %v479, %v476
        %v510 = vpack.c.b16 %v480, %v477
        %v511 = vpack.c.b16 %v484, %v481
        %v512 = vpack.c.b16 %v485, %v482
        %v513 = vpack.c.b16 %v486, %v483
        %v514 = vpack.c.b16 %v490, %v487
        %v515 = vpack.c.b16 %v491, %v488
        %v516 = vpack.c.b16 %v492, %v489
        %v517 = vpack.c.b16 %v496, %v493
        %v518 = vpack.c.b16 %v497, %v494
        %v519 = vpack.c.b16 %v498, %v495
        %v520 = vpack.c.b16 %v499, %v499
        %v521 = vpack.c.b16 %v500, %v500
        %v522 = vpack.c.b16 %v501, %v501
        %v592 = vunpack.c.l.b16 %v389
        %v593 = vunpack.c.l.b16 %v390
        %v594 = vunpack.c.l.b16 %v391
        %v595 = vunpack.c.l.b16 %v392
        %v596 = vunpack.c.l.b16 %v393
        %v597 = vunpack.c.l.b16 %v394
        %v598 = vunpack.c.l.b16 %v395
        %v599 = vunpack.c.l.b16 %v396
        %v600 = vunpack.c.l.b16 %v397
        %v601 = vunpack.c.l.b16 %v398
        %v602 = vunpack.c.l.b16 %v399
        %v603 = vunpack.c.l.b16 %v400
        %v604 = vunpack.c.l.b16 %v401
        %v605 = vunpack.c.l.b16 %v402
        %v606 = vunpack.c.l.b16 %v403
        %v607 = vunpack.c.l.b16 %v404
        %v608 = vunpack.c.l.b16 %v405
        %v609 = vunpack.c.l.b16 %v406
        %v610 = vunpack.c.l.b16 %v407
        %v611 = vunpack.c.l.b16 %v408
        %v612 = vunpack.c.l.b16 %v409
        %v613 = vunpack.c.l.b16 %v410
        %v614 = vunpack.c.l.b16 %v411
        %v615 = vunpack.c.l.b16 %v412
        %v616 = vunpack.c.l.b16 %v413
        %v617 = vunpack.c.l.b16 %v414
        %v618 = vunpack.c.l.b16 %v415
        %v619 = vunpack.c.l.b16 %v416
        %v620 = vunpack.c.l.b16 %v417
        %v621 = vunpack.c.l.b16 %v418
        %v622 = vunpack.c.l.b16 %v419
        %v623 = vunpack.c.l.b16 %v420
        %v624 = vunpack.c.l.b16 %v421
        %v625 = vunpack.c.l.b16 %v422
        %v626 = vunpack.c.l.b16 %v423
        %v627 = vunpack.c.l.b16 %v424
        %v628 = vunpack.c.l.b16 %v425
        %v629 = vunpack.c.l.b16 %v426
        %v630 = vunpack.c.l.b16 %v427
        %v631 = vunpack.c.l.b16 %v428
        %v632 = vunpack.c.l.b16 %v429
        %v633 = vunpack.c.l.b16 %v430
        %v634 = vunpack.c.l.b16 %v431
        %v635 = vunpack.c.l.b16 %v432
        %v636 = vunpack.c.l.b16 %v433
        %v637 = vunpack.c.l.b16 %v434
        %v638 = vunpack.c.l.b16 %v435
        %v639 = vunpack.c.l.b16 %v436
        %v640 = vpack.c.b16 %v593, %v592
        %v641 = vpack.c.b16 %v595, %v594
        %v642 = vpack.c.b16 %v597, %v596
        %v643 = vpack.c.b16 %v599, %v598
        %v644 = vpack.c.b16 %v601, %v600
        %v645 = vpack.c.b16 %v603, %v602
        %v646 = vpack.c.b16 %v605, %v604
        %v647 = vpack.c.b16 %v607, %v606
        %v648 = vpack.c.b16 %v609, %v608
        %v649 = vpack.c.b16 %v611, %v610
        %v650 = vpack.c.b16 %v613, %v612
        %v651 = vpack.c.b16 %v615, %v614
        %v652 = vpack.c.b16 %v617, %v616
        %v653 = vpack.c.b16 %v619, %v618
        %v654 = vpack.c.b16 %v621, %v620
        %v655 = vpack.c.b16 %v623, %v622
        %v656 = vpack.c.b16 %v625, %v624
        %v657 = vpack.c.b16 %v627, %v626
        %v658 = vpack.c.b16 %v629, %v628
        %v659 = vpack.c.b16 %v631, %v630
        %v660 = vpack.c.b16 %v633, %v632
        %v661 = vpack.c.b16 %v635, %v634
        %v662 = vpack.c.b16 %v637, %v636
        %v663 = vpack.c.b16 %v639, %v638
        %688 = vmatprep.subr.bf16.mxu0 0
        %689 = vmatpush1.bf16.msra.mxu0 %v640
        %690 = vmatprep.subr.bf16.mxu0 0
        %691 = vmatpush1.bf16.msra.mxu0 %v641
        %692 = vmatprep.subr.bf16.mxu0 0
        %693 = vmatpush1.bf16.msra.mxu0 %v642
        %694 = vmatprep.subr.bf16.mxu0 0
        %695 = vmatpush1.bf16.msra.mxu0 %v643
        %696 = vmatprep.subr.bf16.mxu0 0
        %697 = vmatpush1.bf16.msra.mxu0 %v644
        %698 = vmatprep.subr.bf16.mxu0 0
        %699 = vmatpush1.bf16.msra.mxu0 %v645
        %700 = vmatprep.subr.bf16.mxu0 0
        %701 = vmatpush1.bf16.msra.mxu0 %v646
        %702 = vmatprep.subr.bf16.mxu0 0
        %703 = vmatpush1.bf16.msra.mxu0 %v647
        %704 = vmatprep.subr.bf16.mxu0 0
        %705 = vmatpush1.bf16.msra.mxu0 %v648
        %706 = vmatprep.subr.bf16.mxu0 0
        %707 = vmatpush1.bf16.msra.mxu0 %v649
        %708 = vmatprep.subr.bf16.mxu0 0
        %709 = vmatpush1.bf16.msra.mxu0 %v650
        %710 = vmatprep.subr.bf16.mxu0 0
        %711 = vmatpush1.bf16.msra.mxu0 %v651
        %712 = vmatprep.subr.bf16.mxu0 0
        %713 = vmatpush1.bf16.msra.mxu0 %v652
        %714 = vmatprep.subr.bf16.mxu0 0
        %715 = vmatpush1.bf16.msra.mxu0 %v653
        %716 = vmatprep.subr.bf16.mxu0 0
        %717 = vmatpush1.bf16.msra.mxu0 %v654
        %718 = vmatprep.subr.bf16.mxu0 0
        %719 = vmatpush1.bf16.msra.mxu0 %v655
        %720 = vmatprep.mubr.bf16.mxu0 %v503
        %721 = vmatmul.mubr.bf16.gmra.mrb[0].mxu0 %v502
        %v722 = vpop.f32.mrb[0].mxu0
        %v723 = vadd.f32 0.0, %v722
        %v724 = vpop.f32.mrb[0].mxu0
        %v725 = vpop.f32.mrb[0].mxu0
        %v726 = vadd.f32 0.0, %v725
        %v727 = vpop.f32.mrb[0].mxu0
        %728 = vmatprep.mubr.bf16.mxu0 %v506
        %729 = vmatmul.mubr.bf16.gmra.mrb[0].mxu0 %v505
        %v730 = vpop.f32.mrb[0].mxu0
        %v731 = vadd.f32 0.0, %v730
        %v732 = vpop.f32.mrb[0].mxu0
        %v733 = vpop.f32.mrb[0].mxu0
        %v734 = vadd.f32 0.0, %v733
        %v735 = vpop.f32.mrb[0].mxu0
        %736 = vmatprep.mubr.bf16.mxu0 %v509
        %737 = vmatmul.mubr.bf16.gmra.mrb[0].mxu0 %v508
        %v738 = vpop.f32.mrb[0].mxu0
        %v739 = vadd.f32 0.0, %v738
        %v740 = vpop.f32.mrb[0].mxu0
        %v741 = vpop.f32.mrb[0].mxu0
        %v742 = vadd.f32 0.0, %v741
        %v743 = vpop.f32.mrb[0].mxu0
        %744 = vmatprep.mubr.bf16.mxu0 %v512
        %745 = vmatmul.mubr.bf16.gmra.mrb[0].mxu0 %v511
        %v746 = vpop.f32.mrb[0].mxu0
        %v747 = vadd.f32 0.0, %v746
        %v748 = vpop.f32.mrb[0].mxu0
        %v749 = vpop.f32.mrb[0].mxu0
        %v750 = vadd.f32 0.0, %v749
        %v751 = vpop.f32.mrb[0].mxu0
        %752 = vmatprep.mubr.bf16.mxu0 %v515
        %753 = vmatmul.mubr.bf16.gmra.mrb[0].mxu0 %v514
        %v754 = vpop.f32.mrb[0].mxu0
        %v755 = vadd.f32 0.0, %v754
        %v756 = vpop.f32.mrb[0].mxu0
        %v757 = vpop.f32.mrb[0].mxu0
        %v758 = vadd.f32 0.0, %v757
        %v759 = vpop.f32.mrb[0].mxu0
        %760 = vmatprep.mubr.bf16.mxu0 %v518
        %761 = vmatmul.mubr.bf16.gmra.mrb[0].mxu0 %v517
        %v762 = vpop.f32.mrb[0].mxu0
        %v763 = vadd.f32 0.0, %v762
        %v764 = vpop.f32.mrb[0].mxu0
        %v765 = vpop.f32.mrb[0].mxu0
        %v766 = vadd.f32 0.0, %v765
        %v767 = vpop.f32.mrb[0].mxu0
        %768 = vmatprep.mubr.bf16.mxu0 %v521
        %769 = vmatmul.mubr.bf16.gmra.mrb[0].mxu0 %v520
        %v770 = vpop.f32.mrb[0].mxu0
        %v771 = vadd.f32 0.0, %v770
        %v772 = vpop.f32.mrb[0].mxu0
        %v773 = vpop.f32.mrb[0].mxu0
        %v774 = vpop.f32.mrb[0].mxu0
        %775 = vdwg.mxu0
        %776 = vmatprep.subr.bf16.mxu0 0
        %777 = vmatpush1.bf16.msra.mxu0 %v656
        %778 = vmatprep.subr.bf16.mxu0 0
        %779 = vmatpush1.bf16.msra.mxu0 %v657
        %780 = vmatprep.subr.bf16.mxu0 0
        %781 = vmatpush1.bf16.msra.mxu0 %v658
        %782 = vmatprep.subr.bf16.mxu0 0
        %783 = vmatpush1.bf16.msra.mxu0 %v659
        %784 = vmatprep.subr.bf16.mxu0 0
        %785 = vmatpush1.bf16.msra.mxu0 %v660
        %786 = vmatprep.subr.bf16.mxu0 0
        %787 = vmatpush1.bf16.msra.mxu0 %v661
        %788 = vmatprep.subr.bf16.mxu0 0
        %789 = vmatpush1.bf16.msra.mxu0 %v662
        %790 = vmatprep.subr.bf16.mxu0 0
        %791 = vmatpush1.bf16.msra.mxu0 %v663
        %792 = vmatprep.subr.bf16.mxu0 0
        %793 = vmatpush1.bf16.msra.mxu0 0
        %794 = vmatprep.subr.bf16.mxu0 0
        %795 = vmatpush1.bf16.msra.mxu0 0
        %796 = vmatprep.subr.bf16.mxu0 0
        %797 = vmatpush1.bf16.msra.mxu0 0
        %798 = vmatprep.subr.bf16.mxu0 0
        %799 = vmatpush1.bf16.msra.mxu0 0
        %800 = vmatprep.subr.bf16.mxu0 0
        %801 = vmatpush1.bf16.msra.mxu0 0
        %802 = vmatprep.subr.bf16.mxu0 0
        %803 = vmatpush1.bf16.msra.mxu0 0
        %804 = vmatprep.subr.bf16.mxu0 0
        %805 = vmatpush1.bf16.msra.mxu0 0
        %806 = vmatprep.subr.bf16.mxu0 0
        %807 = vmatpush1.bf16.msra.mxu0 0
        %808 = vmatprep.mubr.bf16.mxu0 0
        %809 = vmatmul.mubr.bf16.gmra.mrb[0].mxu0 %v504
        %v810 = vpop.f32.mrb[0].mxu0
        %v811 = vadd.f32 %v723, %v810
        %v812 = vpop.f32.mrb[0].mxu0
        %v813 = vpop.f32.mrb[0].mxu0
        %v814 = vadd.f32 %v726, %v813
        %v815 = vpop.f32.mrb[0].mxu0
        %816 = vmatprep.mubr.bf16.mxu0 0
        %817 = vmatmul.mubr.bf16.gmra.mrb[0].mxu0 %v507
        %v818 = vpop.f32.mrb[0].mxu0
        %v819 = vadd.f32 %v731, %v818
        %v820 = vpop.f32.mrb[0].mxu0
        %v821 = vpop.f32.mrb[0].mxu0
        %v822 = vadd.f32 %v734, %v821
        %v823 = vpop.f32.mrb[0].mxu0
        %824 = vmatprep.mubr.bf16.mxu0 0
        %825 = vmatmul.mubr.bf16.gmra.mrb[0].mxu0 %v510
        %v826 = vpop.f32.mrb[0].mxu0
        %v827 = vadd.f32 %v739, %v826
        %v828 = vpop.f32.mrb[0].mxu0
        %v829 = vpop.f32.mrb[0].mxu0
        %v830 = vadd.f32 %v742, %v829
        %v831 = vpop.f32.mrb[0].mxu0
        %832 = vmatprep.mubr.bf16.mxu0 0
        %833 = vmatmul.mubr.bf16.gmra.mrb[0].mxu0 %v513
        %v834 = vpop.f32.mrb[0].mxu0
        %v835 = vadd.f32 %v747, %v834
        %v836 = vpop.f32.mrb[0].mxu0
        %v837 = vpop.f32.mrb[0].mxu0
        %v838 = vadd.f32 %v750, %v837
        %v839 = vpop.f32.mrb[0].mxu0
        %840 = vmatprep.mubr.bf16.mxu0 0
        %841 = vmatmul.mubr.bf16.gmra.mrb[0].mxu0 %v516
        %v842 = vpop.f32.mrb[0].mxu0
        %v843 = vadd.f32 %v755, %v842
        %v844 = vpop.f32.mrb[0].mxu0
        %v845 = vpop.f32.mrb[0].mxu0
        %v846 = vadd.f32 %v758, %v845
        %v847 = vpop.f32.mrb[0].mxu0
        %848 = vmatprep.mubr.bf16.mxu0 0
        %849 = vmatmul.mubr.bf16.gmra.mrb[0].mxu0 %v519
        %v850 = vpop.f32.mrb[0].mxu0
        %v851 = vadd.f32 %v763, %v850
        %v852 = vpop.f32.mrb[0].mxu0
        %v853 = vpop.f32.mrb[0].mxu0
        %v854 = vadd.f32 %v766, %v853
        %v855 = vpop.f32.mrb[0].mxu0
        %856 = vmatprep.mubr.bf16.mxu0 0
        %857 = vmatmul.mubr.bf16.gmra.mrb[0].mxu0 %v522
        %v858 = vpop.f32.mrb[0].mxu0
        %v859 = vadd.f32 %v771, %v858
        %v860 = vpop.f32.mrb[0].mxu0
        %v861 = vpop.f32.mrb[0].mxu0
        %v862 = vpop.f32.mrb[0].mxu0
        %863 = vdwg.mxu0
        %v864 = vadd.f32 %v350, %v811
        %v865 = vadd.f32 %v351, %v814
        %v866 = vadd.f32 %v352, %v819
        %v867 = vadd.f32 %v353, %v822
        %v868 = vadd.f32 %v354, %v827
        %v869 = vadd.f32 %v355, %v830
        %v870 = vadd.f32 %v356, %v835
        %v871 = vadd.f32 %v357, %v838
        %v872 = vadd.f32 %v358, %v843
        %v873 = vadd.f32 %v359, %v846
        %v874 = vadd.f32 %v360, %v851
        %v875 = vadd.f32 %v361, %v854
        %v876 = vadd.f32 %v362, %v859
        %877 = vst [vmem:[#allocation2] sm:$0xff] %v864
        %878 = vst [vmem:[#allocation2 + $0x8] sm:$0xff] %v865
        %879 = vst [vmem:[#allocation2 + $0x10] sm:$0xff] %v866
        %880 = vst [vmem:[#allocation2 + $0x18] sm:$0xff] %v867
        %881 = vst [vmem:[#allocation2 + $0x20] sm:$0xff] %v868
        %882 = vst [vmem:[#allocation2 + $0x28] sm:$0xff] %v869
        %883 = vst [vmem:[#allocation2 + $0x30] sm:$0xff] %v870
        %884 = vst [vmem:[#allocation2 + $0x38] sm:$0xff] %v871
        %885 = vst [vmem:[#allocation2 + $0x40] sm:$0xff] %v872
        %886 = vst [vmem:[#allocation2 + $0x48] sm:$0xff] %v873
        %887 = vst [vmem:[#allocation2 + $0x50] sm:$0xff] %v874
        %888 = vst [vmem:[#allocation2 + $0x58] sm:$0xff] %v875
        %889 = vst [vmem:[#allocation2 + $0x60] sm:$0xff] %v876
        %p890 = scmp.eq.s32.totalorder %s21, 2
        // Predicated region
        $region63: #{entry_stem_fwd.36} parent=53 // pred_check
          %p891 = pneg %p890
        $region64: #{entry_stem_fwd.36} parent=53 // pred_check_branch
          %893 = sbr.rel (%p891) target = $region66
        $region65: #{entry_stem_fwd.36} parent=53 // pred_region
          %v894 = vld [vmem:[#allocation2] sm:$0xff]
          %v895 = vld [vmem:[#allocation2 + $0x8] sm:$0xff]
          %v896 = vld [vmem:[#allocation2 + $0x10] sm:$0xff]
          %v897 = vld [vmem:[#allocation2 + $0x18] sm:$0xff]
          %v898 = vld [vmem:[#allocation2 + $0x20] sm:$0xff]
          %v899 = vld [vmem:[#allocation2 + $0x28] sm:$0xff]
          %v900 = vld [vmem:[#allocation2 + $0x30] sm:$0xff]
          %v901 = vld [vmem:[#allocation2 + $0x38] sm:$0xff]
          %v902 = vld [vmem:[#allocation2 + $0x40] sm:$0xff]
          %v903 = vld [vmem:[#allocation2 + $0x48] sm:$0xff]
          %v904 = vld [vmem:[#allocation2 + $0x50] sm:$0xff]
          %v905 = vld [vmem:[#allocation2 + $0x58] sm:$0xff]
          %v906 = vld [vmem:[#allocation2 + $0x60] sm:$0xff]
          %v907 = vld [vmem:[%s322] sm:$0x1]
          %v909 = vlaneseq
          %v910 = vshrl.u32 %v909, 7
          %v911 = vsub.s32 0, %v910
          %v912 = vrot.slane %v907, %v911
          %v914 = vadd.f32 %v894, %v912
          %v915 = vadd.f32 %v895, %v912
          %v916 = vadd.f32 %v896, %v912
          %v917 = vadd.f32 %v897, %v912
          %v918 = vadd.f32 %v898, %v912
          %v919 = vadd.f32 %v899, %v912
          %v920 = vadd.f32 %v900, %v912
          %v921 = vadd.f32 %v901, %v912
          %v922 = vadd.f32 %v902, %v912
          %v923 = vadd.f32 %v903, %v912
          %v924 = vadd.f32 %v904, %v912
          %v925 = vadd.f32 %v905, %v912
          %v926 = vadd.f32 %v906, %v912
          %927 = vst [vmem:[%s330] sm:$0xff] %v914
          %928 = vst [vmem:[%s330 + $0x8] sm:$0xff] %v915
          %929 = vst [vmem:[%s330 + $0x10] sm:$0xff] %v916
          %930 = vst [vmem:[%s330 + $0x18] sm:$0xff] %v917
          %931 = vst [vmem:[%s330 + $0x20] sm:$0xff] %v918
          %932 = vst [vmem:[%s330 + $0x28] sm:$0xff] %v919
          %933 = vst [vmem:[%s330 + $0x30] sm:$0xff] %v920
          %934 = vst [vmem:[%s330 + $0x38] sm:$0xff] %v921
          %935 = vst [vmem:[%s330 + $0x40] sm:$0xff] %v922
          %936 = vst [vmem:[%s330 + $0x48] sm:$0xff] %v923
          %937 = vst [vmem:[%s330 + $0x50] sm:$0xff] %v924
          %938 = vst [vmem:[%s330 + $0x58] sm:$0xff] %v925
          %939 = vst [vmem:[%s330 + $0x60] sm:$0xff] %v926
        $region66: #{entry_stem_fwd.36} parent=53 // pred_fallthru
          _
        %s940 = smul.u32 13, %s19
        %p941 = scmp.lt.s32.totalorder %s940, 12
        %s942 = scalar_select %p941, %s940, 12
        %p943 = scmp.lt.s32.totalorder %s20, 0
        %s944 = scalar_select %p943, %s20, 0
        %s945 = sadd.s32 %s944, %s942
        %s946 = smul.addr %s945, 8
        %s947 = scalar_lea.vmem %s3, %s946
        // Predicated region
        $region67: #{entry_stem_fwd.36} parent=53 // pred_check
          %p948 = pneg %p135
        $region68: #{entry_stem_fwd.36} parent=53 // pred_check_branch
          %950 = sbr.rel (%p948) target = $region70
        $region69: #{entry_stem_fwd.36} parent=53 // pred_region
          %s951 = smul.u32 13, %s19
        $region70: #{entry_stem_fwd.36} parent=53 // pred_fallthru
          _
        // Predicated region
        $region71: #{entry_stem_fwd.36} parent=53 // pred_check
          %p952 = pneg %p135
        $region72: #{entry_stem_fwd.36} parent=53 // pred_check_branch
          %954 = sbr.rel (%p952) target = $region74
        $region73: #{entry_stem_fwd.36} parent=53 // pred_region
          %s955 = smul.u32 13, %s19
          %p956 = scmp.lt.s32.totalorder %s955, 12
          %s957 = scalar_select %p956, %s955, 12
          %p958 = scmp.lt.s32.totalorder %s20, 0
          %s959 = scalar_select %p958, %s20, 0
          %s960 = sadd.s32 %s959, %s957
          %s961 = smul.addr %s960, 8
          %s962 = scalar_lea.vmem %s3, %s961
        $region74: #{entry_stem_fwd.36} parent=53 // pred_fallthru
          _
      $region54: #{entry_stem_fwd.36} parent=5 // pred_fallthru
        _
      %p963 = scmp.le.s32.totalorder 2, %s9
      // Predicated region
      $region75: #{entry_stem_fwd.36} parent=5 // pred_check
        %p964 = pneg %p963
      $region76: #{entry_stem_fwd.36} parent=5 // pred_check_branch
        %966 = sbr.rel (%p964) target = $region78
      $region77: #{entry_stem_fwd.36} parent=5 // pred_region
        %s967 = ssub.s32 %s9, 2
      $region78: #{entry_stem_fwd.36} parent=5 // pred_fallthru
        _
    $region6: #{entry_stem_fwd.36} parent=1 // loop_footer
      %s13 = sadd.s32 1, %s9
    $region7: #{entry_stem_fwd.36} parent=1 // loop_footer_branch
      %8 = sbr.rel target = $region3
    $region8: #{entry_stem_fwd.36} parent=1 // loop_exit
      _

// kernel: entry_stem_fwd.42
$region0: #{entry_stem_fwd.42}
  #allocation0 [shape = 'u32[]', space=smem, size = 0x4, offset = 0x4, fixed_abs, tag = 'smem constant byte address 0x4 - core index']
  #allocation1 [shape = 'u32[144,128]{1,0:T(1,128)}', space=vmem, size = 0x12000, scoped, tag = 'internal scratch']
  #allocation2 [shape = 'f32[32,256]{1,0:T(8,128)}', space=vmem, size = 0x8000, scoped, tag = 'scratch operand']
  %s0 = inlined_call_operand.vmem [shape: bf16[32,256], index: 0, kind: input, shape index: {}]
  %s1 = inlined_call_operand.vmem [shape: bf16[256,256], index: 1, kind: input, shape index: {}]
  %s2 = inlined_call_operand.vmem [shape: f32[1,256], index: 2, kind: input, shape index: {}]
  %s3 = inlined_call_operand.vmem [shape: f32[32,256], index: 3, kind: output, shape index: {}]
  %s4 = sld [smem:[#allocation0]]
  $region30: #{entry_stem_fwd.42} parent=0
    _
  %s6 = ssub.s32 1, %s4
  %s7 = scalar_select 0, %s6, %s4
  // Predicated region
  $region2: #{entry_stem_fwd.42} parent=0 // pred_check
    _
  $region3: #{entry_stem_fwd.42} parent=0 // pred_check_branch
    %9 = sbr.rel (0) target = $region5
  $region4: #{entry_stem_fwd.42} parent=0 // pred_region
    _
  $region5: #{entry_stem_fwd.42} parent=0 // pred_fallthru
    _
  // Predicated region
  $region6: #{entry_stem_fwd.42} parent=0 // pred_check
    _
  $region7: #{entry_stem_fwd.42} parent=0 // pred_check_branch
    %11 = sbr.rel (0) target = $region9
  $region8: #{entry_stem_fwd.42} parent=0 // pred_region
    _
  $region9: #{entry_stem_fwd.42} parent=0 // pred_fallthru
    _
  // Predicated region
  $region10: #{entry_stem_fwd.42} parent=0 // pred_check
    _
  $region11: #{entry_stem_fwd.42} parent=0 // pred_check_branch
    %13 = sbr.rel (0) target = $region13
  $region12: #{entry_stem_fwd.42} parent=0 // pred_region
    _
  $region13: #{entry_stem_fwd.42} parent=0 // pred_fallthru
    _
  %p14 = scmp.eq.s32.totalorder 0, 0
  // Predicated region
  $region14: #{entry_stem_fwd.42} parent=0 // pred_check
    %p15 = pneg %p14
  $region15: #{entry_stem_fwd.42} parent=0 // pred_check_branch
    %17 = sbr.rel (%p15) target = $region17
  $region16: #{entry_stem_fwd.42} parent=0 // pred_region
    %18 = vst [vmem:[#allocation2] sm:$0xff] 0.0
    %19 = vst [vmem:[#allocation2 + $0x8] sm:$0xff] 0.0
    %20 = vst [vmem:[#allocation2 + $0x10] sm:$0xff] 0.0
    %21 = vst [vmem:[#allocation2 + $0x18] sm:$0xff] 0.0
    %22 = vst [vmem:[#allocation2 + $0x20] sm:$0xff] 0.0
    %23 = vst [vmem:[#allocation2 + $0x28] sm:$0xff] 0.0
    %24 = vst [vmem:[#allocation2 + $0x30] sm:$0xff] 0.0
    %25 = vst [vmem:[#allocation2 + $0x38] sm:$0xff] 0.0
  $region17: #{entry_stem_fwd.42} parent=0 // pred_fallthru
    _
  %v26 = vld [vmem:[#allocation2] sm:$0xff]
  %v27 = vld [vmem:[#allocation2 + $0x8] sm:$0xff]
  %v28 = vld [vmem:[#allocation2 + $0x10] sm:$0xff]
  %v29 = vld [vmem:[#allocation2 + $0x18] sm:$0xff]
  %v30 = vld [vmem:[#allocation2 + $0x20] sm:$0xff]
  %v31 = vld [vmem:[#allocation2 + $0x28] sm:$0xff]
  %v32 = vld [vmem:[#allocation2 + $0x30] sm:$0xff]
  %v33 = vld [vmem:[#allocation2 + $0x38] sm:$0xff]
  %v34 = vld [vmem:[%s0] sm:$0xff]
  %v35 = vld [vmem:[%s0 + $0x8] sm:$0xff]
  %v36 = vld [vmem:[%s0 + $0x10] sm:$0xff]
  %v37 = vld [vmem:[%s0 + $0x18] sm:$0xff]
  %v38 = vld [vmem:[%s1] sm:$0xff]
  %v39 = vld [vmem:[%s1 + $0x8] sm:$0xff]
  %v40 = vld [vmem:[%s1 + $0x10] sm:$0xff]
  %v41 = vld [vmem:[%s1 + $0x18] sm:$0xff]
  %v42 = vld [vmem:[%s1 + $0x20] sm:$0xff]
  %v43 = vld [vmem:[%s1 + $0x28] sm:$0xff]
  %v44 = vld [vmem:[%s1 + $0x30] sm:$0xff]
  %v45 = vld [vmem:[%s1 + $0x38] sm:$0xff]
  %v46 = vld [vmem:[%s1 + $0x40] sm:$0xff]
  %v47 = vld [vmem:[%s1 + $0x48] sm:$0xff]
  %v48 = vld [vmem:[%s1 + $0x50] sm:$0xff]
  %v49 = vld [vmem:[%s1 + $0x58] sm:$0xff]
  %v50 = vld [vmem:[%s1 + $0x60] sm:$0xff]
  %v51 = vld [vmem:[%s1 + $0x68] sm:$0xff]
  %v52 = vld [vmem:[%s1 + $0x70] sm:$0xff]
  %v53 = vld [vmem:[%s1 + $0x78] sm:$0xff]
  %v54 = vld [vmem:[%s1 + $0x80] sm:$0xff]
  %v55 = vld [vmem:[%s1 + $0x88] sm:$0xff]
  %v56 = vld [vmem:[%s1 + $0x90] sm:$0xff]
  %v57 = vld [vmem:[%s1 + $0x98] sm:$0xff]
  %v58 = vld [vmem:[%s1 + $0xa0] sm:$0xff]
  %v59 = vld [vmem:[%s1 + $0xa8] sm:$0xff]
  %v60 = vld [vmem:[%s1 + $0xb0] sm:$0xff]
  %v61 = vld [vmem:[%s1 + $0xb8] sm:$0xff]
  %v62 = vld [vmem:[%s1 + $0xc0] sm:$0xff]
  %v63 = vld [vmem:[%s1 + $0xc8] sm:$0xff]
  %v64 = vld [vmem:[%s1 + $0xd0] sm:$0xff]
  %v65 = vld [vmem:[%s1 + $0xd8] sm:$0xff]
  %v66 = vld [vmem:[%s1 + $0xe0] sm:$0xff]
  %v67 = vld [vmem:[%s1 + $0xe8] sm:$0xff]
  %v68 = vld [vmem:[%s1 + $0xf0] sm:$0xff]
  %v69 = vld [vmem:[%s1 + $0xf8] sm:$0xff]
  %v74 = vunpack.c.l.b16 %v34
  %v75 = vunpack.c.h.b16 %v34
  %v76 = vunpack.c.l.b16 %v35
  %v77 = vunpack.c.h.b16 %v35
  %v78 = vunpack.c.l.b16 %v36
  %v79 = vunpack.c.h.b16 %v36
  %v80 = vunpack.c.l.b16 %v37
  %v81 = vunpack.c.h.b16 %v37
  %v82 = vpack.c.b16 %v76, %v74
  %v83 = vpack.c.b16 %v77, %v75
  %v84 = vpack.c.b16 %v80, %v78
  %v85 = vpack.c.b16 %v81, %v79
  %v122 = vunpack.c.l.b16 %v38
  %v123 = vunpack.c.h.b16 %v38
  %v124 = vunpack.c.l.b16 %v39
  %v125 = vunpack.c.h.b16 %v39
  %v126 = vunpack.c.l.b16 %v40
  %v127 = vunpack.c.h.b16 %v40
  %v128 = vunpack.c.l.b16 %v41
  %v129 = vunpack.c.h.b16 %v41
  %v130 = vunpack.c.l.b16 %v42
  %v131 = vunpack.c.h.b16 %v42
  %v132 = vunpack.c.l.b16 %v43
  %v133 = vunpack.c.h.b16 %v43
  %v134 = vunpack.c.l.b16 %v44
  %v135 = vunpack.c.h.b16 %v44
  %v136 = vunpack.c.l.b16 %v45
  %v137 = vunpack.c.h.b16 %v45
  %v138 = vunpack.c.l.b16 %v46
  %v139 = vunpack.c.h.b16 %v46
  %v140 = vunpack.c.l.b16 %v47
  %v141 = vunpack.c.h.b16 %v47
  %v142 = vunpack.c.l.b16 %v48
  %v143 = vunpack.c.h.b16 %v48
  %v144 = vunpack.c.l.b16 %v49
  %v145 = vunpack.c.h.b16 %v49
  %v146 = vunpack.c.l.b16 %v50
  %v147 = vunpack.c.h.b16 %v50
  %v148 = vunpack.c.l.b16 %v51
  %v149 = vunpack.c.h.b16 %v51
  %v150 = vunpack.c.l.b16 %v52
  %v151 = vunpack.c.h.b16 %v52
  %v152 = vunpack.c.l.b16 %v53
  %v153 = vunpack.c.h.b16 %v53
  %v154 = vunpack.c.l.b16 %v54
  %v155 = vunpack.c.h.b16 %v54
  %v156 = vunpack.c.l.b16 %v55
  %v157 = vunpack.c.h.b16 %v55
  %v158 = vunpack.c.l.b16 %v56
  %v159 = vunpack.c.h.b16 %v56
  %v160 = vunpack.c.l.b16 %v57
  %v161 = vunpack.c.h.b16 %v57
  %v162 = vunpack.c.l.b16 %v58
  %v163 = vunpack.c.h.b16 %v58
  %v164 = vunpack.c.l.b16 %v59
  %v165 = vunpack.c.h.b16 %v59
  %v166 = vunpack.c.l.b16 %v60
  %v167 = vunpack.c.h.b16 %v60
  %v168 = vunpack.c.l.b16 %v61
  %v169 = vunpack.c.h.b16 %v61
  %v170 = vunpack.c.l.b16 %v62
  %v171 = vunpack.c.h.b16 %v62
  %v172 = vunpack.c.l.b16 %v63
  %v173 = vunpack.c.h.b16 %v63
  %v174 = vunpack.c.l.b16 %v64
  %v175 = vunpack.c.h.b16 %v64
  %v176 = vunpack.c.l.b16 %v65
  %v177 = vunpack.c.h.b16 %v65
  %v178 = vunpack.c.l.b16 %v66
  %v179 = vunpack.c.h.b16 %v66
  %v180 = vunpack.c.l.b16 %v67
  %v181 = vunpack.c.h.b16 %v67
  %v182 = vunpack.c.l.b16 %v68
  %v183 = vunpack.c.h.b16 %v68
  %v184 = vunpack.c.l.b16 %v69
  %v185 = vunpack.c.h.b16 %v69
  %v186 = vpack.c.b16 %v124, %v122
  %v187 = vpack.c.b16 %v125, %v123
  %v188 = vpack.c.b16 %v128, %v126
  %v189 = vpack.c.b16 %v129, %v127
  %v190 = vpack.c.b16 %v132, %v130
  %v191 = vpack.c.b16 %v133, %v131
  %v192 = vpack.c.b16 %v136, %v134
  %v193 = vpack.c.b16 %v137, %v135
  %v194 = vpack.c.b16 %v140, %v138
  %v195 = vpack.c.b16 %v141, %v139
  %v196 = vpack.c.b16 %v144, %v142
  %v197 = vpack.c.b16 %v145, %v143
  %v198 = vpack.c.b16 %v148, %v146
  %v199 = vpack.c.b16 %v149, %v147
  %v200 = vpack.c.b16 %v152, %v150
  %v201 = vpack.c.b16 %v153, %v151
  %v202 = vpack.c.b16 %v156, %v154
  %v203 = vpack.c.b16 %v157, %v155
  %v204 = vpack.c.b16 %v160, %v158
  %v205 = vpack.c.b16 %v161, %v159
  %v206 = vpack.c.b16 %v164, %v162
  %v207 = vpack.c.b16 %v165, %v163
  %v208 = vpack.c.b16 %v168, %v166
  %v209 = vpack.c.b16 %v169, %v167
  %v210 = vpack.c.b16 %v172, %v170
  %v211 = vpack.c.b16 %v173, %v171
  %v212 = vpack.c.b16 %v176, %v174
  %v213 = vpack.c.b16 %v177, %v175
  %v214 = vpack.c.b16 %v180, %v178
  %v215 = vpack.c.b16 %v181, %v179
  %v216 = vpack.c.b16 %v184, %v182
  %v217 = vpack.c.b16 %v185, %v183
  %250 = vmatprep.subr.bf16.mxu0 %v187
  %251 = vmatpush1.bf16.msra.mxu0 %v186
  %252 = vmatprep.subr.bf16.mxu0 %v189
  %253 = vmatpush1.bf16.msra.mxu0 %v188
  %254 = vmatprep.subr.bf16.mxu0 %v191
  %255 = vmatpush1.bf16.msra.mxu0 %v190
  %256 = vmatprep.subr.bf16.mxu0 %v193
  %257 = vmatpush1.bf16.msra.mxu0 %v192
  %258 = vmatprep.subr.bf16.mxu0 %v195
  %259 = vmatpush1.bf16.msra.mxu0 %v194
  %260 = vmatprep.subr.bf16.mxu0 %v197
  %261 = vmatpush1.bf16.msra.mxu0 %v196
  %262 = vmatprep.subr.bf16.mxu0 %v199
  %263 = vmatpush1.bf16.msra.mxu0 %v198
  %264 = vmatprep.subr.bf16.mxu0 %v201
  %265 = vmatpush1.bf16.msra.mxu0 %v200
  %266 = vmatprep.subr.bf16.mxu0 %v203
  %267 = vmatpush1.bf16.msra.mxu0 %v202
  %268 = vmatprep.subr.bf16.mxu0 %v205
  %269 = vmatpush1.bf16.msra.mxu0 %v204
  %270 = vmatprep.subr.bf16.mxu0 %v207
  %271 = vmatpush1.bf16.msra.mxu0 %v206
  %272 = vmatprep.subr.bf16.mxu0 %v209
  %273 = vmatpush1.bf16.msra.mxu0 %v208
  %274 = vmatprep.subr.bf16.mxu0 %v211
  %275 = vmatpush1.bf16.msra.mxu0 %v210
  %276 = vmatprep.subr.bf16.mxu0 %v213
  %277 = vmatpush1.bf16.msra.mxu0 %v212
  %278 = vmatprep.subr.bf16.mxu0 %v215
  %279 = vmatpush1.bf16.msra.mxu0 %v214
  %280 = vmatprep.subr.bf16.mxu0 %v217
  %281 = vmatpush1.bf16.msra.mxu0 %v216
  %282 = vmatprep.mubr.bf16.mxu0 %v83
  %283 = vmatmul.mubr.bf16.gmra.mrb[0].mxu0 %v82
  %v284 = vpop.f32.mrb[0].mxu0
  %v285 = vadd.f32 0.0, %v284
  %v286 = vpop.f32.mrb[0].mxu0
  %v287 = vadd.f32 0.0, %v286
  %v288 = vpop.f32.mrb[0].mxu0
  %v289 = vadd.f32 0.0, %v288
  %v290 = vpop.f32.mrb[0].mxu0
  %v291 = vadd.f32 0.0, %v290
  %292 = vmatprep.mubr.bf16.mxu0 %v85
  %293 = vmatmul.mubr.bf16.gmra.mrb[0].mxu0 %v84
  %v294 = vpop.f32.mrb[0].mxu0
  %v295 = vadd.f32 0.0, %v294
  %v296 = vpop.f32.mrb[0].mxu0
  %v297 = vadd.f32 0.0, %v296
  %v298 = vpop.f32.mrb[0].mxu0
  %v299 = vadd.f32 0.0, %v298
  %v300 = vpop.f32.mrb[0].mxu0
  %v301 = vadd.f32 0.0, %v300
  %302 = vdwg.mxu0
  %v303 = vadd.f32 %v26, %v285
  %v304 = vadd.f32 %v27, %v287
  %v305 = vadd.f32 %v28, %v289
  %v306 = vadd.f32 %v29, %v291
  %v307 = vadd.f32 %v30, %v295
  %v308 = vadd.f32 %v31, %v297
  %v309 = vadd.f32 %v32, %v299
  %v310 = vadd.f32 %v33, %v301
  %311 = vst [vmem:[#allocation2] sm:$0xff] %v303
  %312 = vst [vmem:[#allocation2 + $0x8] sm:$0xff] %v304
  %313 = vst [vmem:[#allocation2 + $0x10] sm:$0xff] %v305
  %314 = vst [vmem:[#allocation2 + $0x18] sm:$0xff] %v306
  %315 = vst [vmem:[#allocation2 + $0x20] sm:$0xff] %v307
  %316 = vst [vmem:[#allocation2 + $0x28] sm:$0xff] %v308
  %317 = vst [vmem:[#allocation2 + $0x30] sm:$0xff] %v309
  %318 = vst [vmem:[#allocation2 + $0x38] sm:$0xff] %v310
  // Predicated region
  $region18: #{entry_stem_fwd.42} parent=0 // pred_check
    %p319 = pneg %p14
  $region19: #{entry_stem_fwd.42} parent=0 // pred_check_branch
    %321 = sbr.rel (%p319) target = $region21
  $region20: #{entry_stem_fwd.42} parent=0 // pred_region
    %v322 = vld [vmem:[#allocation2] sm:$0xff]
    %v323 = vld [vmem:[#allocation2 + $0x8] sm:$0xff]
    %v324 = vld [vmem:[#allocation2 + $0x10] sm:$0xff]
    %v325 = vld [vmem:[#allocation2 + $0x18] sm:$0xff]
    %v326 = vld [vmem:[#allocation2 + $0x20] sm:$0xff]
    %v327 = vld [vmem:[#allocation2 + $0x28] sm:$0xff]
    %v328 = vld [vmem:[#allocation2 + $0x30] sm:$0xff]
    %v329 = vld [vmem:[#allocation2 + $0x38] sm:$0xff]
    %v330 = vld [vmem:[%s2] sm:$0x3]
    %v332 = vlaneseq
    %v333 = vshrl.u32 %v332, 7
    %v334 = vsub.s32 0, %v333
    %v335 = vrot.slane %v330, %v334
    %v336 = vlaneseq
    %v337 = vshrl.u32 %v336, 7
    %v338 = vsub.s32 1, %v337
    %v339 = vrot.slane %v330, %v338
    %v342 = vadd.f32 %v322, %v335
    %v343 = vadd.f32 %v323, %v339
    %v344 = vadd.f32 %v324, %v335
    %v345 = vadd.f32 %v325, %v339
    %v346 = vadd.f32 %v326, %v335
    %v347 = vadd.f32 %v327, %v339
    %v348 = vadd.f32 %v328, %v335
    %v349 = vadd.f32 %v329, %v339
    %350 = vst [vmem:[%s3] sm:$0xff] %v342
    %351 = vst [vmem:[%s3 + $0x8] sm:$0xff] %v343
    %352 = vst [vmem:[%s3 + $0x10] sm:$0xff] %v344
    %353 = vst [vmem:[%s3 + $0x18] sm:$0xff] %v345
    %354 = vst [vmem:[%s3 + $0x20] sm:$0xff] %v346
    %355 = vst [vmem:[%s3 + $0x28] sm:$0xff] %v347
    %356 = vst [vmem:[%s3 + $0x30] sm:$0xff] %v348
    %357 = vst [vmem:[%s3 + $0x38] sm:$0xff] %v349
  $region21: #{entry_stem_fwd.42} parent=0 // pred_fallthru
    _
  // Predicated region
  $region22: #{entry_stem_fwd.42} parent=0 // pred_check
    _
  $region23: #{entry_stem_fwd.42} parent=0 // pred_check_branch
    %359 = sbr.rel (0) target = $region25
  $region24: #{entry_stem_fwd.42} parent=0 // pred_region
    _
  $region25: #{entry_stem_fwd.42} parent=0 // pred_fallthru
    _
  // Predicated region
  $region26: #{entry_stem_fwd.42} parent=0 // pred_check
    _
  $region27: #{entry_stem_fwd.42} parent=0 // pred_check_branch
    %361 = sbr.rel (0) target = $region29
  $region28: #{entry_stem_fwd.42} parent=0 // pred_region
    _
  $region29: #{entry_stem_fwd.42} parent=0 // pred_fallthru
    _

// kernel: entry_stem_fwd.41
$region0: #{entry_stem_fwd.41}
  #allocation0 [shape = 'u32[]', space=smem, size = 0x4, offset = 0x4, fixed_abs, tag = 'smem constant byte address 0x4 - core index']
  #allocation1 [shape = 'u32[144,128]{1,0:T(1,128)}', space=vmem, size = 0x12000, scoped, tag = 'internal scratch']
  #allocation2 [shape = 'f32[8,256]{1,0:T(8,128)}', space=vmem, size = 0x2000, scoped, tag = 'scratch operand']
  %s0 = inlined_call_operand.vmem [shape: bf16[8,256], index: 0, kind: input, shape index: {}]
  %s1 = inlined_call_operand.vmem [shape: bf16[256,256], index: 1, kind: input, shape index: {}]
  %s2 = inlined_call_operand.vmem [shape: f32[1,256], index: 2, kind: input, shape index: {}]
  %s3 = inlined_call_operand.vmem [shape: f32[8,256], index: 3, kind: output, shape index: {}]
  %s4 = sld [smem:[#allocation0]]
  $region30: #{entry_stem_fwd.41} parent=0
    _
  %s6 = ssub.s32 1, %s4
  %s7 = scalar_select 0, %s6, %s4
  // Predicated region
  $region2: #{entry_stem_fwd.41} parent=0 // pred_check
    _
  $region3: #{entry_stem_fwd.41} parent=0 // pred_check_branch
    %9 = sbr.rel (0) target = $region5
  $region4: #{entry_stem_fwd.41} parent=0 // pred_region
    _
  $region5: #{entry_stem_fwd.41} parent=0 // pred_fallthru
    _
  // Predicated region
  $region6: #{entry_stem_fwd.41} parent=0 // pred_check
    _
  $region7: #{entry_stem_fwd.41} parent=0 // pred_check_branch
    %11 = sbr.rel (0) target = $region9
  $region8: #{entry_stem_fwd.41} parent=0 // pred_region
    _
  $region9: #{entry_stem_fwd.41} parent=0 // pred_fallthru
    _
  // Predicated region
  $region10: #{entry_stem_fwd.41} parent=0 // pred_check
    _
  $region11: #{entry_stem_fwd.41} parent=0 // pred_check_branch
    %13 = sbr.rel (0) target = $region13
  $region12: #{entry_stem_fwd.41} parent=0 // pred_region
    _
  $region13: #{entry_stem_fwd.41} parent=0 // pred_fallthru
    _
  %p14 = scmp.eq.s32.totalorder 0, 0
  // Predicated region
  $region14: #{entry_stem_fwd.41} parent=0 // pred_check
    %p15 = pneg %p14
  $region15: #{entry_stem_fwd.41} parent=0 // pred_check_branch
    %17 = sbr.rel (%p15) target = $region17
  $region16: #{entry_stem_fwd.41} parent=0 // pred_region
    %18 = vst [vmem:[#allocation2] sm:$0xff] 0.0
    %19 = vst [vmem:[#allocation2 + $0x8] sm:$0xff] 0.0
  $region17: #{entry_stem_fwd.41} parent=0 // pred_fallthru
    _
  %v20 = vld [vmem:[#allocation2] sm:$0xff]
  %v21 = vld [vmem:[#allocation2 + $0x8] sm:$0xff]
  %v22 = vld [vmem:[%s0] sm:$0xff]
  %v23 = vld [vmem:[%s1] sm:$0xff]
  %v24 = vld [vmem:[%s1 + $0x8] sm:$0xff]
  %v25 = vld [vmem:[%s1 + $0x10] sm:$0xff]
  %v26 = vld [vmem:[%s1 + $0x18] sm:$0xff]
  %v27 = vld [vmem:[%s1 + $0x20] sm:$0xff]
  %v28 = vld [vmem:[%s1 + $0x28] sm:$0xff]
  %v29 = vld [vmem:[%s1 + $0x30] sm:$0xff]
  %v30 = vld [vmem:[%s1 + $0x38] sm:$0xff]
  %v31 = vld [vmem:[%s1 + $0x40] sm:$0xff]
  %v32 = vld [vmem:[%s1 + $0x48] sm:$0xff]
  %v33 = vld [vmem:[%s1 + $0x50] sm:$0xff]
  %v34 = vld [vmem:[%s1 + $0x58] sm:$0xff]
  %v35 = vld [vmem:[%s1 + $0x60] sm:$0xff]
  %v36 = vld [vmem:[%s1 + $0x68] sm:$0xff]
  %v37 = vld [vmem:[%s1 + $0x70] sm:$0xff]
  %v38 = vld [vmem:[%s1 + $0x78] sm:$0xff]
  %v39 = vld [vmem:[%s1 + $0x80] sm:$0xff]
  %v40 = vld [vmem:[%s1 + $0x88] sm:$0xff]
  %v41 = vld [vmem:[%s1 + $0x90] sm:$0xff]
  %v42 = vld [vmem:[%s1 + $0x98] sm:$0xff]
  %v43 = vld [vmem:[%s1 + $0xa0] sm:$0xff]
  %v44 = vld [vmem:[%s1 + $0xa8] sm:$0xff]
  %v45 = vld [vmem:[%s1 + $0xb0] sm:$0xff]
  %v46 = vld [vmem:[%s1 + $0xb8] sm:$0xff]
  %v47 = vld [vmem:[%s1 + $0xc0] sm:$0xff]
  %v48 = vld [vmem:[%s1 + $0xc8] sm:$0xff]
  %v49 = vld [vmem:[%s1 + $0xd0] sm:$0xff]
  %v50 = vld [vmem:[%s1 + $0xd8] sm:$0xff]
  %v51 = vld [vmem:[%s1 + $0xe0] sm:$0xff]
  %v52 = vld [vmem:[%s1 + $0xe8] sm:$0xff]
  %v53 = vld [vmem:[%s1 + $0xf0] sm:$0xff]
  %v54 = vld [vmem:[%s1 + $0xf8] sm:$0xff]
  %v56 = vunpack.c.l.b16 %v22
  %v57 = vunpack.c.h.b16 %v22
  %v58 = vpack.c.b16 %v56, %v56
  %v59 = vpack.c.b16 %v57, %v57
  %v94 = vunpack.c.l.b16 %v23
  %v95 = vunpack.c.h.b16 %v23
  %v96 = vunpack.c.l.b16 %v24
  %v97 = vunpack.c.h.b16 %v24
  %v98 = vunpack.c.l.b16 %v25
  %v99 = vunpack.c.h.b16 %v25
  %v100 = vunpack.c.l.b16 %v26
  %v101 = vunpack.c.h.b16 %v26
  %v102 = vunpack.c.l.b16 %v27
  %v103 = vunpack.c.h.b16 %v27
  %v104 = vunpack.c.l.b16 %v28
  %v105 = vunpack.c.h.b16 %v28
  %v106 = vunpack.c.l.b16 %v29
  %v107 = vunpack.c.h.b16 %v29
  %v108 = vunpack.c.l.b16 %v30
  %v109 = vunpack.c.h.b16 %v30
  %v110 = vunpack.c.l.b16 %v31
  %v111 = vunpack.c.h.b16 %v31
  %v112 = vunpack.c.l.b16 %v32
  %v113 = vunpack.c.h.b16 %v32
  %v114 = vunpack.c.l.b16 %v33
  %v115 = vunpack.c.h.b16 %v33
  %v116 = vunpack.c.l.b16 %v34
  %v117 = vunpack.c.h.b16 %v34
  %v118 = vunpack.c.l.b16 %v35
  %v119 = vunpack.c.h.b16 %v35
  %v120 = vunpack.c.l.b16 %v36
  %v121 = vunpack.c.h.b16 %v36
  %v122 = vunpack.c.l.b16 %v37
  %v123 = vunpack.c.h.b16 %v37
  %v124 = vunpack.c.l.b16 %v38
  %v125 = vunpack.c.h.b16 %v38
  %v126 = vunpack.c.l.b16 %v39
  %v127 = vunpack.c.h.b16 %v39
  %v128 = vunpack.c.l.b16 %v40
  %v129 = vunpack.c.h.b16 %v40
  %v130 = vunpack.c.l.b16 %v41
  %v131 = vunpack.c.h.b16 %v41
  %v132 = vunpack.c.l.b16 %v42
  %v133 = vunpack.c.h.b16 %v42
  %v134 = vunpack.c.l.b16 %v43
  %v135 = vunpack.c.h.b16 %v43
  %v136 = vunpack.c.l.b16 %v44
  %v137 = vunpack.c.h.b16 %v44
  %v138 = vunpack.c.l.b16 %v45
  %v139 = vunpack.c.h.b16 %v45
  %v140 = vunpack.c.l.b16 %v46
  %v141 = vunpack.c.h.b16 %v46
  %v142 = vunpack.c.l.b16 %v47
  %v143 = vunpack.c.h.b16 %v47
  %v144 = vunpack.c.l.b16 %v48
  %v145 = vunpack.c.h.b16 %v48
  %v146 = vunpack.c.l.b16 %v49
  %v147 = vunpack.c.h.b16 %v49
  %v148 = vunpack.c.l.b16 %v50
  %v149 = vunpack.c.h.b16 %v50
  %v150 = vunpack.c.l.b16 %v51
  %v151 = vunpack.c.h.b16 %v51
  %v152 = vunpack.c.l.b16 %v52
  %v153 = vunpack.c.h.b16 %v52
  %v154 = vunpack.c.l.b16 %v53
  %v155 = vunpack.c.h.b16 %v53
  %v156 = vunpack.c.l.b16 %v54
  %v157 = vunpack.c.h.b16 %v54
  %v158 = vpack.c.b16 %v96, %v94
  %v159 = vpack.c.b16 %v97, %v95
  %v160 = vpack.c.b16 %v100, %v98
  %v161 = vpack.c.b16 %v101, %v99
  %v162 = vpack.c.b16 %v104, %v102
  %v163 = vpack.c.b16 %v105, %v103
  %v164 = vpack.c.b16 %v108, %v106
  %v165 = vpack.c.b16 %v109, %v107
  %v166 = vpack.c.b16 %v112, %v110
  %v167 = vpack.c.b16 %v113, %v111
  %v168 = vpack.c.b16 %v116, %v114
  %v169 = vpack.c.b16 %v117, %v115
  %v170 = vpack.c.b16 %v120, %v118
  %v171 = vpack.c.b16 %v121, %v119
  %v172 = vpack.c.b16 %v124, %v122
  %v173 = vpack.c.b16 %v125, %v123
  %v174 = vpack.c.b16 %v128, %v126
  %v175 = vpack.c.b16 %v129, %v127
  %v176 = vpack.c.b16 %v132, %v130
  %v177 = vpack.c.b16 %v133, %v131
  %v178 = vpack.c.b16 %v136, %v134
  %v179 = vpack.c.b16 %v137, %v135
  %v180 = vpack.c.b16 %v140, %v138
  %v181 = vpack.c.b16 %v141, %v139
  %v182 = vpack.c.b16 %v144, %v142
  %v183 = vpack.c.b16 %v145, %v143
  %v184 = vpack.c.b16 %v148, %v146
  %v185 = vpack.c.b16 %v149, %v147
  %v186 = vpack.c.b16 %v152, %v150
  %v187 = vpack.c.b16 %v153, %v151
  %v188 = vpack.c.b16 %v156, %v154
  %v189 = vpack.c.b16 %v157, %v155
  %222 = vmatprep.subr.bf16.mxu0 %v159
  %223 = vmatpush1.bf16.msra.mxu0 %v158
  %224 = vmatprep.subr.bf16.mxu0 %v161
  %225 = vmatpush1.bf16.msra.mxu0 %v160
  %226 = vmatprep.subr.bf16.mxu0 %v163
  %227 = vmatpush1.bf16.msra.mxu0 %v162
  %228 = vmatprep.subr.bf16.mxu0 %v165
  %229 = vmatpush1.bf16.msra.mxu0 %v164
  %230 = vmatprep.subr.bf16.mxu0 %v167
  %231 = vmatpush1.bf16.msra.mxu0 %v166
  %232 = vmatprep.subr.bf16.mxu0 %v169
  %233 = vmatpush1.bf16.msra.mxu0 %v168
  %234 = vmatprep.subr.bf16.mxu0 %v171
  %235 = vmatpush1.bf16.msra.mxu0 %v170
  %236 = vmatprep.subr.bf16.mxu0 %v173
  %237 = vmatpush1.bf16.msra.mxu0 %v172
  %238 = vmatprep.subr.bf16.mxu0 %v175
  %239 = vmatpush1.bf16.msra.mxu0 %v174
  %240 = vmatprep.subr.bf16.mxu0 %v177
  %241 = vmatpush1.bf16.msra.mxu0 %v176
  %242 = vmatprep.subr.bf16.mxu0 %v179
  %243 = vmatpush1.bf16.msra.mxu0 %v178
  %244 = vmatprep.subr.bf16.mxu0 %v181
  %245 = vmatpush1.bf16.msra.mxu0 %v180
  %246 = vmatprep.subr.bf16.mxu0 %v183
  %247 = vmatpush1.bf16.msra.mxu0 %v182
  %248 = vmatprep.subr.bf16.mxu0 %v185
  %249 = vmatpush1.bf16.msra.mxu0 %v184
  %250 = vmatprep.subr.bf16.mxu0 %v187
  %251 = vmatpush1.bf16.msra.mxu0 %v186
  %252 = vmatprep.subr.bf16.mxu0 %v189
  %253 = vmatpush1.bf16.msra.mxu0 %v188
  %254 = vmatprep.mubr.bf16.mxu0 %v59
  %255 = vmatmul.mubr.bf16.gmra.mrb[0].mxu0 %v58
  %v256 = vpop.f32.mrb[0].mxu0
  %v257 = vadd.f32 0.0, %v256
  %v258 = vpop.f32.mrb[0].mxu0
  %v259 = vadd.f32 0.0, %v258
  %v260 = vpop.f32.mrb[0].mxu0
  %v261 = vpop.f32.mrb[0].mxu0
  %262 = vdwg.mxu0
  %v263 = vadd.f32 %v20, %v257
  %v264 = vadd.f32 %v21, %v259
  %265 = vst [vmem:[#allocation2] sm:$0xff] %v263
  %266 = vst [vmem:[#allocation2 + $0x8] sm:$0xff] %v264
  // Predicated region
  $region18: #{entry_stem_fwd.41} parent=0 // pred_check
    %p267 = pneg %p14
  $region19: #{entry_stem_fwd.41} parent=0 // pred_check_branch
    %269 = sbr.rel (%p267) target = $region21
  $region20: #{entry_stem_fwd.41} parent=0 // pred_region
    %v270 = vld [vmem:[#allocation2] sm:$0xff]
    %v271 = vld [vmem:[#allocation2 + $0x8] sm:$0xff]
    %v272 = vld [vmem:[%s2] sm:$0x3]
    %v274 = vlaneseq
    %v275 = vshrl.u32 %v274, 7
    %v276 = vsub.s32 0, %v275
    %v277 = vrot.slane %v272, %v276
    %v278 = vlaneseq
    %v279 = vshrl.u32 %v278, 7
    %v280 = vsub.s32 1, %v279
    %v281 = vrot.slane %v272, %v280
    %v284 = vadd.f32 %v270, %v277
    %v285 = vadd.f32 %v271, %v281
    %286 = vst [vmem:[%s3] sm:$0xff] %v284
    %287 = vst [vmem:[%s3 + $0x8] sm:$0xff] %v285
  $region21: #{entry_stem_fwd.41} parent=0 // pred_fallthru
    _
  // Predicated region
  $region22: #{entry_stem_fwd.41} parent=0 // pred_check
    _
  $region23: #{entry_stem_fwd.41} parent=0 // pred_check_branch
    %289 = sbr.rel (0) target = $region25
  $region24: #{entry_stem_fwd.41} parent=0 // pred_region
    _
  $region25: #{entry_stem_fwd.41} parent=0 // pred_fallthru
    _
  // Predicated region
  $region26: #{entry_stem_fwd.41} parent=0 // pred_check
    _
  $region27: #{entry_stem_fwd.41} parent=0 // pred_check_branch
    %291 = sbr.rel (0) target = $region29
  $region28: #{entry_stem_fwd.41} parent=0 // pred_region
    _
  $region29: #{entry_stem_fwd.41} parent=0 // pred_fallthru
    _

// kernel: entry_stem_fwd.43
$region0: #{entry_stem_fwd.43}
  #allocation0 [shape = 'u32[]', space=smem, size = 0x4, offset = 0x4, fixed_abs, tag = 'smem constant byte address 0x4 - core index']
  #allocation1 [shape = 'u32[144,128]{1,0:T(1,128)}', space=vmem, size = 0x12000, scoped, tag = 'internal scratch']
  #allocation2 [shape = 'f32[32,256]{1,0:T(8,128)}', space=vmem, size = 0x8000, scoped, tag = 'scratch operand']
  %s0 = inlined_call_operand.vmem [shape: bf16[32,768], index: 0, kind: input, shape index: {}]
  %s1 = inlined_call_operand.vmem [shape: bf16[768,256], index: 1, kind: input, shape index: {}]
  %s2 = inlined_call_operand.vmem [shape: f32[1,256], index: 2, kind: input, shape index: {}]
  %s3 = inlined_call_operand.vmem [shape: f32[32,256], index: 3, kind: output, shape index: {}]
  %s4 = sld [smem:[#allocation0]]
  $region30: #{entry_stem_fwd.43} parent=0
    _
  %s6 = ssub.s32 1, %s4
  %s7 = scalar_select 0, %s6, %s4
  // Predicated region
  $region2: #{entry_stem_fwd.43} parent=0 // pred_check
    _
  $region3: #{entry_stem_fwd.43} parent=0 // pred_check_branch
    %9 = sbr.rel (0) target = $region5
  $region4: #{entry_stem_fwd.43} parent=0 // pred_region
    _
  $region5: #{entry_stem_fwd.43} parent=0 // pred_fallthru
    _
  // Predicated region
  $region6: #{entry_stem_fwd.43} parent=0 // pred_check
    _
  $region7: #{entry_stem_fwd.43} parent=0 // pred_check_branch
    %11 = sbr.rel (0) target = $region9
  $region8: #{entry_stem_fwd.43} parent=0 // pred_region
    _
  $region9: #{entry_stem_fwd.43} parent=0 // pred_fallthru
    _
  // Predicated region
  $region10: #{entry_stem_fwd.43} parent=0 // pred_check
    _
  $region11: #{entry_stem_fwd.43} parent=0 // pred_check_branch
    %13 = sbr.rel (0) target = $region13
  $region12: #{entry_stem_fwd.43} parent=0 // pred_region
    _
  $region13: #{entry_stem_fwd.43} parent=0 // pred_fallthru
    _
  %p14 = scmp.eq.s32.totalorder 0, 0
  // Predicated region
  $region14: #{entry_stem_fwd.43} parent=0 // pred_check
    %p15 = pneg %p14
  $region15: #{entry_stem_fwd.43} parent=0 // pred_check_branch
    %17 = sbr.rel (%p15) target = $region17
  $region16: #{entry_stem_fwd.43} parent=0 // pred_region
    %18 = vst [vmem:[#allocation2] sm:$0xff] 0.0
    %19 = vst [vmem:[#allocation2 + $0x8] sm:$0xff] 0.0
    %20 = vst [vmem:[#allocation2 + $0x10] sm:$0xff] 0.0
    %21 = vst [vmem:[#allocation2 + $0x18] sm:$0xff] 0.0
    %22 = vst [vmem:[#allocation2 + $0x20] sm:$0xff] 0.0
    %23 = vst [vmem:[#allocation2 + $0x28] sm:$0xff] 0.0
    %24 = vst [vmem:[#allocation2 + $0x30] sm:$0xff] 0.0
    %25 = vst [vmem:[#allocation2 + $0x38] sm:$0xff] 0.0
  $region17: #{entry_stem_fwd.43} parent=0 // pred_fallthru
    _
  %v26 = vld [vmem:[#allocation2] sm:$0xff]
  %v27 = vld [vmem:[#allocation2 + $0x8] sm:$0xff]
  %v28 = vld [vmem:[#allocation2 + $0x10] sm:$0xff]
  %v29 = vld [vmem:[#allocation2 + $0x18] sm:$0xff]
  %v30 = vld [vmem:[#allocation2 + $0x20] sm:$0xff]
  %v31 = vld [vmem:[#allocation2 + $0x28] sm:$0xff]
  %v32 = vld [vmem:[#allocation2 + $0x30] sm:$0xff]
  %v33 = vld [vmem:[#allocation2 + $0x38] sm:$0xff]
  %v34 = vld [vmem:[%s0] sm:$0xff]
  %v35 = vld [vmem:[%s0 + $0x8] sm:$0xff]
  %v36 = vld [vmem:[%s0 + $0x10] sm:$0xff]
  %v37 = vld [vmem:[%s0 + $0x18] sm:$0xff]
  %v38 = vld [vmem:[%s0 + $0x20] sm:$0xff]
  %v39 = vld [vmem:[%s0 + $0x28] sm:$0xff]
  %v40 = vld [vmem:[%s0 + $0x30] sm:$0xff]
  %v41 = vld [vmem:[%s0 + $0x38] sm:$0xff]
  %v42 = vld [vmem:[%s0 + $0x40] sm:$0xff]
  %v43 = vld [vmem:[%s0 + $0x48] sm:$0xff]
  %v44 = vld [vmem:[%s0 + $0x50] sm:$0xff]
  %v45 = vld [vmem:[%s0 + $0x58] sm:$0xff]
  %v46 = vld [vmem:[%s1] sm:$0xff]
  %v47 = vld [vmem:[%s1 + $0x8] sm:$0xff]
  %v48 = vld [vmem:[%s1 + $0x10] sm:$0xff]
  %v49 = vld [vmem:[%s1 + $0x18] sm:$0xff]
  %v50 = vld [vmem:[%s1 + $0x20] sm:$0xff]
  %v51 = vld [vmem:[%s1 + $0x28] sm:$0xff]
  %v52 = vld [vmem:[%s1 + $0x30] sm:$0xff]
  %v53 = vld [vmem:[%s1 + $0x38] sm:$0xff]
  %v54 = vld [vmem:[%s1 + $0x40] sm:$0xff]
  %v55 = vld [vmem:[%s1 + $0x48] sm:$0xff]
  %v56 = vld [vmem:[%s1 + $0x50] sm:$0xff]
  %v57 = vld [vmem:[%s1 + $0x58] sm:$0xff]
  %v58 = vld [vmem:[%s1 + $0x60] sm:$0xff]
  %v59 = vld [vmem:[%s1 + $0x68] sm:$0xff]
  %v60 = vld [vmem:[%s1 + $0x70] sm:$0xff]
  %v61 = vld [vmem:[%s1 + $0x78] sm:$0xff]
  %v62 = vld [vmem:[%s1 + $0x80] sm:$0xff]
  %v63 = vld [vmem:[%s1 + $0x88] sm:$0xff]
  %v64 = vld [vmem:[%s1 + $0x90] sm:$0xff]
  %v65 = vld [vmem:[%s1 + $0x98] sm:$0xff]
  %v66 = vld [vmem:[%s1 + $0xa0] sm:$0xff]
  %v67 = vld [vmem:[%s1 + $0xa8] sm:$0xff]
  %v68 = vld [vmem:[%s1 + $0xb0] sm:$0xff]
  %v69 = vld [vmem:[%s1 + $0xb8] sm:$0xff]
  %v70 = vld [vmem:[%s1 + $0xc0] sm:$0xff]
  %v71 = vld [vmem:[%s1 + $0xc8] sm:$0xff]
  %v72 = vld [vmem:[%s1 + $0xd0] sm:$0xff]
  %v73 = vld [vmem:[%s1 + $0xd8] sm:$0xff]
  %v74 = vld [vmem:[%s1 + $0xe0] sm:$0xff]
  %v75 = vld [vmem:[%s1 + $0xe8] sm:$0xff]
  %v76 = vld [vmem:[%s1 + $0xf0] sm:$0xff]
  %v77 = vld [vmem:[%s1 + $0xf8] sm:$0xff]
  %v78 = vld [vmem:[%s1 + $0x100] sm:$0xff]
  %v79 = vld [vmem:[%s1 + $0x108] sm:$0xff]
  %v80 = vld [vmem:[%s1 + $0x110] sm:$0xff]
  %v81 = vld [vmem:[%s1 + $0x118] sm:$0xff]
  %v82 = vld [vmem:[%s1 + $0x120] sm:$0xff]
  %v83 = vld [vmem:[%s1 + $0x128] sm:$0xff]
  %v84 = vld [vmem:[%s1 + $0x130] sm:$0xff]
  %v85 = vld [vmem:[%s1 + $0x138] sm:$0xff]
  %v86 = vld [vmem:[%s1 + $0x140] sm:$0xff]
  %v87 = vld [vmem:[%s1 + $0x148] sm:$0xff]
  %v88 = vld [vmem:[%s1 + $0x150] sm:$0xff]
  %v89 = vld [vmem:[%s1 + $0x158] sm:$0xff]
  %v90 = vld [vmem:[%s1 + $0x160] sm:$0xff]
  %v91 = vld [vmem:[%s1 + $0x168] sm:$0xff]
  %v92 = vld [vmem:[%s1 + $0x170] sm:$0xff]
  %v93 = vld [vmem:[%s1 + $0x178] sm:$0xff]
  %v94 = vld [vmem:[%s1 + $0x180] sm:$0xff]
  %v95 = vld [vmem:[%s1 + $0x188] sm:$0xff]
  %v96 = vld [vmem:[%s1 + $0x190] sm:$0xff]
  %v97 = vld [vmem:[%s1 + $0x198] sm:$0xff]
  %v98 = vld [vmem:[%s1 + $0x1a0] sm:$0xff]
  %v99 = vld [vmem:[%s1 + $0x1a8] sm:$0xff]
  %v100 = vld [vmem:[%s1 + $0x1b0] sm:$0xff]
  %v101 = vld [vmem:[%s1 + $0x1b8] sm:$0xff]
  %v102 = vld [vmem:[%s1 + $0x1c0] sm:$0xff]
  %v103 = vld [vmem:[%s1 + $0x1c8] sm:$0xff]
  %v104 = vld [vmem:[%s1 + $0x1d0] sm:$0xff]
  %v105 = vld [vmem:[%s1 + $0x1d8] sm:$0xff]
  %v106 = vld [vmem:[%s1 + $0x1e0] sm:$0xff]
  %v107 = vld [vmem:[%s1 + $0x1e8] sm:$0xff]
  %v108 = vld [vmem:[%s1 + $0x1f0] sm:$0xff]
  %v109 = vld [vmem:[%s1 + $0x1f8] sm:$0xff]
  %v110 = vld [vmem:[%s1 + $0x200] sm:$0xff]
  %v111 = vld [vmem:[%s1 + $0x208] sm:$0xff]
  %v112 = vld [vmem:[%s1 + $0x210] sm:$0xff]
  %v113 = vld [vmem:[%s1 + $0x218] sm:$0xff]
  %v114 = vld [vmem:[%s1 + $0x220] sm:$0xff]
  %v115 = vld [vmem:[%s1 + $0x228] sm:$0xff]
  %v116 = vld [vmem:[%s1 + $0x230] sm:$0xff]
  %v117 = vld [vmem:[%s1 + $0x238] sm:$0xff]
  %v118 = vld [vmem:[%s1 + $0x240] sm:$0xff]
  %v119 = vld [vmem:[%s1 + $0x248] sm:$0xff]
  %v120 = vld [vmem:[%s1 + $0x250] sm:$0xff]
  %v121 = vld [vmem:[%s1 + $0x258] sm:$0xff]
  %v122 = vld [vmem:[%s1 + $0x260] sm:$0xff]
  %v123 = vld [vmem:[%s1 + $0x268] sm:$0xff]
  %v124 = vld [vmem:[%s1 + $0x270] sm:$0xff]
  %v125 = vld [vmem:[%s1 + $0x278] sm:$0xff]
  %v126 = vld [vmem:[%s1 + $0x280] sm:$0xff]
  %v127 = vld [vmem:[%s1 + $0x288] sm:$0xff]
  %v128 = vld [vmem:[%s1 + $0x290] sm:$0xff]
  %v129 = vld [vmem:[%s1 + $0x298] sm:$0xff]
  %v130 = vld [vmem:[%s1 + $0x2a0] sm:$0xff]
  %v131 = vld [vmem:[%s1 + $0x2a8] sm:$0xff]
  %v132 = vld [vmem:[%s1 + $0x2b0] sm:$0xff]
  %v133 = vld [vmem:[%s1 + $0x2b8] sm:$0xff]
  %v134 = vld [vmem:[%s1 + $0x2c0] sm:$0xff]
  %v135 = vld [vmem:[%s1 + $0x2c8] sm:$0xff]
  %v136 = vld [vmem:[%s1 + $0x2d0] sm:$0xff]
  %v137 = vld [vmem:[%s1 + $0x2d8] sm:$0xff]
  %v138 = vld [vmem:[%s1 + $0x2e0] sm:$0xff]
  %v139 = vld [vmem:[%s1 + $0x2e8] sm:$0xff]
  %v140 = vld [vmem:[%s1 + $0x2f0] sm:$0xff]
  %v141 = vld [vmem:[%s1 + $0x2f8] sm:$0xff]
  %v154 = vunpack.c.l.b16 %v34
  %v155 = vunpack.c.h.b16 %v34
  %v156 = vunpack.c.l.b16 %v35
  %v157 = vunpack.c.h.b16 %v35
  %v158 = vunpack.c.l.b16 %v36
  %v159 = vunpack.c.h.b16 %v36
  %v160 = vunpack.c.l.b16 %v37
  %v161 = vunpack.c.h.b16 %v37
  %v162 = vunpack.c.l.b16 %v38
  %v163 = vunpack.c.h.b16 %v38
  %v164 = vunpack.c.l.b16 %v39
  %v165 = vunpack.c.h.b16 %v39
  %v166 = vunpack.c.l.b16 %v40
  %v167 = vunpack.c.h.b16 %v40
  %v168 = vunpack.c.l.b16 %v41
  %v169 = vunpack.c.h.b16 %v41
  %v170 = vunpack.c.l.b16 %v42
  %v171 = vunpack.c.h.b16 %v42
  %v172 = vunpack.c.l.b16 %v43
  %v173 = vunpack.c.h.b16 %v43
  %v174 = vunpack.c.l.b16 %v44
  %v175 = vunpack.c.h.b16 %v44
  %v176 = vunpack.c.l.b16 %v45
  %v177 = vunpack.c.h.b16 %v45
  %v178 = vpack.c.b16 %v160, %v154
  %v179 = vpack.c.b16 %v161, %v155
  %v180 = vpack.c.b16 %v162, %v156
  %v181 = vpack.c.b16 %v163, %v157
  %v182 = vpack.c.b16 %v164, %v158
  %v183 = vpack.c.b16 %v165, %v159
  %v184 = vpack.c.b16 %v172, %v166
  %v185 = vpack.c.b16 %v173, %v167
  %v186 = vpack.c.b16 %v174, %v168
  %v187 = vpack.c.b16 %v175, %v169
  %v188 = vpack.c.b16 %v176, %v170
  %v189 = vpack.c.b16 %v177, %v171
  %v298 = vunpack.c.l.b16 %v46
  %v299 = vunpack.c.h.b16 %v46
  %v300 = vunpack.c.l.b16 %v47
  %v301 = vunpack.c.h.b16 %v47
  %v302 = vunpack.c.l.b16 %v48
  %v303 = vunpack.c.h.b16 %v48
  %v304 = vunpack.c.l.b16 %v49
  %v305 = vunpack.c.h.b16 %v49
  %v306 = vunpack.c.l.b16 %v50
  %v307 = vunpack.c.h.b16 %v50
  %v308 = vunpack.c.l.b16 %v51
  %v309 = vunpack.c.h.b16 %v51
  %v310 = vunpack.c.l.b16 %v52
  %v311 = vunpack.c.h.b16 %v52
  %v312 = vunpack.c.l.b16 %v53
  %v313 = vunpack.c.h.b16 %v53
  %v314 = vunpack.c.l.b16 %v54
  %v315 = vunpack.c.h.b16 %v54
  %v316 = vunpack.c.l.b16 %v55
  %v317 = vunpack.c.h.b16 %v55
  %v318 = vunpack.c.l.b16 %v56
  %v319 = vunpack.c.h.b16 %v56
  %v320 = vunpack.c.l.b16 %v57
  %v321 = vunpack.c.h.b16 %v57
  %v322 = vunpack.c.l.b16 %v58
  %v323 = vunpack.c.h.b16 %v58
  %v324 = vunpack.c.l.b16 %v59
  %v325 = vunpack.c.h.b16 %v59
  %v326 = vunpack.c.l.b16 %v60
  %v327 = vunpack.c.h.b16 %v60
  %v328 = vunpack.c.l.b16 %v61
  %v329 = vunpack.c.h.b16 %v61
  %v330 = vunpack.c.l.b16 %v62
  %v331 = vunpack.c.h.b16 %v62
  %v332 = vunpack.c.l.b16 %v63
  %v333 = vunpack.c.h.b16 %v63
  %v334 = vunpack.c.l.b16 %v64
  %v335 = vunpack.c.h.b16 %v64
  %v336 = vunpack.c.l.b16 %v65
  %v337 = vunpack.c.h.b16 %v65
  %v338 = vunpack.c.l.b16 %v66
  %v339 = vunpack.c.h.b16 %v66
  %v340 = vunpack.c.l.b16 %v67
  %v341 = vunpack.c.h.b16 %v67
  %v342 = vunpack.c.l.b16 %v68
  %v343 = vunpack.c.h.b16 %v68
  %v344 = vunpack.c.l.b16 %v69
  %v345 = vunpack.c.h.b16 %v69
  %v346 = vunpack.c.l.b16 %v70
  %v347 = vunpack.c.h.b16 %v70
  %v348 = vunpack.c.l.b16 %v71
  %v349 = vunpack.c.h.b16 %v71
  %v350 = vunpack.c.l.b16 %v72
  %v351 = vunpack.c.h.b16 %v72
  %v352 = vunpack.c.l.b16 %v73
  %v353 = vunpack.c.h.b16 %v73
  %v354 = vunpack.c.l.b16 %v74
  %v355 = vunpack.c.h.b16 %v74
  %v356 = vunpack.c.l.b16 %v75
  %v357 = vunpack.c.h.b16 %v75
  %v358 = vunpack.c.l.b16 %v76
  %v359 = vunpack.c.h.b16 %v76
  %v360 = vunpack.c.l.b16 %v77
  %v361 = vunpack.c.h.b16 %v77
  %v362 = vunpack.c.l.b16 %v78
  %v363 = vunpack.c.h.b16 %v78
  %v364 = vunpack.c.l.b16 %v79
  %v365 = vunpack.c.h.b16 %v79
  %v366 = vunpack.c.l.b16 %v80
  %v367 = vunpack.c.h.b16 %v80
  %v368 = vunpack.c.l.b16 %v81
  %v369 = vunpack.c.h.b16 %v81
  %v370 = vunpack.c.l.b16 %v82
  %v371 = vunpack.c.h.b16 %v82
  %v372 = vunpack.c.l.b16 %v83
  %v373 = vunpack.c.h.b16 %v83
  %v374 = vunpack.c.l.b16 %v84
  %v375 = vunpack.c.h.b16 %v84
  %v376 = vunpack.c.l.b16 %v85
  %v377 = vunpack.c.h.b16 %v85
  %v378 = vunpack.c.l.b16 %v86
  %v379 = vunpack.c.h.b16 %v86
  %v380 = vunpack.c.l.b16 %v87
  %v381 = vunpack.c.h.b16 %v87
  %v382 = vunpack.c.l.b16 %v88
  %v383 = vunpack.c.h.b16 %v88
  %v384 = vunpack.c.l.b16 %v89
  %v385 = vunpack.c.h.b16 %v89
  %v386 = vunpack.c.l.b16 %v90
  %v387 = vunpack.c.h.b16 %v90
  %v388 = vunpack.c.l.b16 %v91
  %v389 = vunpack.c.h.b16 %v91
  %v390 = vunpack.c.l.b16 %v92
  %v391 = vunpack.c.h.b16 %v92
  %v392 = vunpack.c.l.b16 %v93
  %v393 = vunpack.c.h.b16 %v93
  %v394 = vunpack.c.l.b16 %v94
  %v395 = vunpack.c.h.b16 %v94
  %v396 = vunpack.c.l.b16 %v95
  %v397 = vunpack.c.h.b16 %v95
  %v398 = vunpack.c.l.b16 %v96
  %v399 = vunpack.c.h.b16 %v96
  %v400 = vunpack.c.l.b16 %v97
  %v401 = vunpack.c.h.b16 %v97
  %v402 = vunpack.c.l.b16 %v98
  %v403 = vunpack.c.h.b16 %v98
  %v404 = vunpack.c.l.b16 %v99
  %v405 = vunpack.c.h.b16 %v99
  %v406 = vunpack.c.l.b16 %v100
  %v407 = vunpack.c.h.b16 %v100
  %v408 = vunpack.c.l.b16 %v101
  %v409 = vunpack.c.h.b16 %v101
  %v410 = vunpack.c.l.b16 %v102
  %v411 = vunpack.c.h.b16 %v102
  %v412 = vunpack.c.l.b16 %v103
  %v413 = vunpack.c.h.b16 %v103
  %v414 = vunpack.c.l.b16 %v104
  %v415 = vunpack.c.h.b16 %v104
  %v416 = vunpack.c.l.b16 %v105
  %v417 = vunpack.c.h.b16 %v105
  %v418 = vunpack.c.l.b16 %v106
  %v419 = vunpack.c.h.b16 %v106
  %v420 = vunpack.c.l.b16 %v107
  %v421 = vunpack.c.h.b16 %v107
  %v422 = vunpack.c.l.b16 %v108
  %v423 = vunpack.c.h.b16 %v108
  %v424 = vunpack.c.l.b16 %v109
  %v425 = vunpack.c.h.b16 %v109
  %v426 = vunpack.c.l.b16 %v110
  %v427 = vunpack.c.h.b16 %v110
  %v428 = vunpack.c.l.b16 %v111
  %v429 = vunpack.c.h.b16 %v111
  %v430 = vunpack.c.l.b16 %v112
  %v431 = vunpack.c.h.b16 %v112
  %v432 = vunpack.c.l.b16 %v113
  %v433 = vunpack.c.h.b16 %v113
  %v434 = vunpack.c.l.b16 %v114
  %v435 = vunpack.c.h.b16 %v114
  %v436 = vunpack.c.l.b16 %v115
  %v437 = vunpack.c.h.b16 %v115
  %v438 = vunpack.c.l.b16 %v116
  %v439 = vunpack.c.h.b16 %v116
  %v440 = vunpack.c.l.b16 %v117
  %v441 = vunpack.c.h.b16 %v117
  %v442 = vunpack.c.l.b16 %v118
  %v443 = vunpack.c.h.b16 %v118
  %v444 = vunpack.c.l.b16 %v119
  %v445 = vunpack.c.h.b16 %v119
  %v446 = vunpack.c.l.b16 %v120
  %v447 = vunpack.c.h.b16 %v120
  %v448 = vunpack.c.l.b16 %v121
  %v449 = vunpack.c.h.b16 %v121
  %v450 = vunpack.c.l.b16 %v122
  %v451 = vunpack.c.h.b16 %v122
  %v452 = vunpack.c.l.b16 %v123
  %v453 = vunpack.c.h.b16 %v123
  %v454 = vunpack.c.l.b16 %v124
  %v455 = vunpack.c.h.b16 %v124
  %v456 = vunpack.c.l.b16 %v125
  %v457 = vunpack.c.h.b16 %v125
  %v458 = vunpack.c.l.b16 %v126
  %v459 = vunpack.c.h.b16 %v126
  %v460 = vunpack.c.l.b16 %v127
  %v461 = vunpack.c.h.b16 %v127
  %v462 = vunpack.c.l.b16 %v128
  %v463 = vunpack.c.h.b16 %v128
  %v464 = vunpack.c.l.b16 %v129
  %v465 = vunpack.c.h.b16 %v129
  %v466 = vunpack.c.l.b16 %v130
  %v467 = vunpack.c.h.b16 %v130
  %v468 = vunpack.c.l.b16 %v131
  %v469 = vunpack.c.h.b16 %v131
  %v470 = vunpack.c.l.b16 %v132
  %v471 = vunpack.c.h.b16 %v132
  %v472 = vunpack.c.l.b16 %v133
  %v473 = vunpack.c.h.b16 %v133
  %v474 = vunpack.c.l.b16 %v134
  %v475 = vunpack.c.h.b16 %v134
  %v476 = vunpack.c.l.b16 %v135
  %v477 = vunpack.c.h.b16 %v135
  %v478 = vunpack.c.l.b16 %v136
  %v479 = vunpack.c.h.b16 %v136
  %v480 = vunpack.c.l.b16 %v137
  %v481 = vunpack.c.h.b16 %v137
  %v482 = vunpack.c.l.b16 %v138
  %v483 = vunpack.c.h.b16 %v138
  %v484 = vunpack.c.l.b16 %v139
  %v485 = vunpack.c.h.b16 %v139
  %v486 = vunpack.c.l.b16 %v140
  %v487 = vunpack.c.h.b16 %v140
  %v488 = vunpack.c.l.b16 %v141
  %v489 = vunpack.c.h.b16 %v141
  %v490 = vpack.c.b16 %v300, %v298
  %v491 = vpack.c.b16 %v301, %v299
  %v492 = vpack.c.b16 %v304, %v302
  %v493 = vpack.c.b16 %v305, %v303
  %v494 = vpack.c.b16 %v308, %v306
  %v495 = vpack.c.b16 %v309, %v307
  %v496 = vpack.c.b16 %v312, %v310
  %v497 = vpack.c.b16 %v313, %v311
  %v498 = vpack.c.b16 %v316, %v314
  %v499 = vpack.c.b16 %v317, %v315
  %v500 = vpack.c.b16 %v320, %v318
  %v501 = vpack.c.b16 %v321, %v319
  %v502 = vpack.c.b16 %v324, %v322
  %v503 = vpack.c.b16 %v325, %v323
  %v504 = vpack.c.b16 %v328, %v326
  %v505 = vpack.c.b16 %v329, %v327
  %v506 = vpack.c.b16 %v332, %v330
  %v507 = vpack.c.b16 %v333, %v331
  %v508 = vpack.c.b16 %v336, %v334
  %v509 = vpack.c.b16 %v337, %v335
  %v510 = vpack.c.b16 %v340, %v338
  %v511 = vpack.c.b16 %v341, %v339
  %v512 = vpack.c.b16 %v344, %v342
  %v513 = vpack.c.b16 %v345, %v343
  %v514 = vpack.c.b16 %v348, %v346
  %v515 = vpack.c.b16 %v349, %v347
  %v516 = vpack.c.b16 %v352, %v350
  %v517 = vpack.c.b16 %v353, %v351
  %v518 = vpack.c.b16 %v356, %v354
  %v519 = vpack.c.b16 %v357, %v355
  %v520 = vpack.c.b16 %v360, %v358
  %v521 = vpack.c.b16 %v361, %v359
  %v522 = vpack.c.b16 %v364, %v362
  %v523 = vpack.c.b16 %v365, %v363
  %v524 = vpack.c.b16 %v368, %v366
  %v525 = vpack.c.b16 %v369, %v367
  %v526 = vpack.c.b16 %v372, %v370
  %v527 = vpack.c.b16 %v373, %v371
  %v528 = vpack.c.b16 %v376, %v374
  %v529 = vpack.c.b16 %v377, %v375
  %v530 = vpack.c.b16 %v380, %v378
  %v531 = vpack.c.b16 %v381, %v379
  %v532 = vpack.c.b16 %v384, %v382
  %v533 = vpack.c.b16 %v385, %v383
  %v534 = vpack.c.b16 %v388, %v386
  %v535 = vpack.c.b16 %v389, %v387
  %v536 = vpack.c.b16 %v392, %v390
  %v537 = vpack.c.b16 %v393, %v391
  %v538 = vpack.c.b16 %v396, %v394
  %v539 = vpack.c.b16 %v397, %v395
  %v540 = vpack.c.b16 %v400, %v398
  %v541 = vpack.c.b16 %v401, %v399
  %v542 = vpack.c.b16 %v404, %v402
  %v543 = vpack.c.b16 %v405, %v403
  %v544 = vpack.c.b16 %v408, %v406
  %v545 = vpack.c.b16 %v409, %v407
  %v546 = vpack.c.b16 %v412, %v410
  %v547 = vpack.c.b16 %v413, %v411
  %v548 = vpack.c.b16 %v416, %v414
  %v549 = vpack.c.b16 %v417, %v415
  %v550 = vpack.c.b16 %v420, %v418
  %v551 = vpack.c.b16 %v421, %v419
  %v552 = vpack.c.b16 %v424, %v422
  %v553 = vpack.c.b16 %v425, %v423
  %v554 = vpack.c.b16 %v428, %v426
  %v555 = vpack.c.b16 %v429, %v427
  %v556 = vpack.c.b16 %v432, %v430
  %v557 = vpack.c.b16 %v433, %v431
  %v558 = vpack.c.b16 %v436, %v434
  %v559 = vpack.c.b16 %v437, %v435
  %v560 = vpack.c.b16 %v440, %v438
  %v561 = vpack.c.b16 %v441, %v439
  %v562 = vpack.c.b16 %v444, %v442
  %v563 = vpack.c.b16 %v445, %v443
  %v564 = vpack.c.b16 %v448, %v446
  %v565 = vpack.c.b16 %v449, %v447
  %v566 = vpack.c.b16 %v452, %v450
  %v567 = vpack.c.b16 %v453, %v451
  %v568 = vpack.c.b16 %v456, %v454
  %v569 = vpack.c.b16 %v457, %v455
  %v570 = vpack.c.b16 %v460, %v458
  %v571 = vpack.c.b16 %v461, %v459
  %v572 = vpack.c.b16 %v464, %v462
  %v573 = vpack.c.b16 %v465, %v463
  %v574 = vpack.c.b16 %v468, %v466
  %v575 = vpack.c.b16 %v469, %v467
  %v576 = vpack.c.b16 %v472, %v470
  %v577 = vpack.c.b16 %v473, %v471
  %v578 = vpack.c.b16 %v476, %v474
  %v579 = vpack.c.b16 %v477, %v475
  %v580 = vpack.c.b16 %v480, %v478
  %v581 = vpack.c.b16 %v481, %v479
  %v582 = vpack.c.b16 %v484, %v482
  %v583 = vpack.c.b16 %v485, %v483
  %v584 = vpack.c.b16 %v488, %v486
  %v585 = vpack.c.b16 %v489, %v487
  %682 = vmatprep.subr.bf16.mxu0 %v491
  %683 = vmatpush1.bf16.msra.mxu0 %v490
  %684 = vmatprep.subr.bf16.mxu0 %v493
  %685 = vmatpush1.bf16.msra.mxu0 %v492
  %686 = vmatprep.subr.bf16.mxu0 %v495
  %687 = vmatpush1.bf16.msra.mxu0 %v494
  %688 = vmatprep.subr.bf16.mxu0 %v497
  %689 = vmatpush1.bf16.msra.mxu0 %v496
  %690 = vmatprep.subr.bf16.mxu0 %v499
  %691 = vmatpush1.bf16.msra.mxu0 %v498
  %692 = vmatprep.subr.bf16.mxu0 %v501
  %693 = vmatpush1.bf16.msra.mxu0 %v500
  %694 = vmatprep.subr.bf16.mxu0 %v503
  %695 = vmatpush1.bf16.msra.mxu0 %v502
  %696 = vmatprep.subr.bf16.mxu0 %v505
  %697 = vmatpush1.bf16.msra.mxu0 %v504
  %698 = vmatprep.subr.bf16.mxu0 %v507
  %699 = vmatpush1.bf16.msra.mxu0 %v506
  %700 = vmatprep.subr.bf16.mxu0 %v509
  %701 = vmatpush1.bf16.msra.mxu0 %v508
  %702 = vmatprep.subr.bf16.mxu0 %v511
  %703 = vmatpush1.bf16.msra.mxu0 %v510
  %704 = vmatprep.subr.bf16.mxu0 %v513
  %705 = vmatpush1.bf16.msra.mxu0 %v512
  %706 = vmatprep.subr.bf16.mxu0 %v515
  %707 = vmatpush1.bf16.msra.mxu0 %v514
  %708 = vmatprep.subr.bf16.mxu0 %v517
  %709 = vmatpush1.bf16.msra.mxu0 %v516
  %710 = vmatprep.subr.bf16.mxu0 %v519
  %711 = vmatpush1.bf16.msra.mxu0 %v518
  %712 = vmatprep.subr.bf16.mxu0 %v521
  %713 = vmatpush1.bf16.msra.mxu0 %v520
  %714 = vmatprep.mubr.bf16.mxu0 %v179
  %715 = vmatmul.mubr.bf16.gmra.mrb[0].mxu0 %v178
  %v716 = vpop.f32.mrb[0].mxu0
  %v717 = vadd.f32 0.0, %v716
  %v718 = vpop.f32.mrb[0].mxu0
  %v719 = vadd.f32 0.0, %v718
  %v720 = vpop.f32.mrb[0].mxu0
  %v721 = vadd.f32 0.0, %v720
  %v722 = vpop.f32.mrb[0].mxu0
  %v723 = vadd.f32 0.0, %v722
  %724 = vmatprep.mubr.bf16.mxu0 %v185
  %725 = vmatmul.mubr.bf16.gmra.mrb[0].mxu0 %v184
  %v726 = vpop.f32.mrb[0].mxu0
  %v727 = vadd.f32 0.0, %v726
  %v728 = vpop.f32.mrb[0].mxu0
  %v729 = vadd.f32 0.0, %v728
  %v730 = vpop.f32.mrb[0].mxu0
  %v731 = vadd.f32 0.0, %v730
  %v732 = vpop.f32.mrb[0].mxu0
  %v733 = vadd.f32 0.0, %v732
  %734 = vdwg.mxu0
  %735 = vmatprep.subr.bf16.mxu0 %v523
  %736 = vmatpush1.bf16.msra.mxu0 %v522
  %737 = vmatprep.subr.bf16.mxu0 %v525
  %738 = vmatpush1.bf16.msra.mxu0 %v524
  %739 = vmatprep.subr.bf16.mxu0 %v527
  %740 = vmatpush1.bf16.msra.mxu0 %v526
  %741 = vmatprep.subr.bf16.mxu0 %v529
  %742 = vmatpush1.bf16.msra.mxu0 %v528
  %743 = vmatprep.subr.bf16.mxu0 %v531
  %744 = vmatpush1.bf16.msra.mxu0 %v530
  %745 = vmatprep.subr.bf16.mxu0 %v533
  %746 = vmatpush1.bf16.msra.mxu0 %v532
  %747 = vmatprep.subr.bf16.mxu0 %v535
  %748 = vmatpush1.bf16.msra.mxu0 %v534
  %749 = vmatprep.subr.bf16.mxu0 %v537
  %750 = vmatpush1.bf16.msra.mxu0 %v536
  %751 = vmatprep.subr.bf16.mxu0 %v539
  %752 = vmatpush1.bf16.msra.mxu0 %v538
  %753 = vmatprep.subr.bf16.mxu0 %v541
  %754 = vmatpush1.bf16.msra.mxu0 %v540
  %755 = vmatprep.subr.bf16.mxu0 %v543
  %756 = vmatpush1.bf16.msra.mxu0 %v542
  %757 = vmatprep.subr.bf16.mxu0 %v545
  %758 = vmatpush1.bf16.msra.mxu0 %v544
  %759 = vmatprep.subr.bf16.mxu0 %v547
  %760 = vmatpush1.bf16.msra.mxu0 %v546
  %761 = vmatprep.subr.bf16.mxu0 %v549
  %762 = vmatpush1.bf16.msra.mxu0 %v548
  %763 = vmatprep.subr.bf16.mxu0 %v551
  %764 = vmatpush1.bf16.msra.mxu0 %v550
  %765 = vmatprep.subr.bf16.mxu0 %v553
  %766 = vmatpush1.bf16.msra.mxu0 %v552
  %767 = vmatprep.mubr.bf16.mxu0 %v181
  %768 = vmatmul.mubr.bf16.gmra.mrb[0].mxu0 %v180
  %v769 = vpop.f32.mrb[0].mxu0
  %v770 = vadd.f32 %v717, %v769
  %v771 = vpop.f32.mrb[0].mxu0
  %v772 = vadd.f32 %v719, %v771
  %v773 = vpop.f32.mrb[0].mxu0
  %v774 = vadd.f32 %v721, %v773
  %v775 = vpop.f32.mrb[0].mxu0
  %v776 = vadd.f32 %v723, %v775
  %777 = vmatprep.mubr.bf16.mxu0 %v187
  %778 = vmatmul.mubr.bf16.gmra.mrb[0].mxu0 %v186
  %v779 = vpop.f32.mrb[0].mxu0
  %v780 = vadd.f32 %v727, %v779
  %v781 = vpop.f32.mrb[0].mxu0
  %v782 = vadd.f32 %v729, %v781
  %v783 = vpop.f32.mrb[0].mxu0
  %v784 = vadd.f32 %v731, %v783
  %v785 = vpop.f32.mrb[0].mxu0
  %v786 = vadd.f32 %v733, %v785
  %787 = vdwg.mxu0
  %788 = vmatprep.subr.bf16.mxu0 %v555
  %789 = vmatpush1.bf16.msra.mxu0 %v554
  %790 = vmatprep.subr.bf16.mxu0 %v557
  %791 = vmatpush1.bf16.msra.mxu0 %v556
  %792 = vmatprep.subr.bf16.mxu0 %v559
  %793 = vmatpush1.bf16.msra.mxu0 %v558
  %794 = vmatprep.subr.bf16.mxu0 %v561
  %795 = vmatpush1.bf16.msra.mxu0 %v560
  %796 = vmatprep.subr.bf16.mxu0 %v563
  %797 = vmatpush1.bf16.msra.mxu0 %v562
  %798 = vmatprep.subr.bf16.mxu0 %v565
  %799 = vmatpush1.bf16.msra.mxu0 %v564
  %800 = vmatprep.subr.bf16.mxu0 %v567
  %801 = vmatpush1.bf16.msra.mxu0 %v566
  %802 = vmatprep.subr.bf16.mxu0 %v569
  %803 = vmatpush1.bf16.msra.mxu0 %v568
  %804 = vmatprep.subr.bf16.mxu0 %v571
  %805 = vmatpush1.bf16.msra.mxu0 %v570
  %806 = vmatprep.subr.bf16.mxu0 %v573
  %807 = vmatpush1.bf16.msra.mxu0 %v572
  %808 = vmatprep.subr.bf16.mxu0 %v575
  %809 = vmatpush1.bf16.msra.mxu0 %v574
  %810 = vmatprep.subr.bf16.mxu0 %v577
  %811 = vmatpush1.bf16.msra.mxu0 %v576
  %812 = vmatprep.subr.bf16.mxu0 %v579
  %813 = vmatpush1.bf16.msra.mxu0 %v578
  %814 = vmatprep.subr.bf16.mxu0 %v581
  %815 = vmatpush1.bf16.msra.mxu0 %v580
  %816 = vmatprep.subr.bf16.mxu0 %v583
  %817 = vmatpush1.bf16.msra.mxu0 %v582
  %818 = vmatprep.subr.bf16.mxu0 %v585
  %819 = vmatpush1.bf16.msra.mxu0 %v584
  %820 = vmatprep.mubr.bf16.mxu0 %v183
  %821 = vmatmul.mubr.bf16.gmra.mrb[0].mxu0 %v182
  %v822 = vpop.f32.mrb[0].mxu0
  %v823 = vadd.f32 %v770, %v822
  %v824 = vpop.f32.mrb[0].mxu0
  %v825 = vadd.f32 %v772, %v824
  %v826 = vpop.f32.mrb[0].mxu0
  %v827 = vadd.f32 %v774, %v826
  %v828 = vpop.f32.mrb[0].mxu0
  %v829 = vadd.f32 %v776, %v828
  %830 = vmatprep.mubr.bf16.mxu0 %v189
  %831 = vmatmul.mubr.bf16.gmra.mrb[0].mxu0 %v188
  %v832 = vpop.f32.mrb[0].mxu0
  %v833 = vadd.f32 %v780, %v832
  %v834 = vpop.f32.mrb[0].mxu0
  %v835 = vadd.f32 %v782, %v834
  %v836 = vpop.f32.mrb[0].mxu0
  %v837 = vadd.f32 %v784, %v836
  %v838 = vpop.f32.mrb[0].mxu0
  %v839 = vadd.f32 %v786, %v838
  %840 = vdwg.mxu0
  %v841 = vadd.f32 %v26, %v823
  %v842 = vadd.f32 %v27, %v825
  %v843 = vadd.f32 %v28, %v827
  %v844 = vadd.f32 %v29, %v829
  %v845 = vadd.f32 %v30, %v833
  %v846 = vadd.f32 %v31, %v835
  %v847 = vadd.f32 %v32, %v837
  %v848 = vadd.f32 %v33, %v839
  %849 = vst [vmem:[#allocation2] sm:$0xff] %v841
  %850 = vst [vmem:[#allocation2 + $0x8] sm:$0xff] %v842
  %851 = vst [vmem:[#allocation2 + $0x10] sm:$0xff] %v843
  %852 = vst [vmem:[#allocation2 + $0x18] sm:$0xff] %v844
  %853 = vst [vmem:[#allocation2 + $0x20] sm:$0xff] %v845
  %854 = vst [vmem:[#allocation2 + $0x28] sm:$0xff] %v846
  %855 = vst [vmem:[#allocation2 + $0x30] sm:$0xff] %v847
  %856 = vst [vmem:[#allocation2 + $0x38] sm:$0xff] %v848
  // Predicated region
  $region18: #{entry_stem_fwd.43} parent=0 // pred_check
    %p857 = pneg %p14
  $region19: #{entry_stem_fwd.43} parent=0 // pred_check_branch
    %859 = sbr.rel (%p857) target = $region21
  $region20: #{entry_stem_fwd.43} parent=0 // pred_region
    %v860 = vld [vmem:[#allocation2] sm:$0xff]
    %v861 = vld [vmem:[#allocation2 + $0x8] sm:$0xff]
    %v862 = vld [vmem:[#allocation2 + $0x10] sm:$0xff]
    %v863 = vld [vmem:[#allocation2 + $0x18] sm:$0xff]
    %v864 = vld [vmem:[#allocation2 + $0x20] sm:$0xff]
    %v865 = vld [vmem:[#allocation2 + $0x28] sm:$0xff]
    %v866 = vld [vmem:[#allocation2 + $0x30] sm:$0xff]
    %v867 = vld [vmem:[#allocation2 + $0x38] sm:$0xff]
    %v868 = vld [vmem:[%s2] sm:$0x3]
    %v870 = vlaneseq
    %v871 = vshrl.u32 %v870, 7
    %v872 = vsub.s32 0, %v871
    %v873 = vrot.slane %v868, %v872
    %v874 = vlaneseq
    %v875 = vshrl.u32 %v874, 7
    %v876 = vsub.s32 1, %v875
    %v877 = vrot.slane %v868, %v876
    %v880 = vadd.f32 %v860, %v873
    %v881 = vadd.f32 %v861, %v877
    %v882 = vadd.f32 %v862, %v873
    %v883 = vadd.f32 %v863, %v877
    %v884 = vadd.f32 %v864, %v873
    %v885 = vadd.f32 %v865, %v877
    %v886 = vadd.f32 %v866, %v873
    %v887 = vadd.f32 %v867, %v877
    %888 = vst [vmem:[%s3] sm:$0xff] %v880
    %889 = vst [vmem:[%s3 + $0x8] sm:$0xff] %v881
    %890 = vst [vmem:[%s3 + $0x10] sm:$0xff] %v882
    %891 = vst [vmem:[%s3 + $0x18] sm:$0xff] %v883
    %892 = vst [vmem:[%s3 + $0x20] sm:$0xff] %v884
    %893 = vst [vmem:[%s3 + $0x28] sm:$0xff] %v885
    %894 = vst [vmem:[%s3 + $0x30] sm:$0xff] %v886
    %895 = vst [vmem:[%s3 + $0x38] sm:$0xff] %v887
  $region21: #{entry_stem_fwd.43} parent=0 // pred_fallthru
    _
  // Predicated region
  $region22: #{entry_stem_fwd.43} parent=0 // pred_check
    _
  $region23: #{entry_stem_fwd.43} parent=0 // pred_check_branch
    %897 = sbr.rel (0) target = $region25
  $region24: #{entry_stem_fwd.43} parent=0 // pred_region
    _
  $region25: #{entry_stem_fwd.43} parent=0 // pred_fallthru
    _
  // Predicated region
  $region26: #{entry_stem_fwd.43} parent=0 // pred_check
    _
  $region27: #{entry_stem_fwd.43} parent=0 // pred_check_branch
    %899 = sbr.rel (0) target = $region29
  $region28: #{entry_stem_fwd.43} parent=0 // pred_region
    _
  $region29: #{entry_stem_fwd.43} parent=0 // pred_fallthru
    _

// kernel: entry_stem_fwd.45
$region0: #{entry_stem_fwd.45}
  #allocation0 [shape = 'u32[]', space=smem, size = 0x4, offset = 0x4, fixed_abs, tag = 'smem constant byte address 0x4 - core index']
  #allocation1 [shape = 'u32[144,128]{1,0:T(1,128)}', space=vmem, size = 0x12000, scoped, tag = 'internal scratch']
  #allocation2 [shape = 'f32[32,256]{1,0:T(8,128)}', space=vmem, size = 0x8000, scoped, tag = 'scratch operand']
  %s0 = inlined_call_operand.vmem [shape: bf16[32,2304], index: 0, kind: input, shape index: {}]
  %s1 = inlined_call_operand.vmem [shape: bf16[2304,256], index: 1, kind: input, shape index: {}]
  %s2 = inlined_call_operand.vmem [shape: f32[1,256], index: 2, kind: input, shape index: {}]
  %s3 = inlined_call_operand.vmem [shape: f32[32,256], index: 3, kind: output, shape index: {}]
  %s4 = sld [smem:[#allocation0]]
  $region79: #{entry_stem_fwd.45} parent=0
    _
  %s6 = ssub.s32 1, %s4
  %s7 = scalar_select 0, %s6, %s4
  $region1: #{entry_stem_fwd.45} parent=0
    #allocation3 [shape = 'u8[49152]{0}', space=vmem, size = 0xc000, scoped, tag = 'input window, operand 0']
    loop: start=0, step=1, limit=8
    $region2: #{entry_stem_fwd.45} parent=1 // loop_pre_header
      _
    $region3: #{entry_stem_fwd.45} parent=1 // loop_header
      %s9 = sphi 0, %s13
      %p10 = scmp.ge.s32.totalorder %s9, 8
      %s16 = sphi 0, %s35
      %s17 = sphi 0, %s31
      %s18 = sphi 0, %s27
      %s19 = sphi 0, %s16
      %s20 = sphi 0, %s17
      %s21 = sphi 0, %s18
      %s22 = sphi 0, %s19
      %s23 = sphi 0, %s20
      %s24 = sphi 0, %s21
      %s40 = sphi 0, %s42
      %s43 = sphi 0, %s40
      %s44 = sphi 0, %s43
      %s60 = sphi 0, %s44
      %s68 = sphi 0, %s70
      %s71 = sphi 0, %s68
      %s72 = sphi 0, %s71
      %s88 = sphi 0, %s72
      %s94 = sphi 0, %s96
      %s97 = sphi 0, %s94
      %s98 = sphi 0, %s97
      %s114 = sphi 0, %s98
      %s122 = sphi 0, %s124
      %s125 = sphi 0, %s122
      %s126 = sphi 0, %s125
      %s142 = sphi 0, %s126
    $region4: #{entry_stem_fwd.45} parent=1 // loop_header_branch
      %12 = sbr.rel (%p10) target = $region8
    $region5: #{entry_stem_fwd.45} parent=1 // loop_body
      %s14 = ssub.s32 %s9, 1
      %s15 = ssub.s32 %s9, 2
      %s25 = sadd.s32 1, %s18
      %p26 = scmp.ge.s32.totalorder %s25, 6
      %s27 = scalar_select %p26, 0, %s25
      %s28 = sadd.s32 1, %s17
      %s29 = scalar_select %p26, %s28, %s17
      %p30 = scmp.ge.s32.totalorder %s29, 1
      %s31 = scalar_select %p30, 0, %s29
      %s32 = sadd.s32 1, %s16
      %s33 = scalar_select %p30, %s32, %s16
      %p34 = scmp.ge.s32.totalorder %s33, 1
      %s35 = scalar_select %p34, 0, %s33
      %s36 = ssub.s32 %s16, %s35
      %s37 = ssub.s32 %s18, %s27
      %s38 = sor.u32 %s36, %s37
      %p39 = scmp.eq.s32.totalorder %s38, 0
      %s41 = sadd.s32 %s40, 1
      %s42 = scalar_select %p39, %s40, %s41
      %p45 = pneg %p39
      %p46 = scmp.eq.s32.totalorder %s9, 5
      %p47 = por %p45, %p46
      %p48 = scmp.ne.s32.totalorder %s40, %s43
      %p49 = scmp.eq.s32.totalorder %s9, 0
      %p50 = por %p48, %p49
      %p51 = scmp.ne.s32.totalorder %s40, %s43
      %p52 = scmp.eq.s32.totalorder %s14, 5
      %p53 = por %p51, %p52
      %p54 = scmp.ne.s32.totalorder %s43, %s44
      %p55 = scmp.eq.s32.totalorder %s14, 0
      %p56 = por %p54, %p55
      %p57 = scmp.ne.s32.totalorder %s43, %s44
      %p58 = scmp.eq.s32.totalorder %s15, 5
      %p59 = por %p57, %p58
      %p61 = scmp.ne.s32.totalorder %s44, %s60
      %p62 = scmp.eq.s32.totalorder %s15, 0
      %p63 = por %p61, %p62
      %s64 = ssub.s32 %s18, %s27
      %s65 = ssub.s32 %s17, %s31
      %s66 = sor.u32 %s64, %s65
      %p67 = scmp.eq.s32.totalorder %s66, 0
      %s69 = sadd.s32 %s68, 1
      %s70 = scalar_select %p67, %s68, %s69
      %p73 = pneg %p67
      %p74 = scmp.eq.s32.totalorder %s9, 5
      %p75 = por %p73, %p74
      %p76 = scmp.ne.s32.totalorder %s68, %s71
      %p77 = scmp.eq.s32.totalorder %s9, 0
      %p78 = por %p76, %p77
      %p79 = scmp.ne.s32.totalorder %s68, %s71
      %p80 = scmp.eq.s32.totalorder %s14, 5
      %p81 = por %p79, %p80
      %p82 = scmp.ne.s32.totalorder %s71, %s72
      %p83 = scmp.eq.s32.totalorder %s14, 0
      %p84 = por %p82, %p83
      %p85 = scmp.ne.s32.totalorder %s71, %s72
      %p86 = scmp.eq.s32.totalorder %s15, 5
      %p87 = por %p85, %p86
      %p89 = scmp.ne.s32.totalorder %s72, %s88
      %p90 = scmp.eq.s32.totalorder %s15, 0
      %p91 = por %p89, %p90
      %s92 = ssub.s32 %s17, %s31
      %p93 = scmp.eq.s32.totalorder %s92, 0
      %s95 = sadd.s32 %s94, 1
      %s96 = scalar_select %p93, %s94, %s95
      %p99 = pneg %p93
      %p100 = scmp.eq.s32.totalorder %s9, 5
      %p101 = por %p99, %p100
      %p102 = scmp.ne.s32.totalorder %s94, %s97
      %p103 = scmp.eq.s32.totalorder %s9, 0
      %p104 = por %p102, %p103
      %p105 = scmp.ne.s32.totalorder %s94, %s97
      %p106 = scmp.eq.s32.totalorder %s14, 5
      %p107 = por %p105, %p106
      %p108 = scmp.ne.s32.totalorder %s97, %s98
      %p109 = scmp.eq.s32.totalorder %s14, 0
      %p110 = por %p108, %p109
      %p111 = scmp.ne.s32.totalorder %s97, %s98
      %p112 = scmp.eq.s32.totalorder %s15, 5
      %p113 = por %p111, %p112
      %p115 = scmp.ne.s32.totalorder %s98, %s114
      %p116 = scmp.eq.s32.totalorder %s15, 0
      %p117 = por %p115, %p116
      %s118 = ssub.s32 %s16, %s35
      %s119 = ssub.s32 %s17, %s31
      %s120 = sor.u32 %s118, %s119
      %p121 = scmp.eq.s32.totalorder %s120, 0
      %s123 = sadd.s32 %s122, 1
      %s124 = scalar_select %p121, %s122, %s123
      %p127 = pneg %p121
      %p128 = scmp.eq.s32.totalorder %s9, 5
      %p129 = por %p127, %p128
      %p130 = scmp.ne.s32.totalorder %s122, %s125
      %p131 = scmp.eq.s32.totalorder %s9, 0
      %p132 = por %p130, %p131
      %p133 = scmp.ne.s32.totalorder %s122, %s125
      %p134 = scmp.eq.s32.totalorder %s14, 5
      %p135 = por %p133, %p134
      %p136 = scmp.ne.s32.totalorder %s125, %s126
      %p137 = scmp.eq.s32.totalorder %s14, 0
      %p138 = por %p136, %p137
      %p139 = scmp.ne.s32.totalorder %s125, %s126
      %p140 = scmp.eq.s32.totalorder %s15, 5
      %p141 = por %p139, %p140
      %p143 = scmp.ne.s32.totalorder %s126, %s142
      %p144 = scmp.eq.s32.totalorder %s15, 0
      %p145 = por %p143, %p144
      %p146 = scmp.le.s32.totalorder 1, %s9
      %p147 = scmp.lt.s32.totalorder %s9, 7
      %p148 = pnand %p146, %p147
      %p149 = pneg %p148
      // Predicated region
      $region9: #{entry_stem_fwd.45} parent=5 // pred_check
        _
      $region10: #{entry_stem_fwd.45} parent=5 // pred_check_branch
        %151 = sbr.rel (%p148) target = $region12
      $region11: #{entry_stem_fwd.45} parent=5 // pred_region
        %s152 = ssub.s32 %s9, 1
        // Predicated region
        $region13: #{entry_stem_fwd.45} parent=11 // pred_check
          %p153 = pneg %p110
        $region14: #{entry_stem_fwd.45} parent=11 // pred_check_branch
          %155 = sbr.rel (%p153) target = $region16
        $region15: #{entry_stem_fwd.45} parent=11 // pred_region
          %s156 = smul.u32 2, %s20
          %p157 = scmp.lt.s32.totalorder %s156, 1
          %s158 = scalar_select %p157, %s156, 1
          %s159 = scalar_lea.vmem %s2, %s158
          %s160 = smul.u32 2, %s20
        $region16: #{entry_stem_fwd.45} parent=11 // pred_fallthru
          _
      $region12: #{entry_stem_fwd.45} parent=5 // pred_fallthru
        _
      %p161 = scmp.lt.s32.totalorder %s9, 6
      // Predicated region
      $region17: #{entry_stem_fwd.45} parent=5 // pred_check
        %p162 = pneg %p161
      $region18: #{entry_stem_fwd.45} parent=5 // pred_check_branch
        %164 = sbr.rel (%p162) target = $region20
      $region19: #{entry_stem_fwd.45} parent=5 // pred_region
        // Predicated region
        $region21: #{entry_stem_fwd.45} parent=19 // pred_check
          %p165 = pneg %p50
        $region22: #{entry_stem_fwd.45} parent=19 // pred_check_branch
          %167 = sbr.rel (%p165) target = $region24
        $region23: #{entry_stem_fwd.45} parent=19 // pred_region
          %s168 = sand.u32 %s40, 1
          %s169 = sand.u32 %s40, 1
          %s170 = smul.addr %s169, 48
          %s171 = scalar_lea.vmem [#allocation3], %s170
          %s172 = smul.u32 4, %s16
          %s173 = smul.u32 3, %s18
          %s174 = smul.addr %s172, 18
          %s175 = sadd.s32 %s173, %s174
          %s176 = smul.addr %s175, 4
          %s177 = scalar_lea.vmem %s0, %s176
          // Predicated region
          $region25: #{entry_stem_fwd.45} parent=23 // pred_check
            _
          $region26: #{entry_stem_fwd.45} parent=23 // pred_check_branch
            %179 = sbr.rel (0) target = $region28
          $region27: #{entry_stem_fwd.45} parent=23 // pred_region
            // Predicated region
            $region29: #{entry_stem_fwd.45} parent=27 // pred_check
              _
            $region30: #{entry_stem_fwd.45} parent=27 // pred_check_branch
              %181 = sbr.rel (0) target = $region32
            $region31: #{entry_stem_fwd.45} parent=27 // pred_region
              %s182 = scalar_lea.vmem %s177, 8
              %s183 = scalar_lea.vmem %s171, 8 [#allocation3]
              loop: start=0, step=1, limit=1
              $region33: #{entry_stem_fwd.45} parent=31 // loop_pre_header
                _
              $region34: #{entry_stem_fwd.45} parent=31 // loop_header
                %s185 = sphi 0, %s189
                %p186 = scmp.ge.s32.totalorder %s185, 1
                %s190 = sphi %s177, %s177
                %s191 = sphi %s171, %s171
              $region35: #{entry_stem_fwd.45} parent=31 // loop_header_branch
                %188 = sbr.rel (%p186) target = $region39
              $region36: #{entry_stem_fwd.45} parent=31 // loop_body
                %v192 = vld [vmem:[%s190] sm:$0xff]
                %193 = vst [vmem:[%s191] sm:$0xff] %v192
                %v194 = vld [vmem:[%s190 + $0x48] sm:$0xff]
                %195 = vst [vmem:[%s191 + $0xc] sm:$0xff] %v194
                %v196 = vld [vmem:[%s190 + $0x90] sm:$0xff]
                %197 = vst [vmem:[%s191 + $0x18] sm:$0xff] %v196
                %v198 = vld [vmem:[%s190 + $0xd8] sm:$0xff]
                %199 = vst [vmem:[%s191 + $0x24] sm:$0xff] %v198
              $region37: #{entry_stem_fwd.45} parent=31 // loop_footer
                %s189 = sadd.s32 1, %s185
              $region38: #{entry_stem_fwd.45} parent=31 // loop_footer_branch
                %184 = sbr.rel target = $region34
              $region39: #{entry_stem_fwd.45} parent=31 // loop_exit
                _
              loop: start=0, step=1, limit=1
              $region40: #{entry_stem_fwd.45} parent=31 // loop_pre_header
                _
              $region41: #{entry_stem_fwd.45} parent=31 // loop_header
                %s202 = sphi 0, %s206
                %p203 = scmp.ge.s32.totalorder %s202, 1
                %s207 = sphi %s182, %s182
                %s208 = sphi %s183, %s183
              $region42: #{entry_stem_fwd.45} parent=31 // loop_header_branch
                %205 = sbr.rel (%p203) target = $region46
              $region43: #{entry_stem_fwd.45} parent=31 // loop_body
                %v209 = vld [vmem:[%s207] sm:$0xf]
                %210 = vst [vmem:[%s208] sm:$0xf] %v209
                %v211 = vld [vmem:[%s207 + $0x48] sm:$0xf]
                %212 = vst [vmem:[%s208 + $0xc] sm:$0xf] %v211
                %v213 = vld [vmem:[%s207 + $0x90] sm:$0xf]
                %214 = vst [vmem:[%s208 + $0x18] sm:$0xf] %v213
                %v215 = vld [vmem:[%s207 + $0xd8] sm:$0xf]
                %216 = vst [vmem:[%s208 + $0x24] sm:$0xf] %v215
              $region44: #{entry_stem_fwd.45} parent=31 // loop_footer
                %s206 = sadd.s32 1, %s202
              $region45: #{entry_stem_fwd.45} parent=31 // loop_footer_branch
                %201 = sbr.rel target = $region41
              $region46: #{entry_stem_fwd.45} parent=31 // loop_exit
                _
            $region32: #{entry_stem_fwd.45} parent=27 // pred_fallthru
              _
          $region28: #{entry_stem_fwd.45} parent=23 // pred_fallthru
            _
          %217 = vnop
        $region24: #{entry_stem_fwd.45} parent=19 // pred_fallthru
          _
        // Predicated region
        $region47: #{entry_stem_fwd.45} parent=19 // pred_check
          %p218 = pneg %p78
        $region48: #{entry_stem_fwd.45} parent=19 // pred_check_branch
          %220 = sbr.rel (%p218) target = $region50
        $region49: #{entry_stem_fwd.45} parent=19 // pred_region
          %s221 = smul.u32 48, %s18
          %s222 = smul.u32 2, %s17
          %p223 = scmp.lt.s32.totalorder %s221, 287
          %s224 = scalar_select %p223, %s221, 287
          %p225 = scmp.lt.s32.totalorder %s222, 1
          %s226 = scalar_select %p225, %s222, 1
          %s227 = smul.addr %s224, 2
          %s228 = sadd.s32 %s226, %s227
          %s229 = smul.addr %s228, 4
          %s230 = scalar_lea.vmem %s1, %s229
          %s231 = smul.u32 48, %s18
          %s232 = smul.u32 2, %s17
        $region50: #{entry_stem_fwd.45} parent=19 // pred_fallthru
          _
      $region20: #{entry_stem_fwd.45} parent=5 // pred_fallthru
        _
      %p233 = scmp.le.s32.totalorder 1, %s9
      %p234 = scmp.lt.s32.totalorder %s9, 7
      %p235 = pnand %p233, %p234
      %p236 = pneg %p235
      // Predicated region
      $region51: #{entry_stem_fwd.45} parent=5 // pred_check
        _
      $region52: #{entry_stem_fwd.45} parent=5 // pred_check_branch
        %238 = sbr.rel (%p235) target = $region54
      $region53: #{entry_stem_fwd.45} parent=5 // pred_region
        %s239 = ssub.s32 %s9, 1
        %s240 = sand.u32 %s43, 1
        %s241 = sand.u32 %s43, 1
        %s242 = smul.addr %s241, 48
        %s243 = scalar_lea.vmem [#allocation3], %s242
        // Predicated region
        $region55: #{entry_stem_fwd.45} parent=53 // pred_check
          %p244 = pneg %p56
        $region56: #{entry_stem_fwd.45} parent=53 // pred_check_branch
          %246 = sbr.rel (%p244) target = $region58
        $region57: #{entry_stem_fwd.45} parent=53 // pred_region
          _
        $region58: #{entry_stem_fwd.45} parent=53 // pred_fallthru
          _
        %s247 = sand.u32 %s43, 1
        %s248 = sand.u32 %s43, 1
        %s249 = smul.addr %s248, 48
        %s250 = scalar_lea.vmem [#allocation3], %s249
        %p251 = pneg %p56
        %p252 = pneg %p53
        %s253 = smul.u32 48, %s21
        %s254 = smul.u32 2, %s20
        %p255 = scmp.lt.s32.totalorder %s253, 287
        %s256 = scalar_select %p255, %s253, 287
        %p257 = scmp.lt.s32.totalorder %s254, 1
        %s258 = scalar_select %p257, %s254, 1
        %s259 = smul.addr %s256, 2
        %s260 = sadd.s32 %s258, %s259
        %s261 = smul.addr %s260, 4
        %s262 = scalar_lea.vmem %s1, %s261
        %p263 = pneg %p84
        %p264 = pneg %p81
        %s265 = smul.u32 2, %s20
        %p266 = scmp.lt.s32.totalorder %s265, 1
        %s267 = scalar_select %p266, %s265, 1
        %s268 = scalar_lea.vmem %s2, %s267
        %p269 = pneg %p110
        %p270 = pneg %p107
        %p271 = pneg %p138
        %p272 = pneg %p135
        %s273 = smul.u32 4, %s19
        %s274 = smul.u32 2, %s20
        %p275 = scmp.lt.s32.totalorder %s273, 3
        %s276 = scalar_select %p275, %s273, 3
        %p277 = scmp.lt.s32.totalorder %s274, 1
        %s278 = scalar_select %p277, %s274, 1
        %s279 = smul.addr %s276, 2
        %s280 = sadd.s32 %s278, %s279
        %s281 = smul.addr %s280, 8
        %s282 = scalar_lea.vmem %s3, %s281
        %s283 = smul.u32 4, %s19
        %s284 = smul.u32 3, %s21
        %s285 = smul.u32 48, %s21
        %s286 = smul.u32 2, %s20
        %p287 = scmp.lt.s32.totalorder %s285, 287
        %s288 = scalar_select %p287, %s285, 287
        %p289 = scmp.lt.s32.totalorder %s286, 1
        %s290 = scalar_select %p289, %s286, 1
        %s291 = smul.addr %s288, 2
        %s292 = sadd.s32 %s290, %s291
        %s293 = smul.addr %s292, 4
        %s294 = scalar_lea.vmem %s1, %s293
        %s295 = smul.u32 48, %s21
        %s296 = smul.u32 2, %s20
        %s297 = smul.u32 2, %s20
        %p298 = scmp.lt.s32.totalorder %s297, 1
        %s299 = scalar_select %p298, %s297, 1
        %s300 = scalar_lea.vmem %s2, %s299
        %s301 = smul.u32 2, %s20
        %s302 = smul.u32 4, %s19
        %s303 = smul.u32 2, %s20
        %p304 = scmp.lt.s32.totalorder %s302, 3
        %s305 = scalar_select %p304, %s302, 3
        %p306 = scmp.lt.s32.totalorder %s303, 1
        %s307 = scalar_select %p306, %s303, 1
        %s308 = smul.addr %s305, 2
        %s309 = sadd.s32 %s307, %s308
        %s310 = smul.addr %s309, 8
        %s311 = scalar_lea.vmem %s3, %s310
        %s312 = smul.u32 4, %s19
        %s313 = smul.u32 2, %s20
        %p315 = scmp.eq.s32.totalorder %s21, 0
        // Predicated region
        $region59: #{entry_stem_fwd.45} parent=53 // pred_check
          %p316 = pneg %p315
        $region60: #{entry_stem_fwd.45} parent=53 // pred_check_branch
          %318 = sbr.rel (%p316) target = $region62
        $region61: #{entry_stem_fwd.45} parent=53 // pred_region
          %319 = vst [vmem:[#allocation2] sm:$0xff] 0.0
          %320 = vst [vmem:[#allocation2 + $0x8] sm:$0xff] 0.0
          %321 = vst [vmem:[#allocation2 + $0x10] sm:$0xff] 0.0
          %322 = vst [vmem:[#allocation2 + $0x18] sm:$0xff] 0.0
          %323 = vst [vmem:[#allocation2 + $0x20] sm:$0xff] 0.0
          %324 = vst [vmem:[#allocation2 + $0x28] sm:$0xff] 0.0
          %325 = vst [vmem:[#allocation2 + $0x30] sm:$0xff] 0.0
          %326 = vst [vmem:[#allocation2 + $0x38] sm:$0xff] 0.0
        $region62: #{entry_stem_fwd.45} parent=53 // pred_fallthru
          _
        %v327 = vld [vmem:[#allocation2] sm:$0xff]
        %v328 = vld [vmem:[#allocation2 + $0x8] sm:$0xff]
        %v329 = vld [vmem:[#allocation2 + $0x10] sm:$0xff]
        %v330 = vld [vmem:[#allocation2 + $0x18] sm:$0xff]
        %v331 = vld [vmem:[#allocation2 + $0x20] sm:$0xff]
        %v332 = vld [vmem:[#allocation2 + $0x28] sm:$0xff]
        %v333 = vld [vmem:[#allocation2 + $0x30] sm:$0xff]
        %v334 = vld [vmem:[#allocation2 + $0x38] sm:$0xff]
        %v335 = vld [vmem:[%s243] sm:$0xff]
        %v336 = vld [vmem:[%s243 + $0x8] sm:$0xf]
        %v337 = vld [vmem:[%s243 + $0xc] sm:$0xff]
        %v338 = vld [vmem:[%s243 + $0x14] sm:$0xf]
        %v339 = vld [vmem:[%s243 + $0x18] sm:$0xff]
        %v340 = vld [vmem:[%s243 + $0x20] sm:$0xf]
        %v341 = vld [vmem:[%s243 + $0x24] sm:$0xff]
        %v342 = vld [vmem:[%s243 + $0x2c] sm:$0xf]
        %v343 = vld [vmem:[%s294] sm:$0xff]
        %v344 = vld [vmem:[%s294 + $0x8] sm:$0xff]
        %v345 = vld [vmem:[%s294 + $0x10] sm:$0xff]
        %v346 = vld [vmem:[%s294 + $0x18] sm:$0xff]
        %v347 = vld [vmem:[%s294 + $0x20] sm:$0xff]
        %v348 = vld [vmem:[%s294 + $0x28] sm:$0xff]
        %v349 = vld [vmem:[%s294 + $0x30] sm:$0xff]
        %v350 = vld [vmem:[%s294 + $0x38] sm:$0xff]
        %v351 = vld [vmem:[%s294 + $0x40] sm:$0xff]
        %v352 = vld [vmem:[%s294 + $0x48] sm:$0xff]
        %v353 = vld [vmem:[%s294 + $0x50] sm:$0xff]
        %v354 = vld [vmem:[%s294 + $0x58] sm:$0xff]
        %v355 = vld [vmem:[%s294 + $0x60] sm:$0xff]
        %v356 = vld [vmem:[%s294 + $0x68] sm:$0xff]
        %v357 = vld [vmem:[%s294 + $0x70] sm:$0xff]
        %v358 = vld [vmem:[%s294 + $0x78] sm:$0xff]
        %v359 = vld [vmem:[%s294 + $0x80] sm:$0xff]
        %v360 = vld [vmem:[%s294 + $0x88] sm:$0xff]
        %v361 = vld [vmem:[%s294 + $0x90] sm:$0xff]
        %v362 = vld [vmem:[%s294 + $0x98] sm:$0xff]
        %v363 = vld [vmem:[%s294 + $0xa0] sm:$0xff]
        %v364 = vld [vmem:[%s294 + $0xa8] sm:$0xff]
        %v365 = vld [vmem:[%s294 + $0xb0] sm:$0xff]
        %v366 = vld [vmem:[%s294 + $0xb8] sm:$0xff]
        %v367 = vld [vmem:[%s294 + $0xc0] sm:$0xff]
        %v368 = vld [vmem:[%s294 + $0xc8] sm:$0xff]
        %v369 = vld [vmem:[%s294 + $0xd0] sm:$0xff]
        %v370 = vld [vmem:[%s294 + $0xd8] sm:$0xff]
        %v371 = vld [vmem:[%s294 + $0xe0] sm:$0xff]
        %v372 = vld [vmem:[%s294 + $0xe8] sm:$0xff]
        %v373 = vld [vmem:[%s294 + $0xf0] sm:$0xff]
        %v374 = vld [vmem:[%s294 + $0xf8] sm:$0xff]
        %v375 = vld [vmem:[%s294 + $0x100] sm:$0xff]
        %v376 = vld [vmem:[%s294 + $0x108] sm:$0xff]
        %v377 = vld [vmem:[%s294 + $0x110] sm:$0xff]
        %v378 = vld [vmem:[%s294 + $0x118] sm:$0xff]
        %v379 = vld [vmem:[%s294 + $0x120] sm:$0xff]
        %v380 = vld [vmem:[%s294 + $0x128] sm:$0xff]
        %v381 = vld [vmem:[%s294 + $0x130] sm:$0xff]
        %v382 = vld [vmem:[%s294 + $0x138] sm:$0xff]
        %v383 = vld [vmem:[%s294 + $0x140] sm:$0xff]
        %v384 = vld [vmem:[%s294 + $0x148] sm:$0xff]
        %v385 = vld [vmem:[%s294 + $0x150] sm:$0xff]
        %v386 = vld [vmem:[%s294 + $0x158] sm:$0xff]
        %v387 = vld [vmem:[%s294 + $0x160] sm:$0xff]
        %v388 = vld [vmem:[%s294 + $0x168] sm:$0xff]
        %v389 = vld [vmem:[%s294 + $0x170] sm:$0xff]
        %v390 = vld [vmem:[%s294 + $0x178] sm:$0xff]
        %v399 = vunpack.c.l.b16 %v335
        %v400 = vunpack.c.h.b16 %v335
        %v401 = vunpack.c.l.b16 %v336
        %v402 = vunpack.c.l.b16 %v337
        %v403 = vunpack.c.h.b16 %v337
        %v404 = vunpack.c.l.b16 %v338
        %v405 = vunpack.c.l.b16 %v339
        %v406 = vunpack.c.h.b16 %v339
        %v407 = vunpack.c.l.b16 %v340
        %v408 = vunpack.c.l.b16 %v341
        %v409 = vunpack.c.h.b16 %v341
        %v410 = vunpack.c.l.b16 %v342
        %v411 = vpack.c.b16 %v402, %v399
        %v412 = vpack.c.b16 %v403, %v400
        %v413 = vpack.c.b16 %v404, %v401
        %v414 = vpack.c.b16 %v408, %v405
        %v415 = vpack.c.b16 %v409, %v406
        %v416 = vpack.c.b16 %v410, %v407
        %v471 = vunpack.c.l.b16 %v343
        %v472 = vunpack.c.h.b16 %v343
        %v473 = vunpack.c.l.b16 %v344
        %v474 = vunpack.c.h.b16 %v344
        %v475 = vunpack.c.l.b16 %v345
        %v476 = vunpack.c.h.b16 %v345
        %v477 = vunpack.c.l.b16 %v346
        %v478 = vunpack.c.h.b16 %v346
        %v479 = vunpack.c.l.b16 %v347
        %v480 = vunpack.c.h.b16 %v347
        %v481 = vunpack.c.l.b16 %v348
        %v482 = vunpack.c.h.b16 %v348
        %v483 = vunpack.c.l.b16 %v349
        %v484 = vunpack.c.h.b16 %v349
        %v485 = vunpack.c.l.b16 %v350
        %v486 = vunpack.c.h.b16 %v350
        %v487 = vunpack.c.l.b16 %v351
        %v488 = vunpack.c.h.b16 %v351
        %v489 = vunpack.c.l.b16 %v352
        %v490 = vunpack.c.h.b16 %v352
        %v491 = vunpack.c.l.b16 %v353
        %v492 = vunpack.c.h.b16 %v353
        %v493 = vunpack.c.l.b16 %v354
        %v494 = vunpack.c.h.b16 %v354
        %v495 = vunpack.c.l.b16 %v355
        %v496 = vunpack.c.h.b16 %v355
        %v497 = vunpack.c.l.b16 %v356
        %v498 = vunpack.c.h.b16 %v356
        %v499 = vunpack.c.l.b16 %v357
        %v500 = vunpack.c.h.b16 %v357
        %v501 = vunpack.c.l.b16 %v358
        %v502 = vunpack.c.h.b16 %v358
        %v503 = vunpack.c.l.b16 %v359
        %v504 = vunpack.c.h.b16 %v359
        %v505 = vunpack.c.l.b16 %v360
        %v506 = vunpack.c.h.b16 %v360
        %v507 = vunpack.c.l.b16 %v361
        %v508 = vunpack.c.h.b16 %v361
        %v509 = vunpack.c.l.b16 %v362
        %v510 = vunpack.c.h.b16 %v362
        %v511 = vunpack.c.l.b16 %v363
        %v512 = vunpack.c.h.b16 %v363
        %v513 = vunpack.c.l.b16 %v364
        %v514 = vunpack.c.h.b16 %v364
        %v515 = vunpack.c.l.b16 %v365
        %v516 = vunpack.c.h.b16 %v365
        %v517 = vunpack.c.l.b16 %v366
        %v518 = vunpack.c.h.b16 %v366
        %v519 = vunpack.c.l.b16 %v367
        %v520 = vunpack.c.h.b16 %v367
        %v521 = vunpack.c.l.b16 %v368
        %v522 = vunpack.c.h.b16 %v368
        %v523 = vunpack.c.l.b16 %v369
        %v524 = vunpack.c.h.b16 %v369
        %v525 = vunpack.c.l.b16 %v370
        %v526 = vunpack.c.h.b16 %v370
        %v527 = vunpack.c.l.b16 %v371
        %v528 = vunpack.c.h.b16 %v371
        %v529 = vunpack.c.l.b16 %v372
        %v530 = vunpack.c.h.b16 %v372
        %v531 = vunpack.c.l.b16 %v373
        %v532 = vunpack.c.h.b16 %v373
        %v533 = vunpack.c.l.b16 %v374
        %v534 = vunpack.c.h.b16 %v374
        %v535 = vunpack.c.l.b16 %v375
        %v536 = vunpack.c.h.b16 %v375
        %v537 = vunpack.c.l.b16 %v376
        %v538 = vunpack.c.h.b16 %v376
        %v539 = vunpack.c.l.b16 %v377
        %v540 = vunpack.c.h.b16 %v377
        %v541 = vunpack.c.l.b16 %v378
        %v542 = vunpack.c.h.b16 %v378
        %v543 = vunpack.c.l.b16 %v379
        %v544 = vunpack.c.h.b16 %v379
        %v545 = vunpack.c.l.b16 %v380
        %v546 = vunpack.c.h.b16 %v380
        %v547 = vunpack.c.l.b16 %v381
        %v548 = vunpack.c.h.b16 %v381
        %v549 = vunpack.c.l.b16 %v382
        %v550 = vunpack.c.h.b16 %v382
        %v551 = vunpack.c.l.b16 %v383
        %v552 = vunpack.c.h.b16 %v383
        %v553 = vunpack.c.l.b16 %v384
        %v554 = vunpack.c.h.b16 %v384
        %v555 = vunpack.c.l.b16 %v385
        %v556 = vunpack.c.h.b16 %v385
        %v557 = vunpack.c.l.b16 %v386
        %v558 = vunpack.c.h.b16 %v386
        %v559 = vunpack.c.l.b16 %v387
        %v560 = vunpack.c.h.b16 %v387
        %v561 = vunpack.c.l.b16 %v388
        %v562 = vunpack.c.h.b16 %v388
        %v563 = vunpack.c.l.b16 %v389
        %v564 = vunpack.c.h.b16 %v389
        %v565 = vunpack.c.l.b16 %v390
        %v566 = vunpack.c.h.b16 %v390
        %v567 = vpack.c.b16 %v473, %v471
        %v568 = vpack.c.b16 %v474, %v472
        %v569 = vpack.c.b16 %v477, %v475
        %v570 = vpack.c.b16 %v478, %v476
        %v571 = vpack.c.b16 %v481, %v479
        %v572 = vpack.c.b16 %v482, %v480
        %v573 = vpack.c.b16 %v485, %v483
        %v574 = vpack.c.b16 %v486, %v484
        %v575 = vpack.c.b16 %v489, %v487
        %v576 = vpack.c.b16 %v490, %v488
        %v577 = vpack.c.b16 %v493, %v491
        %v578 = vpack.c.b16 %v494, %v492
        %v579 = vpack.c.b16 %v497, %v495
        %v580 = vpack.c.b16 %v498, %v496
        %v581 = vpack.c.b16 %v501, %v499
        %v582 = vpack.c.b16 %v502, %v500
        %v583 = vpack.c.b16 %v505, %v503
        %v584 = vpack.c.b16 %v506, %v504
        %v585 = vpack.c.b16 %v509, %v507
        %v586 = vpack.c.b16 %v510, %v508
        %v587 = vpack.c.b16 %v513, %v511
        %v588 = vpack.c.b16 %v514, %v512
        %v589 = vpack.c.b16 %v517, %v515
        %v590 = vpack.c.b16 %v518, %v516
        %v591 = vpack.c.b16 %v521, %v519
        %v592 = vpack.c.b16 %v522, %v520
        %v593 = vpack.c.b16 %v525, %v523
        %v594 = vpack.c.b16 %v526, %v524
        %v595 = vpack.c.b16 %v529, %v527
        %v596 = vpack.c.b16 %v530, %v528
        %v597 = vpack.c.b16 %v533, %v531
        %v598 = vpack.c.b16 %v534, %v532
        %v599 = vpack.c.b16 %v537, %v535
        %v600 = vpack.c.b16 %v538, %v536
        %v601 = vpack.c.b16 %v541, %v539
        %v602 = vpack.c.b16 %v542, %v540
        %v603 = vpack.c.b16 %v545, %v543
        %v604 = vpack.c.b16 %v546, %v544
        %v605 = vpack.c.b16 %v549, %v547
        %v606 = vpack.c.b16 %v550, %v548
        %v607 = vpack.c.b16 %v553, %v551
        %v608 = vpack.c.b16 %v554, %v552
        %v609 = vpack.c.b16 %v557, %v555
        %v610 = vpack.c.b16 %v558, %v556
        %v611 = vpack.c.b16 %v561, %v559
        %v612 = vpack.c.b16 %v562, %v560
        %v613 = vpack.c.b16 %v565, %v563
        %v614 = vpack.c.b16 %v566, %v564
        %663 = vmatprep.subr.bf16.mxu0 %v568
        %664 = vmatpush1.bf16.msra.mxu0 %v567
        %665 = vmatprep.subr.bf16.mxu0 %v570
        %666 = vmatpush1.bf16.msra.mxu0 %v569
        %667 = vmatprep.subr.bf16.mxu0 %v572
        %668 = vmatpush1.bf16.msra.mxu0 %v571
        %669 = vmatprep.subr.bf16.mxu0 %v574
        %670 = vmatpush1.bf16.msra.mxu0 %v573
        %671 = vmatprep.subr.bf16.mxu0 %v576
        %672 = vmatpush1.bf16.msra.mxu0 %v575
        %673 = vmatprep.subr.bf16.mxu0 %v578
        %674 = vmatpush1.bf16.msra.mxu0 %v577
        %675 = vmatprep.subr.bf16.mxu0 %v580
        %676 = vmatpush1.bf16.msra.mxu0 %v579
        %677 = vmatprep.subr.bf16.mxu0 %v582
        %678 = vmatpush1.bf16.msra.mxu0 %v581
        %679 = vmatprep.subr.bf16.mxu0 %v584
        %680 = vmatpush1.bf16.msra.mxu0 %v583
        %681 = vmatprep.subr.bf16.mxu0 %v586
        %682 = vmatpush1.bf16.msra.mxu0 %v585
        %683 = vmatprep.subr.bf16.mxu0 %v588
        %684 = vmatpush1.bf16.msra.mxu0 %v587
        %685 = vmatprep.subr.bf16.mxu0 %v590
        %686 = vmatpush1.bf16.msra.mxu0 %v589
        %687 = vmatprep.subr.bf16.mxu0 %v592
        %688 = vmatpush1.bf16.msra.mxu0 %v591
        %689 = vmatprep.subr.bf16.mxu0 %v594
        %690 = vmatpush1.bf16.msra.mxu0 %v593
        %691 = vmatprep.subr.bf16.mxu0 %v596
        %692 = vmatpush1.bf16.msra.mxu0 %v595
        %693 = vmatprep.subr.bf16.mxu0 %v598
        %694 = vmatpush1.bf16.msra.mxu0 %v597
        %695 = vmatprep.mubr.bf16.mxu0 %v412
        %696 = vmatmul.mubr.bf16.gmra.mrb[0].mxu0 %v411
        %v697 = vpop.f32.mrb[0].mxu0
        %v698 = vadd.f32 0.0, %v697
        %v699 = vpop.f32.mrb[0].mxu0
        %v700 = vadd.f32 0.0, %v699
        %v701 = vpop.f32.mrb[0].mxu0
        %v702 = vadd.f32 0.0, %v701
        %v703 = vpop.f32.mrb[0].mxu0
        %v704 = vadd.f32 0.0, %v703
        %705 = vmatprep.mubr.bf16.mxu0 %v415
        %706 = vmatmul.mubr.bf16.gmra.mrb[0].mxu0 %v414
        %v707 = vpop.f32.mrb[0].mxu0
        %v708 = vadd.f32 0.0, %v707
        %v709 = vpop.f32.mrb[0].mxu0
        %v710 = vadd.f32 0.0, %v709
        %v711 = vpop.f32.mrb[0].mxu0
        %v712 = vadd.f32 0.0, %v711
        %v713 = vpop.f32.mrb[0].mxu0
        %v714 = vadd.f32 0.0, %v713
        %715 = vdwg.mxu0
        %716 = vmatprep.subr.bf16.mxu0 %v600
        %717 = vmatpush1.bf16.msra.mxu0 %v599
        %718 = vmatprep.subr.bf16.mxu0 %v602
        %719 = vmatpush1.bf16.msra.mxu0 %v601
        %720 = vmatprep.subr.bf16.mxu0 %v604
        %721 = vmatpush1.bf16.msra.mxu0 %v603
        %722 = vmatprep.subr.bf16.mxu0 %v606
        %723 = vmatpush1.bf16.msra.mxu0 %v605
        %724 = vmatprep.subr.bf16.mxu0 %v608
        %725 = vmatpush1.bf16.msra.mxu0 %v607
        %726 = vmatprep.subr.bf16.mxu0 %v610
        %727 = vmatpush1.bf16.msra.mxu0 %v609
        %728 = vmatprep.subr.bf16.mxu0 %v612
        %729 = vmatpush1.bf16.msra.mxu0 %v611
        %730 = vmatprep.subr.bf16.mxu0 %v614
        %731 = vmatpush1.bf16.msra.mxu0 %v613
        %732 = vmatprep.subr.bf16.mxu0 0
        %733 = vmatpush1.bf16.msra.mxu0 0
        %734 = vmatprep.subr.bf16.mxu0 0
        %735 = vmatpush1.bf16.msra.mxu0 0
        %736 = vmatprep.subr.bf16.mxu0 0
        %737 = vmatpush1.bf16.msra.mxu0 0
        %738 = vmatprep.subr.bf16.mxu0 0
        %739 = vmatpush1.bf16.msra.mxu0 0
        %740 = vmatprep.subr.bf16.mxu0 0
        %741 = vmatpush1.bf16.msra.mxu0 0
        %742 = vmatprep.subr.bf16.mxu0 0
        %743 = vmatpush1.bf16.msra.mxu0 0
        %744 = vmatprep.subr.bf16.mxu0 0
        %745 = vmatpush1.bf16.msra.mxu0 0
        %746 = vmatprep.subr.bf16.mxu0 0
        %747 = vmatpush1.bf16.msra.mxu0 0
        %748 = vmatprep.mubr.bf16.mxu0 0
        %749 = vmatmul.mubr.bf16.gmra.mrb[0].mxu0 %v413
        %v750 = vpop.f32.mrb[0].mxu0
        %v751 = vadd.f32 %v698, %v750
        %v752 = vpop.f32.mrb[0].mxu0
        %v753 = vadd.f32 %v700, %v752
        %v754 = vpop.f32.mrb[0].mxu0
        %v755 = vadd.f32 %v702, %v754
        %v756 = vpop.f32.mrb[0].mxu0
        %v757 = vadd.f32 %v704, %v756
        %758 = vmatprep.mubr.bf16.mxu0 0
        %759 = vmatmul.mubr.bf16.gmra.mrb[0].mxu0 %v416
        %v760 = vpop.f32.mrb[0].mxu0
        %v761 = vadd.f32 %v708, %v760
        %v762 = vpop.f32.mrb[0].mxu0
        %v763 = vadd.f32 %v710, %v762
        %v764 = vpop.f32.mrb[0].mxu0
        %v765 = vadd.f32 %v712, %v764
        %v766 = vpop.f32.mrb[0].mxu0
        %v767 = vadd.f32 %v714, %v766
        %768 = vdwg.mxu0
        %v769 = vadd.f32 %v327, %v751
        %v770 = vadd.f32 %v328, %v753
        %v771 = vadd.f32 %v329, %v755
        %v772 = vadd.f32 %v330, %v757
        %v773 = vadd.f32 %v331, %v761
        %v774 = vadd.f32 %v332, %v763
        %v775 = vadd.f32 %v333, %v765
        %v776 = vadd.f32 %v334, %v767
        %777 = vst [vmem:[#allocation2] sm:$0xff] %v769
        %778 = vst [vmem:[#allocation2 + $0x8] sm:$0xff] %v770
        %779 = vst [vmem:[#allocation2 + $0x10] sm:$0xff] %v771
        %780 = vst [vmem:[#allocation2 + $0x18] sm:$0xff] %v772
        %781 = vst [vmem:[#allocation2 + $0x20] sm:$0xff] %v773
        %782 = vst [vmem:[#allocation2 + $0x28] sm:$0xff] %v774
        %783 = vst [vmem:[#allocation2 + $0x30] sm:$0xff] %v775
        %784 = vst [vmem:[#allocation2 + $0x38] sm:$0xff] %v776
        %p785 = scmp.eq.s32.totalorder %s21, 5
        // Predicated region
        $region63: #{entry_stem_fwd.45} parent=53 // pred_check
          %p786 = pneg %p785
        $region64: #{entry_stem_fwd.45} parent=53 // pred_check_branch
          %788 = sbr.rel (%p786) target = $region66
        $region65: #{entry_stem_fwd.45} parent=53 // pred_region
          %v789 = vld [vmem:[#allocation2] sm:$0xff]
          %v790 = vld [vmem:[#allocation2 + $0x8] sm:$0xff]
          %v791 = vld [vmem:[#allocation2 + $0x10] sm:$0xff]
          %v792 = vld [vmem:[#allocation2 + $0x18] sm:$0xff]
          %v793 = vld [vmem:[#allocation2 + $0x20] sm:$0xff]
          %v794 = vld [vmem:[#allocation2 + $0x28] sm:$0xff]
          %v795 = vld [vmem:[#allocation2 + $0x30] sm:$0xff]
          %v796 = vld [vmem:[#allocation2 + $0x38] sm:$0xff]
          %v797 = vld [vmem:[%s300] sm:$0x3]
          %v799 = vlaneseq
          %v800 = vshrl.u32 %v799, 7
          %v801 = vsub.s32 0, %v800
          %v802 = vrot.slane %v797, %v801
          %v803 = vlaneseq
          %v804 = vshrl.u32 %v803, 7
          %v805 = vsub.s32 1, %v804
          %v806 = vrot.slane %v797, %v805
          %v809 = vadd.f32 %v789, %v802
          %v810 = vadd.f32 %v790, %v806
          %v811 = vadd.f32 %v791, %v802
          %v812 = vadd.f32 %v792, %v806
          %v813 = vadd.f32 %v793, %v802
          %v814 = vadd.f32 %v794, %v806
          %v815 = vadd.f32 %v795, %v802
          %v816 = vadd.f32 %v796, %v806
          %817 = vst [vmem:[%s311] sm:$0xff] %v809
          %818 = vst [vmem:[%s311 + $0x8] sm:$0xff] %v810
          %819 = vst [vmem:[%s311 + $0x10] sm:$0xff] %v811
          %820 = vst [vmem:[%s311 + $0x18] sm:$0xff] %v812
          %821 = vst [vmem:[%s311 + $0x20] sm:$0xff] %v813
          %822 = vst [vmem:[%s311 + $0x28] sm:$0xff] %v814
          %823 = vst [vmem:[%s311 + $0x30] sm:$0xff] %v815
          %824 = vst [vmem:[%s311 + $0x38] sm:$0xff] %v816
        $region66: #{entry_stem_fwd.45} parent=53 // pred_fallthru
          _
        %s825 = smul.u32 4, %s19
        %s826 = smul.u32 2, %s20
        %p827 = scmp.lt.s32.totalorder %s825, 3
        %s828 = scalar_select %p827, %s825, 3
        %p829 = scmp.lt.s32.totalorder %s826, 1
        %s830 = scalar_select %p829, %s826, 1
        %s831 = smul.addr %s828, 2
        %s832 = sadd.s32 %s830, %s831
        %s833 = smul.addr %s832, 8
        %s834 = scalar_lea.vmem %s3, %s833
        // Predicated region
        $region67: #{entry_stem_fwd.45} parent=53 // pred_check
          %p835 = pneg %p135
        $region68: #{entry_stem_fwd.45} parent=53 // pred_check_branch
          %837 = sbr.rel (%p835) target = $region70
        $region69: #{entry_stem_fwd.45} parent=53 // pred_region
          %s838 = smul.u32 4, %s19
          %s839 = smul.u32 2, %s20
        $region70: #{entry_stem_fwd.45} parent=53 // pred_fallthru
          _
        // Predicated region
        $region71: #{entry_stem_fwd.45} parent=53 // pred_check
          %p840 = pneg %p135
        $region72: #{entry_stem_fwd.45} parent=53 // pred_check_branch
          %842 = sbr.rel (%p840) target = $region74
        $region73: #{entry_stem_fwd.45} parent=53 // pred_region
          %s843 = smul.u32 4, %s19
          %s844 = smul.u32 2, %s20
          %p845 = scmp.lt.s32.totalorder %s843, 3
          %s846 = scalar_select %p845, %s843, 3
          %p847 = scmp.lt.s32.totalorder %s844, 1
          %s848 = scalar_select %p847, %s844, 1
          %s849 = smul.addr %s846, 2
          %s850 = sadd.s32 %s848, %s849
          %s851 = smul.addr %s850, 8
          %s852 = scalar_lea.vmem %s3, %s851
        $region74: #{entry_stem_fwd.45} parent=53 // pred_fallthru
          _
      $region54: #{entry_stem_fwd.45} parent=5 // pred_fallthru
        _
      %p853 = scmp.le.s32.totalorder 2, %s9
      // Predicated region
      $region75: #{entry_stem_fwd.45} parent=5 // pred_check
        %p854 = pneg %p853
      $region76: #{entry_stem_fwd.45} parent=5 // pred_check_branch
        %856 = sbr.rel (%p854) target = $region78
      $region77: #{entry_stem_fwd.45} parent=5 // pred_region
        %s857 = ssub.s32 %s9, 2
      $region78: #{entry_stem_fwd.45} parent=5 // pred_fallthru
        _
    $region6: #{entry_stem_fwd.45} parent=1 // loop_footer
      %s13 = sadd.s32 1, %s9
    $region7: #{entry_stem_fwd.45} parent=1 // loop_footer_branch
      %8 = sbr.rel target = $region3
    $region8: #{entry_stem_fwd.45} parent=1 // loop_exit
      _

// kernel: entry_stem_fwd.51
$region0: #{entry_stem_fwd.51}
  #allocation0 [shape = 'u32[]', space=smem, size = 0x4, offset = 0x4, fixed_abs, tag = 'smem constant byte address 0x4 - core index']
  #allocation1 [shape = 'u32[144,128]{1,0:T(1,128)}', space=vmem, size = 0x12000, scoped, tag = 'internal scratch']
  #allocation2 [shape = 'f32[8,256]{1,0:T(8,128)}', space=vmem, size = 0x2000, scoped, tag = 'scratch operand']
  %s0 = inlined_call_operand.vmem [shape: bf16[8,512], index: 0, kind: input, shape index: {}]
  %s1 = inlined_call_operand.vmem [shape: bf16[512,768], index: 1, kind: input, shape index: {}]
  %s2 = inlined_call_operand.vmem [shape: f32[1,768], index: 2, kind: input, shape index: {}]
  %s3 = inlined_call_operand.vmem [shape: f32[8,768], index: 3, kind: output, shape index: {}]
  %s4 = sld [smem:[#allocation0]]
  $region91: #{entry_stem_fwd.51} parent=0
    _
  %s6 = ssub.s32 1, %s4
  %s7 = scalar_select 0, %s6, %s4
  $region1: #{entry_stem_fwd.51} parent=0
    #allocation3 [shape = 'u8[524288]{0}', space=vmem, size = 0x80000, scoped, tag = 'input window, operand 1']
    loop: start=0, step=1, limit=5
    $region2: #{entry_stem_fwd.51} parent=1 // loop_pre_header
      _
    $region3: #{entry_stem_fwd.51} parent=1 // loop_header
      %s9 = sphi 0, %s13
      %p10 = scmp.ge.s32.totalorder %s9, 5
      %s16 = sphi 0, %s35
      %s17 = sphi 0, %s31
      %s18 = sphi 0, %s27
      %s19 = sphi 0, %s16
      %s20 = sphi 0, %s17
      %s21 = sphi 0, %s18
      %s22 = sphi 0, %s19
      %s23 = sphi 0, %s20
      %s24 = sphi 0, %s21
      %s40 = sphi 0, %s42
      %s43 = sphi 0, %s40
      %s44 = sphi 0, %s43
      %s60 = sphi 0, %s44
      %s68 = sphi 0, %s70
      %s71 = sphi 0, %s68
      %s72 = sphi 0, %s71
      %s88 = sphi 0, %s72
      %s94 = sphi 0, %s96
      %s97 = sphi 0, %s94
      %s98 = sphi 0, %s97
      %s114 = sphi 0, %s98
      %s122 = sphi 0, %s124
      %s125 = sphi 0, %s122
      %s126 = sphi 0, %s125
      %s142 = sphi 0, %s126
    $region4: #{entry_stem_fwd.51} parent=1 // loop_header_branch
      %12 = sbr.rel (%p10) target = $region8
    $region5: #{entry_stem_fwd.51} parent=1 // loop_body
      %s14 = ssub.s32 %s9, 1
      %s15 = ssub.s32 %s9, 2
      %s25 = sadd.s32 1, %s18
      %p26 = scmp.ge.s32.totalorder %s25, 1
      %s27 = scalar_select %p26, 0, %s25
      %s28 = sadd.s32 1, %s17
      %s29 = scalar_select %p26, %s28, %s17
      %p30 = scmp.ge.s32.totalorder %s29, 3
      %s31 = scalar_select %p30, 0, %s29
      %s32 = sadd.s32 1, %s16
      %s33 = scalar_select %p30, %s32, %s16
      %p34 = scmp.ge.s32.totalorder %s33, 1
      %s35 = scalar_select %p34, 0, %s33
      %s36 = ssub.s32 %s16, %s35
      %s37 = ssub.s32 %s18, %s27
      %s38 = sor.u32 %s36, %s37
      %p39 = scmp.eq.s32.totalorder %s38, 0
      %s41 = sadd.s32 %s40, 1
      %s42 = scalar_select %p39, %s40, %s41
      %p45 = pneg %p39
      %p46 = scmp.eq.s32.totalorder %s9, 2
      %p47 = por %p45, %p46
      %p48 = scmp.ne.s32.totalorder %s40, %s43
      %p49 = scmp.eq.s32.totalorder %s9, 0
      %p50 = por %p48, %p49
      %p51 = scmp.ne.s32.totalorder %s40, %s43
      %p52 = scmp.eq.s32.totalorder %s14, 2
      %p53 = por %p51, %p52
      %p54 = scmp.ne.s32.totalorder %s43, %s44
      %p55 = scmp.eq.s32.totalorder %s14, 0
      %p56 = por %p54, %p55
      %p57 = scmp.ne.s32.totalorder %s43, %s44
      %p58 = scmp.eq.s32.totalorder %s15, 2
      %p59 = por %p57, %p58
      %p61 = scmp.ne.s32.totalorder %s44, %s60
      %p62 = scmp.eq.s32.totalorder %s15, 0
      %p63 = por %p61, %p62
      %s64 = ssub.s32 %s18, %s27
      %s65 = ssub.s32 %s17, %s31
      %s66 = sor.u32 %s64, %s65
      %p67 = scmp.eq.s32.totalorder %s66, 0
      %s69 = sadd.s32 %s68, 1
      %s70 = scalar_select %p67, %s68, %s69
      %p73 = pneg %p67
      %p74 = scmp.eq.s32.totalorder %s9, 2
      %p75 = por %p73, %p74
      %p76 = scmp.ne.s32.totalorder %s68, %s71
      %p77 = scmp.eq.s32.totalorder %s9, 0
      %p78 = por %p76, %p77
      %p79 = scmp.ne.s32.totalorder %s68, %s71
      %p80 = scmp.eq.s32.totalorder %s14, 2
      %p81 = por %p79, %p80
      %p82 = scmp.ne.s32.totalorder %s71, %s72
      %p83 = scmp.eq.s32.totalorder %s14, 0
      %p84 = por %p82, %p83
      %p85 = scmp.ne.s32.totalorder %s71, %s72
      %p86 = scmp.eq.s32.totalorder %s15, 2
      %p87 = por %p85, %p86
      %p89 = scmp.ne.s32.totalorder %s72, %s88
      %p90 = scmp.eq.s32.totalorder %s15, 0
      %p91 = por %p89, %p90
      %s92 = ssub.s32 %s17, %s31
      %p93 = scmp.eq.s32.totalorder %s92, 0
      %s95 = sadd.s32 %s94, 1
      %s96 = scalar_select %p93, %s94, %s95
      %p99 = pneg %p93
      %p100 = scmp.eq.s32.totalorder %s9, 2
      %p101 = por %p99, %p100
      %p102 = scmp.ne.s32.totalorder %s94, %s97
      %p103 = scmp.eq.s32.totalorder %s9, 0
      %p104 = por %p102, %p103
      %p105 = scmp.ne.s32.totalorder %s94, %s97
      %p106 = scmp.eq.s32.totalorder %s14, 2
      %p107 = por %p105, %p106
      %p108 = scmp.ne.s32.totalorder %s97, %s98
      %p109 = scmp.eq.s32.totalorder %s14, 0
      %p110 = por %p108, %p109
      %p111 = scmp.ne.s32.totalorder %s97, %s98
      %p112 = scmp.eq.s32.totalorder %s15, 2
      %p113 = por %p111, %p112
      %p115 = scmp.ne.s32.totalorder %s98, %s114
      %p116 = scmp.eq.s32.totalorder %s15, 0
      %p117 = por %p115, %p116
      %s118 = ssub.s32 %s16, %s35
      %s119 = ssub.s32 %s17, %s31
      %s120 = sor.u32 %s118, %s119
      %p121 = scmp.eq.s32.totalorder %s120, 0
      %s123 = sadd.s32 %s122, 1
      %s124 = scalar_select %p121, %s122, %s123
      %p127 = pneg %p121
      %p128 = scmp.eq.s32.totalorder %s9, 2
      %p129 = por %p127, %p128
      %p130 = scmp.ne.s32.totalorder %s122, %s125
      %p131 = scmp.eq.s32.totalorder %s9, 0
      %p132 = por %p130, %p131
      %p133 = scmp.ne.s32.totalorder %s122, %s125
      %p134 = scmp.eq.s32.totalorder %s14, 2
      %p135 = por %p133, %p134
      %p136 = scmp.ne.s32.totalorder %s125, %s126
      %p137 = scmp.eq.s32.totalorder %s14, 0
      %p138 = por %p136, %p137
      %p139 = scmp.ne.s32.totalorder %s125, %s126
      %p140 = scmp.eq.s32.totalorder %s15, 2
      %p141 = por %p139, %p140
      %p143 = scmp.ne.s32.totalorder %s126, %s142
      %p144 = scmp.eq.s32.totalorder %s15, 0
      %p145 = por %p143, %p144
      %p146 = scmp.le.s32.totalorder 1, %s9
      %p147 = scmp.lt.s32.totalorder %s9, 4
      %p148 = pnand %p146, %p147
      %p149 = pneg %p148
      // Predicated region
      $region9: #{entry_stem_fwd.51} parent=5 // pred_check
        _
      $region10: #{entry_stem_fwd.51} parent=5 // pred_check_branch
        %151 = sbr.rel (%p148) target = $region12
      $region11: #{entry_stem_fwd.51} parent=5 // pred_region
        %s152 = ssub.s32 %s9, 1
        // Predicated region
        $region13: #{entry_stem_fwd.51} parent=11 // pred_check
          %p153 = pneg %p56
        $region14: #{entry_stem_fwd.51} parent=11 // pred_check_branch
          %155 = sbr.rel (%p153) target = $region16
        $region15: #{entry_stem_fwd.51} parent=11 // pred_region
          %s156 = smul.u32 4, %s21
          %p157 = scmp.lt.s32.totalorder %s19, 0
          %s158 = scalar_select %p157, %s19, 0
          %p159 = scmp.lt.s32.totalorder %s156, 3
          %s160 = scalar_select %p159, %s156, 3
          %s161 = smul.addr %s158, 4
          %s162 = sadd.s32 %s160, %s161
          %s163 = smul.addr %s162, 4
          %s164 = scalar_lea.vmem %s0, %s163
          %s165 = smul.u32 4, %s21
        $region16: #{entry_stem_fwd.51} parent=11 // pred_fallthru
          _
      $region12: #{entry_stem_fwd.51} parent=5 // pred_fallthru
        _
      %p166 = scmp.lt.s32.totalorder %s9, 3
      // Predicated region
      $region17: #{entry_stem_fwd.51} parent=5 // pred_check
        %p167 = pneg %p166
      $region18: #{entry_stem_fwd.51} parent=5 // pred_check_branch
        %169 = sbr.rel (%p167) target = $region20
      $region19: #{entry_stem_fwd.51} parent=5 // pred_region
        // Predicated region
        $region21: #{entry_stem_fwd.51} parent=19 // pred_check
          %p170 = pneg %p78
        $region22: #{entry_stem_fwd.51} parent=19 // pred_check_branch
          %172 = sbr.rel (%p170) target = $region24
        $region23: #{entry_stem_fwd.51} parent=19 // pred_region
          %s173 = sand.u32 %s68, 1
          %s174 = sand.u32 %s68, 1
          %s175 = smul.addr %s174, 512
          %s176 = scalar_lea.vmem [#allocation3], %s175
          %s177 = smul.u32 64, %s18
          %s178 = smul.u32 2, %s17
          %s179 = smul.addr %s177, 6
          %s180 = sadd.s32 %s178, %s179
          %s181 = smul.addr %s180, 4
          %s182 = scalar_lea.vmem %s1, %s181
          // Predicated region
          $region25: #{entry_stem_fwd.51} parent=23 // pred_check
            _
          $region26: #{entry_stem_fwd.51} parent=23 // pred_check_branch
            %184 = sbr.rel (0) target = $region28
          $region27: #{entry_stem_fwd.51} parent=23 // pred_region
            // Predicated region
            $region29: #{entry_stem_fwd.51} parent=27 // pred_check
              _
            $region30: #{entry_stem_fwd.51} parent=27 // pred_check_branch
              %186 = sbr.rel (0) target = $region32
            $region31: #{entry_stem_fwd.51} parent=27 // pred_region
              // Predicated region
              $region44: #{entry_stem_fwd.51} parent=31 // pred_check
                _
              $region45: #{entry_stem_fwd.51} parent=31 // pred_check_branch
                %327 = sbr.rel (0) target = $region47
              $region46: #{entry_stem_fwd.51} parent=31 // pred_region
                loop: start=0, step=1, limit=1
                $region48: #{entry_stem_fwd.51} parent=46 // loop_pre_header
                  _
                $region49: #{entry_stem_fwd.51} parent=46 // loop_header
                  %s329 = sphi 0, %s333
                  %p330 = scmp.ge.s32.totalorder %s329, 1
                  %s334 = sphi %s182, %s182
                  %s335 = sphi %s176, %s176
                $region50: #{entry_stem_fwd.51} parent=46 // loop_header_branch
                  %332 = sbr.rel (%p330) target = $region54
                $region51: #{entry_stem_fwd.51} parent=46 // loop_body
                  %v336 = vld [vmem:[%s334] sm:$0xff]
                  %337 = vst [vmem:[%s335] sm:$0xff] %v336
                  %v338 = vld [vmem:[%s334 + $0x18] sm:$0xff]
                  %339 = vst [vmem:[%s335 + $0x8] sm:$0xff] %v338
                  %v340 = vld [vmem:[%s334 + $0x30] sm:$0xff]
                  %341 = vst [vmem:[%s335 + $0x10] sm:$0xff] %v340
                  %v342 = vld [vmem:[%s334 + $0x48] sm:$0xff]
                  %343 = vst [vmem:[%s335 + $0x18] sm:$0xff] %v342
                  %v344 = vld [vmem:[%s334 + $0x60] sm:$0xff]
                  %345 = vst [vmem:[%s335 + $0x20] sm:$0xff] %v344
                  %v346 = vld [vmem:[%s334 + $0x78] sm:$0xff]
                  %347 = vst [vmem:[%s335 + $0x28] sm:$0xff] %v346
                  %v348 = vld [vmem:[%s334 + $0x90] sm:$0xff]
                  %349 = vst [vmem:[%s335 + $0x30] sm:$0xff] %v348
                  %v350 = vld [vmem:[%s334 + $0xa8] sm:$0xff]
                  %351 = vst [vmem:[%s335 + $0x38] sm:$0xff] %v350
                  %v352 = vld [vmem:[%s334 + $0xc0] sm:$0xff]
                  %353 = vst [vmem:[%s335 + $0x40] sm:$0xff] %v352
                  %v354 = vld [vmem:[%s334 + $0xd8] sm:$0xff]
                  %355 = vst [vmem:[%s335 + $0x48] sm:$0xff] %v354
                  %v356 = vld [vmem:[%s334 + $0xf0] sm:$0xff]
                  %357 = vst [vmem:[%s335 + $0x50] sm:$0xff] %v356
                  %v358 = vld [vmem:[%s334 + $0x108] sm:$0xff]
                  %359 = vst [vmem:[%s335 + $0x58] sm:$0xff] %v358
                  %v360 = vld [vmem:[%s334 + $0x120] sm:$0xff]
                  %361 = vst [vmem:[%s335 + $0x60] sm:$0xff] %v360
                  %v362 = vld [vmem:[%s334 + $0x138] sm:$0xff]
                  %363 = vst [vmem:[%s335 + $0x68] sm:$0xff] %v362
                  %v364 = vld [vmem:[%s334 + $0x150] sm:$0xff]
                  %365 = vst [vmem:[%s335 + $0x70] sm:$0xff] %v364
                  %v366 = vld [vmem:[%s334 + $0x168] sm:$0xff]
                  %367 = vst [vmem:[%s335 + $0x78] sm:$0xff] %v366
                  %v368 = vld [vmem:[%s334 + $0x180] sm:$0xff]
                  %369 = vst [vmem:[%s335 + $0x80] sm:$0xff] %v368
                  %v370 = vld [vmem:[%s334 + $0x198] sm:$0xff]
                  %371 = vst [vmem:[%s335 + $0x88] sm:$0xff] %v370
                  %v372 = vld [vmem:[%s334 + $0x1b0] sm:$0xff]
                  %373 = vst [vmem:[%s335 + $0x90] sm:$0xff] %v372
                  %v374 = vld [vmem:[%s334 + $0x1c8] sm:$0xff]
                  %375 = vst [vmem:[%s335 + $0x98] sm:$0xff] %v374
                  %v376 = vld [vmem:[%s334 + $0x1e0] sm:$0xff]
                  %377 = vst [vmem:[%s335 + $0xa0] sm:$0xff] %v376
                  %v378 = vld [vmem:[%s334 + $0x1f8] sm:$0xff]
                  %379 = vst [vmem:[%s335 + $0xa8] sm:$0xff] %v378
                  %v380 = vld [vmem:[%s334 + $0x210] sm:$0xff]
                  %381 = vst [vmem:[%s335 + $0xb0] sm:$0xff] %v380
                  %v382 = vld [vmem:[%s334 + $0x228] sm:$0xff]
                  %383 = vst [vmem:[%s335 + $0xb8] sm:$0xff] %v382
                  %v384 = vld [vmem:[%s334 + $0x240] sm:$0xff]
                  %385 = vst [vmem:[%s335 + $0xc0] sm:$0xff] %v384
                  %v386 = vld [vmem:[%s334 + $0x258] sm:$0xff]
                  %387 = vst [vmem:[%s335 + $0xc8] sm:$0xff] %v386
                  %v388 = vld [vmem:[%s334 + $0x270] sm:$0xff]
                  %389 = vst [vmem:[%s335 + $0xd0] sm:$0xff] %v388
                  %v390 = vld [vmem:[%s334 + $0x288] sm:$0xff]
                  %391 = vst [vmem:[%s335 + $0xd8] sm:$0xff] %v390
                  %v392 = vld [vmem:[%s334 + $0x2a0] sm:$0xff]
                  %393 = vst [vmem:[%s335 + $0xe0] sm:$0xff] %v392
                  %v394 = vld [vmem:[%s334 + $0x2b8] sm:$0xff]
                  %395 = vst [vmem:[%s335 + $0xe8] sm:$0xff] %v394
                  %v396 = vld [vmem:[%s334 + $0x2d0] sm:$0xff]
                  %397 = vst [vmem:[%s335 + $0xf0] sm:$0xff] %v396
                  %v398 = vld [vmem:[%s334 + $0x2e8] sm:$0xff]
                  %399 = vst [vmem:[%s335 + $0xf8] sm:$0xff] %v398
                  %v400 = vld [vmem:[%s334 + $0x300] sm:$0xff]
                  %401 = vst [vmem:[%s335 + $0x100] sm:$0xff] %v400
                  %v402 = vld [vmem:[%s334 + $0x318] sm:$0xff]
                  %403 = vst [vmem:[%s335 + $0x108] sm:$0xff] %v402
                  %v404 = vld [vmem:[%s334 + $0x330] sm:$0xff]
                  %405 = vst [vmem:[%s335 + $0x110] sm:$0xff] %v404
                  %v406 = vld [vmem:[%s334 + $0x348] sm:$0xff]
                  %407 = vst [vmem:[%s335 + $0x118] sm:$0xff] %v406
                  %v408 = vld [vmem:[%s334 + $0x360] sm:$0xff]
                  %409 = vst [vmem:[%s335 + $0x120] sm:$0xff] %v408
                  %v410 = vld [vmem:[%s334 + $0x378] sm:$0xff]
                  %411 = vst [vmem:[%s335 + $0x128] sm:$0xff] %v410
                  %v412 = vld [vmem:[%s334 + $0x390] sm:$0xff]
                  %413 = vst [vmem:[%s335 + $0x130] sm:$0xff] %v412
                  %v414 = vld [vmem:[%s334 + $0x3a8] sm:$0xff]
                  %415 = vst [vmem:[%s335 + $0x138] sm:$0xff] %v414
                  %v416 = vld [vmem:[%s334 + $0x3c0] sm:$0xff]
                  %417 = vst [vmem:[%s335 + $0x140] sm:$0xff] %v416
                  %v418 = vld [vmem:[%s334 + $0x3d8] sm:$0xff]
                  %419 = vst [vmem:[%s335 + $0x148] sm:$0xff] %v418
                  %v420 = vld [vmem:[%s334 + $0x3f0] sm:$0xff]
                  %421 = vst [vmem:[%s335 + $0x150] sm:$0xff] %v420
                  %v422 = vld [vmem:[%s334 + $0x408] sm:$0xff]
                  %423 = vst [vmem:[%s335 + $0x158] sm:$0xff] %v422
                  %v424 = vld [vmem:[%s334 + $0x420] sm:$0xff]
                  %425 = vst [vmem:[%s335 + $0x160] sm:$0xff] %v424
                  %v426 = vld [vmem:[%s334 + $0x438] sm:$0xff]
                  %427 = vst [vmem:[%s335 + $0x168] sm:$0xff] %v426
                  %v428 = vld [vmem:[%s334 + $0x450] sm:$0xff]
                  %429 = vst [vmem:[%s335 + $0x170] sm:$0xff] %v428
                  %v430 = vld [vmem:[%s334 + $0x468] sm:$0xff]
                  %431 = vst [vmem:[%s335 + $0x178] sm:$0xff] %v430
                  %v432 = vld [vmem:[%s334 + $0x480] sm:$0xff]
                  %433 = vst [vmem:[%s335 + $0x180] sm:$0xff] %v432
                  %v434 = vld [vmem:[%s334 + $0x498] sm:$0xff]
                  %435 = vst [vmem:[%s335 + $0x188] sm:$0xff] %v434
                  %v436 = vld [vmem:[%s334 + $0x4b0] sm:$0xff]
                  %437 = vst [vmem:[%s335 + $0x190] sm:$0xff] %v436
                  %v438 = vld [vmem:[%s334 + $0x4c8] sm:$0xff]
                  %439 = vst [vmem:[%s335 + $0x198] sm:$0xff] %v438
                  %v440 = vld [vmem:[%s334 + $0x4e0] sm:$0xff]
                  %441 = vst [vmem:[%s335 + $0x1a0] sm:$0xff] %v440
                  %v442 = vld [vmem:[%s334 + $0x4f8] sm:$0xff]
                  %443 = vst [vmem:[%s335 + $0x1a8] sm:$0xff] %v442
                  %v444 = vld [vmem:[%s334 + $0x510] sm:$0xff]
                  %445 = vst [vmem:[%s335 + $0x1b0] sm:$0xff] %v444
                  %v446 = vld [vmem:[%s334 + $0x528] sm:$0xff]
                  %447 = vst [vmem:[%s335 + $0x1b8] sm:$0xff] %v446
                  %v448 = vld [vmem:[%s334 + $0x540] sm:$0xff]
                  %449 = vst [vmem:[%s335 + $0x1c0] sm:$0xff] %v448
                  %v450 = vld [vmem:[%s334 + $0x558] sm:$0xff]
                  %451 = vst [vmem:[%s335 + $0x1c8] sm:$0xff] %v450
                  %v452 = vld [vmem:[%s334 + $0x570] sm:$0xff]
                  %453 = vst [vmem:[%s335 + $0x1d0] sm:$0xff] %v452
                  %v454 = vld [vmem:[%s334 + $0x588] sm:$0xff]
                  %455 = vst [vmem:[%s335 + $0x1d8] sm:$0xff] %v454
                  %v456 = vld [vmem:[%s334 + $0x5a0] sm:$0xff]
                  %457 = vst [vmem:[%s335 + $0x1e0] sm:$0xff] %v456
                  %v458 = vld [vmem:[%s334 + $0x5b8] sm:$0xff]
                  %459 = vst [vmem:[%s335 + $0x1e8] sm:$0xff] %v458
                  %v460 = vld [vmem:[%s334 + $0x5d0] sm:$0xff]
                  %461 = vst [vmem:[%s335 + $0x1f0] sm:$0xff] %v460
                  %v462 = vld [vmem:[%s334 + $0x5e8] sm:$0xff]
                  %463 = vst [vmem:[%s335 + $0x1f8] sm:$0xff] %v462
                $region52: #{entry_stem_fwd.51} parent=46 // loop_footer
                  %s333 = sadd.s32 1, %s329
                $region53: #{entry_stem_fwd.51} parent=46 // loop_footer_branch
                  %328 = sbr.rel target = $region49
                $region54: #{entry_stem_fwd.51} parent=46 // loop_exit
                  _
              $region47: #{entry_stem_fwd.51} parent=31 // pred_fallthru
                _
              // Predicated region
              $region55: #{entry_stem_fwd.51} parent=31 // pred_check
                _
              $region56: #{entry_stem_fwd.51} parent=31 // pred_check_branch
                %465 = sbr.rel target = $region58
              $region57: #{entry_stem_fwd.51} parent=31 // pred_region
                _
              $region58: #{entry_stem_fwd.51} parent=31 // pred_fallthru
                _
            $region32: #{entry_stem_fwd.51} parent=27 // pred_fallthru
              _
            // Predicated region
            $region33: #{entry_stem_fwd.51} parent=27 // pred_check
              _
            $region34: #{entry_stem_fwd.51} parent=27 // pred_check_branch
              %188 = sbr.rel target = $region36
            $region35: #{entry_stem_fwd.51} parent=27 // pred_region
              loop: start=0, step=1, limit=1
              $region37: #{entry_stem_fwd.51} parent=35 // loop_pre_header
                _
              $region38: #{entry_stem_fwd.51} parent=35 // loop_header
                %s191 = sphi 0, %s195
                %p192 = scmp.ge.s32.totalorder %s191, 1
                %s196 = sphi %s182, %s182
                %s197 = sphi %s176, %s176
              $region39: #{entry_stem_fwd.51} parent=35 // loop_header_branch
                %194 = sbr.rel (%p192) target = $region43
              $region40: #{entry_stem_fwd.51} parent=35 // loop_body
                %v198 = vld [vmem:[%s196] sm:$0xff]
                %199 = vst [vmem:[%s197] sm:$0xff] %v198
                %v200 = vld [vmem:[%s196 + $0x18] sm:$0xff]
                %201 = vst [vmem:[%s197 + $0x8] sm:$0xff] %v200
                %v202 = vld [vmem:[%s196 + $0x30] sm:$0xff]
                %203 = vst [vmem:[%s197 + $0x10] sm:$0xff] %v202
                %v204 = vld [vmem:[%s196 + $0x48] sm:$0xff]
                %205 = vst [vmem:[%s197 + $0x18] sm:$0xff] %v204
                %v206 = vld [vmem:[%s196 + $0x60] sm:$0xff]
                %207 = vst [vmem:[%s197 + $0x20] sm:$0xff] %v206
                %v208 = vld [vmem:[%s196 + $0x78] sm:$0xff]
                %209 = vst [vmem:[%s197 + $0x28] sm:$0xff] %v208
                %v210 = vld [vmem:[%s196 + $0x90] sm:$0xff]
                %211 = vst [vmem:[%s197 + $0x30] sm:$0xff] %v210
                %v212 = vld [vmem:[%s196 + $0xa8] sm:$0xff]
                %213 = vst [vmem:[%s197 + $0x38] sm:$0xff] %v212
                %v214 = vld [vmem:[%s196 + $0xc0] sm:$0xff]
                %215 = vst [vmem:[%s197 + $0x40] sm:$0xff] %v214
                %v216 = vld [vmem:[%s196 + $0xd8] sm:$0xff]
                %217 = vst [vmem:[%s197 + $0x48] sm:$0xff] %v216
                %v218 = vld [vmem:[%s196 + $0xf0] sm:$0xff]
                %219 = vst [vmem:[%s197 + $0x50] sm:$0xff] %v218
                %v220 = vld [vmem:[%s196 + $0x108] sm:$0xff]
                %221 = vst [vmem:[%s197 + $0x58] sm:$0xff] %v220
                %v222 = vld [vmem:[%s196 + $0x120] sm:$0xff]
                %223 = vst [vmem:[%s197 + $0x60] sm:$0xff] %v222
                %v224 = vld [vmem:[%s196 + $0x138] sm:$0xff]
                %225 = vst [vmem:[%s197 + $0x68] sm:$0xff] %v224
                %v226 = vld [vmem:[%s196 + $0x150] sm:$0xff]
                %227 = vst [vmem:[%s197 + $0x70] sm:$0xff] %v226
                %v228 = vld [vmem:[%s196 + $0x168] sm:$0xff]
                %229 = vst [vmem:[%s197 + $0x78] sm:$0xff] %v228
                %v230 = vld [vmem:[%s196 + $0x180] sm:$0xff]
                %231 = vst [vmem:[%s197 + $0x80] sm:$0xff] %v230
                %v232 = vld [vmem:[%s196 + $0x198] sm:$0xff]
                %233 = vst [vmem:[%s197 + $0x88] sm:$0xff] %v232
                %v234 = vld [vmem:[%s196 + $0x1b0] sm:$0xff]
                %235 = vst [vmem:[%s197 + $0x90] sm:$0xff] %v234
                %v236 = vld [vmem:[%s196 + $0x1c8] sm:$0xff]
                %237 = vst [vmem:[%s197 + $0x98] sm:$0xff] %v236
                %v238 = vld [vmem:[%s196 + $0x1e0] sm:$0xff]
                %239 = vst [vmem:[%s197 + $0xa0] sm:$0xff] %v238
                %v240 = vld [vmem:[%s196 + $0x1f8] sm:$0xff]
                %241 = vst [vmem:[%s197 + $0xa8] sm:$0xff] %v240
                %v242 = vld [vmem:[%s196 + $0x210] sm:$0xff]
                %243 = vst [vmem:[%s197 + $0xb0] sm:$0xff] %v242
                %v244 = vld [vmem:[%s196 + $0x228] sm:$0xff]
                %245 = vst [vmem:[%s197 + $0xb8] sm:$0xff] %v244
                %v246 = vld [vmem:[%s196 + $0x240] sm:$0xff]
                %247 = vst [vmem:[%s197 + $0xc0] sm:$0xff] %v246
                %v248 = vld [vmem:[%s196 + $0x258] sm:$0xff]
                %249 = vst [vmem:[%s197 + $0xc8] sm:$0xff] %v248
                %v250 = vld [vmem:[%s196 + $0x270] sm:$0xff]
                %251 = vst [vmem:[%s197 + $0xd0] sm:$0xff] %v250
                %v252 = vld [vmem:[%s196 + $0x288] sm:$0xff]
                %253 = vst [vmem:[%s197 + $0xd8] sm:$0xff] %v252
                %v254 = vld [vmem:[%s196 + $0x2a0] sm:$0xff]
                %255 = vst [vmem:[%s197 + $0xe0] sm:$0xff] %v254
                %v256 = vld [vmem:[%s196 + $0x2b8] sm:$0xff]
                %257 = vst [vmem:[%s197 + $0xe8] sm:$0xff] %v256
                %v258 = vld [vmem:[%s196 + $0x2d0] sm:$0xff]
                %259 = vst [vmem:[%s197 + $0xf0] sm:$0xff] %v258
                %v260 = vld [vmem:[%s196 + $0x2e8] sm:$0xff]
                %261 = vst [vmem:[%s197 + $0xf8] sm:$0xff] %v260
                %v262 = vld [vmem:[%s196 + $0x300] sm:$0xff]
                %263 = vst [vmem:[%s197 + $0x100] sm:$0xff] %v262
                %v264 = vld [vmem:[%s196 + $0x318] sm:$0xff]
                %265 = vst [vmem:[%s197 + $0x108] sm:$0xff] %v264
                %v266 = vld [vmem:[%s196 + $0x330] sm:$0xff]
                %267 = vst [vmem:[%s197 + $0x110] sm:$0xff] %v266
                %v268 = vld [vmem:[%s196 + $0x348] sm:$0xff]
                %269 = vst [vmem:[%s197 + $0x118] sm:$0xff] %v268
                %v270 = vld [vmem:[%s196 + $0x360] sm:$0xff]
                %271 = vst [vmem:[%s197 + $0x120] sm:$0xff] %v270
                %v272 = vld [vmem:[%s196 + $0x378] sm:$0xff]
                %273 = vst [vmem:[%s197 + $0x128] sm:$0xff] %v272
                %v274 = vld [vmem:[%s196 + $0x390] sm:$0xff]
                %275 = vst [vmem:[%s197 + $0x130] sm:$0xff] %v274
                %v276 = vld [vmem:[%s196 + $0x3a8] sm:$0xff]
                %277 = vst [vmem:[%s197 + $0x138] sm:$0xff] %v276
                %v278 = vld [vmem:[%s196 + $0x3c0] sm:$0xff]
                %279 = vst [vmem:[%s197 + $0x140] sm:$0xff] %v278
                %v280 = vld [vmem:[%s196 + $0x3d8] sm:$0xff]
                %281 = vst [vmem:[%s197 + $0x148] sm:$0xff] %v280
                %v282 = vld [vmem:[%s196 + $0x3f0] sm:$0xff]
                %283 = vst [vmem:[%s197 + $0x150] sm:$0xff] %v282
                %v284 = vld [vmem:[%s196 + $0x408] sm:$0xff]
                %285 = vst [vmem:[%s197 + $0x158] sm:$0xff] %v284
                %v286 = vld [vmem:[%s196 + $0x420] sm:$0xff]
                %287 = vst [vmem:[%s197 + $0x160] sm:$0xff] %v286
                %v288 = vld [vmem:[%s196 + $0x438] sm:$0xff]
                %289 = vst [vmem:[%s197 + $0x168] sm:$0xff] %v288
                %v290 = vld [vmem:[%s196 + $0x450] sm:$0xff]
                %291 = vst [vmem:[%s197 + $0x170] sm:$0xff] %v290
                %v292 = vld [vmem:[%s196 + $0x468] sm:$0xff]
                %293 = vst [vmem:[%s197 + $0x178] sm:$0xff] %v292
                %v294 = vld [vmem:[%s196 + $0x480] sm:$0xff]
                %295 = vst [vmem:[%s197 + $0x180] sm:$0xff] %v294
                %v296 = vld [vmem:[%s196 + $0x498] sm:$0xff]
                %297 = vst [vmem:[%s197 + $0x188] sm:$0xff] %v296
                %v298 = vld [vmem:[%s196 + $0x4b0] sm:$0xff]
                %299 = vst [vmem:[%s197 + $0x190] sm:$0xff] %v298
                %v300 = vld [vmem:[%s196 + $0x4c8] sm:$0xff]
                %301 = vst [vmem:[%s197 + $0x198] sm:$0xff] %v300
                %v302 = vld [vmem:[%s196 + $0x4e0] sm:$0xff]
                %303 = vst [vmem:[%s197 + $0x1a0] sm:$0xff] %v302
                %v304 = vld [vmem:[%s196 + $0x4f8] sm:$0xff]
                %305 = vst [vmem:[%s197 + $0x1a8] sm:$0xff] %v304
                %v306 = vld [vmem:[%s196 + $0x510] sm:$0xff]
                %307 = vst [vmem:[%s197 + $0x1b0] sm:$0xff] %v306
                %v308 = vld [vmem:[%s196 + $0x528] sm:$0xff]
                %309 = vst [vmem:[%s197 + $0x1b8] sm:$0xff] %v308
                %v310 = vld [vmem:[%s196 + $0x540] sm:$0xff]
                %311 = vst [vmem:[%s197 + $0x1c0] sm:$0xff] %v310
                %v312 = vld [vmem:[%s196 + $0x558] sm:$0xff]
                %313 = vst [vmem:[%s197 + $0x1c8] sm:$0xff] %v312
                %v314 = vld [vmem:[%s196 + $0x570] sm:$0xff]
                %315 = vst [vmem:[%s197 + $0x1d0] sm:$0xff] %v314
                %v316 = vld [vmem:[%s196 + $0x588] sm:$0xff]
                %317 = vst [vmem:[%s197 + $0x1d8] sm:$0xff] %v316
                %v318 = vld [vmem:[%s196 + $0x5a0] sm:$0xff]
                %319 = vst [vmem:[%s197 + $0x1e0] sm:$0xff] %v318
                %v320 = vld [vmem:[%s196 + $0x5b8] sm:$0xff]
                %321 = vst [vmem:[%s197 + $0x1e8] sm:$0xff] %v320
                %v322 = vld [vmem:[%s196 + $0x5d0] sm:$0xff]
                %323 = vst [vmem:[%s197 + $0x1f0] sm:$0xff] %v322
                %v324 = vld [vmem:[%s196 + $0x5e8] sm:$0xff]
                %325 = vst [vmem:[%s197 + $0x1f8] sm:$0xff] %v324
              $region41: #{entry_stem_fwd.51} parent=35 // loop_footer
                %s195 = sadd.s32 1, %s191
              $region42: #{entry_stem_fwd.51} parent=35 // loop_footer_branch
                %190 = sbr.rel target = $region38
              $region43: #{entry_stem_fwd.51} parent=35 // loop_exit
                _
            $region36: #{entry_stem_fwd.51} parent=27 // pred_fallthru
              _
          $region28: #{entry_stem_fwd.51} parent=23 // pred_fallthru
            _
          %466 = vnop
        $region24: #{entry_stem_fwd.51} parent=19 // pred_fallthru
          _
        // Predicated region
        $region59: #{entry_stem_fwd.51} parent=19 // pred_check
          %p467 = pneg %p104
        $region60: #{entry_stem_fwd.51} parent=19 // pred_check_branch
          %469 = sbr.rel (%p467) target = $region62
        $region61: #{entry_stem_fwd.51} parent=19 // pred_region
          %s470 = smul.u32 2, %s17
          %p471 = scmp.lt.s32.totalorder %s470, 5
          %s472 = scalar_select %p471, %s470, 5
          %s473 = scalar_lea.vmem %s2, %s472
          %s474 = smul.u32 2, %s17
        $region62: #{entry_stem_fwd.51} parent=19 // pred_fallthru
          _
      $region20: #{entry_stem_fwd.51} parent=5 // pred_fallthru
        _
      %p475 = scmp.le.s32.totalorder 1, %s9
      %p476 = scmp.lt.s32.totalorder %s9, 4
      %p477 = pnand %p475, %p476
      %p478 = pneg %p477
      // Predicated region
      $region63: #{entry_stem_fwd.51} parent=5 // pred_check
        _
      $region64: #{entry_stem_fwd.51} parent=5 // pred_check_branch
        %480 = sbr.rel (%p477) target = $region66
      $region65: #{entry_stem_fwd.51} parent=5 // pred_region
        %s481 = ssub.s32 %s9, 1
        %s482 = sand.u32 %s71, 1
        %s483 = sand.u32 %s71, 1
        %s484 = smul.addr %s483, 512
        %s485 = scalar_lea.vmem [#allocation3], %s484
        // Predicated region
        $region67: #{entry_stem_fwd.51} parent=65 // pred_check
          %p486 = pneg %p84
        $region68: #{entry_stem_fwd.51} parent=65 // pred_check_branch
          %488 = sbr.rel (%p486) target = $region70
        $region69: #{entry_stem_fwd.51} parent=65 // pred_region
          _
        $region70: #{entry_stem_fwd.51} parent=65 // pred_fallthru
          _
        %s489 = smul.u32 4, %s21
        %p490 = scmp.lt.s32.totalorder %s19, 0
        %s491 = scalar_select %p490, %s19, 0
        %p492 = scmp.lt.s32.totalorder %s489, 3
        %s493 = scalar_select %p492, %s489, 3
        %s494 = smul.addr %s491, 4
        %s495 = sadd.s32 %s493, %s494
        %s496 = smul.addr %s495, 4
        %s497 = scalar_lea.vmem %s0, %s496
        %p498 = pneg %p56
        %p499 = pneg %p53
        %s500 = sand.u32 %s71, 1
        %s501 = sand.u32 %s71, 1
        %s502 = smul.addr %s501, 512
        %s503 = scalar_lea.vmem [#allocation3], %s502
        %p504 = pneg %p84
        %p505 = pneg %p81
        %s506 = smul.u32 2, %s20
        %p507 = scmp.lt.s32.totalorder %s506, 5
        %s508 = scalar_select %p507, %s506, 5
        %s509 = scalar_lea.vmem %s2, %s508
        %p510 = pneg %p110
        %p511 = pneg %p107
        %p512 = pneg %p138
        %p513 = pneg %p135
        %s514 = smul.u32 2, %s20
        %p515 = scmp.lt.s32.totalorder %s19, 0
        %s516 = scalar_select %p515, %s19, 0
        %p517 = scmp.lt.s32.totalorder %s514, 5
        %s518 = scalar_select %p517, %s514, 5
        %s519 = smul.addr %s516, 6
        %s520 = sadd.s32 %s518, %s519
        %s521 = smul.addr %s520, 8
        %s522 = scalar_lea.vmem %s3, %s521
        %s523 = smul.u32 4, %s21
        %p524 = scmp.lt.s32.totalorder %s19, 0
        %s525 = scalar_select %p524, %s19, 0
        %p526 = scmp.lt.s32.totalorder %s523, 3
        %s527 = scalar_select %p526, %s523, 3
        %s528 = smul.addr %s525, 4
        %s529 = sadd.s32 %s527, %s528
        %s530 = smul.addr %s529, 4
        %s531 = scalar_lea.vmem %s0, %s530
        %s532 = smul.u32 4, %s21
        %s533 = smul.u32 64, %s21
        %s534 = smul.u32 2, %s20
        %s535 = smul.u32 2, %s20
        %p536 = scmp.lt.s32.totalorder %s535, 5
        %s537 = scalar_select %p536, %s535, 5
        %s538 = scalar_lea.vmem %s2, %s537
        %s539 = smul.u32 2, %s20
        %s540 = smul.u32 2, %s20
        %p541 = scmp.lt.s32.totalorder %s19, 0
        %s542 = scalar_select %p541, %s19, 0
        %p543 = scmp.lt.s32.totalorder %s540, 5
        %s544 = scalar_select %p543, %s540, 5
        %s545 = smul.addr %s542, 6
        %s546 = sadd.s32 %s544, %s545
        %s547 = smul.addr %s546, 8
        %s548 = scalar_lea.vmem %s3, %s547
        %s549 = smul.u32 2, %s20
        %p550 = scmp.eq.s32.totalorder %s21, 0
        // Predicated region
        $region71: #{entry_stem_fwd.51} parent=65 // pred_check
          %p551 = pneg %p550
        $region72: #{entry_stem_fwd.51} parent=65 // pred_check_branch
          %553 = sbr.rel (%p551) target = $region74
        $region73: #{entry_stem_fwd.51} parent=65 // pred_region
          %554 = vst [vmem:[#allocation2] sm:$0xff] 0.0
          %555 = vst [vmem:[#allocation2 + $0x8] sm:$0xff] 0.0
        $region74: #{entry_stem_fwd.51} parent=65 // pred_fallthru
          _
        %v556 = vld [vmem:[#allocation2] sm:$0xff]
        %v557 = vld [vmem:[#allocation2 + $0x8] sm:$0xff]
        %v558 = vld [vmem:[%s531] sm:$0xff]
        %v559 = vld [vmem:[%s531 + $0x8] sm:$0xff]
        %v560 = vld [vmem:[%s485] sm:$0xff]
        %v561 = vld [vmem:[%s485 + $0x8] sm:$0xff]
        %v562 = vld [vmem:[%s485 + $0x10] sm:$0xff]
        %v563 = vld [vmem:[%s485 + $0x18] sm:$0xff]
        %v564 = vld [vmem:[%s485 + $0x20] sm:$0xff]
        %v565 = vld [vmem:[%s485 + $0x28] sm:$0xff]
        %v566 = vld [vmem:[%s485 + $0x30] sm:$0xff]
        %v567 = vld [vmem:[%s485 + $0x38] sm:$0xff]
        %v568 = vld [vmem:[%s485 + $0x40] sm:$0xff]
        %v569 = vld [vmem:[%s485 + $0x48] sm:$0xff]
        %v570 = vld [vmem:[%s485 + $0x50] sm:$0xff]
        %v571 = vld [vmem:[%s485 + $0x58] sm:$0xff]
        %v572 = vld [vmem:[%s485 + $0x60] sm:$0xff]
        %v573 = vld [vmem:[%s485 + $0x68] sm:$0xff]
        %v574 = vld [vmem:[%s485 + $0x70] sm:$0xff]
        %v575 = vld [vmem:[%s485 + $0x78] sm:$0xff]
        %v576 = vld [vmem:[%s485 + $0x80] sm:$0xff]
        %v577 = vld [vmem:[%s485 + $0x88] sm:$0xff]
        %v578 = vld [vmem:[%s485 + $0x90] sm:$0xff]
        %v579 = vld [vmem:[%s485 + $0x98] sm:$0xff]
        %v580 = vld [vmem:[%s485 + $0xa0] sm:$0xff]
        %v581 = vld [vmem:[%s485 + $0xa8] sm:$0xff]
        %v582 = vld [vmem:[%s485 + $0xb0] sm:$0xff]
        %v583 = vld [vmem:[%s485 + $0xb8] sm:$0xff]
        %v584 = vld [vmem:[%s485 + $0xc0] sm:$0xff]
        %v585 = vld [vmem:[%s485 + $0xc8] sm:$0xff]
        %v586 = vld [vmem:[%s485 + $0xd0] sm:$0xff]
        %v587 = vld [vmem:[%s485 + $0xd8] sm:$0xff]
        %v588 = vld [vmem:[%s485 + $0xe0] sm:$0xff]
        %v589 = vld [vmem:[%s485 + $0xe8] sm:$0xff]
        %v590 = vld [vmem:[%s485 + $0xf0] sm:$0xff]
        %v591 = vld [vmem:[%s485 + $0xf8] sm:$0xff]
        %v592 = vld [vmem:[%s485 + $0x100] sm:$0xff]
        %v593 = vld [vmem:[%s485 + $0x108] sm:$0xff]
        %v594 = vld [vmem:[%s485 + $0x110] sm:$0xff]
        %v595 = vld [vmem:[%s485 + $0x118] sm:$0xff]
        %v596 = vld [vmem:[%s485 + $0x120] sm:$0xff]
        %v597 = vld [vmem:[%s485 + $0x128] sm:$0xff]
        %v598 = vld [vmem:[%s485 + $0x130] sm:$0xff]
        %v599 = vld [vmem:[%s485 + $0x138] sm:$0xff]
        %v600 = vld [vmem:[%s485 + $0x140] sm:$0xff]
        %v601 = vld [vmem:[%s485 + $0x148] sm:$0xff]
        %v602 = vld [vmem:[%s485 + $0x150] sm:$0xff]
        %v603 = vld [vmem:[%s485 + $0x158] sm:$0xff]
        %v604 = vld [vmem:[%s485 + $0x160] sm:$0xff]
        %v605 = vld [vmem:[%s485 + $0x168] sm:$0xff]
        %v606 = vld [vmem:[%s485 + $0x170] sm:$0xff]
        %v607 = vld [vmem:[%s485 + $0x178] sm:$0xff]
        %v608 = vld [vmem:[%s485 + $0x180] sm:$0xff]
        %v609 = vld [vmem:[%s485 + $0x188] sm:$0xff]
        %v610 = vld [vmem:[%s485 + $0x190] sm:$0xff]
        %v611 = vld [vmem:[%s485 + $0x198] sm:$0xff]
        %v612 = vld [vmem:[%s485 + $0x1a0] sm:$0xff]
        %v613 = vld [vmem:[%s485 + $0x1a8] sm:$0xff]
        %v614 = vld [vmem:[%s485 + $0x1b0] sm:$0xff]
        %v615 = vld [vmem:[%s485 + $0x1b8] sm:$0xff]
        %v616 = vld [vmem:[%s485 + $0x1c0] sm:$0xff]
        %v617 = vld [vmem:[%s485 + $0x1c8] sm:$0xff]
        %v618 = vld [vmem:[%s485 + $0x1d0] sm:$0xff]
        %v619 = vld [vmem:[%s485 + $0x1d8] sm:$0xff]
        %v620 = vld [vmem:[%s485 + $0x1e0] sm:$0xff]
        %v621 = vld [vmem:[%s485 + $0x1e8] sm:$0xff]
        %v622 = vld [vmem:[%s485 + $0x1f0] sm:$0xff]
        %v623 = vld [vmem:[%s485 + $0x1f8] sm:$0xff]
        %v626 = vunpack.c.l.b16 %v558
        %v627 = vunpack.c.h.b16 %v558
        %v628 = vunpack.c.l.b16 %v559
        %v629 = vunpack.c.h.b16 %v559
        %v630 = vpack.c.b16 %v626, %v626
        %v631 = vpack.c.b16 %v627, %v627
        %v632 = vpack.c.b16 %v628, %v628
        %v633 = vpack.c.b16 %v629, %v629
        %v702 = vunpack.c.l.b16 %v560
        %v703 = vunpack.c.h.b16 %v560
        %v704 = vunpack.c.l.b16 %v561
        %v705 = vunpack.c.h.b16 %v561
        %v706 = vunpack.c.l.b16 %v562
        %v707 = vunpack.c.h.b16 %v562
        %v708 = vunpack.c.l.b16 %v563
        %v709 = vunpack.c.h.b16 %v563
        %v710 = vunpack.c.l.b16 %v564
        %v711 = vunpack.c.h.b16 %v564
        %v712 = vunpack.c.l.b16 %v565
        %v713 = vunpack.c.h.b16 %v565
        %v714 = vunpack.c.l.b16 %v566
        %v715 = vunpack.c.h.b16 %v566
        %v716 = vunpack.c.l.b16 %v567
        %v717 = vunpack.c.h.b16 %v567
        %v718 = vunpack.c.l.b16 %v568
        %v719 = vunpack.c.h.b16 %v568
        %v720 = vunpack.c.l.b16 %v569
        %v721 = vunpack.c.h.b16 %v569
        %v722 = vunpack.c.l.b16 %v570
        %v723 = vunpack.c.h.b16 %v570
        %v724 = vunpack.c.l.b16 %v571
        %v725 = vunpack.c.h.b16 %v571
        %v726 = vunpack.c.l.b16 %v572
        %v727 = vunpack.c.h.b16 %v572
        %v728 = vunpack.c.l.b16 %v573
        %v729 = vunpack.c.h.b16 %v573
        %v730 = vunpack.c.l.b16 %v574
        %v731 = vunpack.c.h.b16 %v574
        %v732 = vunpack.c.l.b16 %v575
        %v733 = vunpack.c.h.b16 %v575
        %v734 = vunpack.c.l.b16 %v576
        %v735 = vunpack.c.h.b16 %v576
        %v736 = vunpack.c.l.b16 %v577
        %v737 = vunpack.c.h.b16 %v577
        %v738 = vunpack.c.l.b16 %v578
        %v739 = vunpack.c.h.b16 %v578
        %v740 = vunpack.c.l.b16 %v579
        %v741 = vunpack.c.h.b16 %v579
        %v742 = vunpack.c.l.b16 %v580
        %v743 = vunpack.c.h.b16 %v580
        %v744 = vunpack.c.l.b16 %v581
        %v745 = vunpack.c.h.b16 %v581
        %v746 = vunpack.c.l.b16 %v582
        %v747 = vunpack.c.h.b16 %v582
        %v748 = vunpack.c.l.b16 %v583
        %v749 = vunpack.c.h.b16 %v583
        %v750 = vunpack.c.l.b16 %v584
        %v751 = vunpack.c.h.b16 %v584
        %v752 = vunpack.c.l.b16 %v585
        %v753 = vunpack.c.h.b16 %v585
        %v754 = vunpack.c.l.b16 %v586
        %v755 = vunpack.c.h.b16 %v586
        %v756 = vunpack.c.l.b16 %v587
        %v757 = vunpack.c.h.b16 %v587
        %v758 = vunpack.c.l.b16 %v588
        %v759 = vunpack.c.h.b16 %v588
        %v760 = vunpack.c.l.b16 %v589
        %v761 = vunpack.c.h.b16 %v589
        %v762 = vunpack.c.l.b16 %v590
        %v763 = vunpack.c.h.b16 %v590
        %v764 = vunpack.c.l.b16 %v591
        %v765 = vunpack.c.h.b16 %v591
        %v766 = vunpack.c.l.b16 %v592
        %v767 = vunpack.c.h.b16 %v592
        %v768 = vunpack.c.l.b16 %v593
        %v769 = vunpack.c.h.b16 %v593
        %v770 = vunpack.c.l.b16 %v594
        %v771 = vunpack.c.h.b16 %v594
        %v772 = vunpack.c.l.b16 %v595
        %v773 = vunpack.c.h.b16 %v595
        %v774 = vunpack.c.l.b16 %v596
        %v775 = vunpack.c.h.b16 %v596
        %v776 = vunpack.c.l.b16 %v597
        %v777 = vunpack.c.h.b16 %v597
        %v778 = vunpack.c.l.b16 %v598
        %v779 = vunpack.c.h.b16 %v598
        %v780 = vunpack.c.l.b16 %v599
        %v781 = vunpack.c.h.b16 %v599
        %v782 = vunpack.c.l.b16 %v600
        %v783 = vunpack.c.h.b16 %v600
        %v784 = vunpack.c.l.b16 %v601
        %v785 = vunpack.c.h.b16 %v601
        %v786 = vunpack.c.l.b16 %v602
        %v787 = vunpack.c.h.b16 %v602
        %v788 = vunpack.c.l.b16 %v603
        %v789 = vunpack.c.h.b16 %v603
        %v790 = vunpack.c.l.b16 %v604
        %v791 = vunpack.c.h.b16 %v604
        %v792 = vunpack.c.l.b16 %v605
        %v793 = vunpack.c.h.b16 %v605
        %v794 = vunpack.c.l.b16 %v606
        %v795 = vunpack.c.h.b16 %v606
        %v796 = vunpack.c.l.b16 %v607
        %v797 = vunpack.c.h.b16 %v607
        %v798 = vunpack.c.l.b16 %v608
        %v799 = vunpack.c.h.b16 %v608
        %v800 = vunpack.c.l.b16 %v609
        %v801 = vunpack.c.h.b16 %v609
        %v802 = vunpack.c.l.b16 %v610
        %v803 = vunpack.c.h.b16 %v610
        %v804 = vunpack.c.l.b16 %v611
        %v805 = vunpack.c.h.b16 %v611
        %v806 = vunpack.c.l.b16 %v612
        %v807 = vunpack.c.h.b16 %v612
        %v808 = vunpack.c.l.b16 %v613
        %v809 = vunpack.c.h.b16 %v613
        %v810 = vunpack.c.l.b16 %v614
        %v811 = vunpack.c.h.b16 %v614
        %v812 = vunpack.c.l.b16 %v615
        %v813 = vunpack.c.h.b16 %v615
        %v814 = vunpack.c.l.b16 %v616
        %v815 = vunpack.c.h.b16 %v616
        %v816 = vunpack.c.l.b16 %v617
        %v817 = vunpack.c.h.b16 %v617
        %v818 = vunpack.c.l.b16 %v618
        %v819 = vunpack.c.h.b16 %v618
        %v820 = vunpack.c.l.b16 %v619
        %v821 = vunpack.c.h.b16 %v619
        %v822 = vunpack.c.l.b16 %v620
        %v823 = vunpack.c.h.b16 %v620
        %v824 = vunpack.c.l.b16 %v621
        %v825 = vunpack.c.h.b16 %v621
        %v826 = vunpack.c.l.b16 %v622
        %v827 = vunpack.c.h.b16 %v622
        %v828 = vunpack.c.l.b16 %v623
        %v829 = vunpack.c.h.b16 %v623
        %v830 = vpack.c.b16 %v704, %v702
        %v831 = vpack.c.b16 %v705, %v703
        %v832 = vpack.c.b16 %v708, %v706
        %v833 = vpack.c.b16 %v709, %v707
        %v834 = vpack.c.b16 %v712, %v710
        %v835 = vpack.c.b16 %v713, %v711
        %v836 = vpack.c.b16 %v716, %v714
        %v837 = vpack.c.b16 %v717, %v715
        %v838 = vpack.c.b16 %v720, %v718
        %v839 = vpack.c.b16 %v721, %v719
        %v840 = vpack.c.b16 %v724, %v722
        %v841 = vpack.c.b16 %v725, %v723
        %v842 = vpack.c.b16 %v728, %v726
        %v843 = vpack.c.b16 %v729, %v727
        %v844 = vpack.c.b16 %v732, %v730
        %v845 = vpack.c.b16 %v733, %v731
        %v846 = vpack.c.b16 %v736, %v734
        %v847 = vpack.c.b16 %v737, %v735
        %v848 = vpack.c.b16 %v740, %v738
        %v849 = vpack.c.b16 %v741, %v739
        %v850 = vpack.c.b16 %v744, %v742
        %v851 = vpack.c.b16 %v745, %v743
        %v852 = vpack.c.b16 %v748, %v746
        %v853 = vpack.c.b16 %v749, %v747
        %v854 = vpack.c.b16 %v752, %v750
        %v855 = vpack.c.b16 %v753, %v751
        %v856 = vpack.c.b16 %v756, %v754
        %v857 = vpack.c.b16 %v757, %v755
        %v858 = vpack.c.b16 %v760, %v758
        %v859 = vpack.c.b16 %v761, %v759
        %v860 = vpack.c.b16 %v764, %v762
        %v861 = vpack.c.b16 %v765, %v763
        %v862 = vpack.c.b16 %v768, %v766
        %v863 = vpack.c.b16 %v769, %v767
        %v864 = vpack.c.b16 %v772, %v770
        %v865 = vpack.c.b16 %v773, %v771
        %v866 = vpack.c.b16 %v776, %v774
        %v867 = vpack.c.b16 %v777, %v775
        %v868 = vpack.c.b16 %v780, %v778
        %v869 = vpack.c.b16 %v781, %v779
        %v870 = vpack.c.b16 %v784, %v782
        %v871 = vpack.c.b16 %v785, %v783
        %v872 = vpack.c.b16 %v788, %v786
        %v873 = vpack.c.b16 %v789, %v787
        %v874 = vpack.c.b16 %v792, %v790
        %v875 = vpack.c.b16 %v793, %v791
        %v876 = vpack.c.b16 %v796, %v794
        %v877 = vpack.c.b16 %v797, %v795
        %v878 = vpack.c.b16 %v800, %v798
        %v879 = vpack.c.b16 %v801, %v799
        %v880 = vpack.c.b16 %v804, %v802
        %v881 = vpack.c.b16 %v805, %v803
        %v882 = vpack.c.b16 %v808, %v806
        %v883 = vpack.c.b16 %v809, %v807
        %v884 = vpack.c.b16 %v812, %v810
        %v885 = vpack.c.b16 %v813, %v811
        %v886 = vpack.c.b16 %v816, %v814
        %v887 = vpack.c.b16 %v817, %v815
        %v888 = vpack.c.b16 %v820, %v818
        %v889 = vpack.c.b16 %v821, %v819
        %v890 = vpack.c.b16 %v824, %v822
        %v891 = vpack.c.b16 %v825, %v823
        %v892 = vpack.c.b16 %v828, %v826
        %v893 = vpack.c.b16 %v829, %v827
        %958 = vmatprep.subr.bf16.mxu0 %v831
        %959 = vmatpush1.bf16.msra.mxu0 %v830
        %960 = vmatprep.subr.bf16.mxu0 %v833
        %961 = vmatpush1.bf16.msra.mxu0 %v832
        %962 = vmatprep.subr.bf16.mxu0 %v835
        %963 = vmatpush1.bf16.msra.mxu0 %v834
        %964 = vmatprep.subr.bf16.mxu0 %v837
        %965 = vmatpush1.bf16.msra.mxu0 %v836
        %966 = vmatprep.subr.bf16.mxu0 %v839
        %967 = vmatpush1.bf16.msra.mxu0 %v838
        %968 = vmatprep.subr.bf16.mxu0 %v841
        %969 = vmatpush1.bf16.msra.mxu0 %v840
        %970 = vmatprep.subr.bf16.mxu0 %v843
        %971 = vmatpush1.bf16.msra.mxu0 %v842
        %972 = vmatprep.subr.bf16.mxu0 %v845
        %973 = vmatpush1.bf16.msra.mxu0 %v844
        %974 = vmatprep.subr.bf16.mxu0 %v847
        %975 = vmatpush1.bf16.msra.mxu0 %v846
        %976 = vmatprep.subr.bf16.mxu0 %v849
        %977 = vmatpush1.bf16.msra.mxu0 %v848
        %978 = vmatprep.subr.bf16.mxu0 %v851
        %979 = vmatpush1.bf16.msra.mxu0 %v850
        %980 = vmatprep.subr.bf16.mxu0 %v853
        %981 = vmatpush1.bf16.msra.mxu0 %v852
        %982 = vmatprep.subr.bf16.mxu0 %v855
        %983 = vmatpush1.bf16.msra.mxu0 %v854
        %984 = vmatprep.subr.bf16.mxu0 %v857
        %985 = vmatpush1.bf16.msra.mxu0 %v856
        %986 = vmatprep.subr.bf16.mxu0 %v859
        %987 = vmatpush1.bf16.msra.mxu0 %v858
        %988 = vmatprep.subr.bf16.mxu0 %v861
        %989 = vmatpush1.bf16.msra.mxu0 %v860
        %990 = vmatprep.mubr.bf16.mxu0 %v631
        %991 = vmatmul.mubr.bf16.gmra.mrb[0].mxu0 %v630
        %v992 = vpop.f32.mrb[0].mxu0
        %v993 = vadd.f32 0.0, %v992
        %v994 = vpop.f32.mrb[0].mxu0
        %v995 = vadd.f32 0.0, %v994
        %v996 = vpop.f32.mrb[0].mxu0
        %v997 = vpop.f32.mrb[0].mxu0
        %998 = vdwg.mxu0
        %999 = vmatprep.subr.bf16.mxu0 %v863
        %1000 = vmatpush1.bf16.msra.mxu0 %v862
        %1001 = vmatprep.subr.bf16.mxu0 %v865
        %1002 = vmatpush1.bf16.msra.mxu0 %v864
        %1003 = vmatprep.subr.bf16.mxu0 %v867
        %1004 = vmatpush1.bf16.msra.mxu0 %v866
        %1005 = vmatprep.subr.bf16.mxu0 %v869
        %1006 = vmatpush1.bf16.msra.mxu0 %v868
        %1007 = vmatprep.subr.bf16.mxu0 %v871
        %1008 = vmatpush1.bf16.msra.mxu0 %v870
        %1009 = vmatprep.subr.bf16.mxu0 %v873
        %1010 = vmatpush1.bf16.msra.mxu0 %v872
        %1011 = vmatprep.subr.bf16.mxu0 %v875
        %1012 = vmatpush1.bf16.msra.mxu0 %v874
        %1013 = vmatprep.subr.bf16.mxu0 %v877
        %1014 = vmatpush1.bf16.msra.mxu0 %v876
        %1015 = vmatprep.subr.bf16.mxu0 %v879
        %1016 = vmatpush1.bf16.msra.mxu0 %v878
        %1017 = vmatprep.subr.bf16.mxu0 %v881
        %1018 = vmatpush1.bf16.msra.mxu0 %v880
        %1019 = vmatprep.subr.bf16.mxu0 %v883
        %1020 = vmatpush1.bf16.msra.mxu0 %v882
        %1021 = vmatprep.subr.bf16.mxu0 %v885
        %1022 = vmatpush1.bf16.msra.mxu0 %v884
        %1023 = vmatprep.subr.bf16.mxu0 %v887
        %1024 = vmatpush1.bf16.msra.mxu0 %v886
        %1025 = vmatprep.subr.bf16.mxu0 %v889
        %1026 = vmatpush1.bf16.msra.mxu0 %v888
        %1027 = vmatprep.subr.bf16.mxu0 %v891
        %1028 = vmatpush1.bf16.msra.mxu0 %v890
        %1029 = vmatprep.subr.bf16.mxu0 %v893
        %1030 = vmatpush1.bf16.msra.mxu0 %v892
        %1031 = vmatprep.mubr.bf16.mxu0 %v633
        %1032 = vmatmul.mubr.bf16.gmra.mrb[0].mxu0 %v632
        %v1033 = vpop.f32.mrb[0].mxu0
        %v1034 = vadd.f32 %v993, %v1033
        %v1035 = vpop.f32.mrb[0].mxu0
        %v1036 = vadd.f32 %v995, %v1035
        %v1037 = vpop.f32.mrb[0].mxu0
        %v1038 = vpop.f32.mrb[0].mxu0
        %1039 = vdwg.mxu0
        %v1040 = vadd.f32 %v556, %v1034
        %v1041 = vadd.f32 %v557, %v1036
        %1042 = vst [vmem:[#allocation2] sm:$0xff] %v1040
        %1043 = vst [vmem:[#allocation2 + $0x8] sm:$0xff] %v1041
        // Predicated region
        $region75: #{entry_stem_fwd.51} parent=65 // pred_check
          %p1044 = pneg %p550
        $region76: #{entry_stem_fwd.51} parent=65 // pred_check_branch
          %1046 = sbr.rel (%p1044) target = $region78
        $region77: #{entry_stem_fwd.51} parent=65 // pred_region
          %v1047 = vld [vmem:[#allocation2] sm:$0xff]
          %v1048 = vld [vmem:[#allocation2 + $0x8] sm:$0xff]
          %v1049 = vld [vmem:[%s538] sm:$0x3]
          %v1051 = vlaneseq
          %v1052 = vshrl.u32 %v1051, 7
          %v1053 = vsub.s32 0, %v1052
          %v1054 = vrot.slane %v1049, %v1053
          %v1055 = vlaneseq
          %v1056 = vshrl.u32 %v1055, 7
          %v1057 = vsub.s32 1, %v1056
          %v1058 = vrot.slane %v1049, %v1057
          %v1061 = vadd.f32 %v1047, %v1054
          %v1062 = vadd.f32 %v1048, %v1058
          %1063 = vst [vmem:[%s548] sm:$0xff] %v1061
          %1064 = vst [vmem:[%s548 + $0x8] sm:$0xff] %v1062
        $region78: #{entry_stem_fwd.51} parent=65 // pred_fallthru
          _
        %s1065 = smul.u32 2, %s20
        %p1066 = scmp.lt.s32.totalorder %s19, 0
        %s1067 = scalar_select %p1066, %s19, 0
        %p1068 = scmp.lt.s32.totalorder %s1065, 5
        %s1069 = scalar_select %p1068, %s1065, 5
        %s1070 = smul.addr %s1067, 6
        %s1071 = sadd.s32 %s1069, %s1070
        %s1072 = smul.addr %s1071, 8
        %s1073 = scalar_lea.vmem %s3, %s1072
        // Predicated region
        $region79: #{entry_stem_fwd.51} parent=65 // pred_check
          %p1074 = pneg %p135
        $region80: #{entry_stem_fwd.51} parent=65 // pred_check_branch
          %1076 = sbr.rel (%p1074) target = $region82
        $region81: #{entry_stem_fwd.51} parent=65 // pred_region
          %s1077 = smul.u32 2, %s20
        $region82: #{entry_stem_fwd.51} parent=65 // pred_fallthru
          _
      $region66: #{entry_stem_fwd.51} parent=5 // pred_fallthru
        _
      %p1078 = scmp.le.s32.totalorder 2, %s9
      // Predicated region
      $region83: #{entry_stem_fwd.51} parent=5 // pred_check
        %p1079 = pneg %p1078
      $region84: #{entry_stem_fwd.51} parent=5 // pred_check_branch
        %1081 = sbr.rel (%p1079) target = $region86
      $region85: #{entry_stem_fwd.51} parent=5 // pred_region
        %s1082 = ssub.s32 %s9, 2
        // Predicated region
        $region87: #{entry_stem_fwd.51} parent=85 // pred_check
          %p1083 = pneg %p141
        $region88: #{entry_stem_fwd.51} parent=85 // pred_check_branch
          %1085 = sbr.rel (%p1083) target = $region90
        $region89: #{entry_stem_fwd.51} parent=85 // pred_region
          %s1086 = smul.u32 2, %s23
          %p1087 = scmp.lt.s32.totalorder %s22, 0
          %s1088 = scalar_select %p1087, %s22, 0
          %p1089 = scmp.lt.s32.totalorder %s1086, 5
          %s1090 = scalar_select %p1089, %s1086, 5
          %s1091 = smul.addr %s1088, 6
          %s1092 = sadd.s32 %s1090, %s1091
          %s1093 = smul.addr %s1092, 8
          %s1094 = scalar_lea.vmem %s3, %s1093
        $region90: #{entry_stem_fwd.51} parent=85 // pred_fallthru
          _
      $region86: #{entry_stem_fwd.51} parent=5 // pred_fallthru
        _
    $region6: #{entry_stem_fwd.51} parent=1 // loop_footer
      %s13 = sadd.s32 1, %s9
    $region7: #{entry_stem_fwd.51} parent=1 // loop_footer_branch
      %8 = sbr.rel target = $region3
    $region8: #{entry_stem_fwd.51} parent=1 // loop_exit
      _

// kernel: entry_stem_fwd.52
$region0: #{entry_stem_fwd.52}
  #allocation0 [shape = 'u32[]', space=smem, size = 0x4, offset = 0x4, fixed_abs, tag = 'smem constant byte address 0x4 - core index']
  #allocation1 [shape = 'u32[144,128]{1,0:T(1,128)}', space=vmem, size = 0x12000, scoped, tag = 'internal scratch']
  #allocation2 [shape = 'f32[8,256]{1,0:T(8,128)}', space=vmem, size = 0x2000, scoped, tag = 'scratch operand']
  %s0 = inlined_call_operand.vmem [shape: bf16[8,2304], index: 0, kind: input, shape index: {}]
  %s1 = inlined_call_operand.vmem [shape: bf16[2304,768], index: 1, kind: input, shape index: {}]
  %s2 = inlined_call_operand.vmem [shape: f32[1,768], index: 2, kind: input, shape index: {}]
  %s3 = inlined_call_operand.vmem [shape: f32[8,768], index: 3, kind: output, shape index: {}]
  %s4 = sld [smem:[#allocation0]]
  $region91: #{entry_stem_fwd.52} parent=0
    _
  %s6 = ssub.s32 1, %s4
  %s7 = scalar_select 0, %s6, %s4
  $region1: #{entry_stem_fwd.52} parent=0
    #allocation3 [shape = 'u8[393216]{0}', space=vmem, size = 0x60000, scoped, tag = 'input window, operand 1']
    loop: start=0, step=1, limit=20
    $region2: #{entry_stem_fwd.52} parent=1 // loop_pre_header
      _
    $region3: #{entry_stem_fwd.52} parent=1 // loop_header
      %s9 = sphi 0, %s13
      %p10 = scmp.ge.s32.totalorder %s9, 20
      %s16 = sphi 0, %s35
      %s17 = sphi 0, %s31
      %s18 = sphi 0, %s27
      %s19 = sphi 0, %s16
      %s20 = sphi 0, %s17
      %s21 = sphi 0, %s18
      %s22 = sphi 0, %s19
      %s23 = sphi 0, %s20
      %s24 = sphi 0, %s21
      %s40 = sphi 0, %s42
      %s43 = sphi 0, %s40
      %s44 = sphi 0, %s43
      %s60 = sphi 0, %s44
      %s68 = sphi 0, %s70
      %s71 = sphi 0, %s68
      %s72 = sphi 0, %s71
      %s88 = sphi 0, %s72
      %s94 = sphi 0, %s96
      %s97 = sphi 0, %s94
      %s98 = sphi 0, %s97
      %s114 = sphi 0, %s98
      %s122 = sphi 0, %s124
      %s125 = sphi 0, %s122
      %s126 = sphi 0, %s125
      %s142 = sphi 0, %s126
    $region4: #{entry_stem_fwd.52} parent=1 // loop_header_branch
      %12 = sbr.rel (%p10) target = $region8
    $region5: #{entry_stem_fwd.52} parent=1 // loop_body
      %s14 = ssub.s32 %s9, 1
      %s15 = ssub.s32 %s9, 2
      %s25 = sadd.s32 1, %s18
      %p26 = scmp.ge.s32.totalorder %s25, 6
      %s27 = scalar_select %p26, 0, %s25
      %s28 = sadd.s32 1, %s17
      %s29 = scalar_select %p26, %s28, %s17
      %p30 = scmp.ge.s32.totalorder %s29, 3
      %s31 = scalar_select %p30, 0, %s29
      %s32 = sadd.s32 1, %s16
      %s33 = scalar_select %p30, %s32, %s16
      %p34 = scmp.ge.s32.totalorder %s33, 1
      %s35 = scalar_select %p34, 0, %s33
      %s36 = ssub.s32 %s16, %s35
      %s37 = ssub.s32 %s18, %s27
      %s38 = sor.u32 %s36, %s37
      %p39 = scmp.eq.s32.totalorder %s38, 0
      %s41 = sadd.s32 %s40, 1
      %s42 = scalar_select %p39, %s40, %s41
      %p45 = pneg %p39
      %p46 = scmp.eq.s32.totalorder %s9, 17
      %p47 = por %p45, %p46
      %p48 = scmp.ne.s32.totalorder %s40, %s43
      %p49 = scmp.eq.s32.totalorder %s9, 0
      %p50 = por %p48, %p49
      %p51 = scmp.ne.s32.totalorder %s40, %s43
      %p52 = scmp.eq.s32.totalorder %s14, 17
      %p53 = por %p51, %p52
      %p54 = scmp.ne.s32.totalorder %s43, %s44
      %p55 = scmp.eq.s32.totalorder %s14, 0
      %p56 = por %p54, %p55
      %p57 = scmp.ne.s32.totalorder %s43, %s44
      %p58 = scmp.eq.s32.totalorder %s15, 17
      %p59 = por %p57, %p58
      %p61 = scmp.ne.s32.totalorder %s44, %s60
      %p62 = scmp.eq.s32.totalorder %s15, 0
      %p63 = por %p61, %p62
      %s64 = ssub.s32 %s18, %s27
      %s65 = ssub.s32 %s17, %s31
      %s66 = sor.u32 %s64, %s65
      %p67 = scmp.eq.s32.totalorder %s66, 0
      %s69 = sadd.s32 %s68, 1
      %s70 = scalar_select %p67, %s68, %s69
      %p73 = pneg %p67
      %p74 = scmp.eq.s32.totalorder %s9, 17
      %p75 = por %p73, %p74
      %p76 = scmp.ne.s32.totalorder %s68, %s71
      %p77 = scmp.eq.s32.totalorder %s9, 0
      %p78 = por %p76, %p77
      %p79 = scmp.ne.s32.totalorder %s68, %s71
      %p80 = scmp.eq.s32.totalorder %s14, 17
      %p81 = por %p79, %p80
      %p82 = scmp.ne.s32.totalorder %s71, %s72
      %p83 = scmp.eq.s32.totalorder %s14, 0
      %p84 = por %p82, %p83
      %p85 = scmp.ne.s32.totalorder %s71, %s72
      %p86 = scmp.eq.s32.totalorder %s15, 17
      %p87 = por %p85, %p86
      %p89 = scmp.ne.s32.totalorder %s72, %s88
      %p90 = scmp.eq.s32.totalorder %s15, 0
      %p91 = por %p89, %p90
      %s92 = ssub.s32 %s17, %s31
      %p93 = scmp.eq.s32.totalorder %s92, 0
      %s95 = sadd.s32 %s94, 1
      %s96 = scalar_select %p93, %s94, %s95
      %p99 = pneg %p93
      %p100 = scmp.eq.s32.totalorder %s9, 17
      %p101 = por %p99, %p100
      %p102 = scmp.ne.s32.totalorder %s94, %s97
      %p103 = scmp.eq.s32.totalorder %s9, 0
      %p104 = por %p102, %p103
      %p105 = scmp.ne.s32.totalorder %s94, %s97
      %p106 = scmp.eq.s32.totalorder %s14, 17
      %p107 = por %p105, %p106
      %p108 = scmp.ne.s32.totalorder %s97, %s98
      %p109 = scmp.eq.s32.totalorder %s14, 0
      %p110 = por %p108, %p109
      %p111 = scmp.ne.s32.totalorder %s97, %s98
      %p112 = scmp.eq.s32.totalorder %s15, 17
      %p113 = por %p111, %p112
      %p115 = scmp.ne.s32.totalorder %s98, %s114
      %p116 = scmp.eq.s32.totalorder %s15, 0
      %p117 = por %p115, %p116
      %s118 = ssub.s32 %s16, %s35
      %s119 = ssub.s32 %s17, %s31
      %s120 = sor.u32 %s118, %s119
      %p121 = scmp.eq.s32.totalorder %s120, 0
      %s123 = sadd.s32 %s122, 1
      %s124 = scalar_select %p121, %s122, %s123
      %p127 = pneg %p121
      %p128 = scmp.eq.s32.totalorder %s9, 17
      %p129 = por %p127, %p128
      %p130 = scmp.ne.s32.totalorder %s122, %s125
      %p131 = scmp.eq.s32.totalorder %s9, 0
      %p132 = por %p130, %p131
      %p133 = scmp.ne.s32.totalorder %s122, %s125
      %p134 = scmp.eq.s32.totalorder %s14, 17
      %p135 = por %p133, %p134
      %p136 = scmp.ne.s32.totalorder %s125, %s126
      %p137 = scmp.eq.s32.totalorder %s14, 0
      %p138 = por %p136, %p137
      %p139 = scmp.ne.s32.totalorder %s125, %s126
      %p140 = scmp.eq.s32.totalorder %s15, 17
      %p141 = por %p139, %p140
      %p143 = scmp.ne.s32.totalorder %s126, %s142
      %p144 = scmp.eq.s32.totalorder %s15, 0
      %p145 = por %p143, %p144
      %p146 = scmp.le.s32.totalorder 1, %s9
      %p147 = scmp.lt.s32.totalorder %s9, 19
      %p148 = pnand %p146, %p147
      %p149 = pneg %p148
      // Predicated region
      $region9: #{entry_stem_fwd.52} parent=5 // pred_check
        _
      $region10: #{entry_stem_fwd.52} parent=5 // pred_check_branch
        %151 = sbr.rel (%p148) target = $region12
      $region11: #{entry_stem_fwd.52} parent=5 // pred_region
        %s152 = ssub.s32 %s9, 1
      $region12: #{entry_stem_fwd.52} parent=5 // pred_fallthru
        _
      %p153 = scmp.lt.s32.totalorder %s9, 18
      // Predicated region
      $region13: #{entry_stem_fwd.52} parent=5 // pred_check
        %p154 = pneg %p153
      $region14: #{entry_stem_fwd.52} parent=5 // pred_check_branch
        %156 = sbr.rel (%p154) target = $region16
      $region15: #{entry_stem_fwd.52} parent=5 // pred_region
        // Predicated region
        $region17: #{entry_stem_fwd.52} parent=15 // pred_check
          %p157 = pneg %p50
        $region18: #{entry_stem_fwd.52} parent=15 // pred_check_branch
          %159 = sbr.rel (%p157) target = $region20
        $region19: #{entry_stem_fwd.52} parent=15 // pred_region
          %s160 = smul.u32 3, %s18
          %p161 = scmp.lt.s32.totalorder %s16, 0
          %s162 = scalar_select %p161, %s16, 0
          %p163 = scmp.lt.s32.totalorder %s160, 17
          %s164 = scalar_select %p163, %s160, 17
          %s165 = smul.addr %s162, 18
          %s166 = sadd.s32 %s164, %s165
          %s167 = smul.addr %s166, 4
          %s168 = scalar_lea.vmem %s0, %s167
          %s169 = smul.u32 3, %s18
        $region20: #{entry_stem_fwd.52} parent=15 // pred_fallthru
          _
        // Predicated region
        $region21: #{entry_stem_fwd.52} parent=15 // pred_check
          %p170 = pneg %p78
        $region22: #{entry_stem_fwd.52} parent=15 // pred_check_branch
          %172 = sbr.rel (%p170) target = $region24
        $region23: #{entry_stem_fwd.52} parent=15 // pred_region
          %s173 = sand.u32 %s68, 1
          %s174 = sand.u32 %s68, 1
          %s175 = smul.addr %s174, 384
          %s176 = scalar_lea.vmem [#allocation3], %s175
          %s177 = smul.u32 48, %s18
          %s178 = smul.u32 2, %s17
          %s179 = smul.addr %s177, 6
          %s180 = sadd.s32 %s178, %s179
          %s181 = smul.addr %s180, 4
          %s182 = scalar_lea.vmem %s1, %s181
          // Predicated region
          $region25: #{entry_stem_fwd.52} parent=23 // pred_check
            _
          $region26: #{entry_stem_fwd.52} parent=23 // pred_check_branch
            %184 = sbr.rel (0) target = $region28
          $region27: #{entry_stem_fwd.52} parent=23 // pred_region
            // Predicated region
            $region29: #{entry_stem_fwd.52} parent=27 // pred_check
              _
            $region30: #{entry_stem_fwd.52} parent=27 // pred_check_branch
              %186 = sbr.rel (0) target = $region32
            $region31: #{entry_stem_fwd.52} parent=27 // pred_region
              // Predicated region
              $region44: #{entry_stem_fwd.52} parent=31 // pred_check
                _
              $region45: #{entry_stem_fwd.52} parent=31 // pred_check_branch
                %295 = sbr.rel (0) target = $region47
              $region46: #{entry_stem_fwd.52} parent=31 // pred_region
                loop: start=0, step=1, limit=1
                $region48: #{entry_stem_fwd.52} parent=46 // loop_pre_header
                  _
                $region49: #{entry_stem_fwd.52} parent=46 // loop_header
                  %s297 = sphi 0, %s301
                  %p298 = scmp.ge.s32.totalorder %s297, 1
                  %s302 = sphi %s182, %s182
                  %s303 = sphi %s176, %s176
                $region50: #{entry_stem_fwd.52} parent=46 // loop_header_branch
                  %300 = sbr.rel (%p298) target = $region54
                $region51: #{entry_stem_fwd.52} parent=46 // loop_body
                  %v304 = vld [vmem:[%s302] sm:$0xff]
                  %305 = vst [vmem:[%s303] sm:$0xff] %v304
                  %v306 = vld [vmem:[%s302 + $0x18] sm:$0xff]
                  %307 = vst [vmem:[%s303 + $0x8] sm:$0xff] %v306
                  %v308 = vld [vmem:[%s302 + $0x30] sm:$0xff]
                  %309 = vst [vmem:[%s303 + $0x10] sm:$0xff] %v308
                  %v310 = vld [vmem:[%s302 + $0x48] sm:$0xff]
                  %311 = vst [vmem:[%s303 + $0x18] sm:$0xff] %v310
                  %v312 = vld [vmem:[%s302 + $0x60] sm:$0xff]
                  %313 = vst [vmem:[%s303 + $0x20] sm:$0xff] %v312
                  %v314 = vld [vmem:[%s302 + $0x78] sm:$0xff]
                  %315 = vst [vmem:[%s303 + $0x28] sm:$0xff] %v314
                  %v316 = vld [vmem:[%s302 + $0x90] sm:$0xff]
                  %317 = vst [vmem:[%s303 + $0x30] sm:$0xff] %v316
                  %v318 = vld [vmem:[%s302 + $0xa8] sm:$0xff]
                  %319 = vst [vmem:[%s303 + $0x38] sm:$0xff] %v318
                  %v320 = vld [vmem:[%s302 + $0xc0] sm:$0xff]
                  %321 = vst [vmem:[%s303 + $0x40] sm:$0xff] %v320
                  %v322 = vld [vmem:[%s302 + $0xd8] sm:$0xff]
                  %323 = vst [vmem:[%s303 + $0x48] sm:$0xff] %v322
                  %v324 = vld [vmem:[%s302 + $0xf0] sm:$0xff]
                  %325 = vst [vmem:[%s303 + $0x50] sm:$0xff] %v324
                  %v326 = vld [vmem:[%s302 + $0x108] sm:$0xff]
                  %327 = vst [vmem:[%s303 + $0x58] sm:$0xff] %v326
                  %v328 = vld [vmem:[%s302 + $0x120] sm:$0xff]
                  %329 = vst [vmem:[%s303 + $0x60] sm:$0xff] %v328
                  %v330 = vld [vmem:[%s302 + $0x138] sm:$0xff]
                  %331 = vst [vmem:[%s303 + $0x68] sm:$0xff] %v330
                  %v332 = vld [vmem:[%s302 + $0x150] sm:$0xff]
                  %333 = vst [vmem:[%s303 + $0x70] sm:$0xff] %v332
                  %v334 = vld [vmem:[%s302 + $0x168] sm:$0xff]
                  %335 = vst [vmem:[%s303 + $0x78] sm:$0xff] %v334
                  %v336 = vld [vmem:[%s302 + $0x180] sm:$0xff]
                  %337 = vst [vmem:[%s303 + $0x80] sm:$0xff] %v336
                  %v338 = vld [vmem:[%s302 + $0x198] sm:$0xff]
                  %339 = vst [vmem:[%s303 + $0x88] sm:$0xff] %v338
                  %v340 = vld [vmem:[%s302 + $0x1b0] sm:$0xff]
                  %341 = vst [vmem:[%s303 + $0x90] sm:$0xff] %v340
                  %v342 = vld [vmem:[%s302 + $0x1c8] sm:$0xff]
                  %343 = vst [vmem:[%s303 + $0x98] sm:$0xff] %v342
                  %v344 = vld [vmem:[%s302 + $0x1e0] sm:$0xff]
                  %345 = vst [vmem:[%s303 + $0xa0] sm:$0xff] %v344
                  %v346 = vld [vmem:[%s302 + $0x1f8] sm:$0xff]
                  %347 = vst [vmem:[%s303 + $0xa8] sm:$0xff] %v346
                  %v348 = vld [vmem:[%s302 + $0x210] sm:$0xff]
                  %349 = vst [vmem:[%s303 + $0xb0] sm:$0xff] %v348
                  %v350 = vld [vmem:[%s302 + $0x228] sm:$0xff]
                  %351 = vst [vmem:[%s303 + $0xb8] sm:$0xff] %v350
                  %v352 = vld [vmem:[%s302 + $0x240] sm:$0xff]
                  %353 = vst [vmem:[%s303 + $0xc0] sm:$0xff] %v352
                  %v354 = vld [vmem:[%s302 + $0x258] sm:$0xff]
                  %355 = vst [vmem:[%s303 + $0xc8] sm:$0xff] %v354
                  %v356 = vld [vmem:[%s302 + $0x270] sm:$0xff]
                  %357 = vst [vmem:[%s303 + $0xd0] sm:$0xff] %v356
                  %v358 = vld [vmem:[%s302 + $0x288] sm:$0xff]
                  %359 = vst [vmem:[%s303 + $0xd8] sm:$0xff] %v358
                  %v360 = vld [vmem:[%s302 + $0x2a0] sm:$0xff]
                  %361 = vst [vmem:[%s303 + $0xe0] sm:$0xff] %v360
                  %v362 = vld [vmem:[%s302 + $0x2b8] sm:$0xff]
                  %363 = vst [vmem:[%s303 + $0xe8] sm:$0xff] %v362
                  %v364 = vld [vmem:[%s302 + $0x2d0] sm:$0xff]
                  %365 = vst [vmem:[%s303 + $0xf0] sm:$0xff] %v364
                  %v366 = vld [vmem:[%s302 + $0x2e8] sm:$0xff]
                  %367 = vst [vmem:[%s303 + $0xf8] sm:$0xff] %v366
                  %v368 = vld [vmem:[%s302 + $0x300] sm:$0xff]
                  %369 = vst [vmem:[%s303 + $0x100] sm:$0xff] %v368
                  %v370 = vld [vmem:[%s302 + $0x318] sm:$0xff]
                  %371 = vst [vmem:[%s303 + $0x108] sm:$0xff] %v370
                  %v372 = vld [vmem:[%s302 + $0x330] sm:$0xff]
                  %373 = vst [vmem:[%s303 + $0x110] sm:$0xff] %v372
                  %v374 = vld [vmem:[%s302 + $0x348] sm:$0xff]
                  %375 = vst [vmem:[%s303 + $0x118] sm:$0xff] %v374
                  %v376 = vld [vmem:[%s302 + $0x360] sm:$0xff]
                  %377 = vst [vmem:[%s303 + $0x120] sm:$0xff] %v376
                  %v378 = vld [vmem:[%s302 + $0x378] sm:$0xff]
                  %379 = vst [vmem:[%s303 + $0x128] sm:$0xff] %v378
                  %v380 = vld [vmem:[%s302 + $0x390] sm:$0xff]
                  %381 = vst [vmem:[%s303 + $0x130] sm:$0xff] %v380
                  %v382 = vld [vmem:[%s302 + $0x3a8] sm:$0xff]
                  %383 = vst [vmem:[%s303 + $0x138] sm:$0xff] %v382
                  %v384 = vld [vmem:[%s302 + $0x3c0] sm:$0xff]
                  %385 = vst [vmem:[%s303 + $0x140] sm:$0xff] %v384
                  %v386 = vld [vmem:[%s302 + $0x3d8] sm:$0xff]
                  %387 = vst [vmem:[%s303 + $0x148] sm:$0xff] %v386
                  %v388 = vld [vmem:[%s302 + $0x3f0] sm:$0xff]
                  %389 = vst [vmem:[%s303 + $0x150] sm:$0xff] %v388
                  %v390 = vld [vmem:[%s302 + $0x408] sm:$0xff]
                  %391 = vst [vmem:[%s303 + $0x158] sm:$0xff] %v390
                  %v392 = vld [vmem:[%s302 + $0x420] sm:$0xff]
                  %393 = vst [vmem:[%s303 + $0x160] sm:$0xff] %v392
                  %v394 = vld [vmem:[%s302 + $0x438] sm:$0xff]
                  %395 = vst [vmem:[%s303 + $0x168] sm:$0xff] %v394
                  %v396 = vld [vmem:[%s302 + $0x450] sm:$0xff]
                  %397 = vst [vmem:[%s303 + $0x170] sm:$0xff] %v396
                  %v398 = vld [vmem:[%s302 + $0x468] sm:$0xff]
                  %399 = vst [vmem:[%s303 + $0x178] sm:$0xff] %v398
                $region52: #{entry_stem_fwd.52} parent=46 // loop_footer
                  %s301 = sadd.s32 1, %s297
                $region53: #{entry_stem_fwd.52} parent=46 // loop_footer_branch
                  %296 = sbr.rel target = $region49
                $region54: #{entry_stem_fwd.52} parent=46 // loop_exit
                  _
              $region47: #{entry_stem_fwd.52} parent=31 // pred_fallthru
                _
              // Predicated region
              $region55: #{entry_stem_fwd.52} parent=31 // pred_check
                _
              $region56: #{entry_stem_fwd.52} parent=31 // pred_check_branch
                %401 = sbr.rel target = $region58
              $region57: #{entry_stem_fwd.52} parent=31 // pred_region
                _
              $region58: #{entry_stem_fwd.52} parent=31 // pred_fallthru
                _
            $region32: #{entry_stem_fwd.52} parent=27 // pred_fallthru
              _
            // Predicated region
            $region33: #{entry_stem_fwd.52} parent=27 // pred_check
              _
            $region34: #{entry_stem_fwd.52} parent=27 // pred_check_branch
              %188 = sbr.rel target = $region36
            $region35: #{entry_stem_fwd.52} parent=27 // pred_region
              loop: start=0, step=1, limit=1
              $region37: #{entry_stem_fwd.52} parent=35 // loop_pre_header
                _
              $region38: #{entry_stem_fwd.52} parent=35 // loop_header
                %s191 = sphi 0, %s195
                %p192 = scmp.ge.s32.totalorder %s191, 1
                %s196 = sphi %s182, %s182
                %s197 = sphi %s176, %s176
              $region39: #{entry_stem_fwd.52} parent=35 // loop_header_branch
                %194 = sbr.rel (%p192) target = $region43
              $region40: #{entry_stem_fwd.52} parent=35 // loop_body
                %v198 = vld [vmem:[%s196] sm:$0xff]
                %199 = vst [vmem:[%s197] sm:$0xff] %v198
                %v200 = vld [vmem:[%s196 + $0x18] sm:$0xff]
                %201 = vst [vmem:[%s197 + $0x8] sm:$0xff] %v200
                %v202 = vld [vmem:[%s196 + $0x30] sm:$0xff]
                %203 = vst [vmem:[%s197 + $0x10] sm:$0xff] %v202
                %v204 = vld [vmem:[%s196 + $0x48] sm:$0xff]
                %205 = vst [vmem:[%s197 + $0x18] sm:$0xff] %v204
                %v206 = vld [vmem:[%s196 + $0x60] sm:$0xff]
                %207 = vst [vmem:[%s197 + $0x20] sm:$0xff] %v206
                %v208 = vld [vmem:[%s196 + $0x78] sm:$0xff]
                %209 = vst [vmem:[%s197 + $0x28] sm:$0xff] %v208
                %v210 = vld [vmem:[%s196 + $0x90] sm:$0xff]
                %211 = vst [vmem:[%s197 + $0x30] sm:$0xff] %v210
                %v212 = vld [vmem:[%s196 + $0xa8] sm:$0xff]
                %213 = vst [vmem:[%s197 + $0x38] sm:$0xff] %v212
                %v214 = vld [vmem:[%s196 + $0xc0] sm:$0xff]
                %215 = vst [vmem:[%s197 + $0x40] sm:$0xff] %v214
                %v216 = vld [vmem:[%s196 + $0xd8] sm:$0xff]
                %217 = vst [vmem:[%s197 + $0x48] sm:$0xff] %v216
                %v218 = vld [vmem:[%s196 + $0xf0] sm:$0xff]
                %219 = vst [vmem:[%s197 + $0x50] sm:$0xff] %v218
                %v220 = vld [vmem:[%s196 + $0x108] sm:$0xff]
                %221 = vst [vmem:[%s197 + $0x58] sm:$0xff] %v220
                %v222 = vld [vmem:[%s196 + $0x120] sm:$0xff]
                %223 = vst [vmem:[%s197 + $0x60] sm:$0xff] %v222
                %v224 = vld [vmem:[%s196 + $0x138] sm:$0xff]
                %225 = vst [vmem:[%s197 + $0x68] sm:$0xff] %v224
                %v226 = vld [vmem:[%s196 + $0x150] sm:$0xff]
                %227 = vst [vmem:[%s197 + $0x70] sm:$0xff] %v226
                %v228 = vld [vmem:[%s196 + $0x168] sm:$0xff]
                %229 = vst [vmem:[%s197 + $0x78] sm:$0xff] %v228
                %v230 = vld [vmem:[%s196 + $0x180] sm:$0xff]
                %231 = vst [vmem:[%s197 + $0x80] sm:$0xff] %v230
                %v232 = vld [vmem:[%s196 + $0x198] sm:$0xff]
                %233 = vst [vmem:[%s197 + $0x88] sm:$0xff] %v232
                %v234 = vld [vmem:[%s196 + $0x1b0] sm:$0xff]
                %235 = vst [vmem:[%s197 + $0x90] sm:$0xff] %v234
                %v236 = vld [vmem:[%s196 + $0x1c8] sm:$0xff]
                %237 = vst [vmem:[%s197 + $0x98] sm:$0xff] %v236
                %v238 = vld [vmem:[%s196 + $0x1e0] sm:$0xff]
                %239 = vst [vmem:[%s197 + $0xa0] sm:$0xff] %v238
                %v240 = vld [vmem:[%s196 + $0x1f8] sm:$0xff]
                %241 = vst [vmem:[%s197 + $0xa8] sm:$0xff] %v240
                %v242 = vld [vmem:[%s196 + $0x210] sm:$0xff]
                %243 = vst [vmem:[%s197 + $0xb0] sm:$0xff] %v242
                %v244 = vld [vmem:[%s196 + $0x228] sm:$0xff]
                %245 = vst [vmem:[%s197 + $0xb8] sm:$0xff] %v244
                %v246 = vld [vmem:[%s196 + $0x240] sm:$0xff]
                %247 = vst [vmem:[%s197 + $0xc0] sm:$0xff] %v246
                %v248 = vld [vmem:[%s196 + $0x258] sm:$0xff]
                %249 = vst [vmem:[%s197 + $0xc8] sm:$0xff] %v248
                %v250 = vld [vmem:[%s196 + $0x270] sm:$0xff]
                %251 = vst [vmem:[%s197 + $0xd0] sm:$0xff] %v250
                %v252 = vld [vmem:[%s196 + $0x288] sm:$0xff]
                %253 = vst [vmem:[%s197 + $0xd8] sm:$0xff] %v252
                %v254 = vld [vmem:[%s196 + $0x2a0] sm:$0xff]
                %255 = vst [vmem:[%s197 + $0xe0] sm:$0xff] %v254
                %v256 = vld [vmem:[%s196 + $0x2b8] sm:$0xff]
                %257 = vst [vmem:[%s197 + $0xe8] sm:$0xff] %v256
                %v258 = vld [vmem:[%s196 + $0x2d0] sm:$0xff]
                %259 = vst [vmem:[%s197 + $0xf0] sm:$0xff] %v258
                %v260 = vld [vmem:[%s196 + $0x2e8] sm:$0xff]
                %261 = vst [vmem:[%s197 + $0xf8] sm:$0xff] %v260
                %v262 = vld [vmem:[%s196 + $0x300] sm:$0xff]
                %263 = vst [vmem:[%s197 + $0x100] sm:$0xff] %v262
                %v264 = vld [vmem:[%s196 + $0x318] sm:$0xff]
                %265 = vst [vmem:[%s197 + $0x108] sm:$0xff] %v264
                %v266 = vld [vmem:[%s196 + $0x330] sm:$0xff]
                %267 = vst [vmem:[%s197 + $0x110] sm:$0xff] %v266
                %v268 = vld [vmem:[%s196 + $0x348] sm:$0xff]
                %269 = vst [vmem:[%s197 + $0x118] sm:$0xff] %v268
                %v270 = vld [vmem:[%s196 + $0x360] sm:$0xff]
                %271 = vst [vmem:[%s197 + $0x120] sm:$0xff] %v270
                %v272 = vld [vmem:[%s196 + $0x378] sm:$0xff]
                %273 = vst [vmem:[%s197 + $0x128] sm:$0xff] %v272
                %v274 = vld [vmem:[%s196 + $0x390] sm:$0xff]
                %275 = vst [vmem:[%s197 + $0x130] sm:$0xff] %v274
                %v276 = vld [vmem:[%s196 + $0x3a8] sm:$0xff]
                %277 = vst [vmem:[%s197 + $0x138] sm:$0xff] %v276
                %v278 = vld [vmem:[%s196 + $0x3c0] sm:$0xff]
                %279 = vst [vmem:[%s197 + $0x140] sm:$0xff] %v278
                %v280 = vld [vmem:[%s196 + $0x3d8] sm:$0xff]
                %281 = vst [vmem:[%s197 + $0x148] sm:$0xff] %v280
                %v282 = vld [vmem:[%s196 + $0x3f0] sm:$0xff]
                %283 = vst [vmem:[%s197 + $0x150] sm:$0xff] %v282
                %v284 = vld [vmem:[%s196 + $0x408] sm:$0xff]
                %285 = vst [vmem:[%s197 + $0x158] sm:$0xff] %v284
                %v286 = vld [vmem:[%s196 + $0x420] sm:$0xff]
                %287 = vst [vmem:[%s197 + $0x160] sm:$0xff] %v286
                %v288 = vld [vmem:[%s196 + $0x438] sm:$0xff]
                %289 = vst [vmem:[%s197 + $0x168] sm:$0xff] %v288
                %v290 = vld [vmem:[%s196 + $0x450] sm:$0xff]
                %291 = vst [vmem:[%s197 + $0x170] sm:$0xff] %v290
                %v292 = vld [vmem:[%s196 + $0x468] sm:$0xff]
                %293 = vst [vmem:[%s197 + $0x178] sm:$0xff] %v292
              $region41: #{entry_stem_fwd.52} parent=35 // loop_footer
                %s195 = sadd.s32 1, %s191
              $region42: #{entry_stem_fwd.52} parent=35 // loop_footer_branch
                %190 = sbr.rel target = $region38
              $region43: #{entry_stem_fwd.52} parent=35 // loop_exit
                _
            $region36: #{entry_stem_fwd.52} parent=27 // pred_fallthru
              _
          $region28: #{entry_stem_fwd.52} parent=23 // pred_fallthru
            _
          %402 = vnop
        $region24: #{entry_stem_fwd.52} parent=15 // pred_fallthru
          _
        // Predicated region
        $region59: #{entry_stem_fwd.52} parent=15 // pred_check
          %p403 = pneg %p104
        $region60: #{entry_stem_fwd.52} parent=15 // pred_check_branch
          %405 = sbr.rel (%p403) target = $region62
        $region61: #{entry_stem_fwd.52} parent=15 // pred_region
          %s406 = smul.u32 2, %s17
          %p407 = scmp.lt.s32.totalorder %s406, 5
          %s408 = scalar_select %p407, %s406, 5
          %s409 = scalar_lea.vmem %s2, %s408
          %s410 = smul.u32 2, %s17
        $region62: #{entry_stem_fwd.52} parent=15 // pred_fallthru
          _
      $region16: #{entry_stem_fwd.52} parent=5 // pred_fallthru
        _
      %p411 = scmp.le.s32.totalorder 1, %s9
      %p412 = scmp.lt.s32.totalorder %s9, 19
      %p413 = pnand %p411, %p412
      %p414 = pneg %p413
      // Predicated region
      $region63: #{entry_stem_fwd.52} parent=5 // pred_check
        _
      $region64: #{entry_stem_fwd.52} parent=5 // pred_check_branch
        %416 = sbr.rel (%p413) target = $region66
      $region65: #{entry_stem_fwd.52} parent=5 // pred_region
        %s417 = ssub.s32 %s9, 1
        %s418 = sand.u32 %s71, 1
        %s419 = sand.u32 %s71, 1
        %s420 = smul.addr %s419, 384
        %s421 = scalar_lea.vmem [#allocation3], %s420
        // Predicated region
        $region67: #{entry_stem_fwd.52} parent=65 // pred_check
          %p422 = pneg %p84
        $region68: #{entry_stem_fwd.52} parent=65 // pred_check_branch
          %424 = sbr.rel (%p422) target = $region70
        $region69: #{entry_stem_fwd.52} parent=65 // pred_region
          _
        $region70: #{entry_stem_fwd.52} parent=65 // pred_fallthru
          _
        %s425 = smul.u32 3, %s21
        %p426 = scmp.lt.s32.totalorder %s19, 0
        %s427 = scalar_select %p426, %s19, 0
        %p428 = scmp.lt.s32.totalorder %s425, 17
        %s429 = scalar_select %p428, %s425, 17
        %s430 = smul.addr %s427, 18
        %s431 = sadd.s32 %s429, %s430
        %s432 = smul.addr %s431, 4
        %s433 = scalar_lea.vmem %s0, %s432
        %p434 = pneg %p56
        %p435 = pneg %p53
        %s436 = sand.u32 %s71, 1
        %s437 = sand.u32 %s71, 1
        %s438 = smul.addr %s437, 384
        %s439 = scalar_lea.vmem [#allocation3], %s438
        %p440 = pneg %p84
        %p441 = pneg %p81
        %s442 = smul.u32 2, %s20
        %p443 = scmp.lt.s32.totalorder %s442, 5
        %s444 = scalar_select %p443, %s442, 5
        %s445 = scalar_lea.vmem %s2, %s444
        %p446 = pneg %p110
        %p447 = pneg %p107
        %p448 = pneg %p138
        %p449 = pneg %p135
        %s450 = smul.u32 2, %s20
        %p451 = scmp.lt.s32.totalorder %s19, 0
        %s452 = scalar_select %p451, %s19, 0
        %p453 = scmp.lt.s32.totalorder %s450, 5
        %s454 = scalar_select %p453, %s450, 5
        %s455 = smul.addr %s452, 6
        %s456 = sadd.s32 %s454, %s455
        %s457 = smul.addr %s456, 8
        %s458 = scalar_lea.vmem %s3, %s457
        %s459 = smul.u32 3, %s21
        %p460 = scmp.lt.s32.totalorder %s19, 0
        %s461 = scalar_select %p460, %s19, 0
        %p462 = scmp.lt.s32.totalorder %s459, 17
        %s463 = scalar_select %p462, %s459, 17
        %s464 = smul.addr %s461, 18
        %s465 = sadd.s32 %s463, %s464
        %s466 = smul.addr %s465, 4
        %s467 = scalar_lea.vmem %s0, %s466
        %s468 = smul.u32 3, %s21
        %s469 = smul.u32 48, %s21
        %s470 = smul.u32 2, %s20
        %s471 = smul.u32 2, %s20
        %p472 = scmp.lt.s32.totalorder %s471, 5
        %s473 = scalar_select %p472, %s471, 5
        %s474 = scalar_lea.vmem %s2, %s473
        %s475 = smul.u32 2, %s20
        %s476 = smul.u32 2, %s20
        %p477 = scmp.lt.s32.totalorder %s19, 0
        %s478 = scalar_select %p477, %s19, 0
        %p479 = scmp.lt.s32.totalorder %s476, 5
        %s480 = scalar_select %p479, %s476, 5
        %s481 = smul.addr %s478, 6
        %s482 = sadd.s32 %s480, %s481
        %s483 = smul.addr %s482, 8
        %s484 = scalar_lea.vmem %s3, %s483
        %s485 = smul.u32 2, %s20
        %p487 = scmp.eq.s32.totalorder %s21, 0
        // Predicated region
        $region71: #{entry_stem_fwd.52} parent=65 // pred_check
          %p488 = pneg %p487
        $region72: #{entry_stem_fwd.52} parent=65 // pred_check_branch
          %490 = sbr.rel (%p488) target = $region74
        $region73: #{entry_stem_fwd.52} parent=65 // pred_region
          %491 = vst [vmem:[#allocation2] sm:$0xff] 0.0
          %492 = vst [vmem:[#allocation2 + $0x8] sm:$0xff] 0.0
        $region74: #{entry_stem_fwd.52} parent=65 // pred_fallthru
          _
        %v493 = vld [vmem:[#allocation2] sm:$0xff]
        %v494 = vld [vmem:[#allocation2 + $0x8] sm:$0xff]
        %v495 = vld [vmem:[%s467] sm:$0xff]
        %v496 = vld [vmem:[%s467 + $0x8] sm:$0xf]
        %v497 = vld [vmem:[%s421] sm:$0xff]
        %v498 = vld [vmem:[%s421 + $0x8] sm:$0xff]
        %v499 = vld [vmem:[%s421 + $0x10] sm:$0xff]
        %v500 = vld [vmem:[%s421 + $0x18] sm:$0xff]
        %v501 = vld [vmem:[%s421 + $0x20] sm:$0xff]
        %v502 = vld [vmem:[%s421 + $0x28] sm:$0xff]
        %v503 = vld [vmem:[%s421 + $0x30] sm:$0xff]
        %v504 = vld [vmem:[%s421 + $0x38] sm:$0xff]
        %v505 = vld [vmem:[%s421 + $0x40] sm:$0xff]
        %v506 = vld [vmem:[%s421 + $0x48] sm:$0xff]
        %v507 = vld [vmem:[%s421 + $0x50] sm:$0xff]
        %v508 = vld [vmem:[%s421 + $0x58] sm:$0xff]
        %v509 = vld [vmem:[%s421 + $0x60] sm:$0xff]
        %v510 = vld [vmem:[%s421 + $0x68] sm:$0xff]
        %v511 = vld [vmem:[%s421 + $0x70] sm:$0xff]
        %v512 = vld [vmem:[%s421 + $0x78] sm:$0xff]
        %v513 = vld [vmem:[%s421 + $0x80] sm:$0xff]
        %v514 = vld [vmem:[%s421 + $0x88] sm:$0xff]
        %v515 = vld [vmem:[%s421 + $0x90] sm:$0xff]
        %v516 = vld [vmem:[%s421 + $0x98] sm:$0xff]
        %v517 = vld [vmem:[%s421 + $0xa0] sm:$0xff]
        %v518 = vld [vmem:[%s421 + $0xa8] sm:$0xff]
        %v519 = vld [vmem:[%s421 + $0xb0] sm:$0xff]
        %v520 = vld [vmem:[%s421 + $0xb8] sm:$0xff]
        %v521 = vld [vmem:[%s421 + $0xc0] sm:$0xff]
        %v522 = vld [vmem:[%s421 + $0xc8] sm:$0xff]
        %v523 = vld [vmem:[%s421 + $0xd0] sm:$0xff]
        %v524 = vld [vmem:[%s421 + $0xd8] sm:$0xff]
        %v525 = vld [vmem:[%s421 + $0xe0] sm:$0xff]
        %v526 = vld [vmem:[%s421 + $0xe8] sm:$0xff]
        %v527 = vld [vmem:[%s421 + $0xf0] sm:$0xff]
        %v528 = vld [vmem:[%s421 + $0xf8] sm:$0xff]
        %v529 = vld [vmem:[%s421 + $0x100] sm:$0xff]
        %v530 = vld [vmem:[%s421 + $0x108] sm:$0xff]
        %v531 = vld [vmem:[%s421 + $0x110] sm:$0xff]
        %v532 = vld [vmem:[%s421 + $0x118] sm:$0xff]
        %v533 = vld [vmem:[%s421 + $0x120] sm:$0xff]
        %v534 = vld [vmem:[%s421 + $0x128] sm:$0xff]
        %v535 = vld [vmem:[%s421 + $0x130] sm:$0xff]
        %v536 = vld [vmem:[%s421 + $0x138] sm:$0xff]
        %v537 = vld [vmem:[%s421 + $0x140] sm:$0xff]
        %v538 = vld [vmem:[%s421 + $0x148] sm:$0xff]
        %v539 = vld [vmem:[%s421 + $0x150] sm:$0xff]
        %v540 = vld [vmem:[%s421 + $0x158] sm:$0xff]
        %v541 = vld [vmem:[%s421 + $0x160] sm:$0xff]
        %v542 = vld [vmem:[%s421 + $0x168] sm:$0xff]
        %v543 = vld [vmem:[%s421 + $0x170] sm:$0xff]
        %v544 = vld [vmem:[%s421 + $0x178] sm:$0xff]
        %v547 = vunpack.c.l.b16 %v495
        %v548 = vunpack.c.h.b16 %v495
        %v549 = vunpack.c.l.b16 %v496
        %v550 = vpack.c.b16 %v547, %v547
        %v551 = vpack.c.b16 %v548, %v548
        %v552 = vpack.c.b16 %v549, %v549
        %v604 = vunpack.c.l.b16 %v497
        %v605 = vunpack.c.h.b16 %v497
        %v606 = vunpack.c.l.b16 %v498
        %v607 = vunpack.c.h.b16 %v498
        %v608 = vunpack.c.l.b16 %v499
        %v609 = vunpack.c.h.b16 %v499
        %v610 = vunpack.c.l.b16 %v500
        %v611 = vunpack.c.h.b16 %v500
        %v612 = vunpack.c.l.b16 %v501
        %v613 = vunpack.c.h.b16 %v501
        %v614 = vunpack.c.l.b16 %v502
        %v615 = vunpack.c.h.b16 %v502
        %v616 = vunpack.c.l.b16 %v503
        %v617 = vunpack.c.h.b16 %v503
        %v618 = vunpack.c.l.b16 %v504
        %v619 = vunpack.c.h.b16 %v504
        %v620 = vunpack.c.l.b16 %v505
        %v621 = vunpack.c.h.b16 %v505
        %v622 = vunpack.c.l.b16 %v506
        %v623 = vunpack.c.h.b16 %v506
        %v624 = vunpack.c.l.b16 %v507
        %v625 = vunpack.c.h.b16 %v507
        %v626 = vunpack.c.l.b16 %v508
        %v627 = vunpack.c.h.b16 %v508
        %v628 = vunpack.c.l.b16 %v509
        %v629 = vunpack.c.h.b16 %v509
        %v630 = vunpack.c.l.b16 %v510
        %v631 = vunpack.c.h.b16 %v510
        %v632 = vunpack.c.l.b16 %v511
        %v633 = vunpack.c.h.b16 %v511
        %v634 = vunpack.c.l.b16 %v512
        %v635 = vunpack.c.h.b16 %v512
        %v636 = vunpack.c.l.b16 %v513
        %v637 = vunpack.c.h.b16 %v513
        %v638 = vunpack.c.l.b16 %v514
        %v639 = vunpack.c.h.b16 %v514
        %v640 = vunpack.c.l.b16 %v515
        %v641 = vunpack.c.h.b16 %v515
        %v642 = vunpack.c.l.b16 %v516
        %v643 = vunpack.c.h.b16 %v516
        %v644 = vunpack.c.l.b16 %v517
        %v645 = vunpack.c.h.b16 %v517
        %v646 = vunpack.c.l.b16 %v518
        %v647 = vunpack.c.h.b16 %v518
        %v648 = vunpack.c.l.b16 %v519
        %v649 = vunpack.c.h.b16 %v519
        %v650 = vunpack.c.l.b16 %v520
        %v651 = vunpack.c.h.b16 %v520
        %v652 = vunpack.c.l.b16 %v521
        %v653 = vunpack.c.h.b16 %v521
        %v654 = vunpack.c.l.b16 %v522
        %v655 = vunpack.c.h.b16 %v522
        %v656 = vunpack.c.l.b16 %v523
        %v657 = vunpack.c.h.b16 %v523
        %v658 = vunpack.c.l.b16 %v524
        %v659 = vunpack.c.h.b16 %v524
        %v660 = vunpack.c.l.b16 %v525
        %v661 = vunpack.c.h.b16 %v525
        %v662 = vunpack.c.l.b16 %v526
        %v663 = vunpack.c.h.b16 %v526
        %v664 = vunpack.c.l.b16 %v527
        %v665 = vunpack.c.h.b16 %v527
        %v666 = vunpack.c.l.b16 %v528
        %v667 = vunpack.c.h.b16 %v528
        %v668 = vunpack.c.l.b16 %v529
        %v669 = vunpack.c.h.b16 %v529
        %v670 = vunpack.c.l.b16 %v530
        %v671 = vunpack.c.h.b16 %v530
        %v672 = vunpack.c.l.b16 %v531
        %v673 = vunpack.c.h.b16 %v531
        %v674 = vunpack.c.l.b16 %v532
        %v675 = vunpack.c.h.b16 %v532
        %v676 = vunpack.c.l.b16 %v533
        %v677 = vunpack.c.h.b16 %v533
        %v678 = vunpack.c.l.b16 %v534
        %v679 = vunpack.c.h.b16 %v534
        %v680 = vunpack.c.l.b16 %v535
        %v681 = vunpack.c.h.b16 %v535
        %v682 = vunpack.c.l.b16 %v536
        %v683 = vunpack.c.h.b16 %v536
        %v684 = vunpack.c.l.b16 %v537
        %v685 = vunpack.c.h.b16 %v537
        %v686 = vunpack.c.l.b16 %v538
        %v687 = vunpack.c.h.b16 %v538
        %v688 = vunpack.c.l.b16 %v539
        %v689 = vunpack.c.h.b16 %v539
        %v690 = vunpack.c.l.b16 %v540
        %v691 = vunpack.c.h.b16 %v540
        %v692 = vunpack.c.l.b16 %v541
        %v693 = vunpack.c.h.b16 %v541
        %v694 = vunpack.c.l.b16 %v542
        %v695 = vunpack.c.h.b16 %v542
        %v696 = vunpack.c.l.b16 %v543
        %v697 = vunpack.c.h.b16 %v543
        %v698 = vunpack.c.l.b16 %v544
        %v699 = vunpack.c.h.b16 %v544
        %v700 = vpack.c.b16 %v606, %v604
        %v701 = vpack.c.b16 %v607, %v605
        %v702 = vpack.c.b16 %v610, %v608
        %v703 = vpack.c.b16 %v611, %v609
        %v704 = vpack.c.b16 %v614, %v612
        %v705 = vpack.c.b16 %v615, %v613
        %v706 = vpack.c.b16 %v618, %v616
        %v707 = vpack.c.b16 %v619, %v617
        %v708 = vpack.c.b16 %v622, %v620
        %v709 = vpack.c.b16 %v623, %v621
        %v710 = vpack.c.b16 %v626, %v624
        %v711 = vpack.c.b16 %v627, %v625
        %v712 = vpack.c.b16 %v630, %v628
        %v713 = vpack.c.b16 %v631, %v629
        %v714 = vpack.c.b16 %v634, %v632
        %v715 = vpack.c.b16 %v635, %v633
        %v716 = vpack.c.b16 %v638, %v636
        %v717 = vpack.c.b16 %v639, %v637
        %v718 = vpack.c.b16 %v642, %v640
        %v719 = vpack.c.b16 %v643, %v641
        %v720 = vpack.c.b16 %v646, %v644
        %v721 = vpack.c.b16 %v647, %v645
        %v722 = vpack.c.b16 %v650, %v648
        %v723 = vpack.c.b16 %v651, %v649
        %v724 = vpack.c.b16 %v654, %v652
        %v725 = vpack.c.b16 %v655, %v653
        %v726 = vpack.c.b16 %v658, %v656
        %v727 = vpack.c.b16 %v659, %v657
        %v728 = vpack.c.b16 %v662, %v660
        %v729 = vpack.c.b16 %v663, %v661
        %v730 = vpack.c.b16 %v666, %v664
        %v731 = vpack.c.b16 %v667, %v665
        %v732 = vpack.c.b16 %v670, %v668
        %v733 = vpack.c.b16 %v671, %v669
        %v734 = vpack.c.b16 %v674, %v672
        %v735 = vpack.c.b16 %v675, %v673
        %v736 = vpack.c.b16 %v678, %v676
        %v737 = vpack.c.b16 %v679, %v677
        %v738 = vpack.c.b16 %v682, %v680
        %v739 = vpack.c.b16 %v683, %v681
        %v740 = vpack.c.b16 %v686, %v684
        %v741 = vpack.c.b16 %v687, %v685
        %v742 = vpack.c.b16 %v690, %v688
        %v743 = vpack.c.b16 %v691, %v689
        %v744 = vpack.c.b16 %v694, %v692
        %v745 = vpack.c.b16 %v695, %v693
        %v746 = vpack.c.b16 %v698, %v696
        %v747 = vpack.c.b16 %v699, %v697
        %796 = vmatprep.subr.bf16.mxu0 %v701
        %797 = vmatpush1.bf16.msra.mxu0 %v700
        %798 = vmatprep.subr.bf16.mxu0 %v703
        %799 = vmatpush1.bf16.msra.mxu0 %v702
        %800 = vmatprep.subr.bf16.mxu0 %v705
        %801 = vmatpush1.bf16.msra.mxu0 %v704
        %802 = vmatprep.subr.bf16.mxu0 %v707
        %803 = vmatpush1.bf16.msra.mxu0 %v706
        %804 = vmatprep.subr.bf16.mxu0 %v709
        %805 = vmatpush1.bf16.msra.mxu0 %v708
        %806 = vmatprep.subr.bf16.mxu0 %v711
        %807 = vmatpush1.bf16.msra.mxu0 %v710
        %808 = vmatprep.subr.bf16.mxu0 %v713
        %809 = vmatpush1.bf16.msra.mxu0 %v712
        %810 = vmatprep.subr.bf16.mxu0 %v715
        %811 = vmatpush1.bf16.msra.mxu0 %v714
        %812 = vmatprep.subr.bf16.mxu0 %v717
        %813 = vmatpush1.bf16.msra.mxu0 %v716
        %814 = vmatprep.subr.bf16.mxu0 %v719
        %815 = vmatpush1.bf16.msra.mxu0 %v718
        %816 = vmatprep.subr.bf16.mxu0 %v721
        %817 = vmatpush1.bf16.msra.mxu0 %v720
        %818 = vmatprep.subr.bf16.mxu0 %v723
        %819 = vmatpush1.bf16.msra.mxu0 %v722
        %820 = vmatprep.subr.bf16.mxu0 %v725
        %821 = vmatpush1.bf16.msra.mxu0 %v724
        %822 = vmatprep.subr.bf16.mxu0 %v727
        %823 = vmatpush1.bf16.msra.mxu0 %v726
        %824 = vmatprep.subr.bf16.mxu0 %v729
        %825 = vmatpush1.bf16.msra.mxu0 %v728
        %826 = vmatprep.subr.bf16.mxu0 %v731
        %827 = vmatpush1.bf16.msra.mxu0 %v730
        %828 = vmatprep.mubr.bf16.mxu0 %v551
        %829 = vmatmul.mubr.bf16.gmra.mrb[0].mxu0 %v550
        %v830 = vpop.f32.mrb[0].mxu0
        %v831 = vadd.f32 0.0, %v830
        %v832 = vpop.f32.mrb[0].mxu0
        %v833 = vadd.f32 0.0, %v832
        %v834 = vpop.f32.mrb[0].mxu0
        %v835 = vpop.f32.mrb[0].mxu0
        %836 = vdwg.mxu0
        %837 = vmatprep.subr.bf16.mxu0 %v733
        %838 = vmatpush1.bf16.msra.mxu0 %v732
        %839 = vmatprep.subr.bf16.mxu0 %v735
        %840 = vmatpush1.bf16.msra.mxu0 %v734
        %841 = vmatprep.subr.bf16.mxu0 %v737
        %842 = vmatpush1.bf16.msra.mxu0 %v736
        %843 = vmatprep.subr.bf16.mxu0 %v739
        %844 = vmatpush1.bf16.msra.mxu0 %v738
        %845 = vmatprep.subr.bf16.mxu0 %v741
        %846 = vmatpush1.bf16.msra.mxu0 %v740
        %847 = vmatprep.subr.bf16.mxu0 %v743
        %848 = vmatpush1.bf16.msra.mxu0 %v742
        %849 = vmatprep.subr.bf16.mxu0 %v745
        %850 = vmatpush1.bf16.msra.mxu0 %v744
        %851 = vmatprep.subr.bf16.mxu0 %v747
        %852 = vmatpush1.bf16.msra.mxu0 %v746
        %853 = vmatprep.subr.bf16.mxu0 0
        %854 = vmatpush1.bf16.msra.mxu0 0
        %855 = vmatprep.subr.bf16.mxu0 0
        %856 = vmatpush1.bf16.msra.mxu0 0
        %857 = vmatprep.subr.bf16.mxu0 0
        %858 = vmatpush1.bf16.msra.mxu0 0
        %859 = vmatprep.subr.bf16.mxu0 0
        %860 = vmatpush1.bf16.msra.mxu0 0
        %861 = vmatprep.subr.bf16.mxu0 0
        %862 = vmatpush1.bf16.msra.mxu0 0
        %863 = vmatprep.subr.bf16.mxu0 0
        %864 = vmatpush1.bf16.msra.mxu0 0
        %865 = vmatprep.subr.bf16.mxu0 0
        %866 = vmatpush1.bf16.msra.mxu0 0
        %867 = vmatprep.subr.bf16.mxu0 0
        %868 = vmatpush1.bf16.msra.mxu0 0
        %869 = vmatprep.mubr.bf16.mxu0 0
        %870 = vmatmul.mubr.bf16.gmra.mrb[0].mxu0 %v552
        %v871 = vpop.f32.mrb[0].mxu0
        %v872 = vadd.f32 %v831, %v871
        %v873 = vpop.f32.mrb[0].mxu0
        %v874 = vadd.f32 %v833, %v873
        %v875 = vpop.f32.mrb[0].mxu0
        %v876 = vpop.f32.mrb[0].mxu0
        %877 = vdwg.mxu0
        %v878 = vadd.f32 %v493, %v872
        %v879 = vadd.f32 %v494, %v874
        %880 = vst [vmem:[#allocation2] sm:$0xff] %v878
        %881 = vst [vmem:[#allocation2 + $0x8] sm:$0xff] %v879
        %p882 = scmp.eq.s32.totalorder %s21, 5
        // Predicated region
        $region75: #{entry_stem_fwd.52} parent=65 // pred_check
          %p883 = pneg %p882
        $region76: #{entry_stem_fwd.52} parent=65 // pred_check_branch
          %885 = sbr.rel (%p883) target = $region78
        $region77: #{entry_stem_fwd.52} parent=65 // pred_region
          %v886 = vld [vmem:[#allocation2] sm:$0xff]
          %v887 = vld [vmem:[#allocation2 + $0x8] sm:$0xff]
          %v888 = vld [vmem:[%s474] sm:$0x3]
          %v890 = vlaneseq
          %v891 = vshrl.u32 %v890, 7
          %v892 = vsub.s32 0, %v891
          %v893 = vrot.slane %v888, %v892
          %v894 = vlaneseq
          %v895 = vshrl.u32 %v894, 7
          %v896 = vsub.s32 1, %v895
          %v897 = vrot.slane %v888, %v896
          %v900 = vadd.f32 %v886, %v893
          %v901 = vadd.f32 %v887, %v897
          %902 = vst [vmem:[%s484] sm:$0xff] %v900
          %903 = vst [vmem:[%s484 + $0x8] sm:$0xff] %v901
        $region78: #{entry_stem_fwd.52} parent=65 // pred_fallthru
          _
        %s904 = smul.u32 2, %s20
        %p905 = scmp.lt.s32.totalorder %s19, 0
        %s906 = scalar_select %p905, %s19, 0
        %p907 = scmp.lt.s32.totalorder %s904, 5
        %s908 = scalar_select %p907, %s904, 5
        %s909 = smul.addr %s906, 6
        %s910 = sadd.s32 %s908, %s909
        %s911 = smul.addr %s910, 8
        %s912 = scalar_lea.vmem %s3, %s911
        // Predicated region
        $region79: #{entry_stem_fwd.52} parent=65 // pred_check
          %p913 = pneg %p135
        $region80: #{entry_stem_fwd.52} parent=65 // pred_check_branch
          %915 = sbr.rel (%p913) target = $region82
        $region81: #{entry_stem_fwd.52} parent=65 // pred_region
          %s916 = smul.u32 2, %s20
        $region82: #{entry_stem_fwd.52} parent=65 // pred_fallthru
          _
      $region66: #{entry_stem_fwd.52} parent=5 // pred_fallthru
        _
      %p917 = scmp.le.s32.totalorder 2, %s9
      // Predicated region
      $region83: #{entry_stem_fwd.52} parent=5 // pred_check
        %p918 = pneg %p917
      $region84: #{entry_stem_fwd.52} parent=5 // pred_check_branch
        %920 = sbr.rel (%p918) target = $region86
      $region85: #{entry_stem_fwd.52} parent=5 // pred_region
        %s921 = ssub.s32 %s9, 2
        // Predicated region
        $region87: #{entry_stem_fwd.52} parent=85 // pred_check
          %p922 = pneg %p141
        $region88: #{entry_stem_fwd.52} parent=85 // pred_check_branch
          %924 = sbr.rel (%p922) target = $region90
        $region89: #{entry_stem_fwd.52} parent=85 // pred_region
          %s925 = smul.u32 2, %s23
          %p926 = scmp.lt.s32.totalorder %s22, 0
          %s927 = scalar_select %p926, %s22, 0
          %p928 = scmp.lt.s32.totalorder %s925, 5
          %s929 = scalar_select %p928, %s925, 5
          %s930 = smul.addr %s927, 6
          %s931 = sadd.s32 %s929, %s930
          %s932 = smul.addr %s931, 8
          %s933 = scalar_lea.vmem %s3, %s932
        $region90: #{entry_stem_fwd.52} parent=85 // pred_fallthru
          _
      $region86: #{entry_stem_fwd.52} parent=5 // pred_fallthru
        _
    $region6: #{entry_stem_fwd.52} parent=1 // loop_footer
      %s13 = sadd.s32 1, %s9
    $region7: #{entry_stem_fwd.52} parent=1 // loop_footer_branch
      %8 = sbr.rel target = $region3
    $region8: #{entry_stem_fwd.52} parent=1 // loop_exit
      _

// kernel: entry_stem_fwd.54
$region0: #{entry_stem_fwd.54}
  #allocation0 [shape = 'u32[]', space=smem, size = 0x4, offset = 0x4, fixed_abs, tag = 'smem constant byte address 0x4 - core index']
  #allocation1 [shape = 'u32[144,128]{1,0:T(1,128)}', space=vmem, size = 0x12000, scoped, tag = 'internal scratch']
  #allocation2 [shape = 'f32[8,256]{1,0:T(8,128)}', space=vmem, size = 0x2000, scoped, tag = 'scratch operand']
  %s0 = inlined_call_operand.vmem [shape: bf16[8,6656], index: 0, kind: input, shape index: {}]
  %s1 = inlined_call_operand.vmem [shape: bf16[6656,768], index: 1, kind: input, shape index: {}]
  %s2 = inlined_call_operand.vmem [shape: f32[1,768], index: 2, kind: input, shape index: {}]
  %s3 = inlined_call_operand.vmem [shape: f32[8,768], index: 3, kind: output, shape index: {}]
  %s4 = sld [smem:[#allocation0]]
  $region91: #{entry_stem_fwd.54} parent=0
    _
  %s6 = ssub.s32 1, %s4
  %s7 = scalar_select 0, %s6, %s4
  $region1: #{entry_stem_fwd.54} parent=0
    #allocation3 [shape = 'u8[524288]{0}', space=vmem, size = 0x80000, scoped, tag = 'input window, operand 1']
    loop: start=0, step=1, limit=41
    $region2: #{entry_stem_fwd.54} parent=1 // loop_pre_header
      _
    $region3: #{entry_stem_fwd.54} parent=1 // loop_header
      %s9 = sphi 0, %s13
      %p10 = scmp.ge.s32.totalorder %s9, 41
      %s16 = sphi 0, %s35
      %s17 = sphi 0, %s31
      %s18 = sphi 0, %s27
      %s19 = sphi 0, %s16
      %s20 = sphi 0, %s17
      %s21 = sphi 0, %s18
      %s22 = sphi 0, %s19
      %s23 = sphi 0, %s20
      %s24 = sphi 0, %s21
      %s40 = sphi 0, %s42
      %s43 = sphi 0, %s40
      %s44 = sphi 0, %s43
      %s60 = sphi 0, %s44
      %s68 = sphi 0, %s70
      %s71 = sphi 0, %s68
      %s72 = sphi 0, %s71
      %s88 = sphi 0, %s72
      %s94 = sphi 0, %s96
      %s97 = sphi 0, %s94
      %s98 = sphi 0, %s97
      %s114 = sphi 0, %s98
      %s122 = sphi 0, %s124
      %s125 = sphi 0, %s122
      %s126 = sphi 0, %s125
      %s142 = sphi 0, %s126
    $region4: #{entry_stem_fwd.54} parent=1 // loop_header_branch
      %12 = sbr.rel (%p10) target = $region8
    $region5: #{entry_stem_fwd.54} parent=1 // loop_body
      %s14 = ssub.s32 %s9, 1
      %s15 = ssub.s32 %s9, 2
      %s25 = sadd.s32 1, %s18
      %p26 = scmp.ge.s32.totalorder %s25, 13
      %s27 = scalar_select %p26, 0, %s25
      %s28 = sadd.s32 1, %s17
      %s29 = scalar_select %p26, %s28, %s17
      %p30 = scmp.ge.s32.totalorder %s29, 3
      %s31 = scalar_select %p30, 0, %s29
      %s32 = sadd.s32 1, %s16
      %s33 = scalar_select %p30, %s32, %s16
      %p34 = scmp.ge.s32.totalorder %s33, 1
      %s35 = scalar_select %p34, 0, %s33
      %s36 = ssub.s32 %s16, %s35
      %s37 = ssub.s32 %s18, %s27
      %s38 = sor.u32 %s36, %s37
      %p39 = scmp.eq.s32.totalorder %s38, 0
      %s41 = sadd.s32 %s40, 1
      %s42 = scalar_select %p39, %s40, %s41
      %p45 = pneg %p39
      %p46 = scmp.eq.s32.totalorder %s9, 38
      %p47 = por %p45, %p46
      %p48 = scmp.ne.s32.totalorder %s40, %s43
      %p49 = scmp.eq.s32.totalorder %s9, 0
      %p50 = por %p48, %p49
      %p51 = scmp.ne.s32.totalorder %s40, %s43
      %p52 = scmp.eq.s32.totalorder %s14, 38
      %p53 = por %p51, %p52
      %p54 = scmp.ne.s32.totalorder %s43, %s44
      %p55 = scmp.eq.s32.totalorder %s14, 0
      %p56 = por %p54, %p55
      %p57 = scmp.ne.s32.totalorder %s43, %s44
      %p58 = scmp.eq.s32.totalorder %s15, 38
      %p59 = por %p57, %p58
      %p61 = scmp.ne.s32.totalorder %s44, %s60
      %p62 = scmp.eq.s32.totalorder %s15, 0
      %p63 = por %p61, %p62
      %s64 = ssub.s32 %s18, %s27
      %s65 = ssub.s32 %s17, %s31
      %s66 = sor.u32 %s64, %s65
      %p67 = scmp.eq.s32.totalorder %s66, 0
      %s69 = sadd.s32 %s68, 1
      %s70 = scalar_select %p67, %s68, %s69
      %p73 = pneg %p67
      %p74 = scmp.eq.s32.totalorder %s9, 38
      %p75 = por %p73, %p74
      %p76 = scmp.ne.s32.totalorder %s68, %s71
      %p77 = scmp.eq.s32.totalorder %s9, 0
      %p78 = por %p76, %p77
      %p79 = scmp.ne.s32.totalorder %s68, %s71
      %p80 = scmp.eq.s32.totalorder %s14, 38
      %p81 = por %p79, %p80
      %p82 = scmp.ne.s32.totalorder %s71, %s72
      %p83 = scmp.eq.s32.totalorder %s14, 0
      %p84 = por %p82, %p83
      %p85 = scmp.ne.s32.totalorder %s71, %s72
      %p86 = scmp.eq.s32.totalorder %s15, 38
      %p87 = por %p85, %p86
      %p89 = scmp.ne.s32.totalorder %s72, %s88
      %p90 = scmp.eq.s32.totalorder %s15, 0
      %p91 = por %p89, %p90
      %s92 = ssub.s32 %s17, %s31
      %p93 = scmp.eq.s32.totalorder %s92, 0
      %s95 = sadd.s32 %s94, 1
      %s96 = scalar_select %p93, %s94, %s95
      %p99 = pneg %p93
      %p100 = scmp.eq.s32.totalorder %s9, 38
      %p101 = por %p99, %p100
      %p102 = scmp.ne.s32.totalorder %s94, %s97
      %p103 = scmp.eq.s32.totalorder %s9, 0
      %p104 = por %p102, %p103
      %p105 = scmp.ne.s32.totalorder %s94, %s97
      %p106 = scmp.eq.s32.totalorder %s14, 38
      %p107 = por %p105, %p106
      %p108 = scmp.ne.s32.totalorder %s97, %s98
      %p109 = scmp.eq.s32.totalorder %s14, 0
      %p110 = por %p108, %p109
      %p111 = scmp.ne.s32.totalorder %s97, %s98
      %p112 = scmp.eq.s32.totalorder %s15, 38
      %p113 = por %p111, %p112
      %p115 = scmp.ne.s32.totalorder %s98, %s114
      %p116 = scmp.eq.s32.totalorder %s15, 0
      %p117 = por %p115, %p116
      %s118 = ssub.s32 %s16, %s35
      %s119 = ssub.s32 %s17, %s31
      %s120 = sor.u32 %s118, %s119
      %p121 = scmp.eq.s32.totalorder %s120, 0
      %s123 = sadd.s32 %s122, 1
      %s124 = scalar_select %p121, %s122, %s123
      %p127 = pneg %p121
      %p128 = scmp.eq.s32.totalorder %s9, 38
      %p129 = por %p127, %p128
      %p130 = scmp.ne.s32.totalorder %s122, %s125
      %p131 = scmp.eq.s32.totalorder %s9, 0
      %p132 = por %p130, %p131
      %p133 = scmp.ne.s32.totalorder %s122, %s125
      %p134 = scmp.eq.s32.totalorder %s14, 38
      %p135 = por %p133, %p134
      %p136 = scmp.ne.s32.totalorder %s125, %s126
      %p137 = scmp.eq.s32.totalorder %s14, 0
      %p138 = por %p136, %p137
      %p139 = scmp.ne.s32.totalorder %s125, %s126
      %p140 = scmp.eq.s32.totalorder %s15, 38
      %p141 = por %p139, %p140
      %p143 = scmp.ne.s32.totalorder %s126, %s142
      %p144 = scmp.eq.s32.totalorder %s15, 0
      %p145 = por %p143, %p144
      %p146 = scmp.le.s32.totalorder 1, %s9
      %p147 = scmp.lt.s32.totalorder %s9, 40
      %p148 = pnand %p146, %p147
      %p149 = pneg %p148
      // Predicated region
      $region9: #{entry_stem_fwd.54} parent=5 // pred_check
        _
      $region10: #{entry_stem_fwd.54} parent=5 // pred_check_branch
        %151 = sbr.rel (%p148) target = $region12
      $region11: #{entry_stem_fwd.54} parent=5 // pred_region
        %s152 = ssub.s32 %s9, 1
      $region12: #{entry_stem_fwd.54} parent=5 // pred_fallthru
        _
      %p153 = scmp.lt.s32.totalorder %s9, 39
      // Predicated region
      $region13: #{entry_stem_fwd.54} parent=5 // pred_check
        %p154 = pneg %p153
      $region14: #{entry_stem_fwd.54} parent=5 // pred_check_branch
        %156 = sbr.rel (%p154) target = $region16
      $region15: #{entry_stem_fwd.54} parent=5 // pred_region
        // Predicated region
        $region17: #{entry_stem_fwd.54} parent=15 // pred_check
          %p157 = pneg %p50
        $region18: #{entry_stem_fwd.54} parent=15 // pred_check_branch
          %159 = sbr.rel (%p157) target = $region20
        $region19: #{entry_stem_fwd.54} parent=15 // pred_region
          %s160 = smul.u32 4, %s18
          %p161 = scmp.lt.s32.totalorder %s16, 0
          %s162 = scalar_select %p161, %s16, 0
          %p163 = scmp.lt.s32.totalorder %s160, 51
          %s164 = scalar_select %p163, %s160, 51
          %s165 = smul.addr %s162, 52
          %s166 = sadd.s32 %s164, %s165
          %s167 = smul.addr %s166, 4
          %s168 = scalar_lea.vmem %s0, %s167
          %s169 = smul.u32 4, %s18
        $region20: #{entry_stem_fwd.54} parent=15 // pred_fallthru
          _
        // Predicated region
        $region21: #{entry_stem_fwd.54} parent=15 // pred_check
          %p170 = pneg %p78
        $region22: #{entry_stem_fwd.54} parent=15 // pred_check_branch
          %172 = sbr.rel (%p170) target = $region24
        $region23: #{entry_stem_fwd.54} parent=15 // pred_region
          %s173 = sand.u32 %s68, 1
          %s174 = sand.u32 %s68, 1
          %s175 = smul.addr %s174, 512
          %s176 = scalar_lea.vmem [#allocation3], %s175
          %s177 = smul.u32 64, %s18
          %s178 = smul.u32 2, %s17
          %s179 = smul.addr %s177, 6
          %s180 = sadd.s32 %s178, %s179
          %s181 = smul.addr %s180, 4
          %s182 = scalar_lea.vmem %s1, %s181
          // Predicated region
          $region25: #{entry_stem_fwd.54} parent=23 // pred_check
            _
          $region26: #{entry_stem_fwd.54} parent=23 // pred_check_branch
            %184 = sbr.rel (0) target = $region28
          $region27: #{entry_stem_fwd.54} parent=23 // pred_region
            // Predicated region
            $region29: #{entry_stem_fwd.54} parent=27 // pred_check
              _
            $region30: #{entry_stem_fwd.54} parent=27 // pred_check_branch
              %186 = sbr.rel (0) target = $region32
            $region31: #{entry_stem_fwd.54} parent=27 // pred_region
              // Predicated region
              $region44: #{entry_stem_fwd.54} parent=31 // pred_check
                _
              $region45: #{entry_stem_fwd.54} parent=31 // pred_check_branch
                %327 = sbr.rel (0) target = $region47
              $region46: #{entry_stem_fwd.54} parent=31 // pred_region
                loop: start=0, step=1, limit=1
                $region48: #{entry_stem_fwd.54} parent=46 // loop_pre_header
                  _
                $region49: #{entry_stem_fwd.54} parent=46 // loop_header
                  %s329 = sphi 0, %s333
                  %p330 = scmp.ge.s32.totalorder %s329, 1
                  %s334 = sphi %s182, %s182
                  %s335 = sphi %s176, %s176
                $region50: #{entry_stem_fwd.54} parent=46 // loop_header_branch
                  %332 = sbr.rel (%p330) target = $region54
                $region51: #{entry_stem_fwd.54} parent=46 // loop_body
                  %v336 = vld [vmem:[%s334] sm:$0xff]
                  %337 = vst [vmem:[%s335] sm:$0xff] %v336
                  %v338 = vld [vmem:[%s334 + $0x18] sm:$0xff]
                  %339 = vst [vmem:[%s335 + $0x8] sm:$0xff] %v338
                  %v340 = vld [vmem:[%s334 + $0x30] sm:$0xff]
                  %341 = vst [vmem:[%s335 + $0x10] sm:$0xff] %v340
                  %v342 = vld [vmem:[%s334 + $0x48] sm:$0xff]
                  %343 = vst [vmem:[%s335 + $0x18] sm:$0xff] %v342
                  %v344 = vld [vmem:[%s334 + $0x60] sm:$0xff]
                  %345 = vst [vmem:[%s335 + $0x20] sm:$0xff] %v344
                  %v346 = vld [vmem:[%s334 + $0x78] sm:$0xff]
                  %347 = vst [vmem:[%s335 + $0x28] sm:$0xff] %v346
                  %v348 = vld [vmem:[%s334 + $0x90] sm:$0xff]
                  %349 = vst [vmem:[%s335 + $0x30] sm:$0xff] %v348
                  %v350 = vld [vmem:[%s334 + $0xa8] sm:$0xff]
                  %351 = vst [vmem:[%s335 + $0x38] sm:$0xff] %v350
                  %v352 = vld [vmem:[%s334 + $0xc0] sm:$0xff]
                  %353 = vst [vmem:[%s335 + $0x40] sm:$0xff] %v352
                  %v354 = vld [vmem:[%s334 + $0xd8] sm:$0xff]
                  %355 = vst [vmem:[%s335 + $0x48] sm:$0xff] %v354
                  %v356 = vld [vmem:[%s334 + $0xf0] sm:$0xff]
                  %357 = vst [vmem:[%s335 + $0x50] sm:$0xff] %v356
                  %v358 = vld [vmem:[%s334 + $0x108] sm:$0xff]
                  %359 = vst [vmem:[%s335 + $0x58] sm:$0xff] %v358
                  %v360 = vld [vmem:[%s334 + $0x120] sm:$0xff]
                  %361 = vst [vmem:[%s335 + $0x60] sm:$0xff] %v360
                  %v362 = vld [vmem:[%s334 + $0x138] sm:$0xff]
                  %363 = vst [vmem:[%s335 + $0x68] sm:$0xff] %v362
                  %v364 = vld [vmem:[%s334 + $0x150] sm:$0xff]
                  %365 = vst [vmem:[%s335 + $0x70] sm:$0xff] %v364
                  %v366 = vld [vmem:[%s334 + $0x168] sm:$0xff]
                  %367 = vst [vmem:[%s335 + $0x78] sm:$0xff] %v366
                  %v368 = vld [vmem:[%s334 + $0x180] sm:$0xff]
                  %369 = vst [vmem:[%s335 + $0x80] sm:$0xff] %v368
                  %v370 = vld [vmem:[%s334 + $0x198] sm:$0xff]
                  %371 = vst [vmem:[%s335 + $0x88] sm:$0xff] %v370
                  %v372 = vld [vmem:[%s334 + $0x1b0] sm:$0xff]
                  %373 = vst [vmem:[%s335 + $0x90] sm:$0xff] %v372
                  %v374 = vld [vmem:[%s334 + $0x1c8] sm:$0xff]
                  %375 = vst [vmem:[%s335 + $0x98] sm:$0xff] %v374
                  %v376 = vld [vmem:[%s334 + $0x1e0] sm:$0xff]
                  %377 = vst [vmem:[%s335 + $0xa0] sm:$0xff] %v376
                  %v378 = vld [vmem:[%s334 + $0x1f8] sm:$0xff]
                  %379 = vst [vmem:[%s335 + $0xa8] sm:$0xff] %v378
                  %v380 = vld [vmem:[%s334 + $0x210] sm:$0xff]
                  %381 = vst [vmem:[%s335 + $0xb0] sm:$0xff] %v380
                  %v382 = vld [vmem:[%s334 + $0x228] sm:$0xff]
                  %383 = vst [vmem:[%s335 + $0xb8] sm:$0xff] %v382
                  %v384 = vld [vmem:[%s334 + $0x240] sm:$0xff]
                  %385 = vst [vmem:[%s335 + $0xc0] sm:$0xff] %v384
                  %v386 = vld [vmem:[%s334 + $0x258] sm:$0xff]
                  %387 = vst [vmem:[%s335 + $0xc8] sm:$0xff] %v386
                  %v388 = vld [vmem:[%s334 + $0x270] sm:$0xff]
                  %389 = vst [vmem:[%s335 + $0xd0] sm:$0xff] %v388
                  %v390 = vld [vmem:[%s334 + $0x288] sm:$0xff]
                  %391 = vst [vmem:[%s335 + $0xd8] sm:$0xff] %v390
                  %v392 = vld [vmem:[%s334 + $0x2a0] sm:$0xff]
                  %393 = vst [vmem:[%s335 + $0xe0] sm:$0xff] %v392
                  %v394 = vld [vmem:[%s334 + $0x2b8] sm:$0xff]
                  %395 = vst [vmem:[%s335 + $0xe8] sm:$0xff] %v394
                  %v396 = vld [vmem:[%s334 + $0x2d0] sm:$0xff]
                  %397 = vst [vmem:[%s335 + $0xf0] sm:$0xff] %v396
                  %v398 = vld [vmem:[%s334 + $0x2e8] sm:$0xff]
                  %399 = vst [vmem:[%s335 + $0xf8] sm:$0xff] %v398
                  %v400 = vld [vmem:[%s334 + $0x300] sm:$0xff]
                  %401 = vst [vmem:[%s335 + $0x100] sm:$0xff] %v400
                  %v402 = vld [vmem:[%s334 + $0x318] sm:$0xff]
                  %403 = vst [vmem:[%s335 + $0x108] sm:$0xff] %v402
                  %v404 = vld [vmem:[%s334 + $0x330] sm:$0xff]
                  %405 = vst [vmem:[%s335 + $0x110] sm:$0xff] %v404
                  %v406 = vld [vmem:[%s334 + $0x348] sm:$0xff]
                  %407 = vst [vmem:[%s335 + $0x118] sm:$0xff] %v406
                  %v408 = vld [vmem:[%s334 + $0x360] sm:$0xff]
                  %409 = vst [vmem:[%s335 + $0x120] sm:$0xff] %v408
                  %v410 = vld [vmem:[%s334 + $0x378] sm:$0xff]
                  %411 = vst [vmem:[%s335 + $0x128] sm:$0xff] %v410
                  %v412 = vld [vmem:[%s334 + $0x390] sm:$0xff]
                  %413 = vst [vmem:[%s335 + $0x130] sm:$0xff] %v412
                  %v414 = vld [vmem:[%s334 + $0x3a8] sm:$0xff]
                  %415 = vst [vmem:[%s335 + $0x138] sm:$0xff] %v414
                  %v416 = vld [vmem:[%s334 + $0x3c0] sm:$0xff]
                  %417 = vst [vmem:[%s335 + $0x140] sm:$0xff] %v416
                  %v418 = vld [vmem:[%s334 + $0x3d8] sm:$0xff]
                  %419 = vst [vmem:[%s335 + $0x148] sm:$0xff] %v418
                  %v420 = vld [vmem:[%s334 + $0x3f0] sm:$0xff]
                  %421 = vst [vmem:[%s335 + $0x150] sm:$0xff] %v420
                  %v422 = vld [vmem:[%s334 + $0x408] sm:$0xff]
                  %423 = vst [vmem:[%s335 + $0x158] sm:$0xff] %v422
                  %v424 = vld [vmem:[%s334 + $0x420] sm:$0xff]
                  %425 = vst [vmem:[%s335 + $0x160] sm:$0xff] %v424
                  %v426 = vld [vmem:[%s334 + $0x438] sm:$0xff]
                  %427 = vst [vmem:[%s335 + $0x168] sm:$0xff] %v426
                  %v428 = vld [vmem:[%s334 + $0x450] sm:$0xff]
                  %429 = vst [vmem:[%s335 + $0x170] sm:$0xff] %v428
                  %v430 = vld [vmem:[%s334 + $0x468] sm:$0xff]
                  %431 = vst [vmem:[%s335 + $0x178] sm:$0xff] %v430
                  %v432 = vld [vmem:[%s334 + $0x480] sm:$0xff]
                  %433 = vst [vmem:[%s335 + $0x180] sm:$0xff] %v432
                  %v434 = vld [vmem:[%s334 + $0x498] sm:$0xff]
                  %435 = vst [vmem:[%s335 + $0x188] sm:$0xff] %v434
                  %v436 = vld [vmem:[%s334 + $0x4b0] sm:$0xff]
                  %437 = vst [vmem:[%s335 + $0x190] sm:$0xff] %v436
                  %v438 = vld [vmem:[%s334 + $0x4c8] sm:$0xff]
                  %439 = vst [vmem:[%s335 + $0x198] sm:$0xff] %v438
                  %v440 = vld [vmem:[%s334 + $0x4e0] sm:$0xff]
                  %441 = vst [vmem:[%s335 + $0x1a0] sm:$0xff] %v440
                  %v442 = vld [vmem:[%s334 + $0x4f8] sm:$0xff]
                  %443 = vst [vmem:[%s335 + $0x1a8] sm:$0xff] %v442
                  %v444 = vld [vmem:[%s334 + $0x510] sm:$0xff]
                  %445 = vst [vmem:[%s335 + $0x1b0] sm:$0xff] %v444
                  %v446 = vld [vmem:[%s334 + $0x528] sm:$0xff]
                  %447 = vst [vmem:[%s335 + $0x1b8] sm:$0xff] %v446
                  %v448 = vld [vmem:[%s334 + $0x540] sm:$0xff]
                  %449 = vst [vmem:[%s335 + $0x1c0] sm:$0xff] %v448
                  %v450 = vld [vmem:[%s334 + $0x558] sm:$0xff]
                  %451 = vst [vmem:[%s335 + $0x1c8] sm:$0xff] %v450
                  %v452 = vld [vmem:[%s334 + $0x570] sm:$0xff]
                  %453 = vst [vmem:[%s335 + $0x1d0] sm:$0xff] %v452
                  %v454 = vld [vmem:[%s334 + $0x588] sm:$0xff]
                  %455 = vst [vmem:[%s335 + $0x1d8] sm:$0xff] %v454
                  %v456 = vld [vmem:[%s334 + $0x5a0] sm:$0xff]
                  %457 = vst [vmem:[%s335 + $0x1e0] sm:$0xff] %v456
                  %v458 = vld [vmem:[%s334 + $0x5b8] sm:$0xff]
                  %459 = vst [vmem:[%s335 + $0x1e8] sm:$0xff] %v458
                  %v460 = vld [vmem:[%s334 + $0x5d0] sm:$0xff]
                  %461 = vst [vmem:[%s335 + $0x1f0] sm:$0xff] %v460
                  %v462 = vld [vmem:[%s334 + $0x5e8] sm:$0xff]
                  %463 = vst [vmem:[%s335 + $0x1f8] sm:$0xff] %v462
                $region52: #{entry_stem_fwd.54} parent=46 // loop_footer
                  %s333 = sadd.s32 1, %s329
                $region53: #{entry_stem_fwd.54} parent=46 // loop_footer_branch
                  %328 = sbr.rel target = $region49
                $region54: #{entry_stem_fwd.54} parent=46 // loop_exit
                  _
              $region47: #{entry_stem_fwd.54} parent=31 // pred_fallthru
                _
              // Predicated region
              $region55: #{entry_stem_fwd.54} parent=31 // pred_check
                _
              $region56: #{entry_stem_fwd.54} parent=31 // pred_check_branch
                %465 = sbr.rel target = $region58
              $region57: #{entry_stem_fwd.54} parent=31 // pred_region
                _
              $region58: #{entry_stem_fwd.54} parent=31 // pred_fallthru
                _
            $region32: #{entry_stem_fwd.54} parent=27 // pred_fallthru
              _
            // Predicated region
            $region33: #{entry_stem_fwd.54} parent=27 // pred_check
              _
            $region34: #{entry_stem_fwd.54} parent=27 // pred_check_branch
              %188 = sbr.rel target = $region36
            $region35: #{entry_stem_fwd.54} parent=27 // pred_region
              loop: start=0, step=1, limit=1
              $region37: #{entry_stem_fwd.54} parent=35 // loop_pre_header
                _
              $region38: #{entry_stem_fwd.54} parent=35 // loop_header
                %s191 = sphi 0, %s195
                %p192 = scmp.ge.s32.totalorder %s191, 1
                %s196 = sphi %s182, %s182
                %s197 = sphi %s176, %s176
              $region39: #{entry_stem_fwd.54} parent=35 // loop_header_branch
                %194 = sbr.rel (%p192) target = $region43
              $region40: #{entry_stem_fwd.54} parent=35 // loop_body
                %v198 = vld [vmem:[%s196] sm:$0xff]
                %199 = vst [vmem:[%s197] sm:$0xff] %v198
                %v200 = vld [vmem:[%s196 + $0x18] sm:$0xff]
                %201 = vst [vmem:[%s197 + $0x8] sm:$0xff] %v200
                %v202 = vld [vmem:[%s196 + $0x30] sm:$0xff]
                %203 = vst [vmem:[%s197 + $0x10] sm:$0xff] %v202
                %v204 = vld [vmem:[%s196 + $0x48] sm:$0xff]
                %205 = vst [vmem:[%s197 + $0x18] sm:$0xff] %v204
                %v206 = vld [vmem:[%s196 + $0x60] sm:$0xff]
                %207 = vst [vmem:[%s197 + $0x20] sm:$0xff] %v206
                %v208 = vld [vmem:[%s196 + $0x78] sm:$0xff]
                %209 = vst [vmem:[%s197 + $0x28] sm:$0xff] %v208
                %v210 = vld [vmem:[%s196 + $0x90] sm:$0xff]
                %211 = vst [vmem:[%s197 + $0x30] sm:$0xff] %v210
                %v212 = vld [vmem:[%s196 + $0xa8] sm:$0xff]
                %213 = vst [vmem:[%s197 + $0x38] sm:$0xff] %v212
                %v214 = vld [vmem:[%s196 + $0xc0] sm:$0xff]
                %215 = vst [vmem:[%s197 + $0x40] sm:$0xff] %v214
                %v216 = vld [vmem:[%s196 + $0xd8] sm:$0xff]
                %217 = vst [vmem:[%s197 + $0x48] sm:$0xff] %v216
                %v218 = vld [vmem:[%s196 + $0xf0] sm:$0xff]
                %219 = vst [vmem:[%s197 + $0x50] sm:$0xff] %v218
                %v220 = vld [vmem:[%s196 + $0x108] sm:$0xff]
                %221 = vst [vmem:[%s197 + $0x58] sm:$0xff] %v220
                %v222 = vld [vmem:[%s196 + $0x120] sm:$0xff]
                %223 = vst [vmem:[%s197 + $0x60] sm:$0xff] %v222
                %v224 = vld [vmem:[%s196 + $0x138] sm:$0xff]
                %225 = vst [vmem:[%s197 + $0x68] sm:$0xff] %v224
                %v226 = vld [vmem:[%s196 + $0x150] sm:$0xff]
                %227 = vst [vmem:[%s197 + $0x70] sm:$0xff] %v226
                %v228 = vld [vmem:[%s196 + $0x168] sm:$0xff]
                %229 = vst [vmem:[%s197 + $0x78] sm:$0xff] %v228
                %v230 = vld [vmem:[%s196 + $0x180] sm:$0xff]
                %231 = vst [vmem:[%s197 + $0x80] sm:$0xff] %v230
                %v232 = vld [vmem:[%s196 + $0x198] sm:$0xff]
                %233 = vst [vmem:[%s197 + $0x88] sm:$0xff] %v232
                %v234 = vld [vmem:[%s196 + $0x1b0] sm:$0xff]
                %235 = vst [vmem:[%s197 + $0x90] sm:$0xff] %v234
                %v236 = vld [vmem:[%s196 + $0x1c8] sm:$0xff]
                %237 = vst [vmem:[%s197 + $0x98] sm:$0xff] %v236
                %v238 = vld [vmem:[%s196 + $0x1e0] sm:$0xff]
                %239 = vst [vmem:[%s197 + $0xa0] sm:$0xff] %v238
                %v240 = vld [vmem:[%s196 + $0x1f8] sm:$0xff]
                %241 = vst [vmem:[%s197 + $0xa8] sm:$0xff] %v240
                %v242 = vld [vmem:[%s196 + $0x210] sm:$0xff]
                %243 = vst [vmem:[%s197 + $0xb0] sm:$0xff] %v242
                %v244 = vld [vmem:[%s196 + $0x228] sm:$0xff]
                %245 = vst [vmem:[%s197 + $0xb8] sm:$0xff] %v244
                %v246 = vld [vmem:[%s196 + $0x240] sm:$0xff]
                %247 = vst [vmem:[%s197 + $0xc0] sm:$0xff] %v246
                %v248 = vld [vmem:[%s196 + $0x258] sm:$0xff]
                %249 = vst [vmem:[%s197 + $0xc8] sm:$0xff] %v248
                %v250 = vld [vmem:[%s196 + $0x270] sm:$0xff]
                %251 = vst [vmem:[%s197 + $0xd0] sm:$0xff] %v250
                %v252 = vld [vmem:[%s196 + $0x288] sm:$0xff]
                %253 = vst [vmem:[%s197 + $0xd8] sm:$0xff] %v252
                %v254 = vld [vmem:[%s196 + $0x2a0] sm:$0xff]
                %255 = vst [vmem:[%s197 + $0xe0] sm:$0xff] %v254
                %v256 = vld [vmem:[%s196 + $0x2b8] sm:$0xff]
                %257 = vst [vmem:[%s197 + $0xe8] sm:$0xff] %v256
                %v258 = vld [vmem:[%s196 + $0x2d0] sm:$0xff]
                %259 = vst [vmem:[%s197 + $0xf0] sm:$0xff] %v258
                %v260 = vld [vmem:[%s196 + $0x2e8] sm:$0xff]
                %261 = vst [vmem:[%s197 + $0xf8] sm:$0xff] %v260
                %v262 = vld [vmem:[%s196 + $0x300] sm:$0xff]
                %263 = vst [vmem:[%s197 + $0x100] sm:$0xff] %v262
                %v264 = vld [vmem:[%s196 + $0x318] sm:$0xff]
                %265 = vst [vmem:[%s197 + $0x108] sm:$0xff] %v264
                %v266 = vld [vmem:[%s196 + $0x330] sm:$0xff]
                %267 = vst [vmem:[%s197 + $0x110] sm:$0xff] %v266
                %v268 = vld [vmem:[%s196 + $0x348] sm:$0xff]
                %269 = vst [vmem:[%s197 + $0x118] sm:$0xff] %v268
                %v270 = vld [vmem:[%s196 + $0x360] sm:$0xff]
                %271 = vst [vmem:[%s197 + $0x120] sm:$0xff] %v270
                %v272 = vld [vmem:[%s196 + $0x378] sm:$0xff]
                %273 = vst [vmem:[%s197 + $0x128] sm:$0xff] %v272
                %v274 = vld [vmem:[%s196 + $0x390] sm:$0xff]
                %275 = vst [vmem:[%s197 + $0x130] sm:$0xff] %v274
                %v276 = vld [vmem:[%s196 + $0x3a8] sm:$0xff]
                %277 = vst [vmem:[%s197 + $0x138] sm:$0xff] %v276
                %v278 = vld [vmem:[%s196 + $0x3c0] sm:$0xff]
                %279 = vst [vmem:[%s197 + $0x140] sm:$0xff] %v278
                %v280 = vld [vmem:[%s196 + $0x3d8] sm:$0xff]
                %281 = vst [vmem:[%s197 + $0x148] sm:$0xff] %v280
                %v282 = vld [vmem:[%s196 + $0x3f0] sm:$0xff]
                %283 = vst [vmem:[%s197 + $0x150] sm:$0xff] %v282
                %v284 = vld [vmem:[%s196 + $0x408] sm:$0xff]
                %285 = vst [vmem:[%s197 + $0x158] sm:$0xff] %v284
                %v286 = vld [vmem:[%s196 + $0x420] sm:$0xff]
                %287 = vst [vmem:[%s197 + $0x160] sm:$0xff] %v286
                %v288 = vld [vmem:[%s196 + $0x438] sm:$0xff]
                %289 = vst [vmem:[%s197 + $0x168] sm:$0xff] %v288
                %v290 = vld [vmem:[%s196 + $0x450] sm:$0xff]
                %291 = vst [vmem:[%s197 + $0x170] sm:$0xff] %v290
                %v292 = vld [vmem:[%s196 + $0x468] sm:$0xff]
                %293 = vst [vmem:[%s197 + $0x178] sm:$0xff] %v292
                %v294 = vld [vmem:[%s196 + $0x480] sm:$0xff]
                %295 = vst [vmem:[%s197 + $0x180] sm:$0xff] %v294
                %v296 = vld [vmem:[%s196 + $0x498] sm:$0xff]
                %297 = vst [vmem:[%s197 + $0x188] sm:$0xff] %v296
                %v298 = vld [vmem:[%s196 + $0x4b0] sm:$0xff]
                %299 = vst [vmem:[%s197 + $0x190] sm:$0xff] %v298
                %v300 = vld [vmem:[%s196 + $0x4c8] sm:$0xff]
                %301 = vst [vmem:[%s197 + $0x198] sm:$0xff] %v300
                %v302 = vld [vmem:[%s196 + $0x4e0] sm:$0xff]
                %303 = vst [vmem:[%s197 + $0x1a0] sm:$0xff] %v302
                %v304 = vld [vmem:[%s196 + $0x4f8] sm:$0xff]
                %305 = vst [vmem:[%s197 + $0x1a8] sm:$0xff] %v304
                %v306 = vld [vmem:[%s196 + $0x510] sm:$0xff]
                %307 = vst [vmem:[%s197 + $0x1b0] sm:$0xff] %v306
                %v308 = vld [vmem:[%s196 + $0x528] sm:$0xff]
                %309 = vst [vmem:[%s197 + $0x1b8] sm:$0xff] %v308
                %v310 = vld [vmem:[%s196 + $0x540] sm:$0xff]
                %311 = vst [vmem:[%s197 + $0x1c0] sm:$0xff] %v310
                %v312 = vld [vmem:[%s196 + $0x558] sm:$0xff]
                %313 = vst [vmem:[%s197 + $0x1c8] sm:$0xff] %v312
                %v314 = vld [vmem:[%s196 + $0x570] sm:$0xff]
                %315 = vst [vmem:[%s197 + $0x1d0] sm:$0xff] %v314
                %v316 = vld [vmem:[%s196 + $0x588] sm:$0xff]
                %317 = vst [vmem:[%s197 + $0x1d8] sm:$0xff] %v316
                %v318 = vld [vmem:[%s196 + $0x5a0] sm:$0xff]
                %319 = vst [vmem:[%s197 + $0x1e0] sm:$0xff] %v318
                %v320 = vld [vmem:[%s196 + $0x5b8] sm:$0xff]
                %321 = vst [vmem:[%s197 + $0x1e8] sm:$0xff] %v320
                %v322 = vld [vmem:[%s196 + $0x5d0] sm:$0xff]
                %323 = vst [vmem:[%s197 + $0x1f0] sm:$0xff] %v322
                %v324 = vld [vmem:[%s196 + $0x5e8] sm:$0xff]
                %325 = vst [vmem:[%s197 + $0x1f8] sm:$0xff] %v324
              $region41: #{entry_stem_fwd.54} parent=35 // loop_footer
                %s195 = sadd.s32 1, %s191
              $region42: #{entry_stem_fwd.54} parent=35 // loop_footer_branch
                %190 = sbr.rel target = $region38
              $region43: #{entry_stem_fwd.54} parent=35 // loop_exit
                _
            $region36: #{entry_stem_fwd.54} parent=27 // pred_fallthru
              _
          $region28: #{entry_stem_fwd.54} parent=23 // pred_fallthru
            _
          %466 = vnop
        $region24: #{entry_stem_fwd.54} parent=15 // pred_fallthru
          _
        // Predicated region
        $region59: #{entry_stem_fwd.54} parent=15 // pred_check
          %p467 = pneg %p104
        $region60: #{entry_stem_fwd.54} parent=15 // pred_check_branch
          %469 = sbr.rel (%p467) target = $region62
        $region61: #{entry_stem_fwd.54} parent=15 // pred_region
          %s470 = smul.u32 2, %s17
          %p471 = scmp.lt.s32.totalorder %s470, 5
          %s472 = scalar_select %p471, %s470, 5
          %s473 = scalar_lea.vmem %s2, %s472
          %s474 = smul.u32 2, %s17
        $region62: #{entry_stem_fwd.54} parent=15 // pred_fallthru
          _
      $region16: #{entry_stem_fwd.54} parent=5 // pred_fallthru
        _
      %p475 = scmp.le.s32.totalorder 1, %s9
      %p476 = scmp.lt.s32.totalorder %s9, 40
      %p477 = pnand %p475, %p476
      %p478 = pneg %p477
      // Predicated region
      $region63: #{entry_stem_fwd.54} parent=5 // pred_check
        _
      $region64: #{entry_stem_fwd.54} parent=5 // pred_check_branch
        %480 = sbr.rel (%p477) target = $region66
      $region65: #{entry_stem_fwd.54} parent=5 // pred_region
        %s481 = ssub.s32 %s9, 1
        %s482 = sand.u32 %s71, 1
        %s483 = sand.u32 %s71, 1
        %s484 = smul.addr %s483, 512
        %s485 = scalar_lea.vmem [#allocation3], %s484
        // Predicated region
        $region67: #{entry_stem_fwd.54} parent=65 // pred_check
          %p486 = pneg %p84
        $region68: #{entry_stem_fwd.54} parent=65 // pred_check_branch
          %488 = sbr.rel (%p486) target = $region70
        $region69: #{entry_stem_fwd.54} parent=65 // pred_region
          _
        $region70: #{entry_stem_fwd.54} parent=65 // pred_fallthru
          _
        %s489 = smul.u32 4, %s21
        %p490 = scmp.lt.s32.totalorder %s19, 0
        %s491 = scalar_select %p490, %s19, 0
        %p492 = scmp.lt.s32.totalorder %s489, 51
        %s493 = scalar_select %p492, %s489, 51
        %s494 = smul.addr %s491, 52
        %s495 = sadd.s32 %s493, %s494
        %s496 = smul.addr %s495, 4
        %s497 = scalar_lea.vmem %s0, %s496
        %p498 = pneg %p56
        %p499 = pneg %p53
        %s500 = sand.u32 %s71, 1
        %s501 = sand.u32 %s71, 1
        %s502 = smul.addr %s501, 512
        %s503 = scalar_lea.vmem [#allocation3], %s502
        %p504 = pneg %p84
        %p505 = pneg %p81
        %s506 = smul.u32 2, %s20
        %p507 = scmp.lt.s32.totalorder %s506, 5
        %s508 = scalar_select %p507, %s506, 5
        %s509 = scalar_lea.vmem %s2, %s508
        %p510 = pneg %p110
        %p511 = pneg %p107
        %p512 = pneg %p138
        %p513 = pneg %p135
        %s514 = smul.u32 2, %s20
        %p515 = scmp.lt.s32.totalorder %s19, 0
        %s516 = scalar_select %p515, %s19, 0
        %p517 = scmp.lt.s32.totalorder %s514, 5
        %s518 = scalar_select %p517, %s514, 5
        %s519 = smul.addr %s516, 6
        %s520 = sadd.s32 %s518, %s519
        %s521 = smul.addr %s520, 8
        %s522 = scalar_lea.vmem %s3, %s521
        %s523 = smul.u32 4, %s21
        %p524 = scmp.lt.s32.totalorder %s19, 0
        %s525 = scalar_select %p524, %s19, 0
        %p526 = scmp.lt.s32.totalorder %s523, 51
        %s527 = scalar_select %p526, %s523, 51
        %s528 = smul.addr %s525, 52
        %s529 = sadd.s32 %s527, %s528
        %s530 = smul.addr %s529, 4
        %s531 = scalar_lea.vmem %s0, %s530
        %s532 = smul.u32 4, %s21
        %s533 = smul.u32 64, %s21
        %s534 = smul.u32 2, %s20
        %s535 = smul.u32 2, %s20
        %p536 = scmp.lt.s32.totalorder %s535, 5
        %s537 = scalar_select %p536, %s535, 5
        %s538 = scalar_lea.vmem %s2, %s537
        %s539 = smul.u32 2, %s20
        %s540 = smul.u32 2, %s20
        %p541 = scmp.lt.s32.totalorder %s19, 0
        %s542 = scalar_select %p541, %s19, 0
        %p543 = scmp.lt.s32.totalorder %s540, 5
        %s544 = scalar_select %p543, %s540, 5
        %s545 = smul.addr %s542, 6
        %s546 = sadd.s32 %s544, %s545
        %s547 = smul.addr %s546, 8
        %s548 = scalar_lea.vmem %s3, %s547
        %s549 = smul.u32 2, %s20
        %p550 = scmp.eq.s32.totalorder %s21, 0
        // Predicated region
        $region71: #{entry_stem_fwd.54} parent=65 // pred_check
          %p551 = pneg %p550
        $region72: #{entry_stem_fwd.54} parent=65 // pred_check_branch
          %553 = sbr.rel (%p551) target = $region74
        $region73: #{entry_stem_fwd.54} parent=65 // pred_region
          %554 = vst [vmem:[#allocation2] sm:$0xff] 0.0
          %555 = vst [vmem:[#allocation2 + $0x8] sm:$0xff] 0.0
        $region74: #{entry_stem_fwd.54} parent=65 // pred_fallthru
          _
        %v556 = vld [vmem:[#allocation2] sm:$0xff]
        %v557 = vld [vmem:[#allocation2 + $0x8] sm:$0xff]
        %v558 = vld [vmem:[%s531] sm:$0xff]
        %v559 = vld [vmem:[%s531 + $0x8] sm:$0xff]
        %v560 = vld [vmem:[%s485] sm:$0xff]
        %v561 = vld [vmem:[%s485 + $0x8] sm:$0xff]
        %v562 = vld [vmem:[%s485 + $0x10] sm:$0xff]
        %v563 = vld [vmem:[%s485 + $0x18] sm:$0xff]
        %v564 = vld [vmem:[%s485 + $0x20] sm:$0xff]
        %v565 = vld [vmem:[%s485 + $0x28] sm:$0xff]
        %v566 = vld [vmem:[%s485 + $0x30] sm:$0xff]
        %v567 = vld [vmem:[%s485 + $0x38] sm:$0xff]
        %v568 = vld [vmem:[%s485 + $0x40] sm:$0xff]
        %v569 = vld [vmem:[%s485 + $0x48] sm:$0xff]
        %v570 = vld [vmem:[%s485 + $0x50] sm:$0xff]
        %v571 = vld [vmem:[%s485 + $0x58] sm:$0xff]
        %v572 = vld [vmem:[%s485 + $0x60] sm:$0xff]
        %v573 = vld [vmem:[%s485 + $0x68] sm:$0xff]
        %v574 = vld [vmem:[%s485 + $0x70] sm:$0xff]
        %v575 = vld [vmem:[%s485 + $0x78] sm:$0xff]
        %v576 = vld [vmem:[%s485 + $0x80] sm:$0xff]
        %v577 = vld [vmem:[%s485 + $0x88] sm:$0xff]
        %v578 = vld [vmem:[%s485 + $0x90] sm:$0xff]
        %v579 = vld [vmem:[%s485 + $0x98] sm:$0xff]
        %v580 = vld [vmem:[%s485 + $0xa0] sm:$0xff]
        %v581 = vld [vmem:[%s485 + $0xa8] sm:$0xff]
        %v582 = vld [vmem:[%s485 + $0xb0] sm:$0xff]
        %v583 = vld [vmem:[%s485 + $0xb8] sm:$0xff]
        %v584 = vld [vmem:[%s485 + $0xc0] sm:$0xff]
        %v585 = vld [vmem:[%s485 + $0xc8] sm:$0xff]
        %v586 = vld [vmem:[%s485 + $0xd0] sm:$0xff]
        %v587 = vld [vmem:[%s485 + $0xd8] sm:$0xff]
        %v588 = vld [vmem:[%s485 + $0xe0] sm:$0xff]
        %v589 = vld [vmem:[%s485 + $0xe8] sm:$0xff]
        %v590 = vld [vmem:[%s485 + $0xf0] sm:$0xff]
        %v591 = vld [vmem:[%s485 + $0xf8] sm:$0xff]
        %v592 = vld [vmem:[%s485 + $0x100] sm:$0xff]
        %v593 = vld [vmem:[%s485 + $0x108] sm:$0xff]
        %v594 = vld [vmem:[%s485 + $0x110] sm:$0xff]
        %v595 = vld [vmem:[%s485 + $0x118] sm:$0xff]
        %v596 = vld [vmem:[%s485 + $0x120] sm:$0xff]
        %v597 = vld [vmem:[%s485 + $0x128] sm:$0xff]
        %v598 = vld [vmem:[%s485 + $0x130] sm:$0xff]
        %v599 = vld [vmem:[%s485 + $0x138] sm:$0xff]
        %v600 = vld [vmem:[%s485 + $0x140] sm:$0xff]
        %v601 = vld [vmem:[%s485 + $0x148] sm:$0xff]
        %v602 = vld [vmem:[%s485 + $0x150] sm:$0xff]
        %v603 = vld [vmem:[%s485 + $0x158] sm:$0xff]
        %v604 = vld [vmem:[%s485 + $0x160] sm:$0xff]
        %v605 = vld [vmem:[%s485 + $0x168] sm:$0xff]
        %v606 = vld [vmem:[%s485 + $0x170] sm:$0xff]
        %v607 = vld [vmem:[%s485 + $0x178] sm:$0xff]
        %v608 = vld [vmem:[%s485 + $0x180] sm:$0xff]
        %v609 = vld [vmem:[%s485 + $0x188] sm:$0xff]
        %v610 = vld [vmem:[%s485 + $0x190] sm:$0xff]
        %v611 = vld [vmem:[%s485 + $0x198] sm:$0xff]
        %v612 = vld [vmem:[%s485 + $0x1a0] sm:$0xff]
        %v613 = vld [vmem:[%s485 + $0x1a8] sm:$0xff]
        %v614 = vld [vmem:[%s485 + $0x1b0] sm:$0xff]
        %v615 = vld [vmem:[%s485 + $0x1b8] sm:$0xff]
        %v616 = vld [vmem:[%s485 + $0x1c0] sm:$0xff]
        %v617 = vld [vmem:[%s485 + $0x1c8] sm:$0xff]
        %v618 = vld [vmem:[%s485 + $0x1d0] sm:$0xff]
        %v619 = vld [vmem:[%s485 + $0x1d8] sm:$0xff]
        %v620 = vld [vmem:[%s485 + $0x1e0] sm:$0xff]
        %v621 = vld [vmem:[%s485 + $0x1e8] sm:$0xff]
        %v622 = vld [vmem:[%s485 + $0x1f0] sm:$0xff]
        %v623 = vld [vmem:[%s485 + $0x1f8] sm:$0xff]
        %v626 = vunpack.c.l.b16 %v558
        %v627 = vunpack.c.h.b16 %v558
        %v628 = vunpack.c.l.b16 %v559
        %v629 = vunpack.c.h.b16 %v559
        %v630 = vpack.c.b16 %v626, %v626
        %v631 = vpack.c.b16 %v627, %v627
        %v632 = vpack.c.b16 %v628, %v628
        %v633 = vpack.c.b16 %v629, %v629
        %v702 = vunpack.c.l.b16 %v560
        %v703 = vunpack.c.h.b16 %v560
        %v704 = vunpack.c.l.b16 %v561
        %v705 = vunpack.c.h.b16 %v561
        %v706 = vunpack.c.l.b16 %v562
        %v707 = vunpack.c.h.b16 %v562
        %v708 = vunpack.c.l.b16 %v563
        %v709 = vunpack.c.h.b16 %v563
        %v710 = vunpack.c.l.b16 %v564
        %v711 = vunpack.c.h.b16 %v564
        %v712 = vunpack.c.l.b16 %v565
        %v713 = vunpack.c.h.b16 %v565
        %v714 = vunpack.c.l.b16 %v566
        %v715 = vunpack.c.h.b16 %v566
        %v716 = vunpack.c.l.b16 %v567
        %v717 = vunpack.c.h.b16 %v567
        %v718 = vunpack.c.l.b16 %v568
        %v719 = vunpack.c.h.b16 %v568
        %v720 = vunpack.c.l.b16 %v569
        %v721 = vunpack.c.h.b16 %v569
        %v722 = vunpack.c.l.b16 %v570
        %v723 = vunpack.c.h.b16 %v570
        %v724 = vunpack.c.l.b16 %v571
        %v725 = vunpack.c.h.b16 %v571
        %v726 = vunpack.c.l.b16 %v572
        %v727 = vunpack.c.h.b16 %v572
        %v728 = vunpack.c.l.b16 %v573
        %v729 = vunpack.c.h.b16 %v573
        %v730 = vunpack.c.l.b16 %v574
        %v731 = vunpack.c.h.b16 %v574
        %v732 = vunpack.c.l.b16 %v575
        %v733 = vunpack.c.h.b16 %v575
        %v734 = vunpack.c.l.b16 %v576
        %v735 = vunpack.c.h.b16 %v576
        %v736 = vunpack.c.l.b16 %v577
        %v737 = vunpack.c.h.b16 %v577
        %v738 = vunpack.c.l.b16 %v578
        %v739 = vunpack.c.h.b16 %v578
        %v740 = vunpack.c.l.b16 %v579
        %v741 = vunpack.c.h.b16 %v579
        %v742 = vunpack.c.l.b16 %v580
        %v743 = vunpack.c.h.b16 %v580
        %v744 = vunpack.c.l.b16 %v581
        %v745 = vunpack.c.h.b16 %v581
        %v746 = vunpack.c.l.b16 %v582
        %v747 = vunpack.c.h.b16 %v582
        %v748 = vunpack.c.l.b16 %v583
        %v749 = vunpack.c.h.b16 %v583
        %v750 = vunpack.c.l.b16 %v584
        %v751 = vunpack.c.h.b16 %v584
        %v752 = vunpack.c.l.b16 %v585
        %v753 = vunpack.c.h.b16 %v585
        %v754 = vunpack.c.l.b16 %v586
        %v755 = vunpack.c.h.b16 %v586
        %v756 = vunpack.c.l.b16 %v587
        %v757 = vunpack.c.h.b16 %v587
        %v758 = vunpack.c.l.b16 %v588
        %v759 = vunpack.c.h.b16 %v588
        %v760 = vunpack.c.l.b16 %v589
        %v761 = vunpack.c.h.b16 %v589
        %v762 = vunpack.c.l.b16 %v590
        %v763 = vunpack.c.h.b16 %v590
        %v764 = vunpack.c.l.b16 %v591
        %v765 = vunpack.c.h.b16 %v591
        %v766 = vunpack.c.l.b16 %v592
        %v767 = vunpack.c.h.b16 %v592
        %v768 = vunpack.c.l.b16 %v593
        %v769 = vunpack.c.h.b16 %v593
        %v770 = vunpack.c.l.b16 %v594
        %v771 = vunpack.c.h.b16 %v594
        %v772 = vunpack.c.l.b16 %v595
        %v773 = vunpack.c.h.b16 %v595
        %v774 = vunpack.c.l.b16 %v596
        %v775 = vunpack.c.h.b16 %v596
        %v776 = vunpack.c.l.b16 %v597
        %v777 = vunpack.c.h.b16 %v597
        %v778 = vunpack.c.l.b16 %v598
        %v779 = vunpack.c.h.b16 %v598
        %v780 = vunpack.c.l.b16 %v599
        %v781 = vunpack.c.h.b16 %v599
        %v782 = vunpack.c.l.b16 %v600
        %v783 = vunpack.c.h.b16 %v600
        %v784 = vunpack.c.l.b16 %v601
        %v785 = vunpack.c.h.b16 %v601
        %v786 = vunpack.c.l.b16 %v602
        %v787 = vunpack.c.h.b16 %v602
        %v788 = vunpack.c.l.b16 %v603
        %v789 = vunpack.c.h.b16 %v603
        %v790 = vunpack.c.l.b16 %v604
        %v791 = vunpack.c.h.b16 %v604
        %v792 = vunpack.c.l.b16 %v605
        %v793 = vunpack.c.h.b16 %v605
        %v794 = vunpack.c.l.b16 %v606
        %v795 = vunpack.c.h.b16 %v606
        %v796 = vunpack.c.l.b16 %v607
        %v797 = vunpack.c.h.b16 %v607
        %v798 = vunpack.c.l.b16 %v608
        %v799 = vunpack.c.h.b16 %v608
        %v800 = vunpack.c.l.b16 %v609
        %v801 = vunpack.c.h.b16 %v609
        %v802 = vunpack.c.l.b16 %v610
        %v803 = vunpack.c.h.b16 %v610
        %v804 = vunpack.c.l.b16 %v611
        %v805 = vunpack.c.h.b16 %v611
        %v806 = vunpack.c.l.b16 %v612
        %v807 = vunpack.c.h.b16 %v612
        %v808 = vunpack.c.l.b16 %v613
        %v809 = vunpack.c.h.b16 %v613
        %v810 = vunpack.c.l.b16 %v614
        %v811 = vunpack.c.h.b16 %v614
        %v812 = vunpack.c.l.b16 %v615
        %v813 = vunpack.c.h.b16 %v615
        %v814 = vunpack.c.l.b16 %v616
        %v815 = vunpack.c.h.b16 %v616
        %v816 = vunpack.c.l.b16 %v617
        %v817 = vunpack.c.h.b16 %v617
        %v818 = vunpack.c.l.b16 %v618
        %v819 = vunpack.c.h.b16 %v618
        %v820 = vunpack.c.l.b16 %v619
        %v821 = vunpack.c.h.b16 %v619
        %v822 = vunpack.c.l.b16 %v620
        %v823 = vunpack.c.h.b16 %v620
        %v824 = vunpack.c.l.b16 %v621
        %v825 = vunpack.c.h.b16 %v621
        %v826 = vunpack.c.l.b16 %v622
        %v827 = vunpack.c.h.b16 %v622
        %v828 = vunpack.c.l.b16 %v623
        %v829 = vunpack.c.h.b16 %v623
        %v830 = vpack.c.b16 %v704, %v702
        %v831 = vpack.c.b16 %v705, %v703
        %v832 = vpack.c.b16 %v708, %v706
        %v833 = vpack.c.b16 %v709, %v707
        %v834 = vpack.c.b16 %v712, %v710
        %v835 = vpack.c.b16 %v713, %v711
        %v836 = vpack.c.b16 %v716, %v714
        %v837 = vpack.c.b16 %v717, %v715
        %v838 = vpack.c.b16 %v720, %v718
        %v839 = vpack.c.b16 %v721, %v719
        %v840 = vpack.c.b16 %v724, %v722
        %v841 = vpack.c.b16 %v725, %v723
        %v842 = vpack.c.b16 %v728, %v726
        %v843 = vpack.c.b16 %v729, %v727
        %v844 = vpack.c.b16 %v732, %v730
        %v845 = vpack.c.b16 %v733, %v731
        %v846 = vpack.c.b16 %v736, %v734
        %v847 = vpack.c.b16 %v737, %v735
        %v848 = vpack.c.b16 %v740, %v738
        %v849 = vpack.c.b16 %v741, %v739
        %v850 = vpack.c.b16 %v744, %v742
        %v851 = vpack.c.b16 %v745, %v743
        %v852 = vpack.c.b16 %v748, %v746
        %v853 = vpack.c.b16 %v749, %v747
        %v854 = vpack.c.b16 %v752, %v750
        %v855 = vpack.c.b16 %v753, %v751
        %v856 = vpack.c.b16 %v756, %v754
        %v857 = vpack.c.b16 %v757, %v755
        %v858 = vpack.c.b16 %v760, %v758
        %v859 = vpack.c.b16 %v761, %v759
        %v860 = vpack.c.b16 %v764, %v762
        %v861 = vpack.c.b16 %v765, %v763
        %v862 = vpack.c.b16 %v768, %v766
        %v863 = vpack.c.b16 %v769, %v767
        %v864 = vpack.c.b16 %v772, %v770
        %v865 = vpack.c.b16 %v773, %v771
        %v866 = vpack.c.b16 %v776, %v774
        %v867 = vpack.c.b16 %v777, %v775
        %v868 = vpack.c.b16 %v780, %v778
        %v869 = vpack.c.b16 %v781, %v779
        %v870 = vpack.c.b16 %v784, %v782
        %v871 = vpack.c.b16 %v785, %v783
        %v872 = vpack.c.b16 %v788, %v786
        %v873 = vpack.c.b16 %v789, %v787
        %v874 = vpack.c.b16 %v792, %v790
        %v875 = vpack.c.b16 %v793, %v791
        %v876 = vpack.c.b16 %v796, %v794
        %v877 = vpack.c.b16 %v797, %v795
        %v878 = vpack.c.b16 %v800, %v798
        %v879 = vpack.c.b16 %v801, %v799
        %v880 = vpack.c.b16 %v804, %v802
        %v881 = vpack.c.b16 %v805, %v803
        %v882 = vpack.c.b16 %v808, %v806
        %v883 = vpack.c.b16 %v809, %v807
        %v884 = vpack.c.b16 %v812, %v810
        %v885 = vpack.c.b16 %v813, %v811
        %v886 = vpack.c.b16 %v816, %v814
        %v887 = vpack.c.b16 %v817, %v815
        %v888 = vpack.c.b16 %v820, %v818
        %v889 = vpack.c.b16 %v821, %v819
        %v890 = vpack.c.b16 %v824, %v822
        %v891 = vpack.c.b16 %v825, %v823
        %v892 = vpack.c.b16 %v828, %v826
        %v893 = vpack.c.b16 %v829, %v827
        %958 = vmatprep.subr.bf16.mxu0 %v831
        %959 = vmatpush1.bf16.msra.mxu0 %v830
        %960 = vmatprep.subr.bf16.mxu0 %v833
        %961 = vmatpush1.bf16.msra.mxu0 %v832
        %962 = vmatprep.subr.bf16.mxu0 %v835
        %963 = vmatpush1.bf16.msra.mxu0 %v834
        %964 = vmatprep.subr.bf16.mxu0 %v837
        %965 = vmatpush1.bf16.msra.mxu0 %v836
        %966 = vmatprep.subr.bf16.mxu0 %v839
        %967 = vmatpush1.bf16.msra.mxu0 %v838
        %968 = vmatprep.subr.bf16.mxu0 %v841
        %969 = vmatpush1.bf16.msra.mxu0 %v840
        %970 = vmatprep.subr.bf16.mxu0 %v843
        %971 = vmatpush1.bf16.msra.mxu0 %v842
        %972 = vmatprep.subr.bf16.mxu0 %v845
        %973 = vmatpush1.bf16.msra.mxu0 %v844
        %974 = vmatprep.subr.bf16.mxu0 %v847
        %975 = vmatpush1.bf16.msra.mxu0 %v846
        %976 = vmatprep.subr.bf16.mxu0 %v849
        %977 = vmatpush1.bf16.msra.mxu0 %v848
        %978 = vmatprep.subr.bf16.mxu0 %v851
        %979 = vmatpush1.bf16.msra.mxu0 %v850
        %980 = vmatprep.subr.bf16.mxu0 %v853
        %981 = vmatpush1.bf16.msra.mxu0 %v852
        %982 = vmatprep.subr.bf16.mxu0 %v855
        %983 = vmatpush1.bf16.msra.mxu0 %v854
        %984 = vmatprep.subr.bf16.mxu0 %v857
        %985 = vmatpush1.bf16.msra.mxu0 %v856
        %986 = vmatprep.subr.bf16.mxu0 %v859
        %987 = vmatpush1.bf16.msra.mxu0 %v858
        %988 = vmatprep.subr.bf16.mxu0 %v861
        %989 = vmatpush1.bf16.msra.mxu0 %v860
        %990 = vmatprep.mubr.bf16.mxu0 %v631
        %991 = vmatmul.mubr.bf16.gmra.mrb[0].mxu0 %v630
        %v992 = vpop.f32.mrb[0].mxu0
        %v993 = vadd.f32 0.0, %v992
        %v994 = vpop.f32.mrb[0].mxu0
        %v995 = vadd.f32 0.0, %v994
        %v996 = vpop.f32.mrb[0].mxu0
        %v997 = vpop.f32.mrb[0].mxu0
        %998 = vdwg.mxu0
        %999 = vmatprep.subr.bf16.mxu0 %v863
        %1000 = vmatpush1.bf16.msra.mxu0 %v862
        %1001 = vmatprep.subr.bf16.mxu0 %v865
        %1002 = vmatpush1.bf16.msra.mxu0 %v864
        %1003 = vmatprep.subr.bf16.mxu0 %v867
        %1004 = vmatpush1.bf16.msra.mxu0 %v866
        %1005 = vmatprep.subr.bf16.mxu0 %v869
        %1006 = vmatpush1.bf16.msra.mxu0 %v868
        %1007 = vmatprep.subr.bf16.mxu0 %v871
        %1008 = vmatpush1.bf16.msra.mxu0 %v870
        %1009 = vmatprep.subr.bf16.mxu0 %v873
        %1010 = vmatpush1.bf16.msra.mxu0 %v872
        %1011 = vmatprep.subr.bf16.mxu0 %v875
        %1012 = vmatpush1.bf16.msra.mxu0 %v874
        %1013 = vmatprep.subr.bf16.mxu0 %v877
        %1014 = vmatpush1.bf16.msra.mxu0 %v876
        %1015 = vmatprep.subr.bf16.mxu0 %v879
        %1016 = vmatpush1.bf16.msra.mxu0 %v878
        %1017 = vmatprep.subr.bf16.mxu0 %v881
        %1018 = vmatpush1.bf16.msra.mxu0 %v880
        %1019 = vmatprep.subr.bf16.mxu0 %v883
        %1020 = vmatpush1.bf16.msra.mxu0 %v882
        %1021 = vmatprep.subr.bf16.mxu0 %v885
        %1022 = vmatpush1.bf16.msra.mxu0 %v884
        %1023 = vmatprep.subr.bf16.mxu0 %v887
        %1024 = vmatpush1.bf16.msra.mxu0 %v886
        %1025 = vmatprep.subr.bf16.mxu0 %v889
        %1026 = vmatpush1.bf16.msra.mxu0 %v888
        %1027 = vmatprep.subr.bf16.mxu0 %v891
        %1028 = vmatpush1.bf16.msra.mxu0 %v890
        %1029 = vmatprep.subr.bf16.mxu0 %v893
        %1030 = vmatpush1.bf16.msra.mxu0 %v892
        %1031 = vmatprep.mubr.bf16.mxu0 %v633
        %1032 = vmatmul.mubr.bf16.gmra.mrb[0].mxu0 %v632
        %v1033 = vpop.f32.mrb[0].mxu0
        %v1034 = vadd.f32 %v993, %v1033
        %v1035 = vpop.f32.mrb[0].mxu0
        %v1036 = vadd.f32 %v995, %v1035
        %v1037 = vpop.f32.mrb[0].mxu0
        %v1038 = vpop.f32.mrb[0].mxu0
        %1039 = vdwg.mxu0
        %v1040 = vadd.f32 %v556, %v1034
        %v1041 = vadd.f32 %v557, %v1036
        %1042 = vst [vmem:[#allocation2] sm:$0xff] %v1040
        %1043 = vst [vmem:[#allocation2 + $0x8] sm:$0xff] %v1041
        %p1044 = scmp.eq.s32.totalorder %s21, 12
        // Predicated region
        $region75: #{entry_stem_fwd.54} parent=65 // pred_check
          %p1045 = pneg %p1044
        $region76: #{entry_stem_fwd.54} parent=65 // pred_check_branch
          %1047 = sbr.rel (%p1045) target = $region78
        $region77: #{entry_stem_fwd.54} parent=65 // pred_region
          %v1048 = vld [vmem:[#allocation2] sm:$0xff]
          %v1049 = vld [vmem:[#allocation2 + $0x8] sm:$0xff]
          %v1050 = vld [vmem:[%s538] sm:$0x3]
          %v1052 = vlaneseq
          %v1053 = vshrl.u32 %v1052, 7
          %v1054 = vsub.s32 0, %v1053
          %v1055 = vrot.slane %v1050, %v1054
          %v1056 = vlaneseq
          %v1057 = vshrl.u32 %v1056, 7
          %v1058 = vsub.s32 1, %v1057
          %v1059 = vrot.slane %v1050, %v1058
          %v1062 = vadd.f32 %v1048, %v1055
          %v1063 = vadd.f32 %v1049, %v1059
          %1064 = vst [vmem:[%s548] sm:$0xff] %v1062
          %1065 = vst [vmem:[%s548 + $0x8] sm:$0xff] %v1063
        $region78: #{entry_stem_fwd.54} parent=65 // pred_fallthru
          _
        %s1066 = smul.u32 2, %s20
        %p1067 = scmp.lt.s32.totalorder %s19, 0
        %s1068 = scalar_select %p1067, %s19, 0
        %p1069 = scmp.lt.s32.totalorder %s1066, 5
        %s1070 = scalar_select %p1069, %s1066, 5
        %s1071 = smul.addr %s1068, 6
        %s1072 = sadd.s32 %s1070, %s1071
        %s1073 = smul.addr %s1072, 8
        %s1074 = scalar_lea.vmem %s3, %s1073
        // Predicated region
        $region79: #{entry_stem_fwd.54} parent=65 // pred_check
          %p1075 = pneg %p135
        $region80: #{entry_stem_fwd.54} parent=65 // pred_check_branch
          %1077 = sbr.rel (%p1075) target = $region82
        $region81: #{entry_stem_fwd.54} parent=65 // pred_region
          %s1078 = smul.u32 2, %s20
        $region82: #{entry_stem_fwd.54} parent=65 // pred_fallthru
          _
      $region66: #{entry_stem_fwd.54} parent=5 // pred_fallthru
        _
      %p1079 = scmp.le.s32.totalorder 2, %s9
      // Predicated region
      $region83: #{entry_stem_fwd.54} parent=5 // pred_check
        %p1080 = pneg %p1079
      $region84: #{entry_stem_fwd.54} parent=5 // pred_check_branch
        %1082 = sbr.rel (%p1080) target = $region86
      $region85: #{entry_stem_fwd.54} parent=5 // pred_region
        %s1083 = ssub.s32 %s9, 2
        // Predicated region
        $region87: #{entry_stem_fwd.54} parent=85 // pred_check
          %p1084 = pneg %p141
        $region88: #{entry_stem_fwd.54} parent=85 // pred_check_branch
          %1086 = sbr.rel (%p1084) target = $region90
        $region89: #{entry_stem_fwd.54} parent=85 // pred_region
          %s1087 = smul.u32 2, %s23
          %p1088 = scmp.lt.s32.totalorder %s22, 0
          %s1089 = scalar_select %p1088, %s22, 0
          %p1090 = scmp.lt.s32.totalorder %s1087, 5
          %s1091 = scalar_select %p1090, %s1087, 5
          %s1092 = smul.addr %s1089, 6
          %s1093 = sadd.s32 %s1091, %s1092
          %s1094 = smul.addr %s1093, 8
          %s1095 = scalar_lea.vmem %s3, %s1094
        $region90: #{entry_stem_fwd.54} parent=85 // pred_fallthru
          _
      $region86: #{entry_stem_fwd.54} parent=5 // pred_fallthru
        _
    $region6: #{entry_stem_fwd.54} parent=1 // loop_footer
      %s13 = sadd.s32 1, %s9
    $region7: #{entry_stem_fwd.54} parent=1 // loop_footer_branch
      %8 = sbr.rel target = $region3
    $region8: #{entry_stem_fwd.54} parent=1 // loop_exit
      _

// kernel: entry_stem_fwd.55
$region0: #{entry_stem_fwd.55}
  #allocation0 [shape = 'u32[]', space=smem, size = 0x4, offset = 0x4, fixed_abs, tag = 'smem constant byte address 0x4 - core index']
  #allocation1 [shape = 'u32[144,128]{1,0:T(1,128)}', space=vmem, size = 0x12000, scoped, tag = 'internal scratch']
  #allocation2 [shape = 'f32[8,256]{1,0:T(8,128)}', space=vmem, size = 0x2000, scoped, tag = 'scratch operand']
  %s0 = inlined_call_operand.vmem [shape: bf16[8,768], index: 0, kind: input, shape index: {}]
  %s1 = inlined_call_operand.hbm [shape: bf16[768,768], index: 1, kind: input, shape index: {}]
  %s2 = inlined_call_operand.vmem [shape: f32[1,768], index: 2, kind: input, shape index: {}]
  %s3 = inlined_call_operand.vmem [shape: f32[8,768], index: 3, kind: output, shape index: {}]
  %s4 = sld [smem:[#allocation0]]
  $region57: #{entry_stem_fwd.55} parent=0
    _
  %s6 = ssub.s32 1, %s4
  %s7 = scalar_select 0, %s6, %s4
  $region1: #{entry_stem_fwd.55} parent=0
    #allocation3 [shape = 'u8[786432]{0}', space=vmem, size = 0xc0000, scoped, tag = 'input window, operand 1']
    #allocation4 [shape = 's32[2]{0}', space=sflag, size = 0x8, scoped, tag = 'scoped memory for entry_stem_fwd.55']
    %8 = vsyncpa [#allocation4], 0
    %s9 = scalar_lea.sflag [#allocation4], 1
    %10 = vsyncpa %s9, 0
    loop: start=0, step=1, limit=5
    $region2: #{entry_stem_fwd.55} parent=1 // loop_pre_header
      _
    $region3: #{entry_stem_fwd.55} parent=1 // loop_header
      %s12 = sphi 0, %s16
      %p13 = scmp.ge.s32.totalorder %s12, 5
      %s19 = sphi 0, %s38
      %s20 = sphi 0, %s34
      %s21 = sphi 0, %s30
      %s22 = sphi 0, %s19
      %s23 = sphi 0, %s20
      %s24 = sphi 0, %s21
      %s25 = sphi 0, %s22
      %s26 = sphi 0, %s23
      %s27 = sphi 0, %s24
      %s43 = sphi 0, %s45
      %s46 = sphi 0, %s43
      %s47 = sphi 0, %s46
      %s63 = sphi 0, %s47
      %s71 = sphi 0, %s73
      %s74 = sphi 0, %s71
      %s75 = sphi 0, %s74
      %s91 = sphi 0, %s75
      %s97 = sphi 0, %s99
      %s100 = sphi 0, %s97
      %s101 = sphi 0, %s100
      %s117 = sphi 0, %s101
      %s125 = sphi 0, %s127
      %s128 = sphi 0, %s125
      %s129 = sphi 0, %s128
      %s145 = sphi 0, %s129
    $region4: #{entry_stem_fwd.55} parent=1 // loop_header_branch
      %15 = sbr.rel (%p13) target = $region8
    $region5: #{entry_stem_fwd.55} parent=1 // loop_body
      %s17 = ssub.s32 %s12, 1
      %s18 = ssub.s32 %s12, 2
      %s28 = sadd.s32 1, %s21
      %p29 = scmp.ge.s32.totalorder %s28, 1
      %s30 = scalar_select %p29, 0, %s28
      %s31 = sadd.s32 1, %s20
      %s32 = scalar_select %p29, %s31, %s20
      %p33 = scmp.ge.s32.totalorder %s32, 3
      %s34 = scalar_select %p33, 0, %s32
      %s35 = sadd.s32 1, %s19
      %s36 = scalar_select %p33, %s35, %s19
      %p37 = scmp.ge.s32.totalorder %s36, 1
      %s38 = scalar_select %p37, 0, %s36
      %s39 = ssub.s32 %s19, %s38
      %s40 = ssub.s32 %s21, %s30
      %s41 = sor.u32 %s39, %s40
      %p42 = scmp.eq.s32.totalorder %s41, 0
      %s44 = sadd.s32 %s43, 1
      %s45 = scalar_select %p42, %s43, %s44
      %p48 = pneg %p42
      %p49 = scmp.eq.s32.totalorder %s12, 2
      %p50 = por %p48, %p49
      %p51 = scmp.ne.s32.totalorder %s43, %s46
      %p52 = scmp.eq.s32.totalorder %s12, 0
      %p53 = por %p51, %p52
      %p54 = scmp.ne.s32.totalorder %s43, %s46
      %p55 = scmp.eq.s32.totalorder %s17, 2
      %p56 = por %p54, %p55
      %p57 = scmp.ne.s32.totalorder %s46, %s47
      %p58 = scmp.eq.s32.totalorder %s17, 0
      %p59 = por %p57, %p58
      %p60 = scmp.ne.s32.totalorder %s46, %s47
      %p61 = scmp.eq.s32.totalorder %s18, 2
      %p62 = por %p60, %p61
      %p64 = scmp.ne.s32.totalorder %s47, %s63
      %p65 = scmp.eq.s32.totalorder %s18, 0
      %p66 = por %p64, %p65
      %s67 = ssub.s32 %s21, %s30
      %s68 = ssub.s32 %s20, %s34
      %s69 = sor.u32 %s67, %s68
      %p70 = scmp.eq.s32.totalorder %s69, 0
      %s72 = sadd.s32 %s71, 1
      %s73 = scalar_select %p70, %s71, %s72
      %p76 = pneg %p70
      %p77 = scmp.eq.s32.totalorder %s12, 2
      %p78 = por %p76, %p77
      %p79 = scmp.ne.s32.totalorder %s71, %s74
      %p80 = scmp.eq.s32.totalorder %s12, 0
      %p81 = por %p79, %p80
      %p82 = scmp.ne.s32.totalorder %s71, %s74
      %p83 = scmp.eq.s32.totalorder %s17, 2
      %p84 = por %p82, %p83
      %p85 = scmp.ne.s32.totalorder %s74, %s75
      %p86 = scmp.eq.s32.totalorder %s17, 0
      %p87 = por %p85, %p86
      %p88 = scmp.ne.s32.totalorder %s74, %s75
      %p89 = scmp.eq.s32.totalorder %s18, 2
      %p90 = por %p88, %p89
      %p92 = scmp.ne.s32.totalorder %s75, %s91
      %p93 = scmp.eq.s32.totalorder %s18, 0
      %p94 = por %p92, %p93
      %s95 = ssub.s32 %s20, %s34
      %p96 = scmp.eq.s32.totalorder %s95, 0
      %s98 = sadd.s32 %s97, 1
      %s99 = scalar_select %p96, %s97, %s98
      %p102 = pneg %p96
      %p103 = scmp.eq.s32.totalorder %s12, 2
      %p104 = por %p102, %p103
      %p105 = scmp.ne.s32.totalorder %s97, %s100
      %p106 = scmp.eq.s32.totalorder %s12, 0
      %p107 = por %p105, %p106
      %p108 = scmp.ne.s32.totalorder %s97, %s100
      %p109 = scmp.eq.s32.totalorder %s17, 2
      %p110 = por %p108, %p109
      %p111 = scmp.ne.s32.totalorder %s100, %s101
      %p112 = scmp.eq.s32.totalorder %s17, 0
      %p113 = por %p111, %p112
      %p114 = scmp.ne.s32.totalorder %s100, %s101
      %p115 = scmp.eq.s32.totalorder %s18, 2
      %p116 = por %p114, %p115
      %p118 = scmp.ne.s32.totalorder %s101, %s117
      %p119 = scmp.eq.s32.totalorder %s18, 0
      %p120 = por %p118, %p119
      %s121 = ssub.s32 %s19, %s38
      %s122 = ssub.s32 %s20, %s34
      %s123 = sor.u32 %s121, %s122
      %p124 = scmp.eq.s32.totalorder %s123, 0
      %s126 = sadd.s32 %s125, 1
      %s127 = scalar_select %p124, %s125, %s126
      %p130 = pneg %p124
      %p131 = scmp.eq.s32.totalorder %s12, 2
      %p132 = por %p130, %p131
      %p133 = scmp.ne.s32.totalorder %s125, %s128
      %p134 = scmp.eq.s32.totalorder %s12, 0
      %p135 = por %p133, %p134
      %p136 = scmp.ne.s32.totalorder %s125, %s128
      %p137 = scmp.eq.s32.totalorder %s17, 2
      %p138 = por %p136, %p137
      %p139 = scmp.ne.s32.totalorder %s128, %s129
      %p140 = scmp.eq.s32.totalorder %s17, 0
      %p141 = por %p139, %p140
      %p142 = scmp.ne.s32.totalorder %s128, %s129
      %p143 = scmp.eq.s32.totalorder %s18, 2
      %p144 = por %p142, %p143
      %p146 = scmp.ne.s32.totalorder %s129, %s145
      %p147 = scmp.eq.s32.totalorder %s18, 0
      %p148 = por %p146, %p147
      %p149 = scmp.le.s32.totalorder 1, %s12
      %p150 = scmp.lt.s32.totalorder %s12, 4
      %p151 = pnand %p149, %p150
      %p152 = pneg %p151
      // Predicated region
      $region9: #{entry_stem_fwd.55} parent=5 // pred_check
        _
      $region10: #{entry_stem_fwd.55} parent=5 // pred_check_branch
        %154 = sbr.rel (%p151) target = $region12
      $region11: #{entry_stem_fwd.55} parent=5 // pred_region
        %s155 = ssub.s32 %s12, 1
        // Predicated region
        $region13: #{entry_stem_fwd.55} parent=11 // pred_check
          %p156 = pneg %p59
        $region14: #{entry_stem_fwd.55} parent=11 // pred_check_branch
          %158 = sbr.rel (%p156) target = $region16
        $region15: #{entry_stem_fwd.55} parent=11 // pred_region
          %s159 = smul.u32 6, %s24
          %p160 = scmp.lt.s32.totalorder %s22, 0
          %s161 = scalar_select %p160, %s22, 0
          %p162 = scmp.lt.s32.totalorder %s159, 5
          %s163 = scalar_select %p162, %s159, 5
          %s164 = smul.addr %s161, 6
          %s165 = sadd.s32 %s163, %s164
          %s166 = smul.addr %s165, 4
          %s167 = scalar_lea.vmem %s0, %s166
          %s168 = smul.u32 6, %s24
        $region16: #{entry_stem_fwd.55} parent=11 // pred_fallthru
          _
      $region12: #{entry_stem_fwd.55} parent=5 // pred_fallthru
        _
      %p169 = scmp.lt.s32.totalorder %s12, 3
      // Predicated region
      $region17: #{entry_stem_fwd.55} parent=5 // pred_check
        %p170 = pneg %p169
      $region18: #{entry_stem_fwd.55} parent=5 // pred_check_branch
        %172 = sbr.rel (%p170) target = $region20
      $region19: #{entry_stem_fwd.55} parent=5 // pred_region
        // Predicated region
        $region21: #{entry_stem_fwd.55} parent=19 // pred_check
          %p173 = pneg %p81
        $region22: #{entry_stem_fwd.55} parent=19 // pred_check_branch
          %175 = sbr.rel (%p173) target = $region24
        $region23: #{entry_stem_fwd.55} parent=19 // pred_region
          %s176 = sand.u32 %s71, 1
          %s177 = scalar_lea.sflag [#allocation4], %s176
          %s178 = sand.u32 %s71, 1
          %s179 = smul.addr %s178, 768
          %s180 = scalar_lea.vmem [#allocation3], %s179
          %s181 = smul.u32 96, %s21
          %s182 = smul.u32 2, %s20
          %s184 = ssub.s32 12288, 12288
          %185 = vsyncadd %s177, %s184
          %s186 = smul.addr %s181, 6
          %s187 = sadd.s32 %s182, %s186
          %s188 = smul.addr %s187, 64
          %s189 = scalar_lea.hbm %s1, %s188
          %s190 = sshll.u32 %s180, 4
          %s191 = int_to_ptr.vmem [resolvable:$true] %s190
          %196 = dma.hbm_to_vmem [thread:$0]  %s189, 12288, %s191, %s177, 384, 128, 8
        $region24: #{entry_stem_fwd.55} parent=19 // pred_fallthru
          _
        // Predicated region
        $region25: #{entry_stem_fwd.55} parent=19 // pred_check
          %p197 = pneg %p107
        $region26: #{entry_stem_fwd.55} parent=19 // pred_check_branch
          %199 = sbr.rel (%p197) target = $region28
        $region27: #{entry_stem_fwd.55} parent=19 // pred_region
          %s200 = smul.u32 2, %s20
          %p201 = scmp.lt.s32.totalorder %s200, 5
          %s202 = scalar_select %p201, %s200, 5
          %s203 = scalar_lea.vmem %s2, %s202
          %s204 = smul.u32 2, %s20
        $region28: #{entry_stem_fwd.55} parent=19 // pred_fallthru
          _
      $region20: #{entry_stem_fwd.55} parent=5 // pred_fallthru
        _
      %p205 = scmp.le.s32.totalorder 1, %s12
      %p206 = scmp.lt.s32.totalorder %s12, 4
      %p207 = pnand %p205, %p206
      %p208 = pneg %p207
      // Predicated region
      $region29: #{entry_stem_fwd.55} parent=5 // pred_check
        _
      $region30: #{entry_stem_fwd.55} parent=5 // pred_check_branch
        %210 = sbr.rel (%p207) target = $region32
      $region31: #{entry_stem_fwd.55} parent=5 // pred_region
        %s211 = ssub.s32 %s12, 1
        %s212 = sand.u32 %s74, 1
        %s213 = scalar_lea.sflag [#allocation4], %s212
        %s214 = sand.u32 %s74, 1
        %s215 = smul.addr %s214, 768
        %s216 = scalar_lea.vmem [#allocation3], %s215
        // Predicated region
        $region33: #{entry_stem_fwd.55} parent=31 // pred_check
          %p217 = pneg %p87
        $region34: #{entry_stem_fwd.55} parent=31 // pred_check_branch
          %219 = sbr.rel (%p217) target = $region36
        $region35: #{entry_stem_fwd.55} parent=31 // pred_region
          %220 = dma.done %s213, 12288
        $region36: #{entry_stem_fwd.55} parent=31 // pred_fallthru
          _
        %s221 = smul.u32 6, %s24
        %p222 = scmp.lt.s32.totalorder %s22, 0
        %s223 = scalar_select %p222, %s22, 0
        %p224 = scmp.lt.s32.totalorder %s221, 5
        %s225 = scalar_select %p224, %s221, 5
        %s226 = smul.addr %s223, 6
        %s227 = sadd.s32 %s225, %s226
        %s228 = smul.addr %s227, 4
        %s229 = scalar_lea.vmem %s0, %s228
        %p230 = pneg %p59
        %p231 = pneg %p56
        %s232 = sand.u32 %s74, 1
        %s233 = scalar_lea.sflag [#allocation4], %s232
        %s234 = sand.u32 %s74, 1
        %s235 = smul.addr %s234, 768
        %s236 = scalar_lea.vmem [#allocation3], %s235
        %p237 = pneg %p87
        %p238 = pneg %p84
        %s239 = smul.u32 2, %s23
        %p240 = scmp.lt.s32.totalorder %s239, 5
        %s241 = scalar_select %p240, %s239, 5
        %s242 = scalar_lea.vmem %s2, %s241
        %p243 = pneg %p113
        %p244 = pneg %p110
        %p245 = pneg %p141
        %p246 = pneg %p138
        %s247 = smul.u32 2, %s23
        %p248 = scmp.lt.s32.totalorder %s22, 0
        %s249 = scalar_select %p248, %s22, 0
        %p250 = scmp.lt.s32.totalorder %s247, 5
        %s251 = scalar_select %p250, %s247, 5
        %s252 = smul.addr %s249, 6
        %s253 = sadd.s32 %s251, %s252
        %s254 = smul.addr %s253, 8
        %s255 = scalar_lea.vmem %s3, %s254
        %s256 = smul.u32 6, %s24
        %p257 = scmp.lt.s32.totalorder %s22, 0
        %s258 = scalar_select %p257, %s22, 0
        %p259 = scmp.lt.s32.totalorder %s256, 5
        %s260 = scalar_select %p259, %s256, 5
        %s261 = smul.addr %s258, 6
        %s262 = sadd.s32 %s260, %s261
        %s263 = smul.addr %s262, 4
        %s264 = scalar_lea.vmem %s0, %s263
        %s265 = smul.u32 6, %s24
        %s266 = smul.u32 96, %s24
        %s267 = smul.u32 2, %s23
        %s268 = smul.u32 2, %s23
        %p269 = scmp.lt.s32.totalorder %s268, 5
        %s270 = scalar_select %p269, %s268, 5
        %s271 = scalar_lea.vmem %s2, %s270
        %s272 = smul.u32 2, %s23
        %s273 = smul.u32 2, %s23
        %p274 = scmp.lt.s32.totalorder %s22, 0
        %s275 = scalar_select %p274, %s22, 0
        %p276 = scmp.lt.s32.totalorder %s273, 5
        %s277 = scalar_select %p276, %s273, 5
        %s278 = smul.addr %s275, 6
        %s279 = sadd.s32 %s277, %s278
        %s280 = smul.addr %s279, 8
        %s281 = scalar_lea.vmem %s3, %s280
        %s282 = smul.u32 2, %s23
        %p283 = scmp.eq.s32.totalorder %s24, 0
        // Predicated region
        $region37: #{entry_stem_fwd.55} parent=31 // pred_check
          %p284 = pneg %p283
        $region38: #{entry_stem_fwd.55} parent=31 // pred_check_branch
          %286 = sbr.rel (%p284) target = $region40
        $region39: #{entry_stem_fwd.55} parent=31 // pred_region
          %287 = vst [vmem:[#allocation2] sm:$0xff] 0.0
          %288 = vst [vmem:[#allocation2 + $0x8] sm:$0xff] 0.0
        $region40: #{entry_stem_fwd.55} parent=31 // pred_fallthru
          _
        %v289 = vld [vmem:[#allocation2] sm:$0xff]
        %v290 = vld [vmem:[#allocation2 + $0x8] sm:$0xff]
        %v291 = vld [vmem:[%s264] sm:$0xff]
        %v292 = vld [vmem:[%s264 + $0x8] sm:$0xff]
        %v293 = vld [vmem:[%s264 + $0x10] sm:$0xff]
        %v294 = vld [vmem:[%s216] sm:$0xff]
        %v295 = vld [vmem:[%s216 + $0x8] sm:$0xff]
        %v296 = vld [vmem:[%s216 + $0x10] sm:$0xff]
        %v297 = vld [vmem:[%s216 + $0x18] sm:$0xff]
        %v298 = vld [vmem:[%s216 + $0x20] sm:$0xff]
        %v299 = vld [vmem:[%s216 + $0x28] sm:$0xff]
        %v300 = vld [vmem:[%s216 + $0x30] sm:$0xff]
        %v301 = vld [vmem:[%s216 + $0x38] sm:$0xff]
        %v302 = vld [vmem:[%s216 + $0x40] sm:$0xff]
        %v303 = vld [vmem:[%s216 + $0x48] sm:$0xff]
        %v304 = vld [vmem:[%s216 + $0x50] sm:$0xff]
        %v305 = vld [vmem:[%s216 + $0x58] sm:$0xff]
        %v306 = vld [vmem:[%s216 + $0x60] sm:$0xff]
        %v307 = vld [vmem:[%s216 + $0x68] sm:$0xff]
        %v308 = vld [vmem:[%s216 + $0x70] sm:$0xff]
        %v309 = vld [vmem:[%s216 + $0x78] sm:$0xff]
        %v310 = vld [vmem:[%s216 + $0x80] sm:$0xff]
        %v311 = vld [vmem:[%s216 + $0x88] sm:$0xff]
        %v312 = vld [vmem:[%s216 + $0x90] sm:$0xff]
        %v313 = vld [vmem:[%s216 + $0x98] sm:$0xff]
        %v314 = vld [vmem:[%s216 + $0xa0] sm:$0xff]
        %v315 = vld [vmem:[%s216 + $0xa8] sm:$0xff]
        %v316 = vld [vmem:[%s216 + $0xb0] sm:$0xff]
        %v317 = vld [vmem:[%s216 + $0xb8] sm:$0xff]
        %v318 = vld [vmem:[%s216 + $0xc0] sm:$0xff]
        %v319 = vld [vmem:[%s216 + $0xc8] sm:$0xff]
        %v320 = vld [vmem:[%s216 + $0xd0] sm:$0xff]
        %v321 = vld [vmem:[%s216 + $0xd8] sm:$0xff]
        %v322 = vld [vmem:[%s216 + $0xe0] sm:$0xff]
        %v323 = vld [vmem:[%s216 + $0xe8] sm:$0xff]
        %v324 = vld [vmem:[%s216 + $0xf0] sm:$0xff]
        %v325 = vld [vmem:[%s216 + $0xf8] sm:$0xff]
        %v326 = vld [vmem:[%s216 + $0x100] sm:$0xff]
        %v327 = vld [vmem:[%s216 + $0x108] sm:$0xff]
        %v328 = vld [vmem:[%s216 + $0x110] sm:$0xff]
        %v329 = vld [vmem:[%s216 + $0x118] sm:$0xff]
        %v330 = vld [vmem:[%s216 + $0x120] sm:$0xff]
        %v331 = vld [vmem:[%s216 + $0x128] sm:$0xff]
        %v332 = vld [vmem:[%s216 + $0x130] sm:$0xff]
        %v333 = vld [vmem:[%s216 + $0x138] sm:$0xff]
        %v334 = vld [vmem:[%s216 + $0x140] sm:$0xff]
        %v335 = vld [vmem:[%s216 + $0x148] sm:$0xff]
        %v336 = vld [vmem:[%s216 + $0x150] sm:$0xff]
        %v337 = vld [vmem:[%s216 + $0x158] sm:$0xff]
        %v338 = vld [vmem:[%s216 + $0x160] sm:$0xff]
        %v339 = vld [vmem:[%s216 + $0x168] sm:$0xff]
        %v340 = vld [vmem:[%s216 + $0x170] sm:$0xff]
        %v341 = vld [vmem:[%s216 + $0x178] sm:$0xff]
        %v342 = vld [vmem:[%s216 + $0x180] sm:$0xff]
        %v343 = vld [vmem:[%s216 + $0x188] sm:$0xff]
        %v344 = vld [vmem:[%s216 + $0x190] sm:$0xff]
        %v345 = vld [vmem:[%s216 + $0x198] sm:$0xff]
        %v346 = vld [vmem:[%s216 + $0x1a0] sm:$0xff]
        %v347 = vld [vmem:[%s216 + $0x1a8] sm:$0xff]
        %v348 = vld [vmem:[%s216 + $0x1b0] sm:$0xff]
        %v349 = vld [vmem:[%s216 + $0x1b8] sm:$0xff]
        %v350 = vld [vmem:[%s216 + $0x1c0] sm:$0xff]
        %v351 = vld [vmem:[%s216 + $0x1c8] sm:$0xff]
        %v352 = vld [vmem:[%s216 + $0x1d0] sm:$0xff]
        %v353 = vld [vmem:[%s216 + $0x1d8] sm:$0xff]
        %v354 = vld [vmem:[%s216 + $0x1e0] sm:$0xff]
        %v355 = vld [vmem:[%s216 + $0x1e8] sm:$0xff]
        %v356 = vld [vmem:[%s216 + $0x1f0] sm:$0xff]
        %v357 = vld [vmem:[%s216 + $0x1f8] sm:$0xff]
        %v358 = vld [vmem:[%s216 + $0x200] sm:$0xff]
        %v359 = vld [vmem:[%s216 + $0x208] sm:$0xff]
        %v360 = vld [vmem:[%s216 + $0x210] sm:$0xff]
        %v361 = vld [vmem:[%s216 + $0x218] sm:$0xff]
        %v362 = vld [vmem:[%s216 + $0x220] sm:$0xff]
        %v363 = vld [vmem:[%s216 + $0x228] sm:$0xff]
        %v364 = vld [vmem:[%s216 + $0x230] sm:$0xff]
        %v365 = vld [vmem:[%s216 + $0x238] sm:$0xff]
        %v366 = vld [vmem:[%s216 + $0x240] sm:$0xff]
        %v367 = vld [vmem:[%s216 + $0x248] sm:$0xff]
        %v368 = vld [vmem:[%s216 + $0x250] sm:$0xff]
        %v369 = vld [vmem:[%s216 + $0x258] sm:$0xff]
        %v370 = vld [vmem:[%s216 + $0x260] sm:$0xff]
        %v371 = vld [vmem:[%s216 + $0x268] sm:$0xff]
        %v372 = vld [vmem:[%s216 + $0x270] sm:$0xff]
        %v373 = vld [vmem:[%s216 + $0x278] sm:$0xff]
        %v374 = vld [vmem:[%s216 + $0x280] sm:$0xff]
        %v375 = vld [vmem:[%s216 + $0x288] sm:$0xff]
        %v376 = vld [vmem:[%s216 + $0x290] sm:$0xff]
        %v377 = vld [vmem:[%s216 + $0x298] sm:$0xff]
        %v378 = vld [vmem:[%s216 + $0x2a0] sm:$0xff]
        %v379 = vld [vmem:[%s216 + $0x2a8] sm:$0xff]
        %v380 = vld [vmem:[%s216 + $0x2b0] sm:$0xff]
        %v381 = vld [vmem:[%s216 + $0x2b8] sm:$0xff]
        %v382 = vld [vmem:[%s216 + $0x2c0] sm:$0xff]
        %v383 = vld [vmem:[%s216 + $0x2c8] sm:$0xff]
        %v384 = vld [vmem:[%s216 + $0x2d0] sm:$0xff]
        %v385 = vld [vmem:[%s216 + $0x2d8] sm:$0xff]
        %v386 = vld [vmem:[%s216 + $0x2e0] sm:$0xff]
        %v387 = vld [vmem:[%s216 + $0x2e8] sm:$0xff]
        %v388 = vld [vmem:[%s216 + $0x2f0] sm:$0xff]
        %v389 = vld [vmem:[%s216 + $0x2f8] sm:$0xff]
        %v393 = vunpack.c.l.b16 %v291
        %v394 = vunpack.c.h.b16 %v291
        %v395 = vunpack.c.l.b16 %v292
        %v396 = vunpack.c.h.b16 %v292
        %v397 = vunpack.c.l.b16 %v293
        %v398 = vunpack.c.h.b16 %v293
        %v399 = vpack.c.b16 %v393, %v393
        %v400 = vpack.c.b16 %v394, %v394
        %v401 = vpack.c.b16 %v395, %v395
        %v402 = vpack.c.b16 %v396, %v396
        %v403 = vpack.c.b16 %v397, %v397
        %v404 = vpack.c.b16 %v398, %v398
        %v507 = vunpack.c.l.b16 %v294
        %v508 = vunpack.c.h.b16 %v294
        %v509 = vunpack.c.l.b16 %v295
        %v510 = vunpack.c.h.b16 %v295
        %v511 = vunpack.c.l.b16 %v296
        %v512 = vunpack.c.h.b16 %v296
        %v513 = vunpack.c.l.b16 %v297
        %v514 = vunpack.c.h.b16 %v297
        %v515 = vunpack.c.l.b16 %v298
        %v516 = vunpack.c.h.b16 %v298
        %v517 = vunpack.c.l.b16 %v299
        %v518 = vunpack.c.h.b16 %v299
        %v519 = vunpack.c.l.b16 %v300
        %v520 = vunpack.c.h.b16 %v300
        %v521 = vunpack.c.l.b16 %v301
        %v522 = vunpack.c.h.b16 %v301
        %v523 = vunpack.c.l.b16 %v302
        %v524 = vunpack.c.h.b16 %v302
        %v525 = vunpack.c.l.b16 %v303
        %v526 = vunpack.c.h.b16 %v303
        %v527 = vunpack.c.l.b16 %v304
        %v528 = vunpack.c.h.b16 %v304
        %v529 = vunpack.c.l.b16 %v305
        %v530 = vunpack.c.h.b16 %v305
        %v531 = vunpack.c.l.b16 %v306
        %v532 = vunpack.c.h.b16 %v306
        %v533 = vunpack.c.l.b16 %v307
        %v534 = vunpack.c.h.b16 %v307
        %v535 = vunpack.c.l.b16 %v308
        %v536 = vunpack.c.h.b16 %v308
        %v537 = vunpack.c.l.b16 %v309
        %v538 = vunpack.c.h.b16 %v309
        %v539 = vunpack.c.l.b16 %v310
        %v540 = vunpack.c.h.b16 %v310
        %v541 = vunpack.c.l.b16 %v311
        %v542 = vunpack.c.h.b16 %v311
        %v543 = vunpack.c.l.b16 %v312
        %v544 = vunpack.c.h.b16 %v312
        %v545 = vunpack.c.l.b16 %v313
        %v546 = vunpack.c.h.b16 %v313
        %v547 = vunpack.c.l.b16 %v314
        %v548 = vunpack.c.h.b16 %v314
        %v549 = vunpack.c.l.b16 %v315
        %v550 = vunpack.c.h.b16 %v315
        %v551 = vunpack.c.l.b16 %v316
        %v552 = vunpack.c.h.b16 %v316
        %v553 = vunpack.c.l.b16 %v317
        %v554 = vunpack.c.h.b16 %v317
        %v555 = vunpack.c.l.b16 %v318
        %v556 = vunpack.c.h.b16 %v318
        %v557 = vunpack.c.l.b16 %v319
        %v558 = vunpack.c.h.b16 %v319
        %v559 = vunpack.c.l.b16 %v320
        %v560 = vunpack.c.h.b16 %v320
        %v561 = vunpack.c.l.b16 %v321
        %v562 = vunpack.c.h.b16 %v321
        %v563 = vunpack.c.l.b16 %v322
        %v564 = vunpack.c.h.b16 %v322
        %v565 = vunpack.c.l.b16 %v323
        %v566 = vunpack.c.h.b16 %v323
        %v567 = vunpack.c.l.b16 %v324
        %v568 = vunpack.c.h.b16 %v324
        %v569 = vunpack.c.l.b16 %v325
        %v570 = vunpack.c.h.b16 %v325
        %v571 = vunpack.c.l.b16 %v326
        %v572 = vunpack.c.h.b16 %v326
        %v573 = vunpack.c.l.b16 %v327
        %v574 = vunpack.c.h.b16 %v327
        %v575 = vunpack.c.l.b16 %v328
        %v576 = vunpack.c.h.b16 %v328
        %v577 = vunpack.c.l.b16 %v329
        %v578 = vunpack.c.h.b16 %v329
        %v579 = vunpack.c.l.b16 %v330
        %v580 = vunpack.c.h.b16 %v330
        %v581 = vunpack.c.l.b16 %v331
        %v582 = vunpack.c.h.b16 %v331
        %v583 = vunpack.c.l.b16 %v332
        %v584 = vunpack.c.h.b16 %v332
        %v585 = vunpack.c.l.b16 %v333
        %v586 = vunpack.c.h.b16 %v333
        %v587 = vunpack.c.l.b16 %v334
        %v588 = vunpack.c.h.b16 %v334
        %v589 = vunpack.c.l.b16 %v335
        %v590 = vunpack.c.h.b16 %v335
        %v591 = vunpack.c.l.b16 %v336
        %v592 = vunpack.c.h.b16 %v336
        %v593 = vunpack.c.l.b16 %v337
        %v594 = vunpack.c.h.b16 %v337
        %v595 = vunpack.c.l.b16 %v338
        %v596 = vunpack.c.h.b16 %v338
        %v597 = vunpack.c.l.b16 %v339
        %v598 = vunpack.c.h.b16 %v339
        %v599 = vunpack.c.l.b16 %v340
        %v600 = vunpack.c.h.b16 %v340
        %v601 = vunpack.c.l.b16 %v341
        %v602 = vunpack.c.h.b16 %v341
        %v603 = vunpack.c.l.b16 %v342
        %v604 = vunpack.c.h.b16 %v342
        %v605 = vunpack.c.l.b16 %v343
        %v606 = vunpack.c.h.b16 %v343
        %v607 = vunpack.c.l.b16 %v344
        %v608 = vunpack.c.h.b16 %v344
        %v609 = vunpack.c.l.b16 %v345
        %v610 = vunpack.c.h.b16 %v345
        %v611 = vunpack.c.l.b16 %v346
        %v612 = vunpack.c.h.b16 %v346
        %v613 = vunpack.c.l.b16 %v347
        %v614 = vunpack.c.h.b16 %v347
        %v615 = vunpack.c.l.b16 %v348
        %v616 = vunpack.c.h.b16 %v348
        %v617 = vunpack.c.l.b16 %v349
        %v618 = vunpack.c.h.b16 %v349
        %v619 = vunpack.c.l.b16 %v350
        %v620 = vunpack.c.h.b16 %v350
        %v621 = vunpack.c.l.b16 %v351
        %v622 = vunpack.c.h.b16 %v351
        %v623 = vunpack.c.l.b16 %v352
        %v624 = vunpack.c.h.b16 %v352
        %v625 = vunpack.c.l.b16 %v353
        %v626 = vunpack.c.h.b16 %v353
        %v627 = vunpack.c.l.b16 %v354
        %v628 = vunpack.c.h.b16 %v354
        %v629 = vunpack.c.l.b16 %v355
        %v630 = vunpack.c.h.b16 %v355
        %v631 = vunpack.c.l.b16 %v356
        %v632 = vunpack.c.h.b16 %v356
        %v633 = vunpack.c.l.b16 %v357
        %v634 = vunpack.c.h.b16 %v357
        %v635 = vunpack.c.l.b16 %v358
        %v636 = vunpack.c.h.b16 %v358
        %v637 = vunpack.c.l.b16 %v359
        %v638 = vunpack.c.h.b16 %v359
        %v639 = vunpack.c.l.b16 %v360
        %v640 = vunpack.c.h.b16 %v360
        %v641 = vunpack.c.l.b16 %v361
        %v642 = vunpack.c.h.b16 %v361
        %v643 = vunpack.c.l.b16 %v362
        %v644 = vunpack.c.h.b16 %v362
        %v645 = vunpack.c.l.b16 %v363
        %v646 = vunpack.c.h.b16 %v363
        %v647 = vunpack.c.l.b16 %v364
        %v648 = vunpack.c.h.b16 %v364
        %v649 = vunpack.c.l.b16 %v365
        %v650 = vunpack.c.h.b16 %v365
        %v651 = vunpack.c.l.b16 %v366
        %v652 = vunpack.c.h.b16 %v366
        %v653 = vunpack.c.l.b16 %v367
        %v654 = vunpack.c.h.b16 %v367
        %v655 = vunpack.c.l.b16 %v368
        %v656 = vunpack.c.h.b16 %v368
        %v657 = vunpack.c.l.b16 %v369
        %v658 = vunpack.c.h.b16 %v369
        %v659 = vunpack.c.l.b16 %v370
        %v660 = vunpack.c.h.b16 %v370
        %v661 = vunpack.c.l.b16 %v371
        %v662 = vunpack.c.h.b16 %v371
        %v663 = vunpack.c.l.b16 %v372
        %v664 = vunpack.c.h.b16 %v372
        %v665 = vunpack.c.l.b16 %v373
        %v666 = vunpack.c.h.b16 %v373
        %v667 = vunpack.c.l.b16 %v374
        %v668 = vunpack.c.h.b16 %v374
        %v669 = vunpack.c.l.b16 %v375
        %v670 = vunpack.c.h.b16 %v375
        %v671 = vunpack.c.l.b16 %v376
        %v672 = vunpack.c.h.b16 %v376
        %v673 = vunpack.c.l.b16 %v377
        %v674 = vunpack.c.h.b16 %v377
        %v675 = vunpack.c.l.b16 %v378
        %v676 = vunpack.c.h.b16 %v378
        %v677 = vunpack.c.l.b16 %v379
        %v678 = vunpack.c.h.b16 %v379
        %v679 = vunpack.c.l.b16 %v380
        %v680 = vunpack.c.h.b16 %v380
        %v681 = vunpack.c.l.b16 %v381
        %v682 = vunpack.c.h.b16 %v381
        %v683 = vunpack.c.l.b16 %v382
        %v684 = vunpack.c.h.b16 %v382
        %v685 = vunpack.c.l.b16 %v383
        %v686 = vunpack.c.h.b16 %v383
        %v687 = vunpack.c.l.b16 %v384
        %v688 = vunpack.c.h.b16 %v384
        %v689 = vunpack.c.l.b16 %v385
        %v690 = vunpack.c.h.b16 %v385
        %v691 = vunpack.c.l.b16 %v386
        %v692 = vunpack.c.h.b16 %v386
        %v693 = vunpack.c.l.b16 %v387
        %v694 = vunpack.c.h.b16 %v387
        %v695 = vunpack.c.l.b16 %v388
        %v696 = vunpack.c.h.b16 %v388
        %v697 = vunpack.c.l.b16 %v389
        %v698 = vunpack.c.h.b16 %v389
        %v699 = vpack.c.b16 %v509, %v507
        %v700 = vpack.c.b16 %v510, %v508
        %v701 = vpack.c.b16 %v513, %v511
        %v702 = vpack.c.b16 %v514, %v512
        %v703 = vpack.c.b16 %v517, %v515
        %v704 = vpack.c.b16 %v518, %v516
        %v705 = vpack.c.b16 %v521, %v519
        %v706 = vpack.c.b16 %v522, %v520
        %v707 = vpack.c.b16 %v525, %v523
        %v708 = vpack.c.b16 %v526, %v524
        %v709 = vpack.c.b16 %v529, %v527
        %v710 = vpack.c.b16 %v530, %v528
        %v711 = vpack.c.b16 %v533, %v531
        %v712 = vpack.c.b16 %v534, %v532
        %v713 = vpack.c.b16 %v537, %v535
        %v714 = vpack.c.b16 %v538, %v536
        %v715 = vpack.c.b16 %v541, %v539
        %v716 = vpack.c.b16 %v542, %v540
        %v717 = vpack.c.b16 %v545, %v543
        %v718 = vpack.c.b16 %v546, %v544
        %v719 = vpack.c.b16 %v549, %v547
        %v720 = vpack.c.b16 %v550, %v548
        %v721 = vpack.c.b16 %v553, %v551
        %v722 = vpack.c.b16 %v554, %v552
        %v723 = vpack.c.b16 %v557, %v555
        %v724 = vpack.c.b16 %v558, %v556
        %v725 = vpack.c.b16 %v561, %v559
        %v726 = vpack.c.b16 %v562, %v560
        %v727 = vpack.c.b16 %v565, %v563
        %v728 = vpack.c.b16 %v566, %v564
        %v729 = vpack.c.b16 %v569, %v567
        %v730 = vpack.c.b16 %v570, %v568
        %v731 = vpack.c.b16 %v573, %v571
        %v732 = vpack.c.b16 %v574, %v572
        %v733 = vpack.c.b16 %v577, %v575
        %v734 = vpack.c.b16 %v578, %v576
        %v735 = vpack.c.b16 %v581, %v579
        %v736 = vpack.c.b16 %v582, %v580
        %v737 = vpack.c.b16 %v585, %v583
        %v738 = vpack.c.b16 %v586, %v584
        %v739 = vpack.c.b16 %v589, %v587
        %v740 = vpack.c.b16 %v590, %v588
        %v741 = vpack.c.b16 %v593, %v591
        %v742 = vpack.c.b16 %v594, %v592
        %v743 = vpack.c.b16 %v597, %v595
        %v744 = vpack.c.b16 %v598, %v596
        %v745 = vpack.c.b16 %v601, %v599
        %v746 = vpack.c.b16 %v602, %v600
        %v747 = vpack.c.b16 %v605, %v603
        %v748 = vpack.c.b16 %v606, %v604
        %v749 = vpack.c.b16 %v609, %v607
        %v750 = vpack.c.b16 %v610, %v608
        %v751 = vpack.c.b16 %v613, %v611
        %v752 = vpack.c.b16 %v614, %v612
        %v753 = vpack.c.b16 %v617, %v615
        %v754 = vpack.c.b16 %v618, %v616
        %v755 = vpack.c.b16 %v621, %v619
        %v756 = vpack.c.b16 %v622, %v620
        %v757 = vpack.c.b16 %v625, %v623
        %v758 = vpack.c.b16 %v626, %v624
        %v759 = vpack.c.b16 %v629, %v627
        %v760 = vpack.c.b16 %v630, %v628
        %v761 = vpack.c.b16 %v633, %v631
        %v762 = vpack.c.b16 %v634, %v632
        %v763 = vpack.c.b16 %v637, %v635
        %v764 = vpack.c.b16 %v638, %v636
        %v765 = vpack.c.b16 %v641, %v639
        %v766 = vpack.c.b16 %v642, %v640
        %v767 = vpack.c.b16 %v645, %v643
        %v768 = vpack.c.b16 %v646, %v644
        %v769 = vpack.c.b16 %v649, %v647
        %v770 = vpack.c.b16 %v650, %v648
        %v771 = vpack.c.b16 %v653, %v651
        %v772 = vpack.c.b16 %v654, %v652
        %v773 = vpack.c.b16 %v657, %v655
        %v774 = vpack.c.b16 %v658, %v656
        %v775 = vpack.c.b16 %v661, %v659
        %v776 = vpack.c.b16 %v662, %v660
        %v777 = vpack.c.b16 %v665, %v663
        %v778 = vpack.c.b16 %v666, %v664
        %v779 = vpack.c.b16 %v669, %v667
        %v780 = vpack.c.b16 %v670, %v668
        %v781 = vpack.c.b16 %v673, %v671
        %v782 = vpack.c.b16 %v674, %v672
        %v783 = vpack.c.b16 %v677, %v675
        %v784 = vpack.c.b16 %v678, %v676
        %v785 = vpack.c.b16 %v681, %v679
        %v786 = vpack.c.b16 %v682, %v680
        %v787 = vpack.c.b16 %v685, %v683
        %v788 = vpack.c.b16 %v686, %v684
        %v789 = vpack.c.b16 %v689, %v687
        %v790 = vpack.c.b16 %v690, %v688
        %v791 = vpack.c.b16 %v693, %v691
        %v792 = vpack.c.b16 %v694, %v692
        %v793 = vpack.c.b16 %v697, %v695
        %v794 = vpack.c.b16 %v698, %v696
        %891 = vmatprep.subr.bf16.mxu0 %v700
        %892 = vmatpush1.bf16.msra.mxu0 %v699
        %893 = vmatprep.subr.bf16.mxu0 %v702
        %894 = vmatpush1.bf16.msra.mxu0 %v701
        %895 = vmatprep.subr.bf16.mxu0 %v704
        %896 = vmatpush1.bf16.msra.mxu0 %v703
        %897 = vmatprep.subr.bf16.mxu0 %v706
        %898 = vmatpush1.bf16.msra.mxu0 %v705
        %899 = vmatprep.subr.bf16.mxu0 %v708
        %900 = vmatpush1.bf16.msra.mxu0 %v707
        %901 = vmatprep.subr.bf16.mxu0 %v710
        %902 = vmatpush1.bf16.msra.mxu0 %v709
        %903 = vmatprep.subr.bf16.mxu0 %v712
        %904 = vmatpush1.bf16.msra.mxu0 %v711
        %905 = vmatprep.subr.bf16.mxu0 %v714
        %906 = vmatpush1.bf16.msra.mxu0 %v713
        %907 = vmatprep.subr.bf16.mxu0 %v716
        %908 = vmatpush1.bf16.msra.mxu0 %v715
        %909 = vmatprep.subr.bf16.mxu0 %v718
        %910 = vmatpush1.bf16.msra.mxu0 %v717
        %911 = vmatprep.subr.bf16.mxu0 %v720
        %912 = vmatpush1.bf16.msra.mxu0 %v719
        %913 = vmatprep.subr.bf16.mxu0 %v722
        %914 = vmatpush1.bf16.msra.mxu0 %v721
        %915 = vmatprep.subr.bf16.mxu0 %v724
        %916 = vmatpush1.bf16.msra.mxu0 %v723
        %917 = vmatprep.subr.bf16.mxu0 %v726
        %918 = vmatpush1.bf16.msra.mxu0 %v725
        %919 = vmatprep.subr.bf16.mxu0 %v728
        %920 = vmatpush1.bf16.msra.mxu0 %v727
        %921 = vmatprep.subr.bf16.mxu0 %v730
        %922 = vmatpush1.bf16.msra.mxu0 %v729
        %923 = vmatprep.mubr.bf16.mxu0 %v400
        %924 = vmatmul.mubr.bf16.gmra.mrb[0].mxu0 %v399
        %v925 = vpop.f32.mrb[0].mxu0
        %v926 = vadd.f32 0.0, %v925
        %v927 = vpop.f32.mrb[0].mxu0
        %v928 = vadd.f32 0.0, %v927
        %v929 = vpop.f32.mrb[0].mxu0
        %v930 = vpop.f32.mrb[0].mxu0
        %931 = vdwg.mxu0
        %932 = vmatprep.subr.bf16.mxu0 %v732
        %933 = vmatpush1.bf16.msra.mxu0 %v731
        %934 = vmatprep.subr.bf16.mxu0 %v734
        %935 = vmatpush1.bf16.msra.mxu0 %v733
        %936 = vmatprep.subr.bf16.mxu0 %v736
        %937 = vmatpush1.bf16.msra.mxu0 %v735
        %938 = vmatprep.subr.bf16.mxu0 %v738
        %939 = vmatpush1.bf16.msra.mxu0 %v737
        %940 = vmatprep.subr.bf16.mxu0 %v740
        %941 = vmatpush1.bf16.msra.mxu0 %v739
        %942 = vmatprep.subr.bf16.mxu0 %v742
        %943 = vmatpush1.bf16.msra.mxu0 %v741
        %944 = vmatprep.subr.bf16.mxu0 %v744
        %945 = vmatpush1.bf16.msra.mxu0 %v743
        %946 = vmatprep.subr.bf16.mxu0 %v746
        %947 = vmatpush1.bf16.msra.mxu0 %v745
        %948 = vmatprep.subr.bf16.mxu0 %v748
        %949 = vmatpush1.bf16.msra.mxu0 %v747
        %950 = vmatprep.subr.bf16.mxu0 %v750
        %951 = vmatpush1.bf16.msra.mxu0 %v749
        %952 = vmatprep.subr.bf16.mxu0 %v752
        %953 = vmatpush1.bf16.msra.mxu0 %v751
        %954 = vmatprep.subr.bf16.mxu0 %v754
        %955 = vmatpush1.bf16.msra.mxu0 %v753
        %956 = vmatprep.subr.bf16.mxu0 %v756
        %957 = vmatpush1.bf16.msra.mxu0 %v755
        %958 = vmatprep.subr.bf16.mxu0 %v758
        %959 = vmatpush1.bf16.msra.mxu0 %v757
        %960 = vmatprep.subr.bf16.mxu0 %v760
        %961 = vmatpush1.bf16.msra.mxu0 %v759
        %962 = vmatprep.subr.bf16.mxu0 %v762
        %963 = vmatpush1.bf16.msra.mxu0 %v761
        %964 = vmatprep.mubr.bf16.mxu0 %v402
        %965 = vmatmul.mubr.bf16.gmra.mrb[0].mxu0 %v401
        %v966 = vpop.f32.mrb[0].mxu0
        %v967 = vadd.f32 %v926, %v966
        %v968 = vpop.f32.mrb[0].mxu0
        %v969 = vadd.f32 %v928, %v968
        %v970 = vpop.f32.mrb[0].mxu0
        %v971 = vpop.f32.mrb[0].mxu0
        %972 = vdwg.mxu0
        %973 = vmatprep.subr.bf16.mxu0 %v764
        %974 = vmatpush1.bf16.msra.mxu0 %v763
        %975 = vmatprep.subr.bf16.mxu0 %v766
        %976 = vmatpush1.bf16.msra.mxu0 %v765
        %977 = vmatprep.subr.bf16.mxu0 %v768
        %978 = vmatpush1.bf16.msra.mxu0 %v767
        %979 = vmatprep.subr.bf16.mxu0 %v770
        %980 = vmatpush1.bf16.msra.mxu0 %v769
        %981 = vmatprep.subr.bf16.mxu0 %v772
        %982 = vmatpush1.bf16.msra.mxu0 %v771
        %983 = vmatprep.subr.bf16.mxu0 %v774
        %984 = vmatpush1.bf16.msra.mxu0 %v773
        %985 = vmatprep.subr.bf16.mxu0 %v776
        %986 = vmatpush1.bf16.msra.mxu0 %v775
        %987 = vmatprep.subr.bf16.mxu0 %v778
        %988 = vmatpush1.bf16.msra.mxu0 %v777
        %989 = vmatprep.subr.bf16.mxu0 %v780
        %990 = vmatpush1.bf16.msra.mxu0 %v779
        %991 = vmatprep.subr.bf16.mxu0 %v782
        %992 = vmatpush1.bf16.msra.mxu0 %v781
        %993 = vmatprep.subr.bf16.mxu0 %v784
        %994 = vmatpush1.bf16.msra.mxu0 %v783
        %995 = vmatprep.subr.bf16.mxu0 %v786
        %996 = vmatpush1.bf16.msra.mxu0 %v785
        %997 = vmatprep.subr.bf16.mxu0 %v788
        %998 = vmatpush1.bf16.msra.mxu0 %v787
        %999 = vmatprep.subr.bf16.mxu0 %v790
        %1000 = vmatpush1.bf16.msra.mxu0 %v789
        %1001 = vmatprep.subr.bf16.mxu0 %v792
        %1002 = vmatpush1.bf16.msra.mxu0 %v791
        %1003 = vmatprep.subr.bf16.mxu0 %v794
        %1004 = vmatpush1.bf16.msra.mxu0 %v793
        %1005 = vmatprep.mubr.bf16.mxu0 %v404
        %1006 = vmatmul.mubr.bf16.gmra.mrb[0].mxu0 %v403
        %v1007 = vpop.f32.mrb[0].mxu0
        %v1008 = vadd.f32 %v967, %v1007
        %v1009 = vpop.f32.mrb[0].mxu0
        %v1010 = vadd.f32 %v969, %v1009
        %v1011 = vpop.f32.mrb[0].mxu0
        %v1012 = vpop.f32.mrb[0].mxu0
        %1013 = vdwg.mxu0
        %v1014 = vadd.f32 %v289, %v1008
        %v1015 = vadd.f32 %v290, %v1010
        %1016 = vst [vmem:[#allocation2] sm:$0xff] %v1014
        %1017 = vst [vmem:[#allocation2 + $0x8] sm:$0xff] %v1015
        // Predicated region
        $region41: #{entry_stem_fwd.55} parent=31 // pred_check
          %p1018 = pneg %p283
        $region42: #{entry_stem_fwd.55} parent=31 // pred_check_branch
          %1020 = sbr.rel (%p1018) target = $region44
        $region43: #{entry_stem_fwd.55} parent=31 // pred_region
          %v1021 = vld [vmem:[#allocation2] sm:$0xff]
          %v1022 = vld [vmem:[#allocation2 + $0x8] sm:$0xff]
          %v1023 = vld [vmem:[%s271] sm:$0x3]
          %v1025 = vlaneseq
          %v1026 = vshrl.u32 %v1025, 7
          %v1027 = vsub.s32 0, %v1026
          %v1028 = vrot.slane %v1023, %v1027
          %v1029 = vlaneseq
          %v1030 = vshrl.u32 %v1029, 7
          %v1031 = vsub.s32 1, %v1030
          %v1032 = vrot.slane %v1023, %v1031
          %v1035 = vadd.f32 %v1021, %v1028
          %v1036 = vadd.f32 %v1022, %v1032
          %1037 = vst [vmem:[%s281] sm:$0xff] %v1035
          %1038 = vst [vmem:[%s281 + $0x8] sm:$0xff] %v1036
        $region44: #{entry_stem_fwd.55} parent=31 // pred_fallthru
          _
        %s1039 = smul.u32 2, %s23
        %p1040 = scmp.lt.s32.totalorder %s22, 0
        %s1041 = scalar_select %p1040, %s22, 0
        %p1042 = scmp.lt.s32.totalorder %s1039, 5
        %s1043 = scalar_select %p1042, %s1039, 5
        %s1044 = smul.addr %s1041, 6
        %s1045 = sadd.s32 %s1043, %s1044
        %s1046 = smul.addr %s1045, 8
        %s1047 = scalar_lea.vmem %s3, %s1046
        // Predicated region
        $region45: #{entry_stem_fwd.55} parent=31 // pred_check
          %p1048 = pneg %p138
        $region46: #{entry_stem_fwd.55} parent=31 // pred_check_branch
          %1050 = sbr.rel (%p1048) target = $region48
        $region47: #{entry_stem_fwd.55} parent=31 // pred_region
          %s1051 = smul.u32 2, %s23
        $region48: #{entry_stem_fwd.55} parent=31 // pred_fallthru
          _
      $region32: #{entry_stem_fwd.55} parent=5 // pred_fallthru
        _
      %p1052 = scmp.le.s32.totalorder 2, %s12
      // Predicated region
      $region49: #{entry_stem_fwd.55} parent=5 // pred_check
        %p1053 = pneg %p1052
      $region50: #{entry_stem_fwd.55} parent=5 // pred_check_branch
        %1055 = sbr.rel (%p1053) target = $region52
      $region51: #{entry_stem_fwd.55} parent=5 // pred_region
        %s1056 = ssub.s32 %s12, 2
        // Predicated region
        $region53: #{entry_stem_fwd.55} parent=51 // pred_check
          %p1057 = pneg %p144
        $region54: #{entry_stem_fwd.55} parent=51 // pred_check_branch
          %1059 = sbr.rel (%p1057) target = $region56
        $region55: #{entry_stem_fwd.55} parent=51 // pred_region
          %s1060 = smul.u32 2, %s26
          %p1061 = scmp.lt.s32.totalorder %s25, 0
          %s1062 = scalar_select %p1061, %s25, 0
          %p1063 = scmp.lt.s32.totalorder %s1060, 5
          %s1064 = scalar_select %p1063, %s1060, 5
          %s1065 = smul.addr %s1062, 6
          %s1066 = sadd.s32 %s1064, %s1065
          %s1067 = smul.addr %s1066, 8
          %s1068 = scalar_lea.vmem %s3, %s1067
        $region56: #{entry_stem_fwd.55} parent=51 // pred_fallthru
          _
      $region52: #{entry_stem_fwd.55} parent=5 // pred_fallthru
        _
    $region6: #{entry_stem_fwd.55} parent=1 // loop_footer
      %s16 = sadd.s32 1, %s12
    $region7: #{entry_stem_fwd.55} parent=1 // loop_footer_branch
      %11 = sbr.rel target = $region3
    $region8: #{entry_stem_fwd.55} parent=1 // loop_exit
      _
    %1069 = vsyncpa [#allocation4], 1
    %s1070 = scalar_lea.sflag [#allocation4], 1
    %1071 = vsyncpa %s1070, 1

// kernel: entry_stem_fwd.59
$region0: #{entry_stem_fwd.59}
  #allocation0 [shape = 'u32[]', space=smem, size = 0x4, offset = 0x4, fixed_abs, tag = 'smem constant byte address 0x4 - core index']
  #allocation1 [shape = 'u32[144,128]{1,0:T(1,128)}', space=vmem, size = 0x12000, scoped, tag = 'internal scratch']
  #allocation2 [shape = 'f32[8,256]{1,0:T(8,128)}', space=vmem, size = 0x2000, scoped, tag = 'scratch operand']
  %s0 = inlined_call_operand.vmem [shape: bf16[8,13312], index: 0, kind: input, shape index: {}]
  %s1 = inlined_call_operand.vmem [shape: bf16[13312,768], index: 1, kind: input, shape index: {}]
  %s2 = inlined_call_operand.vmem [shape: f32[1,768], index: 2, kind: input, shape index: {}]
  %s3 = inlined_call_operand.vmem [shape: f32[8,768], index: 3, kind: output, shape index: {}]
  %s4 = sld [smem:[#allocation0]]
  $region91: #{entry_stem_fwd.59} parent=0
    _
  %s6 = ssub.s32 1, %s4
  %s7 = scalar_select 0, %s6, %s4
  $region1: #{entry_stem_fwd.59} parent=0
    #allocation3 [shape = 'u8[524288]{0}', space=vmem, size = 0x80000, scoped, tag = 'input window, operand 1']
    loop: start=0, step=1, limit=80
    $region2: #{entry_stem_fwd.59} parent=1 // loop_pre_header
      _
    $region3: #{entry_stem_fwd.59} parent=1 // loop_header
      %s9 = sphi 0, %s13
      %p10 = scmp.ge.s32.totalorder %s9, 80
      %s16 = sphi 0, %s35
      %s17 = sphi 0, %s31
      %s18 = sphi 0, %s27
      %s19 = sphi 0, %s16
      %s20 = sphi 0, %s17
      %s21 = sphi 0, %s18
      %s22 = sphi 0, %s19
      %s23 = sphi 0, %s20
      %s24 = sphi 0, %s21
      %s40 = sphi 0, %s42
      %s43 = sphi 0, %s40
      %s44 = sphi 0, %s43
      %s60 = sphi 0, %s44
      %s68 = sphi 0, %s70
      %s71 = sphi 0, %s68
      %s72 = sphi 0, %s71
      %s88 = sphi 0, %s72
      %s94 = sphi 0, %s96
      %s97 = sphi 0, %s94
      %s98 = sphi 0, %s97
      %s114 = sphi 0, %s98
      %s122 = sphi 0, %s124
      %s125 = sphi 0, %s122
      %s126 = sphi 0, %s125
      %s142 = sphi 0, %s126
    $region4: #{entry_stem_fwd.59} parent=1 // loop_header_branch
      %12 = sbr.rel (%p10) target = $region8
    $region5: #{entry_stem_fwd.59} parent=1 // loop_body
      %s14 = ssub.s32 %s9, 1
      %s15 = ssub.s32 %s9, 2
      %s25 = sadd.s32 1, %s18
      %p26 = scmp.ge.s32.totalorder %s25, 26
      %s27 = scalar_select %p26, 0, %s25
      %s28 = sadd.s32 1, %s17
      %s29 = scalar_select %p26, %s28, %s17
      %p30 = scmp.ge.s32.totalorder %s29, 3
      %s31 = scalar_select %p30, 0, %s29
      %s32 = sadd.s32 1, %s16
      %s33 = scalar_select %p30, %s32, %s16
      %p34 = scmp.ge.s32.totalorder %s33, 1
      %s35 = scalar_select %p34, 0, %s33
      %s36 = ssub.s32 %s16, %s35
      %s37 = ssub.s32 %s18, %s27
      %s38 = sor.u32 %s36, %s37
      %p39 = scmp.eq.s32.totalorder %s38, 0
      %s41 = sadd.s32 %s40, 1
      %s42 = scalar_select %p39, %s40, %s41
      %p45 = pneg %p39
      %p46 = scmp.eq.s32.totalorder %s9, 77
      %p47 = por %p45, %p46
      %p48 = scmp.ne.s32.totalorder %s40, %s43
      %p49 = scmp.eq.s32.totalorder %s9, 0
      %p50 = por %p48, %p49
      %p51 = scmp.ne.s32.totalorder %s40, %s43
      %p52 = scmp.eq.s32.totalorder %s14, 77
      %p53 = por %p51, %p52
      %p54 = scmp.ne.s32.totalorder %s43, %s44
      %p55 = scmp.eq.s32.totalorder %s14, 0
      %p56 = por %p54, %p55
      %p57 = scmp.ne.s32.totalorder %s43, %s44
      %p58 = scmp.eq.s32.totalorder %s15, 77
      %p59 = por %p57, %p58
      %p61 = scmp.ne.s32.totalorder %s44, %s60
      %p62 = scmp.eq.s32.totalorder %s15, 0
      %p63 = por %p61, %p62
      %s64 = ssub.s32 %s18, %s27
      %s65 = ssub.s32 %s17, %s31
      %s66 = sor.u32 %s64, %s65
      %p67 = scmp.eq.s32.totalorder %s66, 0
      %s69 = sadd.s32 %s68, 1
      %s70 = scalar_select %p67, %s68, %s69
      %p73 = pneg %p67
      %p74 = scmp.eq.s32.totalorder %s9, 77
      %p75 = por %p73, %p74
      %p76 = scmp.ne.s32.totalorder %s68, %s71
      %p77 = scmp.eq.s32.totalorder %s9, 0
      %p78 = por %p76, %p77
      %p79 = scmp.ne.s32.totalorder %s68, %s71
      %p80 = scmp.eq.s32.totalorder %s14, 77
      %p81 = por %p79, %p80
      %p82 = scmp.ne.s32.totalorder %s71, %s72
      %p83 = scmp.eq.s32.totalorder %s14, 0
      %p84 = por %p82, %p83
      %p85 = scmp.ne.s32.totalorder %s71, %s72
      %p86 = scmp.eq.s32.totalorder %s15, 77
      %p87 = por %p85, %p86
      %p89 = scmp.ne.s32.totalorder %s72, %s88
      %p90 = scmp.eq.s32.totalorder %s15, 0
      %p91 = por %p89, %p90
      %s92 = ssub.s32 %s17, %s31
      %p93 = scmp.eq.s32.totalorder %s92, 0
      %s95 = sadd.s32 %s94, 1
      %s96 = scalar_select %p93, %s94, %s95
      %p99 = pneg %p93
      %p100 = scmp.eq.s32.totalorder %s9, 77
      %p101 = por %p99, %p100
      %p102 = scmp.ne.s32.totalorder %s94, %s97
      %p103 = scmp.eq.s32.totalorder %s9, 0
      %p104 = por %p102, %p103
      %p105 = scmp.ne.s32.totalorder %s94, %s97
      %p106 = scmp.eq.s32.totalorder %s14, 77
      %p107 = por %p105, %p106
      %p108 = scmp.ne.s32.totalorder %s97, %s98
      %p109 = scmp.eq.s32.totalorder %s14, 0
      %p110 = por %p108, %p109
      %p111 = scmp.ne.s32.totalorder %s97, %s98
      %p112 = scmp.eq.s32.totalorder %s15, 77
      %p113 = por %p111, %p112
      %p115 = scmp.ne.s32.totalorder %s98, %s114
      %p116 = scmp.eq.s32.totalorder %s15, 0
      %p117 = por %p115, %p116
      %s118 = ssub.s32 %s16, %s35
      %s119 = ssub.s32 %s17, %s31
      %s120 = sor.u32 %s118, %s119
      %p121 = scmp.eq.s32.totalorder %s120, 0
      %s123 = sadd.s32 %s122, 1
      %s124 = scalar_select %p121, %s122, %s123
      %p127 = pneg %p121
      %p128 = scmp.eq.s32.totalorder %s9, 77
      %p129 = por %p127, %p128
      %p130 = scmp.ne.s32.totalorder %s122, %s125
      %p131 = scmp.eq.s32.totalorder %s9, 0
      %p132 = por %p130, %p131
      %p133 = scmp.ne.s32.totalorder %s122, %s125
      %p134 = scmp.eq.s32.totalorder %s14, 77
      %p135 = por %p133, %p134
      %p136 = scmp.ne.s32.totalorder %s125, %s126
      %p137 = scmp.eq.s32.totalorder %s14, 0
      %p138 = por %p136, %p137
      %p139 = scmp.ne.s32.totalorder %s125, %s126
      %p140 = scmp.eq.s32.totalorder %s15, 77
      %p141 = por %p139, %p140
      %p143 = scmp.ne.s32.totalorder %s126, %s142
      %p144 = scmp.eq.s32.totalorder %s15, 0
      %p145 = por %p143, %p144
      %p146 = scmp.le.s32.totalorder 1, %s9
      %p147 = scmp.lt.s32.totalorder %s9, 79
      %p148 = pnand %p146, %p147
      %p149 = pneg %p148
      // Predicated region
      $region9: #{entry_stem_fwd.59} parent=5 // pred_check
        _
      $region10: #{entry_stem_fwd.59} parent=5 // pred_check_branch
        %151 = sbr.rel (%p148) target = $region12
      $region11: #{entry_stem_fwd.59} parent=5 // pred_region
        %s152 = ssub.s32 %s9, 1
      $region12: #{entry_stem_fwd.59} parent=5 // pred_fallthru
        _
      %p153 = scmp.lt.s32.totalorder %s9, 78
      // Predicated region
      $region13: #{entry_stem_fwd.59} parent=5 // pred_check
        %p154 = pneg %p153
      $region14: #{entry_stem_fwd.59} parent=5 // pred_check_branch
        %156 = sbr.rel (%p154) target = $region16
      $region15: #{entry_stem_fwd.59} parent=5 // pred_region
        // Predicated region
        $region17: #{entry_stem_fwd.59} parent=15 // pred_check
          %p157 = pneg %p50
        $region18: #{entry_stem_fwd.59} parent=15 // pred_check_branch
          %159 = sbr.rel (%p157) target = $region20
        $region19: #{entry_stem_fwd.59} parent=15 // pred_region
          %s160 = smul.u32 4, %s18
          %p161 = scmp.lt.s32.totalorder %s16, 0
          %s162 = scalar_select %p161, %s16, 0
          %p163 = scmp.lt.s32.totalorder %s160, 103
          %s164 = scalar_select %p163, %s160, 103
          %s165 = smul.addr %s162, 104
          %s166 = sadd.s32 %s164, %s165
          %s167 = smul.addr %s166, 4
          %s168 = scalar_lea.vmem %s0, %s167
          %s169 = smul.u32 4, %s18
        $region20: #{entry_stem_fwd.59} parent=15 // pred_fallthru
          _
        // Predicated region
        $region21: #{entry_stem_fwd.59} parent=15 // pred_check
          %p170 = pneg %p78
        $region22: #{entry_stem_fwd.59} parent=15 // pred_check_branch
          %172 = sbr.rel (%p170) target = $region24
        $region23: #{entry_stem_fwd.59} parent=15 // pred_region
          %s173 = sand.u32 %s68, 1
          %s174 = sand.u32 %s68, 1
          %s175 = smul.addr %s174, 512
          %s176 = scalar_lea.vmem [#allocation3], %s175
          %s177 = smul.u32 64, %s18
          %s178 = smul.u32 2, %s17
          %s179 = smul.addr %s177, 6
          %s180 = sadd.s32 %s178, %s179
          %s181 = smul.addr %s180, 4
          %s182 = scalar_lea.vmem %s1, %s181
          // Predicated region
          $region25: #{entry_stem_fwd.59} parent=23 // pred_check
            _
          $region26: #{entry_stem_fwd.59} parent=23 // pred_check_branch
            %184 = sbr.rel (0) target = $region28
          $region27: #{entry_stem_fwd.59} parent=23 // pred_region
            // Predicated region
            $region29: #{entry_stem_fwd.59} parent=27 // pred_check
              _
            $region30: #{entry_stem_fwd.59} parent=27 // pred_check_branch
              %186 = sbr.rel (0) target = $region32
            $region31: #{entry_stem_fwd.59} parent=27 // pred_region
              // Predicated region
              $region44: #{entry_stem_fwd.59} parent=31 // pred_check
                _
              $region45: #{entry_stem_fwd.59} parent=31 // pred_check_branch
                %327 = sbr.rel (0) target = $region47
              $region46: #{entry_stem_fwd.59} parent=31 // pred_region
                loop: start=0, step=1, limit=1
                $region48: #{entry_stem_fwd.59} parent=46 // loop_pre_header
                  _
                $region49: #{entry_stem_fwd.59} parent=46 // loop_header
                  %s329 = sphi 0, %s333
                  %p330 = scmp.ge.s32.totalorder %s329, 1
                  %s334 = sphi %s182, %s182
                  %s335 = sphi %s176, %s176
                $region50: #{entry_stem_fwd.59} parent=46 // loop_header_branch
                  %332 = sbr.rel (%p330) target = $region54
                $region51: #{entry_stem_fwd.59} parent=46 // loop_body
                  %v336 = vld [vmem:[%s334] sm:$0xff]
                  %337 = vst [vmem:[%s335] sm:$0xff] %v336
                  %v338 = vld [vmem:[%s334 + $0x18] sm:$0xff]
                  %339 = vst [vmem:[%s335 + $0x8] sm:$0xff] %v338
                  %v340 = vld [vmem:[%s334 + $0x30] sm:$0xff]
                  %341 = vst [vmem:[%s335 + $0x10] sm:$0xff] %v340
                  %v342 = vld [vmem:[%s334 + $0x48] sm:$0xff]
                  %343 = vst [vmem:[%s335 + $0x18] sm:$0xff] %v342
                  %v344 = vld [vmem:[%s334 + $0x60] sm:$0xff]
                  %345 = vst [vmem:[%s335 + $0x20] sm:$0xff] %v344
                  %v346 = vld [vmem:[%s334 + $0x78] sm:$0xff]
                  %347 = vst [vmem:[%s335 + $0x28] sm:$0xff] %v346
                  %v348 = vld [vmem:[%s334 + $0x90] sm:$0xff]
                  %349 = vst [vmem:[%s335 + $0x30] sm:$0xff] %v348
                  %v350 = vld [vmem:[%s334 + $0xa8] sm:$0xff]
                  %351 = vst [vmem:[%s335 + $0x38] sm:$0xff] %v350
                  %v352 = vld [vmem:[%s334 + $0xc0] sm:$0xff]
                  %353 = vst [vmem:[%s335 + $0x40] sm:$0xff] %v352
                  %v354 = vld [vmem:[%s334 + $0xd8] sm:$0xff]
                  %355 = vst [vmem:[%s335 + $0x48] sm:$0xff] %v354
                  %v356 = vld [vmem:[%s334 + $0xf0] sm:$0xff]
                  %357 = vst [vmem:[%s335 + $0x50] sm:$0xff] %v356
                  %v358 = vld [vmem:[%s334 + $0x108] sm:$0xff]
                  %359 = vst [vmem:[%s335 + $0x58] sm:$0xff] %v358
                  %v360 = vld [vmem:[%s334 + $0x120] sm:$0xff]
                  %361 = vst [vmem:[%s335 + $0x60] sm:$0xff] %v360
                  %v362 = vld [vmem:[%s334 + $0x138] sm:$0xff]
                  %363 = vst [vmem:[%s335 + $0x68] sm:$0xff] %v362
                  %v364 = vld [vmem:[%s334 + $0x150] sm:$0xff]
                  %365 = vst [vmem:[%s335 + $0x70] sm:$0xff] %v364
                  %v366 = vld [vmem:[%s334 + $0x168] sm:$0xff]
                  %367 = vst [vmem:[%s335 + $0x78] sm:$0xff] %v366
                  %v368 = vld [vmem:[%s334 + $0x180] sm:$0xff]
                  %369 = vst [vmem:[%s335 + $0x80] sm:$0xff] %v368
                  %v370 = vld [vmem:[%s334 + $0x198] sm:$0xff]
                  %371 = vst [vmem:[%s335 + $0x88] sm:$0xff] %v370
                  %v372 = vld [vmem:[%s334 + $0x1b0] sm:$0xff]
                  %373 = vst [vmem:[%s335 + $0x90] sm:$0xff] %v372
                  %v374 = vld [vmem:[%s334 + $0x1c8] sm:$0xff]
                  %375 = vst [vmem:[%s335 + $0x98] sm:$0xff] %v374
                  %v376 = vld [vmem:[%s334 + $0x1e0] sm:$0xff]
                  %377 = vst [vmem:[%s335 + $0xa0] sm:$0xff] %v376
                  %v378 = vld [vmem:[%s334 + $0x1f8] sm:$0xff]
                  %379 = vst [vmem:[%s335 + $0xa8] sm:$0xff] %v378
                  %v380 = vld [vmem:[%s334 + $0x210] sm:$0xff]
                  %381 = vst [vmem:[%s335 + $0xb0] sm:$0xff] %v380
                  %v382 = vld [vmem:[%s334 + $0x228] sm:$0xff]
                  %383 = vst [vmem:[%s335 + $0xb8] sm:$0xff] %v382
                  %v384 = vld [vmem:[%s334 + $0x240] sm:$0xff]
                  %385 = vst [vmem:[%s335 + $0xc0] sm:$0xff] %v384
                  %v386 = vld [vmem:[%s334 + $0x258] sm:$0xff]
                  %387 = vst [vmem:[%s335 + $0xc8] sm:$0xff] %v386
                  %v388 = vld [vmem:[%s334 + $0x270] sm:$0xff]
                  %389 = vst [vmem:[%s335 + $0xd0] sm:$0xff] %v388
                  %v390 = vld [vmem:[%s334 + $0x288] sm:$0xff]
                  %391 = vst [vmem:[%s335 + $0xd8] sm:$0xff] %v390
                  %v392 = vld [vmem:[%s334 + $0x2a0] sm:$0xff]
                  %393 = vst [vmem:[%s335 + $0xe0] sm:$0xff] %v392
                  %v394 = vld [vmem:[%s334 + $0x2b8] sm:$0xff]
                  %395 = vst [vmem:[%s335 + $0xe8] sm:$0xff] %v394
                  %v396 = vld [vmem:[%s334 + $0x2d0] sm:$0xff]
                  %397 = vst [vmem:[%s335 + $0xf0] sm:$0xff] %v396
                  %v398 = vld [vmem:[%s334 + $0x2e8] sm:$0xff]
                  %399 = vst [vmem:[%s335 + $0xf8] sm:$0xff] %v398
                  %v400 = vld [vmem:[%s334 + $0x300] sm:$0xff]
                  %401 = vst [vmem:[%s335 + $0x100] sm:$0xff] %v400
                  %v402 = vld [vmem:[%s334 + $0x318] sm:$0xff]
                  %403 = vst [vmem:[%s335 + $0x108] sm:$0xff] %v402
                  %v404 = vld [vmem:[%s334 + $0x330] sm:$0xff]
                  %405 = vst [vmem:[%s335 + $0x110] sm:$0xff] %v404
                  %v406 = vld [vmem:[%s334 + $0x348] sm:$0xff]
                  %407 = vst [vmem:[%s335 + $0x118] sm:$0xff] %v406
                  %v408 = vld [vmem:[%s334 + $0x360] sm:$0xff]
                  %409 = vst [vmem:[%s335 + $0x120] sm:$0xff] %v408
                  %v410 = vld [vmem:[%s334 + $0x378] sm:$0xff]
                  %411 = vst [vmem:[%s335 + $0x128] sm:$0xff] %v410
                  %v412 = vld [vmem:[%s334 + $0x390] sm:$0xff]
                  %413 = vst [vmem:[%s335 + $0x130] sm:$0xff] %v412
                  %v414 = vld [vmem:[%s334 + $0x3a8] sm:$0xff]
                  %415 = vst [vmem:[%s335 + $0x138] sm:$0xff] %v414
                  %v416 = vld [vmem:[%s334 + $0x3c0] sm:$0xff]
                  %417 = vst [vmem:[%s335 + $0x140] sm:$0xff] %v416
                  %v418 = vld [vmem:[%s334 + $0x3d8] sm:$0xff]
                  %419 = vst [vmem:[%s335 + $0x148] sm:$0xff] %v418
                  %v420 = vld [vmem:[%s334 + $0x3f0] sm:$0xff]
                  %421 = vst [vmem:[%s335 + $0x150] sm:$0xff] %v420
                  %v422 = vld [vmem:[%s334 + $0x408] sm:$0xff]
                  %423 = vst [vmem:[%s335 + $0x158] sm:$0xff] %v422
                  %v424 = vld [vmem:[%s334 + $0x420] sm:$0xff]
                  %425 = vst [vmem:[%s335 + $0x160] sm:$0xff] %v424
                  %v426 = vld [vmem:[%s334 + $0x438] sm:$0xff]
                  %427 = vst [vmem:[%s335 + $0x168] sm:$0xff] %v426
                  %v428 = vld [vmem:[%s334 + $0x450] sm:$0xff]
                  %429 = vst [vmem:[%s335 + $0x170] sm:$0xff] %v428
                  %v430 = vld [vmem:[%s334 + $0x468] sm:$0xff]
                  %431 = vst [vmem:[%s335 + $0x178] sm:$0xff] %v430
                  %v432 = vld [vmem:[%s334 + $0x480] sm:$0xff]
                  %433 = vst [vmem:[%s335 + $0x180] sm:$0xff] %v432
                  %v434 = vld [vmem:[%s334 + $0x498] sm:$0xff]
                  %435 = vst [vmem:[%s335 + $0x188] sm:$0xff] %v434
                  %v436 = vld [vmem:[%s334 + $0x4b0] sm:$0xff]
                  %437 = vst [vmem:[%s335 + $0x190] sm:$0xff] %v436
                  %v438 = vld [vmem:[%s334 + $0x4c8] sm:$0xff]
                  %439 = vst [vmem:[%s335 + $0x198] sm:$0xff] %v438
                  %v440 = vld [vmem:[%s334 + $0x4e0] sm:$0xff]
                  %441 = vst [vmem:[%s335 + $0x1a0] sm:$0xff] %v440
                  %v442 = vld [vmem:[%s334 + $0x4f8] sm:$0xff]
                  %443 = vst [vmem:[%s335 + $0x1a8] sm:$0xff] %v442
                  %v444 = vld [vmem:[%s334 + $0x510] sm:$0xff]
                  %445 = vst [vmem:[%s335 + $0x1b0] sm:$0xff] %v444
                  %v446 = vld [vmem:[%s334 + $0x528] sm:$0xff]
                  %447 = vst [vmem:[%s335 + $0x1b8] sm:$0xff] %v446
                  %v448 = vld [vmem:[%s334 + $0x540] sm:$0xff]
                  %449 = vst [vmem:[%s335 + $0x1c0] sm:$0xff] %v448
                  %v450 = vld [vmem:[%s334 + $0x558] sm:$0xff]
                  %451 = vst [vmem:[%s335 + $0x1c8] sm:$0xff] %v450
                  %v452 = vld [vmem:[%s334 + $0x570] sm:$0xff]
                  %453 = vst [vmem:[%s335 + $0x1d0] sm:$0xff] %v452
                  %v454 = vld [vmem:[%s334 + $0x588] sm:$0xff]
                  %455 = vst [vmem:[%s335 + $0x1d8] sm:$0xff] %v454
                  %v456 = vld [vmem:[%s334 + $0x5a0] sm:$0xff]
                  %457 = vst [vmem:[%s335 + $0x1e0] sm:$0xff] %v456
                  %v458 = vld [vmem:[%s334 + $0x5b8] sm:$0xff]
                  %459 = vst [vmem:[%s335 + $0x1e8] sm:$0xff] %v458
                  %v460 = vld [vmem:[%s334 + $0x5d0] sm:$0xff]
                  %461 = vst [vmem:[%s335 + $0x1f0] sm:$0xff] %v460
                  %v462 = vld [vmem:[%s334 + $0x5e8] sm:$0xff]
                  %463 = vst [vmem:[%s335 + $0x1f8] sm:$0xff] %v462
                $region52: #{entry_stem_fwd.59} parent=46 // loop_footer
                  %s333 = sadd.s32 1, %s329
                $region53: #{entry_stem_fwd.59} parent=46 // loop_footer_branch
                  %328 = sbr.rel target = $region49
                $region54: #{entry_stem_fwd.59} parent=46 // loop_exit
                  _
              $region47: #{entry_stem_fwd.59} parent=31 // pred_fallthru
                _
              // Predicated region
              $region55: #{entry_stem_fwd.59} parent=31 // pred_check
                _
              $region56: #{entry_stem_fwd.59} parent=31 // pred_check_branch
                %465 = sbr.rel target = $region58
              $region57: #{entry_stem_fwd.59} parent=31 // pred_region
                _
              $region58: #{entry_stem_fwd.59} parent=31 // pred_fallthru
                _
            $region32: #{entry_stem_fwd.59} parent=27 // pred_fallthru
              _
            // Predicated region
            $region33: #{entry_stem_fwd.59} parent=27 // pred_check
              _
            $region34: #{entry_stem_fwd.59} parent=27 // pred_check_branch
              %188 = sbr.rel target = $region36
            $region35: #{entry_stem_fwd.59} parent=27 // pred_region
              loop: start=0, step=1, limit=1
              $region37: #{entry_stem_fwd.59} parent=35 // loop_pre_header
                _
              $region38: #{entry_stem_fwd.59} parent=35 // loop_header
                %s191 = sphi 0, %s195
                %p192 = scmp.ge.s32.totalorder %s191, 1
                %s196 = sphi %s182, %s182
                %s197 = sphi %s176, %s176
              $region39: #{entry_stem_fwd.59} parent=35 // loop_header_branch
                %194 = sbr.rel (%p192) target = $region43
              $region40: #{entry_stem_fwd.59} parent=35 // loop_body
                %v198 = vld [vmem:[%s196] sm:$0xff]
                %199 = vst [vmem:[%s197] sm:$0xff] %v198
                %v200 = vld [vmem:[%s196 + $0x18] sm:$0xff]
                %201 = vst [vmem:[%s197 + $0x8] sm:$0xff] %v200
                %v202 = vld [vmem:[%s196 + $0x30] sm:$0xff]
                %203 = vst [vmem:[%s197 + $0x10] sm:$0xff] %v202
                %v204 = vld [vmem:[%s196 + $0x48] sm:$0xff]
                %205 = vst [vmem:[%s197 + $0x18] sm:$0xff] %v204
                %v206 = vld [vmem:[%s196 + $0x60] sm:$0xff]
                %207 = vst [vmem:[%s197 + $0x20] sm:$0xff] %v206
                %v208 = vld [vmem:[%s196 + $0x78] sm:$0xff]
                %209 = vst [vmem:[%s197 + $0x28] sm:$0xff] %v208
                %v210 = vld [vmem:[%s196 + $0x90] sm:$0xff]
                %211 = vst [vmem:[%s197 + $0x30] sm:$0xff] %v210
                %v212 = vld [vmem:[%s196 + $0xa8] sm:$0xff]
                %213 = vst [vmem:[%s197 + $0x38] sm:$0xff] %v212
                %v214 = vld [vmem:[%s196 + $0xc0] sm:$0xff]
                %215 = vst [vmem:[%s197 + $0x40] sm:$0xff] %v214
                %v216 = vld [vmem:[%s196 + $0xd8] sm:$0xff]
                %217 = vst [vmem:[%s197 + $0x48] sm:$0xff] %v216
                %v218 = vld [vmem:[%s196 + $0xf0] sm:$0xff]
                %219 = vst [vmem:[%s197 + $0x50] sm:$0xff] %v218
                %v220 = vld [vmem:[%s196 + $0x108] sm:$0xff]
                %221 = vst [vmem:[%s197 + $0x58] sm:$0xff] %v220
                %v222 = vld [vmem:[%s196 + $0x120] sm:$0xff]
                %223 = vst [vmem:[%s197 + $0x60] sm:$0xff] %v222
                %v224 = vld [vmem:[%s196 + $0x138] sm:$0xff]
                %225 = vst [vmem:[%s197 + $0x68] sm:$0xff] %v224
                %v226 = vld [vmem:[%s196 + $0x150] sm:$0xff]
                %227 = vst [vmem:[%s197 + $0x70] sm:$0xff] %v226
                %v228 = vld [vmem:[%s196 + $0x168] sm:$0xff]
                %229 = vst [vmem:[%s197 + $0x78] sm:$0xff] %v228
                %v230 = vld [vmem:[%s196 + $0x180] sm:$0xff]
                %231 = vst [vmem:[%s197 + $0x80] sm:$0xff] %v230
                %v232 = vld [vmem:[%s196 + $0x198] sm:$0xff]
                %233 = vst [vmem:[%s197 + $0x88] sm:$0xff] %v232
                %v234 = vld [vmem:[%s196 + $0x1b0] sm:$0xff]
                %235 = vst [vmem:[%s197 + $0x90] sm:$0xff] %v234
                %v236 = vld [vmem:[%s196 + $0x1c8] sm:$0xff]
                %237 = vst [vmem:[%s197 + $0x98] sm:$0xff] %v236
                %v238 = vld [vmem:[%s196 + $0x1e0] sm:$0xff]
                %239 = vst [vmem:[%s197 + $0xa0] sm:$0xff] %v238
                %v240 = vld [vmem:[%s196 + $0x1f8] sm:$0xff]
                %241 = vst [vmem:[%s197 + $0xa8] sm:$0xff] %v240
                %v242 = vld [vmem:[%s196 + $0x210] sm:$0xff]
                %243 = vst [vmem:[%s197 + $0xb0] sm:$0xff] %v242
                %v244 = vld [vmem:[%s196 + $0x228] sm:$0xff]
                %245 = vst [vmem:[%s197 + $0xb8] sm:$0xff] %v244
                %v246 = vld [vmem:[%s196 + $0x240] sm:$0xff]
                %247 = vst [vmem:[%s197 + $0xc0] sm:$0xff] %v246
                %v248 = vld [vmem:[%s196 + $0x258] sm:$0xff]
                %249 = vst [vmem:[%s197 + $0xc8] sm:$0xff] %v248
                %v250 = vld [vmem:[%s196 + $0x270] sm:$0xff]
                %251 = vst [vmem:[%s197 + $0xd0] sm:$0xff] %v250
                %v252 = vld [vmem:[%s196 + $0x288] sm:$0xff]
                %253 = vst [vmem:[%s197 + $0xd8] sm:$0xff] %v252
                %v254 = vld [vmem:[%s196 + $0x2a0] sm:$0xff]
                %255 = vst [vmem:[%s197 + $0xe0] sm:$0xff] %v254
                %v256 = vld [vmem:[%s196 + $0x2b8] sm:$0xff]
                %257 = vst [vmem:[%s197 + $0xe8] sm:$0xff] %v256
                %v258 = vld [vmem:[%s196 + $0x2d0] sm:$0xff]
                %259 = vst [vmem:[%s197 + $0xf0] sm:$0xff] %v258
                %v260 = vld [vmem:[%s196 + $0x2e8] sm:$0xff]
                %261 = vst [vmem:[%s197 + $0xf8] sm:$0xff] %v260
                %v262 = vld [vmem:[%s196 + $0x300] sm:$0xff]
                %263 = vst [vmem:[%s197 + $0x100] sm:$0xff] %v262
                %v264 = vld [vmem:[%s196 + $0x318] sm:$0xff]
                %265 = vst [vmem:[%s197 + $0x108] sm:$0xff] %v264
                %v266 = vld [vmem:[%s196 + $0x330] sm:$0xff]
                %267 = vst [vmem:[%s197 + $0x110] sm:$0xff] %v266
                %v268 = vld [vmem:[%s196 + $0x348] sm:$0xff]
                %269 = vst [vmem:[%s197 + $0x118] sm:$0xff] %v268
                %v270 = vld [vmem:[%s196 + $0x360] sm:$0xff]
                %271 = vst [vmem:[%s197 + $0x120] sm:$0xff] %v270
                %v272 = vld [vmem:[%s196 + $0x378] sm:$0xff]
                %273 = vst [vmem:[%s197 + $0x128] sm:$0xff] %v272
                %v274 = vld [vmem:[%s196 + $0x390] sm:$0xff]
                %275 = vst [vmem:[%s197 + $0x130] sm:$0xff] %v274
                %v276 = vld [vmem:[%s196 + $0x3a8] sm:$0xff]
                %277 = vst [vmem:[%s197 + $0x138] sm:$0xff] %v276
                %v278 = vld [vmem:[%s196 + $0x3c0] sm:$0xff]
                %279 = vst [vmem:[%s197 + $0x140] sm:$0xff] %v278
                %v280 = vld [vmem:[%s196 + $0x3d8] sm:$0xff]
                %281 = vst [vmem:[%s197 + $0x148] sm:$0xff] %v280
                %v282 = vld [vmem:[%s196 + $0x3f0] sm:$0xff]
                %283 = vst [vmem:[%s197 + $0x150] sm:$0xff] %v282
                %v284 = vld [vmem:[%s196 + $0x408] sm:$0xff]
                %285 = vst [vmem:[%s197 + $0x158] sm:$0xff] %v284
                %v286 = vld [vmem:[%s196 + $0x420] sm:$0xff]
                %287 = vst [vmem:[%s197 + $0x160] sm:$0xff] %v286
                %v288 = vld [vmem:[%s196 + $0x438] sm:$0xff]
                %289 = vst [vmem:[%s197 + $0x168] sm:$0xff] %v288
                %v290 = vld [vmem:[%s196 + $0x450] sm:$0xff]
                %291 = vst [vmem:[%s197 + $0x170] sm:$0xff] %v290
                %v292 = vld [vmem:[%s196 + $0x468] sm:$0xff]
                %293 = vst [vmem:[%s197 + $0x178] sm:$0xff] %v292
                %v294 = vld [vmem:[%s196 + $0x480] sm:$0xff]
                %295 = vst [vmem:[%s197 + $0x180] sm:$0xff] %v294
                %v296 = vld [vmem:[%s196 + $0x498] sm:$0xff]
                %297 = vst [vmem:[%s197 + $0x188] sm:$0xff] %v296
                %v298 = vld [vmem:[%s196 + $0x4b0] sm:$0xff]
                %299 = vst [vmem:[%s197 + $0x190] sm:$0xff] %v298
                %v300 = vld [vmem:[%s196 + $0x4c8] sm:$0xff]
                %301 = vst [vmem:[%s197 + $0x198] sm:$0xff] %v300
                %v302 = vld [vmem:[%s196 + $0x4e0] sm:$0xff]
                %303 = vst [vmem:[%s197 + $0x1a0] sm:$0xff] %v302
                %v304 = vld [vmem:[%s196 + $0x4f8] sm:$0xff]
                %305 = vst [vmem:[%s197 + $0x1a8] sm:$0xff] %v304
                %v306 = vld [vmem:[%s196 + $0x510] sm:$0xff]
                %307 = vst [vmem:[%s197 + $0x1b0] sm:$0xff] %v306
                %v308 = vld [vmem:[%s196 + $0x528] sm:$0xff]
                %309 = vst [vmem:[%s197 + $0x1b8] sm:$0xff] %v308
                %v310 = vld [vmem:[%s196 + $0x540] sm:$0xff]
                %311 = vst [vmem:[%s197 + $0x1c0] sm:$0xff] %v310
                %v312 = vld [vmem:[%s196 + $0x558] sm:$0xff]
                %313 = vst [vmem:[%s197 + $0x1c8] sm:$0xff] %v312
                %v314 = vld [vmem:[%s196 + $0x570] sm:$0xff]
                %315 = vst [vmem:[%s197 + $0x1d0] sm:$0xff] %v314
                %v316 = vld [vmem:[%s196 + $0x588] sm:$0xff]
                %317 = vst [vmem:[%s197 + $0x1d8] sm:$0xff] %v316
                %v318 = vld [vmem:[%s196 + $0x5a0] sm:$0xff]
                %319 = vst [vmem:[%s197 + $0x1e0] sm:$0xff] %v318
                %v320 = vld [vmem:[%s196 + $0x5b8] sm:$0xff]
                %321 = vst [vmem:[%s197 + $0x1e8] sm:$0xff] %v320
                %v322 = vld [vmem:[%s196 + $0x5d0] sm:$0xff]
                %323 = vst [vmem:[%s197 + $0x1f0] sm:$0xff] %v322
                %v324 = vld [vmem:[%s196 + $0x5e8] sm:$0xff]
                %325 = vst [vmem:[%s197 + $0x1f8] sm:$0xff] %v324
              $region41: #{entry_stem_fwd.59} parent=35 // loop_footer
                %s195 = sadd.s32 1, %s191
              $region42: #{entry_stem_fwd.59} parent=35 // loop_footer_branch
                %190 = sbr.rel target = $region38
              $region43: #{entry_stem_fwd.59} parent=35 // loop_exit
                _
            $region36: #{entry_stem_fwd.59} parent=27 // pred_fallthru
              _
          $region28: #{entry_stem_fwd.59} parent=23 // pred_fallthru
            _
          %466 = vnop
        $region24: #{entry_stem_fwd.59} parent=15 // pred_fallthru
          _
        // Predicated region
        $region59: #{entry_stem_fwd.59} parent=15 // pred_check
          %p467 = pneg %p104
        $region60: #{entry_stem_fwd.59} parent=15 // pred_check_branch
          %469 = sbr.rel (%p467) target = $region62
        $region61: #{entry_stem_fwd.59} parent=15 // pred_region
          %s470 = smul.u32 2, %s17
          %p471 = scmp.lt.s32.totalorder %s470, 5
          %s472 = scalar_select %p471, %s470, 5
          %s473 = scalar_lea.vmem %s2, %s472
          %s474 = smul.u32 2, %s17
        $region62: #{entry_stem_fwd.59} parent=15 // pred_fallthru
          _
      $region16: #{entry_stem_fwd.59} parent=5 // pred_fallthru
        _
      %p475 = scmp.le.s32.totalorder 1, %s9
      %p476 = scmp.lt.s32.totalorder %s9, 79
      %p477 = pnand %p475, %p476
      %p478 = pneg %p477
      // Predicated region
      $region63: #{entry_stem_fwd.59} parent=5 // pred_check
        _
      $region64: #{entry_stem_fwd.59} parent=5 // pred_check_branch
        %480 = sbr.rel (%p477) target = $region66
      $region65: #{entry_stem_fwd.59} parent=5 // pred_region
        %s481 = ssub.s32 %s9, 1
        %s482 = sand.u32 %s71, 1
        %s483 = sand.u32 %s71, 1
        %s484 = smul.addr %s483, 512
        %s485 = scalar_lea.vmem [#allocation3], %s484
        // Predicated region
        $region67: #{entry_stem_fwd.59} parent=65 // pred_check
          %p486 = pneg %p84
        $region68: #{entry_stem_fwd.59} parent=65 // pred_check_branch
          %488 = sbr.rel (%p486) target = $region70
        $region69: #{entry_stem_fwd.59} parent=65 // pred_region
          _
        $region70: #{entry_stem_fwd.59} parent=65 // pred_fallthru
          _
        %s489 = smul.u32 4, %s21
        %p490 = scmp.lt.s32.totalorder %s19, 0
        %s491 = scalar_select %p490, %s19, 0
        %p492 = scmp.lt.s32.totalorder %s489, 103
        %s493 = scalar_select %p492, %s489, 103
        %s494 = smul.addr %s491, 104
        %s495 = sadd.s32 %s493, %s494
        %s496 = smul.addr %s495, 4
        %s497 = scalar_lea.vmem %s0, %s496
        %p498 = pneg %p56
        %p499 = pneg %p53
        %s500 = sand.u32 %s71, 1
        %s501 = sand.u32 %s71, 1
        %s502 = smul.addr %s501, 512
        %s503 = scalar_lea.vmem [#allocation3], %s502
        %p504 = pneg %p84
        %p505 = pneg %p81
        %s506 = smul.u32 2, %s20
        %p507 = scmp.lt.s32.totalorder %s506, 5
        %s508 = scalar_select %p507, %s506, 5
        %s509 = scalar_lea.vmem %s2, %s508
        %p510 = pneg %p110
        %p511 = pneg %p107
        %p512 = pneg %p138
        %p513 = pneg %p135
        %s514 = smul.u32 2, %s20
        %p515 = scmp.lt.s32.totalorder %s19, 0
        %s516 = scalar_select %p515, %s19, 0
        %p517 = scmp.lt.s32.totalorder %s514, 5
        %s518 = scalar_select %p517, %s514, 5
        %s519 = smul.addr %s516, 6
        %s520 = sadd.s32 %s518, %s519
        %s521 = smul.addr %s520, 8
        %s522 = scalar_lea.vmem %s3, %s521
        %s523 = smul.u32 4, %s21
        %p524 = scmp.lt.s32.totalorder %s19, 0
        %s525 = scalar_select %p524, %s19, 0
        %p526 = scmp.lt.s32.totalorder %s523, 103
        %s527 = scalar_select %p526, %s523, 103
        %s528 = smul.addr %s525, 104
        %s529 = sadd.s32 %s527, %s528
        %s530 = smul.addr %s529, 4
        %s531 = scalar_lea.vmem %s0, %s530
        %s532 = smul.u32 4, %s21
        %s533 = smul.u32 64, %s21
        %s534 = smul.u32 2, %s20
        %s535 = smul.u32 2, %s20
        %p536 = scmp.lt.s32.totalorder %s535, 5
        %s537 = scalar_select %p536, %s535, 5
        %s538 = scalar_lea.vmem %s2, %s537
        %s539 = smul.u32 2, %s20
        %s540 = smul.u32 2, %s20
        %p541 = scmp.lt.s32.totalorder %s19, 0
        %s542 = scalar_select %p541, %s19, 0
        %p543 = scmp.lt.s32.totalorder %s540, 5
        %s544 = scalar_select %p543, %s540, 5
        %s545 = smul.addr %s542, 6
        %s546 = sadd.s32 %s544, %s545
        %s547 = smul.addr %s546, 8
        %s548 = scalar_lea.vmem %s3, %s547
        %s549 = smul.u32 2, %s20
        %p550 = scmp.eq.s32.totalorder %s21, 0
        // Predicated region
        $region71: #{entry_stem_fwd.59} parent=65 // pred_check
          %p551 = pneg %p550
        $region72: #{entry_stem_fwd.59} parent=65 // pred_check_branch
          %553 = sbr.rel (%p551) target = $region74
        $region73: #{entry_stem_fwd.59} parent=65 // pred_region
          %554 = vst [vmem:[#allocation2] sm:$0xff] 0.0
          %555 = vst [vmem:[#allocation2 + $0x8] sm:$0xff] 0.0
        $region74: #{entry_stem_fwd.59} parent=65 // pred_fallthru
          _
        %v556 = vld [vmem:[#allocation2] sm:$0xff]
        %v557 = vld [vmem:[#allocation2 + $0x8] sm:$0xff]
        %v558 = vld [vmem:[%s531] sm:$0xff]
        %v559 = vld [vmem:[%s531 + $0x8] sm:$0xff]
        %v560 = vld [vmem:[%s485] sm:$0xff]
        %v561 = vld [vmem:[%s485 + $0x8] sm:$0xff]
        %v562 = vld [vmem:[%s485 + $0x10] sm:$0xff]
        %v563 = vld [vmem:[%s485 + $0x18] sm:$0xff]
        %v564 = vld [vmem:[%s485 + $0x20] sm:$0xff]
        %v565 = vld [vmem:[%s485 + $0x28] sm:$0xff]
        %v566 = vld [vmem:[%s485 + $0x30] sm:$0xff]
        %v567 = vld [vmem:[%s485 + $0x38] sm:$0xff]
        %v568 = vld [vmem:[%s485 + $0x40] sm:$0xff]
        %v569 = vld [vmem:[%s485 + $0x48] sm:$0xff]
        %v570 = vld [vmem:[%s485 + $0x50] sm:$0xff]
        %v571 = vld [vmem:[%s485 + $0x58] sm:$0xff]
        %v572 = vld [vmem:[%s485 + $0x60] sm:$0xff]
        %v573 = vld [vmem:[%s485 + $0x68] sm:$0xff]
        %v574 = vld [vmem:[%s485 + $0x70] sm:$0xff]
        %v575 = vld [vmem:[%s485 + $0x78] sm:$0xff]
        %v576 = vld [vmem:[%s485 + $0x80] sm:$0xff]
        %v577 = vld [vmem:[%s485 + $0x88] sm:$0xff]
        %v578 = vld [vmem:[%s485 + $0x90] sm:$0xff]
        %v579 = vld [vmem:[%s485 + $0x98] sm:$0xff]
        %v580 = vld [vmem:[%s485 + $0xa0] sm:$0xff]
        %v581 = vld [vmem:[%s485 + $0xa8] sm:$0xff]
        %v582 = vld [vmem:[%s485 + $0xb0] sm:$0xff]
        %v583 = vld [vmem:[%s485 + $0xb8] sm:$0xff]
        %v584 = vld [vmem:[%s485 + $0xc0] sm:$0xff]
        %v585 = vld [vmem:[%s485 + $0xc8] sm:$0xff]
        %v586 = vld [vmem:[%s485 + $0xd0] sm:$0xff]
        %v587 = vld [vmem:[%s485 + $0xd8] sm:$0xff]
        %v588 = vld [vmem:[%s485 + $0xe0] sm:$0xff]
        %v589 = vld [vmem:[%s485 + $0xe8] sm:$0xff]
        %v590 = vld [vmem:[%s485 + $0xf0] sm:$0xff]
        %v591 = vld [vmem:[%s485 + $0xf8] sm:$0xff]
        %v592 = vld [vmem:[%s485 + $0x100] sm:$0xff]
        %v593 = vld [vmem:[%s485 + $0x108] sm:$0xff]
        %v594 = vld [vmem:[%s485 + $0x110] sm:$0xff]
        %v595 = vld [vmem:[%s485 + $0x118] sm:$0xff]
        %v596 = vld [vmem:[%s485 + $0x120] sm:$0xff]
        %v597 = vld [vmem:[%s485 + $0x128] sm:$0xff]
        %v598 = vld [vmem:[%s485 + $0x130] sm:$0xff]
        %v599 = vld [vmem:[%s485 + $0x138] sm:$0xff]
        %v600 = vld [vmem:[%s485 + $0x140] sm:$0xff]
        %v601 = vld [vmem:[%s485 + $0x148] sm:$0xff]
        %v602 = vld [vmem:[%s485 + $0x150] sm:$0xff]
        %v603 = vld [vmem:[%s485 + $0x158] sm:$0xff]
        %v604 = vld [vmem:[%s485 + $0x160] sm:$0xff]
        %v605 = vld [vmem:[%s485 + $0x168] sm:$0xff]
        %v606 = vld [vmem:[%s485 + $0x170] sm:$0xff]
        %v607 = vld [vmem:[%s485 + $0x178] sm:$0xff]
        %v608 = vld [vmem:[%s485 + $0x180] sm:$0xff]
        %v609 = vld [vmem:[%s485 + $0x188] sm:$0xff]
        %v610 = vld [vmem:[%s485 + $0x190] sm:$0xff]
        %v611 = vld [vmem:[%s485 + $0x198] sm:$0xff]
        %v612 = vld [vmem:[%s485 + $0x1a0] sm:$0xff]
        %v613 = vld [vmem:[%s485 + $0x1a8] sm:$0xff]
        %v614 = vld [vmem:[%s485 + $0x1b0] sm:$0xff]
        %v615 = vld [vmem:[%s485 + $0x1b8] sm:$0xff]
        %v616 = vld [vmem:[%s485 + $0x1c0] sm:$0xff]
        %v617 = vld [vmem:[%s485 + $0x1c8] sm:$0xff]
        %v618 = vld [vmem:[%s485 + $0x1d0] sm:$0xff]
        %v619 = vld [vmem:[%s485 + $0x1d8] sm:$0xff]
        %v620 = vld [vmem:[%s485 + $0x1e0] sm:$0xff]
        %v621 = vld [vmem:[%s485 + $0x1e8] sm:$0xff]
        %v622 = vld [vmem:[%s485 + $0x1f0] sm:$0xff]
        %v623 = vld [vmem:[%s485 + $0x1f8] sm:$0xff]
        %v626 = vunpack.c.l.b16 %v558
        %v627 = vunpack.c.h.b16 %v558
        %v628 = vunpack.c.l.b16 %v559
        %v629 = vunpack.c.h.b16 %v559
        %v630 = vpack.c.b16 %v626, %v626
        %v631 = vpack.c.b16 %v627, %v627
        %v632 = vpack.c.b16 %v628, %v628
        %v633 = vpack.c.b16 %v629, %v629
        %v702 = vunpack.c.l.b16 %v560
        %v703 = vunpack.c.h.b16 %v560
        %v704 = vunpack.c.l.b16 %v561
        %v705 = vunpack.c.h.b16 %v561
        %v706 = vunpack.c.l.b16 %v562
        %v707 = vunpack.c.h.b16 %v562
        %v708 = vunpack.c.l.b16 %v563
        %v709 = vunpack.c.h.b16 %v563
        %v710 = vunpack.c.l.b16 %v564
        %v711 = vunpack.c.h.b16 %v564
        %v712 = vunpack.c.l.b16 %v565
        %v713 = vunpack.c.h.b16 %v565
        %v714 = vunpack.c.l.b16 %v566
        %v715 = vunpack.c.h.b16 %v566
        %v716 = vunpack.c.l.b16 %v567
        %v717 = vunpack.c.h.b16 %v567
        %v718 = vunpack.c.l.b16 %v568
        %v719 = vunpack.c.h.b16 %v568
        %v720 = vunpack.c.l.b16 %v569
        %v721 = vunpack.c.h.b16 %v569
        %v722 = vunpack.c.l.b16 %v570
        %v723 = vunpack.c.h.b16 %v570
        %v724 = vunpack.c.l.b16 %v571
        %v725 = vunpack.c.h.b16 %v571
        %v726 = vunpack.c.l.b16 %v572
        %v727 = vunpack.c.h.b16 %v572
        %v728 = vunpack.c.l.b16 %v573
        %v729 = vunpack.c.h.b16 %v573
        %v730 = vunpack.c.l.b16 %v574
        %v731 = vunpack.c.h.b16 %v574
        %v732 = vunpack.c.l.b16 %v575
        %v733 = vunpack.c.h.b16 %v575
        %v734 = vunpack.c.l.b16 %v576
        %v735 = vunpack.c.h.b16 %v576
        %v736 = vunpack.c.l.b16 %v577
        %v737 = vunpack.c.h.b16 %v577
        %v738 = vunpack.c.l.b16 %v578
        %v739 = vunpack.c.h.b16 %v578
        %v740 = vunpack.c.l.b16 %v579
        %v741 = vunpack.c.h.b16 %v579
        %v742 = vunpack.c.l.b16 %v580
        %v743 = vunpack.c.h.b16 %v580
        %v744 = vunpack.c.l.b16 %v581
        %v745 = vunpack.c.h.b16 %v581
        %v746 = vunpack.c.l.b16 %v582
        %v747 = vunpack.c.h.b16 %v582
        %v748 = vunpack.c.l.b16 %v583
        %v749 = vunpack.c.h.b16 %v583
        %v750 = vunpack.c.l.b16 %v584
        %v751 = vunpack.c.h.b16 %v584
        %v752 = vunpack.c.l.b16 %v585
        %v753 = vunpack.c.h.b16 %v585
        %v754 = vunpack.c.l.b16 %v586
        %v755 = vunpack.c.h.b16 %v586
        %v756 = vunpack.c.l.b16 %v587
        %v757 = vunpack.c.h.b16 %v587
        %v758 = vunpack.c.l.b16 %v588
        %v759 = vunpack.c.h.b16 %v588
        %v760 = vunpack.c.l.b16 %v589
        %v761 = vunpack.c.h.b16 %v589
        %v762 = vunpack.c.l.b16 %v590
        %v763 = vunpack.c.h.b16 %v590
        %v764 = vunpack.c.l.b16 %v591
        %v765 = vunpack.c.h.b16 %v591
        %v766 = vunpack.c.l.b16 %v592
        %v767 = vunpack.c.h.b16 %v592
        %v768 = vunpack.c.l.b16 %v593
        %v769 = vunpack.c.h.b16 %v593
        %v770 = vunpack.c.l.b16 %v594
        %v771 = vunpack.c.h.b16 %v594
        %v772 = vunpack.c.l.b16 %v595
        %v773 = vunpack.c.h.b16 %v595
        %v774 = vunpack.c.l.b16 %v596
        %v775 = vunpack.c.h.b16 %v596
        %v776 = vunpack.c.l.b16 %v597
        %v777 = vunpack.c.h.b16 %v597
        %v778 = vunpack.c.l.b16 %v598
        %v779 = vunpack.c.h.b16 %v598
        %v780 = vunpack.c.l.b16 %v599
        %v781 = vunpack.c.h.b16 %v599
        %v782 = vunpack.c.l.b16 %v600
        %v783 = vunpack.c.h.b16 %v600
        %v784 = vunpack.c.l.b16 %v601
        %v785 = vunpack.c.h.b16 %v601
        %v786 = vunpack.c.l.b16 %v602
        %v787 = vunpack.c.h.b16 %v602
        %v788 = vunpack.c.l.b16 %v603
        %v789 = vunpack.c.h.b16 %v603
        %v790 = vunpack.c.l.b16 %v604
        %v791 = vunpack.c.h.b16 %v604
        %v792 = vunpack.c.l.b16 %v605
        %v793 = vunpack.c.h.b16 %v605
        %v794 = vunpack.c.l.b16 %v606
        %v795 = vunpack.c.h.b16 %v606
        %v796 = vunpack.c.l.b16 %v607
        %v797 = vunpack.c.h.b16 %v607
        %v798 = vunpack.c.l.b16 %v608
        %v799 = vunpack.c.h.b16 %v608
        %v800 = vunpack.c.l.b16 %v609
        %v801 = vunpack.c.h.b16 %v609
        %v802 = vunpack.c.l.b16 %v610
        %v803 = vunpack.c.h.b16 %v610
        %v804 = vunpack.c.l.b16 %v611
        %v805 = vunpack.c.h.b16 %v611
        %v806 = vunpack.c.l.b16 %v612
        %v807 = vunpack.c.h.b16 %v612
        %v808 = vunpack.c.l.b16 %v613
        %v809 = vunpack.c.h.b16 %v613
        %v810 = vunpack.c.l.b16 %v614
        %v811 = vunpack.c.h.b16 %v614
        %v812 = vunpack.c.l.b16 %v615
        %v813 = vunpack.c.h.b16 %v615
        %v814 = vunpack.c.l.b16 %v616
        %v815 = vunpack.c.h.b16 %v616
        %v816 = vunpack.c.l.b16 %v617
        %v817 = vunpack.c.h.b16 %v617
        %v818 = vunpack.c.l.b16 %v618
        %v819 = vunpack.c.h.b16 %v618
        %v820 = vunpack.c.l.b16 %v619
        %v821 = vunpack.c.h.b16 %v619
        %v822 = vunpack.c.l.b16 %v620
        %v823 = vunpack.c.h.b16 %v620
        %v824 = vunpack.c.l.b16 %v621
        %v825 = vunpack.c.h.b16 %v621
        %v826 = vunpack.c.l.b16 %v622
        %v827 = vunpack.c.h.b16 %v622
        %v828 = vunpack.c.l.b16 %v623
        %v829 = vunpack.c.h.b16 %v623
        %v830 = vpack.c.b16 %v704, %v702
        %v831 = vpack.c.b16 %v705, %v703
        %v832 = vpack.c.b16 %v708, %v706
        %v833 = vpack.c.b16 %v709, %v707
        %v834 = vpack.c.b16 %v712, %v710
        %v835 = vpack.c.b16 %v713, %v711
        %v836 = vpack.c.b16 %v716, %v714
        %v837 = vpack.c.b16 %v717, %v715
        %v838 = vpack.c.b16 %v720, %v718
        %v839 = vpack.c.b16 %v721, %v719
        %v840 = vpack.c.b16 %v724, %v722
        %v841 = vpack.c.b16 %v725, %v723
        %v842 = vpack.c.b16 %v728, %v726
        %v843 = vpack.c.b16 %v729, %v727
        %v844 = vpack.c.b16 %v732, %v730
        %v845 = vpack.c.b16 %v733, %v731
        %v846 = vpack.c.b16 %v736, %v734
        %v847 = vpack.c.b16 %v737, %v735
        %v848 = vpack.c.b16 %v740, %v738
        %v849 = vpack.c.b16 %v741, %v739
        %v850 = vpack.c.b16 %v744, %v742
        %v851 = vpack.c.b16 %v745, %v743
        %v852 = vpack.c.b16 %v748, %v746
        %v853 = vpack.c.b16 %v749, %v747
        %v854 = vpack.c.b16 %v752, %v750
        %v855 = vpack.c.b16 %v753, %v751
        %v856 = vpack.c.b16 %v756, %v754
        %v857 = vpack.c.b16 %v757, %v755
        %v858 = vpack.c.b16 %v760, %v758
        %v859 = vpack.c.b16 %v761, %v759
        %v860 = vpack.c.b16 %v764, %v762
        %v861 = vpack.c.b16 %v765, %v763
        %v862 = vpack.c.b16 %v768, %v766
        %v863 = vpack.c.b16 %v769, %v767
        %v864 = vpack.c.b16 %v772, %v770
        %v865 = vpack.c.b16 %v773, %v771
        %v866 = vpack.c.b16 %v776, %v774
        %v867 = vpack.c.b16 %v777, %v775
        %v868 = vpack.c.b16 %v780, %v778
        %v869 = vpack.c.b16 %v781, %v779
        %v870 = vpack.c.b16 %v784, %v782
        %v871 = vpack.c.b16 %v785, %v783
        %v872 = vpack.c.b16 %v788, %v786
        %v873 = vpack.c.b16 %v789, %v787
        %v874 = vpack.c.b16 %v792, %v790
        %v875 = vpack.c.b16 %v793, %v791
        %v876 = vpack.c.b16 %v796, %v794
        %v877 = vpack.c.b16 %v797, %v795
        %v878 = vpack.c.b16 %v800, %v798
        %v879 = vpack.c.b16 %v801, %v799
        %v880 = vpack.c.b16 %v804, %v802
        %v881 = vpack.c.b16 %v805, %v803
        %v882 = vpack.c.b16 %v808, %v806
        %v883 = vpack.c.b16 %v809, %v807
        %v884 = vpack.c.b16 %v812, %v810
        %v885 = vpack.c.b16 %v813, %v811
        %v886 = vpack.c.b16 %v816, %v814
        %v887 = vpack.c.b16 %v817, %v815
        %v888 = vpack.c.b16 %v820, %v818
        %v889 = vpack.c.b16 %v821, %v819
        %v890 = vpack.c.b16 %v824, %v822
        %v891 = vpack.c.b16 %v825, %v823
        %v892 = vpack.c.b16 %v828, %v826
        %v893 = vpack.c.b16 %v829, %v827
        %958 = vmatprep.subr.bf16.mxu0 %v831
        %959 = vmatpush1.bf16.msra.mxu0 %v830
        %960 = vmatprep.subr.bf16.mxu0 %v833
        %961 = vmatpush1.bf16.msra.mxu0 %v832
        %962 = vmatprep.subr.bf16.mxu0 %v835
        %963 = vmatpush1.bf16.msra.mxu0 %v834
        %964 = vmatprep.subr.bf16.mxu0 %v837
        %965 = vmatpush1.bf16.msra.mxu0 %v836
        %966 = vmatprep.subr.bf16.mxu0 %v839
        %967 = vmatpush1.bf16.msra.mxu0 %v838
        %968 = vmatprep.subr.bf16.mxu0 %v841
        %969 = vmatpush1.bf16.msra.mxu0 %v840
        %970 = vmatprep.subr.bf16.mxu0 %v843
        %971 = vmatpush1.bf16.msra.mxu0 %v842
        %972 = vmatprep.subr.bf16.mxu0 %v845
        %973 = vmatpush1.bf16.msra.mxu0 %v844
        %974 = vmatprep.subr.bf16.mxu0 %v847
        %975 = vmatpush1.bf16.msra.mxu0 %v846
        %976 = vmatprep.subr.bf16.mxu0 %v849
        %977 = vmatpush1.bf16.msra.mxu0 %v848
        %978 = vmatprep.subr.bf16.mxu0 %v851
        %979 = vmatpush1.bf16.msra.mxu0 %v850
        %980 = vmatprep.subr.bf16.mxu0 %v853
        %981 = vmatpush1.bf16.msra.mxu0 %v852
        %982 = vmatprep.subr.bf16.mxu0 %v855
        %983 = vmatpush1.bf16.msra.mxu0 %v854
        %984 = vmatprep.subr.bf16.mxu0 %v857
        %985 = vmatpush1.bf16.msra.mxu0 %v856
        %986 = vmatprep.subr.bf16.mxu0 %v859
        %987 = vmatpush1.bf16.msra.mxu0 %v858
        %988 = vmatprep.subr.bf16.mxu0 %v861
        %989 = vmatpush1.bf16.msra.mxu0 %v860
        %990 = vmatprep.mubr.bf16.mxu0 %v631
        %991 = vmatmul.mubr.bf16.gmra.mrb[0].mxu0 %v630
        %v992 = vpop.f32.mrb[0].mxu0
        %v993 = vadd.f32 0.0, %v992
        %v994 = vpop.f32.mrb[0].mxu0
        %v995 = vadd.f32 0.0, %v994
        %v996 = vpop.f32.mrb[0].mxu0
        %v997 = vpop.f32.mrb[0].mxu0
        %998 = vdwg.mxu0
        %999 = vmatprep.subr.bf16.mxu0 %v863
        %1000 = vmatpush1.bf16.msra.mxu0 %v862
        %1001 = vmatprep.subr.bf16.mxu0 %v865
        %1002 = vmatpush1.bf16.msra.mxu0 %v864
        %1003 = vmatprep.subr.bf16.mxu0 %v867
        %1004 = vmatpush1.bf16.msra.mxu0 %v866
        %1005 = vmatprep.subr.bf16.mxu0 %v869
        %1006 = vmatpush1.bf16.msra.mxu0 %v868
        %1007 = vmatprep.subr.bf16.mxu0 %v871
        %1008 = vmatpush1.bf16.msra.mxu0 %v870
        %1009 = vmatprep.subr.bf16.mxu0 %v873
        %1010 = vmatpush1.bf16.msra.mxu0 %v872
        %1011 = vmatprep.subr.bf16.mxu0 %v875
        %1012 = vmatpush1.bf16.msra.mxu0 %v874
        %1013 = vmatprep.subr.bf16.mxu0 %v877
        %1014 = vmatpush1.bf16.msra.mxu0 %v876
        %1015 = vmatprep.subr.bf16.mxu0 %v879
        %1016 = vmatpush1.bf16.msra.mxu0 %v878
        %1017 = vmatprep.subr.bf16.mxu0 %v881
        %1018 = vmatpush1.bf16.msra.mxu0 %v880
        %1019 = vmatprep.subr.bf16.mxu0 %v883
        %1020 = vmatpush1.bf16.msra.mxu0 %v882
        %1021 = vmatprep.subr.bf16.mxu0 %v885
        %1022 = vmatpush1.bf16.msra.mxu0 %v884
        %1023 = vmatprep.subr.bf16.mxu0 %v887
        %1024 = vmatpush1.bf16.msra.mxu0 %v886
        %1025 = vmatprep.subr.bf16.mxu0 %v889
        %1026 = vmatpush1.bf16.msra.mxu0 %v888
        %1027 = vmatprep.subr.bf16.mxu0 %v891
        %1028 = vmatpush1.bf16.msra.mxu0 %v890
        %1029 = vmatprep.subr.bf16.mxu0 %v893
        %1030 = vmatpush1.bf16.msra.mxu0 %v892
        %1031 = vmatprep.mubr.bf16.mxu0 %v633
        %1032 = vmatmul.mubr.bf16.gmra.mrb[0].mxu0 %v632
        %v1033 = vpop.f32.mrb[0].mxu0
        %v1034 = vadd.f32 %v993, %v1033
        %v1035 = vpop.f32.mrb[0].mxu0
        %v1036 = vadd.f32 %v995, %v1035
        %v1037 = vpop.f32.mrb[0].mxu0
        %v1038 = vpop.f32.mrb[0].mxu0
        %1039 = vdwg.mxu0
        %v1040 = vadd.f32 %v556, %v1034
        %v1041 = vadd.f32 %v557, %v1036
        %1042 = vst [vmem:[#allocation2] sm:$0xff] %v1040
        %1043 = vst [vmem:[#allocation2 + $0x8] sm:$0xff] %v1041
        %p1044 = scmp.eq.s32.totalorder %s21, 25
        // Predicated region
        $region75: #{entry_stem_fwd.59} parent=65 // pred_check
          %p1045 = pneg %p1044
        $region76: #{entry_stem_fwd.59} parent=65 // pred_check_branch
          %1047 = sbr.rel (%p1045) target = $region78
        $region77: #{entry_stem_fwd.59} parent=65 // pred_region
          %v1048 = vld [vmem:[#allocation2] sm:$0xff]
          %v1049 = vld [vmem:[#allocation2 + $0x8] sm:$0xff]
          %v1050 = vld [vmem:[%s538] sm:$0x3]
          %v1052 = vlaneseq
          %v1053 = vshrl.u32 %v1052, 7
          %v1054 = vsub.s32 0, %v1053
          %v1055 = vrot.slane %v1050, %v1054
          %v1056 = vlaneseq
          %v1057 = vshrl.u32 %v1056, 7
          %v1058 = vsub.s32 1, %v1057
          %v1059 = vrot.slane %v1050, %v1058
          %v1062 = vadd.f32 %v1048, %v1055
          %v1063 = vadd.f32 %v1049, %v1059
          %1064 = vst [vmem:[%s548] sm:$0xff] %v1062
          %1065 = vst [vmem:[%s548 + $0x8] sm:$0xff] %v1063
        $region78: #{entry_stem_fwd.59} parent=65 // pred_fallthru
          _
        %s1066 = smul.u32 2, %s20
        %p1067 = scmp.lt.s32.totalorder %s19, 0
        %s1068 = scalar_select %p1067, %s19, 0
        %p1069 = scmp.lt.s32.totalorder %s1066, 5
        %s1070 = scalar_select %p1069, %s1066, 5
        %s1071 = smul.addr %s1068, 6
        %s1072 = sadd.s32 %s1070, %s1071
        %s1073 = smul.addr %s1072, 8
        %s1074 = scalar_lea.vmem %s3, %s1073
        // Predicated region
        $region79: #{entry_stem_fwd.59} parent=65 // pred_check
          %p1075 = pneg %p135
        $region80: #{entry_stem_fwd.59} parent=65 // pred_check_branch
          %1077 = sbr.rel (%p1075) target = $region82
        $region81: #{entry_stem_fwd.59} parent=65 // pred_region
          %s1078 = smul.u32 2, %s20
        $region82: #{entry_stem_fwd.59} parent=65 // pred_fallthru
          _
      $region66: #{entry_stem_fwd.59} parent=5 // pred_fallthru
        _
      %p1079 = scmp.le.s32.totalorder 2, %s9
      // Predicated region
      $region83: #{entry_stem_fwd.59} parent=5 // pred_check
        %p1080 = pneg %p1079
      $region84: #{entry_stem_fwd.59} parent=5 // pred_check_branch
        %1082 = sbr.rel (%p1080) target = $region86
      $region85: #{entry_stem_fwd.59} parent=5 // pred_region
        %s1083 = ssub.s32 %s9, 2
        // Predicated region
        $region87: #{entry_stem_fwd.59} parent=85 // pred_check
          %p1084 = pneg %p141
        $region88: #{entry_stem_fwd.59} parent=85 // pred_check_branch
          %1086 = sbr.rel (%p1084) target = $region90
        $region89: #{entry_stem_fwd.59} parent=85 // pred_region
          %s1087 = smul.u32 2, %s23
          %p1088 = scmp.lt.s32.totalorder %s22, 0
          %s1089 = scalar_select %p1088, %s22, 0
          %p1090 = scmp.lt.s32.totalorder %s1087, 5
          %s1091 = scalar_select %p1090, %s1087, 5
          %s1092 = smul.addr %s1089, 6
          %s1093 = sadd.s32 %s1091, %s1092
          %s1094 = smul.addr %s1093, 8
          %s1095 = scalar_lea.vmem %s3, %s1094
        $region90: #{entry_stem_fwd.59} parent=85 // pred_fallthru
          _
      $region86: #{entry_stem_fwd.59} parent=5 // pred_fallthru
        _
    $region6: #{entry_stem_fwd.59} parent=1 // loop_footer
      %s13 = sadd.s32 1, %s9
    $region7: #{entry_stem_fwd.59} parent=1 // loop_footer_branch
      %8 = sbr.rel target = $region3
    $region8: #{entry_stem_fwd.59} parent=1 // loop_exit
      _

</llo_original>
